<compile_context>
chip_gen: v7x
topology: tpu7x:2x2x1
jax: 0.10.0
libtpu: 0.0.40
codegen_flags: <defaults>
</compile_context>

<pallas_src>
import functools

import numpy as np
import jax
import jax.numpy as jnp
from jax.experimental import pallas as pl
from jax.experimental.pallas import tpu as pltpu


def _round_up(x, m):
    return ((x + m - 1) // m) * m


# ----------------------------- Pallas kernel --------------------------------

def _fourier_attn_kernel(r_ref, q_ref, kt_ref, vaug_ref, o_ref, acc_ref,
                         *, num_heads, head_dim, m_valid):
    """Grid point = (batch b, q-row tile n, key tile m).

    r_ref    : SMEM (1,) f32            paramR (scalar-prefetched)
    q_ref    : VMEM (n_tile, C)         query rows   (c = h*hd + d, head-major)
    kt_ref   : VMEM (C, m_tile)         selected keys, transposed
    vaug_ref : VMEM (m_tile, H*(hd+1))  bf16 values with a ones column per head
    o_ref    : VMEM (n_tile, C)         output rows (lane dense)
    acc_ref  : VMEM (n_tile, H*(hd+1))  running [attn @ v_h | sum_j attn] per head
    """
    m_idx = pl.program_id(2)
    n_m = pl.num_programs(2)
    hd1 = head_dim + 1

    @pl.when(m_idx == 0)
    def _init():
        acc_ref[...] = jnp.zeros_like(acc_ref)

    R = r_ref[0]
    n_tile = q_ref.shape[0]
    m_tile = kt_ref.shape[1]

    # Fold R into the tiles once (cheap: O(C*(N+M)) multiplies per tile).
    qs = q_ref[...] * R                       # (n_tile, C)
    ks = kt_ref[...] * R                      # (C, m_tile)
    vaug = vaug_ref[...]                      # (m_tile, H*(hd+1)) bf16

    # Key-padding mask, only when M is not a multiple of m_tile (static check;
    # m_valid is a trace-time constant, so no SMEM length scalar is needed).
    mask = None
    if m_valid % m_tile != 0:
        col = (jax.lax.broadcasted_iota(jnp.int32, (n_tile, m_tile), 1)
               + m_idx * m_tile)
        mask = col < m_valid

    head_outs = []
    for h in range(num_heads):                # static loops: H, hd are small
        c0 = h * head_dim
        prod = None
        for d in range(head_dim):
            c = c0 + d
            x = qs[:, c:c + 1] - ks[c:c + 1, :]          # (n_tile, m_tile)
            x2 = x * x                                   # reused for the guard
            s = jnp.sin(x)                               # EUP (direct sin)
            r0 = pl.reciprocal(x, approx=True)           # EUP
            r1 = r0 * (2.0 - x * r0)                     # one Newton step
            # |x| < 1e-3: Taylor form sinc ~= 1 - x^2/6 (avoids 0/0 at x == 0;
            # NaN in the unselected branch does not propagate through where).
            sinc_d = jnp.where(x2 < 1e-6, 1.0 - x2 * (1.0 / 6.0), s * r1)
            prod = sinc_d if prod is None else prod * sinc_d
        a2 = prod * prod
        attn = a2 * a2                                   # attn ** 4, in [0, 1]
        if mask is not None:
            attn = jnp.where(mask, attn, 0.0)            # zero padded key columns
        # One MXU matmul per head yields both attn @ v_h and the row sum
        # (last column of the augmented V slice is ones).
        head_outs.append(jnp.dot(attn.astype(jnp.bfloat16),
                                 vaug[:, h * hd1:(h + 1) * hd1],
                                 preferred_element_type=jnp.float32))

    # Single full-block, lane-dense scratch update per m step.
    acc_ref[...] += jnp.concatenate(head_outs, axis=1)

    # attn_drop has p = 0.0 -> identity.
    @pl.when(m_idx == n_m - 1)
    def _finalize():
        acc = acc_ref[...]                               # (n_tile, H*(hd+1))
        parts = []
        for h in range(num_heads):
            base = h * hd1
            vals = acc[:, base:base + head_dim]          # attn @ v_h
            ssum = acc[:, base + head_dim:base + hd1]    # sum_j attn
            parts.append(vals / (ssum + 1e-6))           # exact div: runs once
        o_ref[...] = jnp.concatenate(parts, axis=1).astype(o_ref.dtype)


def fourier_attention_block(q, k, v, sel, paramR, num_heads):
    """q/k/v: (B, N, C) head-major channels; sel: (M,) selected key indices;
    paramR: (1,).  Returns (B, N, C) per-head row-normalized Fourier attention."""
    B, N, C = q.shape
    M = int(sel.shape[0])
    H = num_heads
    assert C % H == 0
    hd = C // H
    hd1 = hd + 1
    Caug = H * hd1
    f32 = jnp.float32

    # Tile sizes: (8,128)-aligned; m_tile capped at 256 (v5e single store slot,
    # v7x 64 MiB VMEM).  Ensure >= 2 parallel grid steps for the v7x 2-TC case.
    n_tile = min(_round_up(N, 8), 256)
    if B * ((N + n_tile - 1) // n_tile) < 2 and N > 8:
        n_tile = _round_up((N + 1) // 2, 8)
    m_tile = min(_round_up(M, 128), 256)
    n_pad = _round_up(N, n_tile)
    m_pad = _round_up(M, m_tile)

    qp = jnp.pad(q.astype(f32), ((0, 0), (0, n_pad - N), (0, 0)))

    # Pad via the index vector so the M-pad is fused into the gather; padded key
    # columns are masked to zero inside the kernel.
    sel_pad = jnp.pad(sel.astype(jnp.int32), (0, m_pad - M))
    ktp = jnp.transpose(jnp.take(k.astype(f32), sel_pad, axis=1), (0, 2, 1))  # (B,C,Mp)
    v_sel = jnp.take(v, sel_pad, axis=1).astype(jnp.bfloat16)                 # (B,Mp,C)
    # Append a ones column per head: attn @ [v_h | 1] -> values and row sum.
    v_aug = jnp.pad(v_sel.reshape(B, m_pad, H, hd),
                    ((0, 0), (0, 0), (0, 0), (0, 1)),
                    constant_values=1.0).reshape(B, m_pad, Caug)

    r = paramR.astype(f32).reshape((1,))
    grid = (B, n_pad // n_tile, m_pad // m_tile)

    kernel = functools.partial(_fourier_attn_kernel,
                               num_heads=H, head_dim=hd, m_valid=M)

    # Advisory cost hint so XLA schedules the surrounding matmuls around this call.
    elem = B * n_pad * m_pad
    cost = pl.CostEstimate(
        flops=int(elem * (10 * C + 2 * Caug)),
        transcendentals=int(2 * elem * C),
        bytes_accessed=int(4 * grid[2] * qp.size + 4 * grid[1] * ktp.size
                           + 2 * grid[1] * v_aug.size + 4 * B * n_pad * C),
    )

    out = pl.pallas_call(
        kernel,
        out_shape=jax.ShapeDtypeStruct((B, n_pad, C), f32),
        grid_spec=pltpu.PrefetchScalarGridSpec(
            num_scalar_prefetch=1,          # paramR -> SMEM
            grid=grid,
            in_specs=[
                pl.BlockSpec((None, n_tile, C), lambda b, n, m, p: (b, n, 0)),
                pl.BlockSpec((None, C, m_tile), lambda b, n, m, p: (b, 0, m)),
                pl.BlockSpec((None, m_tile, Caug), lambda b, n, m, p: (b, m, 0)),
            ],
            out_specs=pl.BlockSpec((None, n_tile, C), lambda b, n, m, p: (b, n, 0)),
            scratch_shapes=[pltpu.VMEM((n_tile, Caug), f32)],
        ),
        compiler_params=pltpu.CompilerParams(
            dimension_semantics=("parallel", "parallel", "arbitrary"),
            vmem_limit_bytes=48 * 1024 * 1024),   # headroom under v7x 64 MiB
        cost_estimate=cost,
    )(r, qp, ktp, v_aug)

    return out[:, :N, :]


# ------------------------------ glue / module -------------------------------

def divide_batch(N, K, outlier, seed=0):
    """Host-side random block sampling (mirrors self.divide_batch / np.random)."""
    # TODO(synk): host numpy sampling keeps the original module's RNG semantics but
    # makes the end-to-end function non-jittable; switch to jax.random if needed.
    rng = np.random.RandomState(seed)
    size = int(N * (1 - outlier))
    all_indices = np.arange(N)
    density = np.ones(N) / N
    idx = []
    for _ in range(K):
        choice = rng.choice(all_indices, size=size, replace=False, p=density)
        idx.append(np.sort(choice))
    return np.stack(idx, axis=0)                          # (K, M) int


def init_params(key, dim):
    k1, k2 = jax.random.split(key, 2)
    qkv_w = jax.random.normal(k1, (3 * dim, dim), jnp.float32) / np.sqrt(dim)
    proj_w = jax.random.normal(k2, (dim, dim), jnp.float32) / np.sqrt(dim)
    proj_b = jnp.zeros((dim,), jnp.float32)
    paramR = jnp.ones((1,), jnp.float32)                  # self.paramR = 1.0 * ones(1)
    return qkv_w, proj_w, proj_b, paramR


def mom_fourier_attention(x, qkv_w, proj_w, proj_b, paramR,
                          num_heads=4, outlier=0.05, seed=0):
    B, N, C = x.shape
    H = num_heads
    hd = C // H
    scale = hd ** -0.5

    # qkv projection (qkv_bias=False).  Each third keeps the c = h*hd + d channel
    # layout, so heads are contiguous column slices (no transposes materialized).
    qkv = x @ qkv_w.T                                     # (B, N, 3C)
    q = qkv[:, :, 0 * C:1 * C]
    k = qkv[:, :, 1 * C:2 * C]
    v = qkv[:, :, 2 * C:3 * C]

    # K = 'auto'  ->  int(2 * N * outlier) + 1
    K_blocks = int(2 * N * outlier) + 1
    indices = divide_batch(N, K_blocks, outlier, seed)    # (K, M)
    M = indices.shape[1]
    idx = jnp.asarray(indices, dtype=jnp.int32)

    # Median-of-means block selection (torch.no_grad section), exact algebraic
    # form instead of the (B,H,K,N,M,hd) distance tensor:
    #   sum_{b,h,i,j in blk} ||q_i - k_j||^2
    #     = M * sum||q||^2 + N * sum_{j in blk} ||k_j||^2
    #       - 2 * sum_b <sum_i q_bi, sum_{j in blk} k_bj>
    sum_q_norm2 = jnp.sum(q * q)
    q_sum = jnp.sum(q, axis=1)                            # (B, C)
    k_norm2_tok = jnp.sum(k * k, axis=(0, 2))             # (N,)
    k_dot_qsum_tok = jnp.einsum('bc,bnc->n', q_sum, k)    # (N,)
    likelihood = -scale * (M * sum_q_norm2
                           + N * jnp.sum(k_norm2_tok[idx], axis=1)
                           - 2.0 * jnp.sum(k_dot_qsum_tok[idx], axis=1))   # (K,)
    b_idx = jnp.argsort(likelihood)[K_blocks // 2]
    sel = idx[b_idx]                                      # (M,)

    # Fourier-kernel attention + **4 + row normalization + attn @ v  (Pallas).
    out = fourier_attention_block(q, k, v, sel, paramR, num_heads=H)

    out = out @ proj_w.T + proj_b                 # proj (attn_drop/proj_drop p=0)
    return out


if __name__ == "__main__":
    B, N, C, H = 2, 16, 32, 4
    key = jax.random.PRNGKey(0)
    kx, kp = jax.random.split(key)
    x = jax.random.normal(kx, (B, N, C), jnp.float32)
    qkv_w, proj_w, proj_b, paramR = init_params(kp, C)

    out = mom_fourier_attention(x, qkv_w, proj_w, proj_b, paramR,
                                num_heads=H, outlier=0.05, seed=0)
    out = jax.block_until_ready(out)
    assert out.shape == (B, N, C)
    assert bool(jnp.all(jnp.isfinite(out)))
    print("KERNEL_OK")
</pallas_src>

<mosaic_0001>
module attributes {stable_mosaic.version = 11 : i64} {
  func.func @_fourier_attn_kernel(%arg0: i32, %arg1: i32, %arg2: i32, %arg3: memref<1xf32, #tpu.memory_space<smem>>, %arg4: memref<1x16x32xf32, #tpu.memory_space<vmem>>, %arg5: memref<1x32x128xf32, #tpu.memory_space<vmem>>, %arg6: memref<1x128x36xbf16, #tpu.memory_space<vmem>>, %arg7: memref<1x16x32xf32, #tpu.memory_space<vmem>>, %arg8: memref<16x36xf32, #tpu.memory_space<vmem>>) attributes {dimension_semantics = [#tpu.dimension_semantics<parallel>, #tpu.dimension_semantics<parallel>, #tpu.dimension_semantics<arbitrary>], iteration_bounds = array<i64: 2, 1, 1>, scalar_prefetch = 1 : i64, scratch_operands = 1 : i64, tpu.core_type = #tpu.core_type<tc>, window_params = [{transform_indices = @transform_0, window_bounds = array<i64: 1, 16, 32>}, {transform_indices = @transform_1, window_bounds = array<i64: 1, 32, 128>}, {transform_indices = @transform_2, window_bounds = array<i64: 1, 128, 36>}, {transform_indices = @transform_3, window_bounds = array<i64: 1, 16, 32>}]} {
    %c0_i32 = arith.constant 0 : i32
    %0 = arith.cmpi eq, %arg2, %c0_i32 : i32
    %1 = arith.extui %0 : i1 to i32
    %c0_i32_0 = arith.constant 0 : i32
    %2 = arith.cmpi ne, %1, %c0_i32_0 : i32
    scf.if %2 {
      %cst_151 = arith.constant 0.000000e+00 : f32
      %723 = vector.broadcast %cst_151 : f32 to vector<16x36xf32>
      %c0_152 = arith.constant 0 : index
      %c0_153 = arith.constant 0 : index
      %724 = vector.load %arg8[%c0_152, %c0_153] : memref<16x36xf32, #tpu.memory_space<vmem>>, vector<16x36xf32>
      tpu.vector_store %arg8[%c0_152, %c0_153], %723 {strides = array<i32>} : memref<16x36xf32, #tpu.memory_space<vmem>>, vector<16x36xf32>,
    } else {
    }
    %c0 = arith.constant 0 : index
    %3 = memref.load %arg3[%c0] : memref<1xf32, #tpu.memory_space<smem>>
    %c0_1 = arith.constant 0 : index
    %c0_2 = arith.constant 0 : index
    %c0_3 = arith.constant 0 : index
    %4 = vector.load %arg4[%c0_1, %c0_2, %c0_3] : memref<1x16x32xf32, #tpu.memory_space<vmem>>, vector<1x16x32xf32>
    %5 = vector.shape_cast %4 : vector<1x16x32xf32> to vector<16x32xf32>
    %6 = vector.broadcast %3 : f32 to vector<16x32xf32>
    %7 = arith.mulf %5, %6 : vector<16x32xf32>
    %c0_4 = arith.constant 0 : index
    %c0_5 = arith.constant 0 : index
    %c0_6 = arith.constant 0 : index
    %8 = vector.load %arg5[%c0_4, %c0_5, %c0_6] : memref<1x32x128xf32, #tpu.memory_space<vmem>>, vector<1x32x128xf32>
    %9 = vector.shape_cast %8 : vector<1x32x128xf32> to vector<32x128xf32>
    %10 = vector.broadcast %3 : f32 to vector<32x128xf32>
    %11 = arith.mulf %9, %10 : vector<32x128xf32>
    %c0_7 = arith.constant 0 : index
    %c0_8 = arith.constant 0 : index
    %c0_9 = arith.constant 0 : index
    %12 = vector.load %arg6[%c0_7, %c0_8, %c0_9] : memref<1x128x36xbf16, #tpu.memory_space<vmem>>, vector<1x128x36xbf16>
    %13 = vector.shape_cast %12 : vector<1x128x36xbf16> to vector<128x36xbf16>
    %14 = tpu.iota {dimensions = array<i32: 1>} : vector<16x128xi32>
    %c128_i32 = arith.constant 128 : i32
    %15 = arith.muli %arg2, %c128_i32 : i32
    %16 = vector.broadcast %15 : i32 to vector<16x128xi32>
    %17 = arith.addi %14, %16 : vector<16x128xi32>
    %c15_i32 = arith.constant 15 : i32
    %18 = vector.broadcast %c15_i32 : i32 to vector<16x128xi32>
    %19 = arith.cmpi slt, %17, %18 : vector<16x128xi32>
    %20 = vector.extract_strided_slice %7 {offsets = [0, 0], sizes = [16, 1], strides = [1, 1]} : vector<16x32xf32> to vector<16x1xf32>
    %21 = vector.extract_strided_slice %11 {offsets = [0, 0], sizes = [1, 128], strides = [1, 1]} : vector<32x128xf32> to vector<1x128xf32>
    %22 = vector.broadcast %20 : vector<16x1xf32> to vector<16x128xf32>
    %23 = vector.broadcast %21 : vector<1x128xf32> to vector<16x128xf32>
    %24 = arith.subf %22, %23 : vector<16x128xf32>
    %25 = arith.mulf %24, %24 : vector<16x128xf32>
    %26 = math.sin %24 : vector<16x128xf32>
    %27 = tpu.reciprocal %24 {approx = true} : vector<16x128xf32> -> vector<16x128xf32>
    %28 = arith.mulf %24, %27 : vector<16x128xf32>
    %cst = arith.constant 2.000000e+00 : f32
    %29 = vector.broadcast %cst : f32 to vector<16x128xf32>
    %30 = arith.subf %29, %28 : vector<16x128xf32>
    %31 = arith.mulf %27, %30 : vector<16x128xf32>
    %cst_10 = arith.constant 9.99999997E-7 : f32
    %32 = vector.broadcast %cst_10 : f32 to vector<16x128xf32>
    %33 = arith.cmpf olt, %25, %32 : vector<16x128xf32>
    %cst_11 = arith.constant 0.166666672 : f32
    %34 = vector.broadcast %cst_11 : f32 to vector<16x128xf32>
    %35 = arith.mulf %25, %34 : vector<16x128xf32>
    %cst_12 = arith.constant 1.000000e+00 : f32
    %36 = vector.broadcast %cst_12 : f32 to vector<16x128xf32>
    %37 = arith.subf %36, %35 : vector<16x128xf32>
    %38 = arith.mulf %26, %31 : vector<16x128xf32>
    %39 = arith.select %33, %37, %38 : vector<16x128xi1>, vector<16x128xf32>
    %40 = vector.extract_strided_slice %7 {offsets = [0, 1], sizes = [16, 1], strides = [1, 1]} : vector<16x32xf32> to vector<16x1xf32>
    %41 = vector.extract_strided_slice %11 {offsets = [1, 0], sizes = [1, 128], strides = [1, 1]} : vector<32x128xf32> to vector<1x128xf32>
    %42 = vector.broadcast %40 : vector<16x1xf32> to vector<16x128xf32>
    %43 = vector.broadcast %41 : vector<1x128xf32> to vector<16x128xf32>
    %44 = arith.subf %42, %43 : vector<16x128xf32>
    %45 = arith.mulf %44, %44 : vector<16x128xf32>
    %46 = math.sin %44 : vector<16x128xf32>
    %47 = tpu.reciprocal %44 {approx = true} : vector<16x128xf32> -> vector<16x128xf32>
    %48 = arith.mulf %44, %47 : vector<16x128xf32>
    %cst_13 = arith.constant 2.000000e+00 : f32
    %49 = vector.broadcast %cst_13 : f32 to vector<16x128xf32>
    %50 = arith.subf %49, %48 : vector<16x128xf32>
    %51 = arith.mulf %47, %50 : vector<16x128xf32>
    %cst_14 = arith.constant 9.99999997E-7 : f32
    %52 = vector.broadcast %cst_14 : f32 to vector<16x128xf32>
    %53 = arith.cmpf olt, %45, %52 : vector<16x128xf32>
    %cst_15 = arith.constant 0.166666672 : f32
    %54 = vector.broadcast %cst_15 : f32 to vector<16x128xf32>
    %55 = arith.mulf %45, %54 : vector<16x128xf32>
    %cst_16 = arith.constant 1.000000e+00 : f32
    %56 = vector.broadcast %cst_16 : f32 to vector<16x128xf32>
    %57 = arith.subf %56, %55 : vector<16x128xf32>
    %58 = arith.mulf %46, %51 : vector<16x128xf32>
    %59 = arith.select %53, %57, %58 : vector<16x128xi1>, vector<16x128xf32>
    %60 = arith.mulf %39, %59 : vector<16x128xf32>
    %61 = vector.extract_strided_slice %7 {offsets = [0, 2], sizes = [16, 1], strides = [1, 1]} : vector<16x32xf32> to vector<16x1xf32>
    %62 = vector.extract_strided_slice %11 {offsets = [2, 0], sizes = [1, 128], strides = [1, 1]} : vector<32x128xf32> to vector<1x128xf32>
    %63 = vector.broadcast %61 : vector<16x1xf32> to vector<16x128xf32>
    %64 = vector.broadcast %62 : vector<1x128xf32> to vector<16x128xf32>
    %65 = arith.subf %63, %64 : vector<16x128xf32>
    %66 = arith.mulf %65, %65 : vector<16x128xf32>
    %67 = math.sin %65 : vector<16x128xf32>
    %68 = tpu.reciprocal %65 {approx = true} : vector<16x128xf32> -> vector<16x128xf32>
    %69 = arith.mulf %65, %68 : vector<16x128xf32>
    %cst_17 = arith.constant 2.000000e+00 : f32
    %70 = vector.broadcast %cst_17 : f32 to vector<16x128xf32>
    %71 = arith.subf %70, %69 : vector<16x128xf32>
    %72 = arith.mulf %68, %71 : vector<16x128xf32>
    %cst_18 = arith.constant 9.99999997E-7 : f32
    %73 = vector.broadcast %cst_18 : f32 to vector<16x128xf32>
    %74 = arith.cmpf olt, %66, %73 : vector<16x128xf32>
    %cst_19 = arith.constant 0.166666672 : f32
    %75 = vector.broadcast %cst_19 : f32 to vector<16x128xf32>
    %76 = arith.mulf %66, %75 : vector<16x128xf32>
    %cst_20 = arith.constant 1.000000e+00 : f32
    %77 = vector.broadcast %cst_20 : f32 to vector<16x128xf32>
    %78 = arith.subf %77, %76 : vector<16x128xf32>
    %79 = arith.mulf %67, %72 : vector<16x128xf32>
    %80 = arith.select %74, %78, %79 : vector<16x128xi1>, vector<16x128xf32>
    %81 = arith.mulf %60, %80 : vector<16x128xf32>
    %82 = vector.extract_strided_slice %7 {offsets = [0, 3], sizes = [16, 1], strides = [1, 1]} : vector<16x32xf32> to vector<16x1xf32>
    %83 = vector.extract_strided_slice %11 {offsets = [3, 0], sizes = [1, 128], strides = [1, 1]} : vector<32x128xf32> to vector<1x128xf32>
    %84 = vector.broadcast %82 : vector<16x1xf32> to vector<16x128xf32>
    %85 = vector.broadcast %83 : vector<1x128xf32> to vector<16x128xf32>
    %86 = arith.subf %84, %85 : vector<16x128xf32>
    %87 = arith.mulf %86, %86 : vector<16x128xf32>
    %88 = math.sin %86 : vector<16x128xf32>
    %89 = tpu.reciprocal %86 {approx = true} : vector<16x128xf32> -> vector<16x128xf32>
    %90 = arith.mulf %86, %89 : vector<16x128xf32>
    %cst_21 = arith.constant 2.000000e+00 : f32
    %91 = vector.broadcast %cst_21 : f32 to vector<16x128xf32>
    %92 = arith.subf %91, %90 : vector<16x128xf32>
    %93 = arith.mulf %89, %92 : vector<16x128xf32>
    %cst_22 = arith.constant 9.99999997E-7 : f32
    %94 = vector.broadcast %cst_22 : f32 to vector<16x128xf32>
    %95 = arith.cmpf olt, %87, %94 : vector<16x128xf32>
    %cst_23 = arith.constant 0.166666672 : f32
    %96 = vector.broadcast %cst_23 : f32 to vector<16x128xf32>
    %97 = arith.mulf %87, %96 : vector<16x128xf32>
    %cst_24 = arith.constant 1.000000e+00 : f32
    %98 = vector.broadcast %cst_24 : f32 to vector<16x128xf32>
    %99 = arith.subf %98, %97 : vector<16x128xf32>
    %100 = arith.mulf %88, %93 : vector<16x128xf32>
    %101 = arith.select %95, %99, %100 : vector<16x128xi1>, vector<16x128xf32>
    %102 = arith.mulf %81, %101 : vector<16x128xf32>
    %103 = vector.extract_strided_slice %7 {offsets = [0, 4], sizes = [16, 1], strides = [1, 1]} : vector<16x32xf32> to vector<16x1xf32>
    %104 = vector.extract_strided_slice %11 {offsets = [4, 0], sizes = [1, 128], strides = [1, 1]} : vector<32x128xf32> to vector<1x128xf32>
    %105 = vector.broadcast %103 : vector<16x1xf32> to vector<16x128xf32>
    %106 = vector.broadcast %104 : vector<1x128xf32> to vector<16x128xf32>
    %107 = arith.subf %105, %106 : vector<16x128xf32>
    %108 = arith.mulf %107, %107 : vector<16x128xf32>
    %109 = math.sin %107 : vector<16x128xf32>
    %110 = tpu.reciprocal %107 {approx = true} : vector<16x128xf32> -> vector<16x128xf32>
    %111 = arith.mulf %107, %110 : vector<16x128xf32>
    %cst_25 = arith.constant 2.000000e+00 : f32
    %112 = vector.broadcast %cst_25 : f32 to vector<16x128xf32>
    %113 = arith.subf %112, %111 : vector<16x128xf32>
    %114 = arith.mulf %110, %113 : vector<16x128xf32>
    %cst_26 = arith.constant 9.99999997E-7 : f32
    %115 = vector.broadcast %cst_26 : f32 to vector<16x128xf32>
    %116 = arith.cmpf olt, %108, %115 : vector<16x128xf32>
    %cst_27 = arith.constant 0.166666672 : f32
    %117 = vector.broadcast %cst_27 : f32 to vector<16x128xf32>
    %118 = arith.mulf %108, %117 : vector<16x128xf32>
    %cst_28 = arith.constant 1.000000e+00 : f32
    %119 = vector.broadcast %cst_28 : f32 to vector<16x128xf32>
    %120 = arith.subf %119, %118 : vector<16x128xf32>
    %121 = arith.mulf %109, %114 : vector<16x128xf32>
    %122 = arith.select %116, %120, %121 : vector<16x128xi1>, vector<16x128xf32>
    %123 = arith.mulf %102, %122 : vector<16x128xf32>
    %124 = vector.extract_strided_slice %7 {offsets = [0, 5], sizes = [16, 1], strides = [1, 1]} : vector<16x32xf32> to vector<16x1xf32>
    %125 = vector.extract_strided_slice %11 {offsets = [5, 0], sizes = [1, 128], strides = [1, 1]} : vector<32x128xf32> to vector<1x128xf32>
    %126 = vector.broadcast %124 : vector<16x1xf32> to vector<16x128xf32>
    %127 = vector.broadcast %125 : vector<1x128xf32> to vector<16x128xf32>
    %128 = arith.subf %126, %127 : vector<16x128xf32>
    %129 = arith.mulf %128, %128 : vector<16x128xf32>
    %130 = math.sin %128 : vector<16x128xf32>
    %131 = tpu.reciprocal %128 {approx = true} : vector<16x128xf32> -> vector<16x128xf32>
    %132 = arith.mulf %128, %131 : vector<16x128xf32>
    %cst_29 = arith.constant 2.000000e+00 : f32
    %133 = vector.broadcast %cst_29 : f32 to vector<16x128xf32>
    %134 = arith.subf %133, %132 : vector<16x128xf32>
    %135 = arith.mulf %131, %134 : vector<16x128xf32>
    %cst_30 = arith.constant 9.99999997E-7 : f32
    %136 = vector.broadcast %cst_30 : f32 to vector<16x128xf32>
    %137 = arith.cmpf olt, %129, %136 : vector<16x128xf32>
    %cst_31 = arith.constant 0.166666672 : f32
    %138 = vector.broadcast %cst_31 : f32 to vector<16x128xf32>
    %139 = arith.mulf %129, %138 : vector<16x128xf32>
    %cst_32 = arith.constant 1.000000e+00 : f32
    %140 = vector.broadcast %cst_32 : f32 to vector<16x128xf32>
    %141 = arith.subf %140, %139 : vector<16x128xf32>
    %142 = arith.mulf %130, %135 : vector<16x128xf32>
    %143 = arith.select %137, %141, %142 : vector<16x128xi1>, vector<16x128xf32>
    %144 = arith.mulf %123, %143 : vector<16x128xf32>
    %145 = vector.extract_strided_slice %7 {offsets = [0, 6], sizes = [16, 1], strides = [1, 1]} : vector<16x32xf32> to vector<16x1xf32>
    %146 = vector.extract_strided_slice %11 {offsets = [6, 0], sizes = [1, 128], strides = [1, 1]} : vector<32x128xf32> to vector<1x128xf32>
    %147 = vector.broadcast %145 : vector<16x1xf32> to vector<16x128xf32>
    %148 = vector.broadcast %146 : vector<1x128xf32> to vector<16x128xf32>
    %149 = arith.subf %147, %148 : vector<16x128xf32>
    %150 = arith.mulf %149, %149 : vector<16x128xf32>
    %151 = math.sin %149 : vector<16x128xf32>
    %152 = tpu.reciprocal %149 {approx = true} : vector<16x128xf32> -> vector<16x128xf32>
    %153 = arith.mulf %149, %152 : vector<16x128xf32>
    %cst_33 = arith.constant 2.000000e+00 : f32
    %154 = vector.broadcast %cst_33 : f32 to vector<16x128xf32>
    %155 = arith.subf %154, %153 : vector<16x128xf32>
    %156 = arith.mulf %152, %155 : vector<16x128xf32>
    %cst_34 = arith.constant 9.99999997E-7 : f32
    %157 = vector.broadcast %cst_34 : f32 to vector<16x128xf32>
    %158 = arith.cmpf olt, %150, %157 : vector<16x128xf32>
    %cst_35 = arith.constant 0.166666672 : f32
    %159 = vector.broadcast %cst_35 : f32 to vector<16x128xf32>
    %160 = arith.mulf %150, %159 : vector<16x128xf32>
    %cst_36 = arith.constant 1.000000e+00 : f32
    %161 = vector.broadcast %cst_36 : f32 to vector<16x128xf32>
    %162 = arith.subf %161, %160 : vector<16x128xf32>
    %163 = arith.mulf %151, %156 : vector<16x128xf32>
    %164 = arith.select %158, %162, %163 : vector<16x128xi1>, vector<16x128xf32>
    %165 = arith.mulf %144, %164 : vector<16x128xf32>
    %166 = vector.extract_strided_slice %7 {offsets = [0, 7], sizes = [16, 1], strides = [1, 1]} : vector<16x32xf32> to vector<16x1xf32>
    %167 = vector.extract_strided_slice %11 {offsets = [7, 0], sizes = [1, 128], strides = [1, 1]} : vector<32x128xf32> to vector<1x128xf32>
    %168 = vector.broadcast %166 : vector<16x1xf32> to vector<16x128xf32>
    %169 = vector.broadcast %167 : vector<1x128xf32> to vector<16x128xf32>
    %170 = arith.subf %168, %169 : vector<16x128xf32>
    %171 = arith.mulf %170, %170 : vector<16x128xf32>
    %172 = math.sin %170 : vector<16x128xf32>
    %173 = tpu.reciprocal %170 {approx = true} : vector<16x128xf32> -> vector<16x128xf32>
    %174 = arith.mulf %170, %173 : vector<16x128xf32>
    %cst_37 = arith.constant 2.000000e+00 : f32
    %175 = vector.broadcast %cst_37 : f32 to vector<16x128xf32>
    %176 = arith.subf %175, %174 : vector<16x128xf32>
    %177 = arith.mulf %173, %176 : vector<16x128xf32>
    %cst_38 = arith.constant 9.99999997E-7 : f32
    %178 = vector.broadcast %cst_38 : f32 to vector<16x128xf32>
    %179 = arith.cmpf olt, %171, %178 : vector<16x128xf32>
    %cst_39 = arith.constant 0.166666672 : f32
    %180 = vector.broadcast %cst_39 : f32 to vector<16x128xf32>
    %181 = arith.mulf %171, %180 : vector<16x128xf32>
    %cst_40 = arith.constant 1.000000e+00 : f32
    %182 = vector.broadcast %cst_40 : f32 to vector<16x128xf32>
    %183 = arith.subf %182, %181 : vector<16x128xf32>
    %184 = arith.mulf %172, %177 : vector<16x128xf32>
    %185 = arith.select %179, %183, %184 : vector<16x128xi1>, vector<16x128xf32>
    %186 = arith.mulf %165, %185 : vector<16x128xf32>
    %187 = arith.mulf %186, %186 : vector<16x128xf32>
    %188 = arith.mulf %187, %187 : vector<16x128xf32>
    %cst_41 = arith.constant 0.000000e+00 : f32
    %189 = vector.broadcast %cst_41 : f32 to vector<16x128xf32>
    %190 = arith.select %19, %188, %189 : vector<16x128xi1>, vector<16x128xf32>
    %191 = arith.truncf %190 : vector<16x128xf32> to vector<16x128xbf16>
    %192 = vector.extract_strided_slice %13 {offsets = [0, 0], sizes = [128, 9], strides = [1, 1]} : vector<128x36xbf16> to vector<128x9xbf16>
    %cst_42 = arith.constant dense<0.000000e+00> : vector<16x9xf32>
    %193 = tpu.matmul %191, %192, %cst_42 {dimension_numbers = #tpu.dot_dimension_numbers<[1], [0], [0], [1], [0, 0, 1, 1], [], []>} : vector<16x128xbf16>, vector<128x9xbf16>, vector<16x9xf32> -> vector<16x9xf32>
    %194 = vector.extract_strided_slice %7 {offsets = [0, 8], sizes = [16, 1], strides = [1, 1]} : vector<16x32xf32> to vector<16x1xf32>
    %195 = vector.extract_strided_slice %11 {offsets = [8, 0], sizes = [1, 128], strides = [1, 1]} : vector<32x128xf32> to vector<1x128xf32>
    %196 = vector.broadcast %194 : vector<16x1xf32> to vector<16x128xf32>
    %197 = vector.broadcast %195 : vector<1x128xf32> to vector<16x128xf32>
    %198 = arith.subf %196, %197 : vector<16x128xf32>
    %199 = arith.mulf %198, %198 : vector<16x128xf32>
    %200 = math.sin %198 : vector<16x128xf32>
    %201 = tpu.reciprocal %198 {approx = true} : vector<16x128xf32> -> vector<16x128xf32>
    %202 = arith.mulf %198, %201 : vector<16x128xf32>
    %cst_43 = arith.constant 2.000000e+00 : f32
    %203 = vector.broadcast %cst_43 : f32 to vector<16x128xf32>
    %204 = arith.subf %203, %202 : vector<16x128xf32>
    %205 = arith.mulf %201, %204 : vector<16x128xf32>
    %cst_44 = arith.constant 9.99999997E-7 : f32
    %206 = vector.broadcast %cst_44 : f32 to vector<16x128xf32>
    %207 = arith.cmpf olt, %199, %206 : vector<16x128xf32>
    %cst_45 = arith.constant 0.166666672 : f32
    %208 = vector.broadcast %cst_45 : f32 to vector<16x128xf32>
    %209 = arith.mulf %199, %208 : vector<16x128xf32>
    %cst_46 = arith.constant 1.000000e+00 : f32
    %210 = vector.broadcast %cst_46 : f32 to vector<16x128xf32>
    %211 = arith.subf %210, %209 : vector<16x128xf32>
    %212 = arith.mulf %200, %205 : vector<16x128xf32>
    %213 = arith.select %207, %211, %212 : vector<16x128xi1>, vector<16x128xf32>
    %214 = vector.extract_strided_slice %7 {offsets = [0, 9], sizes = [16, 1], strides = [1, 1]} : vector<16x32xf32> to vector<16x1xf32>
    %215 = vector.extract_strided_slice %11 {offsets = [9, 0], sizes = [1, 128], strides = [1, 1]} : vector<32x128xf32> to vector<1x128xf32>
    %216 = vector.broadcast %214 : vector<16x1xf32> to vector<16x128xf32>
    %217 = vector.broadcast %215 : vector<1x128xf32> to vector<16x128xf32>
    %218 = arith.subf %216, %217 : vector<16x128xf32>
    %219 = arith.mulf %218, %218 : vector<16x128xf32>
    %220 = math.sin %218 : vector<16x128xf32>
    %221 = tpu.reciprocal %218 {approx = true} : vector<16x128xf32> -> vector<16x128xf32>
    %222 = arith.mulf %218, %221 : vector<16x128xf32>
    %cst_47 = arith.constant 2.000000e+00 : f32
    %223 = vector.broadcast %cst_47 : f32 to vector<16x128xf32>
    %224 = arith.subf %223, %222 : vector<16x128xf32>
    %225 = arith.mulf %221, %224 : vector<16x128xf32>
    %cst_48 = arith.constant 9.99999997E-7 : f32
    %226 = vector.broadcast %cst_48 : f32 to vector<16x128xf32>
    %227 = arith.cmpf olt, %219, %226 : vector<16x128xf32>
    %cst_49 = arith.constant 0.166666672 : f32
    %228 = vector.broadcast %cst_49 : f32 to vector<16x128xf32>
    %229 = arith.mulf %219, %228 : vector<16x128xf32>
    %cst_50 = arith.constant 1.000000e+00 : f32
    %230 = vector.broadcast %cst_50 : f32 to vector<16x128xf32>
    %231 = arith.subf %230, %229 : vector<16x128xf32>
    %232 = arith.mulf %220, %225 : vector<16x128xf32>
    %233 = arith.select %227, %231, %232 : vector<16x128xi1>, vector<16x128xf32>
    %234 = arith.mulf %213, %233 : vector<16x128xf32>
    %235 = vector.extract_strided_slice %7 {offsets = [0, 10], sizes = [16, 1], strides = [1, 1]} : vector<16x32xf32> to vector<16x1xf32>
    %236 = vector.extract_strided_slice %11 {offsets = [10, 0], sizes = [1, 128], strides = [1, 1]} : vector<32x128xf32> to vector<1x128xf32>
    %237 = vector.broadcast %235 : vector<16x1xf32> to vector<16x128xf32>
    %238 = vector.broadcast %236 : vector<1x128xf32> to vector<16x128xf32>
    %239 = arith.subf %237, %238 : vector<16x128xf32>
    %240 = arith.mulf %239, %239 : vector<16x128xf32>
    %241 = math.sin %239 : vector<16x128xf32>
    %242 = tpu.reciprocal %239 {approx = true} : vector<16x128xf32> -> vector<16x128xf32>
    %243 = arith.mulf %239, %242 : vector<16x128xf32>
    %cst_51 = arith.constant 2.000000e+00 : f32
    %244 = vector.broadcast %cst_51 : f32 to vector<16x128xf32>
    %245 = arith.subf %244, %243 : vector<16x128xf32>
    %246 = arith.mulf %242, %245 : vector<16x128xf32>
    %cst_52 = arith.constant 9.99999997E-7 : f32
    %247 = vector.broadcast %cst_52 : f32 to vector<16x128xf32>
    %248 = arith.cmpf olt, %240, %247 : vector<16x128xf32>
    %cst_53 = arith.constant 0.166666672 : f32
    %249 = vector.broadcast %cst_53 : f32 to vector<16x128xf32>
    %250 = arith.mulf %240, %249 : vector<16x128xf32>
    %cst_54 = arith.constant 1.000000e+00 : f32
    %251 = vector.broadcast %cst_54 : f32 to vector<16x128xf32>
    %252 = arith.subf %251, %250 : vector<16x128xf32>
    %253 = arith.mulf %241, %246 : vector<16x128xf32>
    %254 = arith.select %248, %252, %253 : vector<16x128xi1>, vector<16x128xf32>
    %255 = arith.mulf %234, %254 : vector<16x128xf32>
    %256 = vector.extract_strided_slice %7 {offsets = [0, 11], sizes = [16, 1], strides = [1, 1]} : vector<16x32xf32> to vector<16x1xf32>
    %257 = vector.extract_strided_slice %11 {offsets = [11, 0], sizes = [1, 128], strides = [1, 1]} : vector<32x128xf32> to vector<1x128xf32>
    %258 = vector.broadcast %256 : vector<16x1xf32> to vector<16x128xf32>
    %259 = vector.broadcast %257 : vector<1x128xf32> to vector<16x128xf32>
    %260 = arith.subf %258, %259 : vector<16x128xf32>
    %261 = arith.mulf %260, %260 : vector<16x128xf32>
    %262 = math.sin %260 : vector<16x128xf32>
    %263 = tpu.reciprocal %260 {approx = true} : vector<16x128xf32> -> vector<16x128xf32>
    %264 = arith.mulf %260, %263 : vector<16x128xf32>
    %cst_55 = arith.constant 2.000000e+00 : f32
    %265 = vector.broadcast %cst_55 : f32 to vector<16x128xf32>
    %266 = arith.subf %265, %264 : vector<16x128xf32>
    %267 = arith.mulf %263, %266 : vector<16x128xf32>
    %cst_56 = arith.constant 9.99999997E-7 : f32
    %268 = vector.broadcast %cst_56 : f32 to vector<16x128xf32>
    %269 = arith.cmpf olt, %261, %268 : vector<16x128xf32>
    %cst_57 = arith.constant 0.166666672 : f32
    %270 = vector.broadcast %cst_57 : f32 to vector<16x128xf32>
    %271 = arith.mulf %261, %270 : vector<16x128xf32>
    %cst_58 = arith.constant 1.000000e+00 : f32
    %272 = vector.broadcast %cst_58 : f32 to vector<16x128xf32>
    %273 = arith.subf %272, %271 : vector<16x128xf32>
    %274 = arith.mulf %262, %267 : vector<16x128xf32>
    %275 = arith.select %269, %273, %274 : vector<16x128xi1>, vector<16x128xf32>
    %276 = arith.mulf %255, %275 : vector<16x128xf32>
    %277 = vector.extract_strided_slice %7 {offsets = [0, 12], sizes = [16, 1], strides = [1, 1]} : vector<16x32xf32> to vector<16x1xf32>
    %278 = vector.extract_strided_slice %11 {offsets = [12, 0], sizes = [1, 128], strides = [1, 1]} : vector<32x128xf32> to vector<1x128xf32>
    %279 = vector.broadcast %277 : vector<16x1xf32> to vector<16x128xf32>
    %280 = vector.broadcast %278 : vector<1x128xf32> to vector<16x128xf32>
    %281 = arith.subf %279, %280 : vector<16x128xf32>
    %282 = arith.mulf %281, %281 : vector<16x128xf32>
    %283 = math.sin %281 : vector<16x128xf32>
    %284 = tpu.reciprocal %281 {approx = true} : vector<16x128xf32> -> vector<16x128xf32>
    %285 = arith.mulf %281, %284 : vector<16x128xf32>
    %cst_59 = arith.constant 2.000000e+00 : f32
    %286 = vector.broadcast %cst_59 : f32 to vector<16x128xf32>
    %287 = arith.subf %286, %285 : vector<16x128xf32>
    %288 = arith.mulf %284, %287 : vector<16x128xf32>
    %cst_60 = arith.constant 9.99999997E-7 : f32
    %289 = vector.broadcast %cst_60 : f32 to vector<16x128xf32>
    %290 = arith.cmpf olt, %282, %289 : vector<16x128xf32>
    %cst_61 = arith.constant 0.166666672 : f32
    %291 = vector.broadcast %cst_61 : f32 to vector<16x128xf32>
    %292 = arith.mulf %282, %291 : vector<16x128xf32>
    %cst_62 = arith.constant 1.000000e+00 : f32
    %293 = vector.broadcast %cst_62 : f32 to vector<16x128xf32>
    %294 = arith.subf %293, %292 : vector<16x128xf32>
    %295 = arith.mulf %283, %288 : vector<16x128xf32>
    %296 = arith.select %290, %294, %295 : vector<16x128xi1>, vector<16x128xf32>
    %297 = arith.mulf %276, %296 : vector<16x128xf32>
    %298 = vector.extract_strided_slice %7 {offsets = [0, 13], sizes = [16, 1], strides = [1, 1]} : vector<16x32xf32> to vector<16x1xf32>
    %299 = vector.extract_strided_slice %11 {offsets = [13, 0], sizes = [1, 128], strides = [1, 1]} : vector<32x128xf32> to vector<1x128xf32>
    %300 = vector.broadcast %298 : vector<16x1xf32> to vector<16x128xf32>
    %301 = vector.broadcast %299 : vector<1x128xf32> to vector<16x128xf32>
    %302 = arith.subf %300, %301 : vector<16x128xf32>
    %303 = arith.mulf %302, %302 : vector<16x128xf32>
    %304 = math.sin %302 : vector<16x128xf32>
    %305 = tpu.reciprocal %302 {approx = true} : vector<16x128xf32> -> vector<16x128xf32>
    %306 = arith.mulf %302, %305 : vector<16x128xf32>
    %cst_63 = arith.constant 2.000000e+00 : f32
    %307 = vector.broadcast %cst_63 : f32 to vector<16x128xf32>
    %308 = arith.subf %307, %306 : vector<16x128xf32>
    %309 = arith.mulf %305, %308 : vector<16x128xf32>
    %cst_64 = arith.constant 9.99999997E-7 : f32
    %310 = vector.broadcast %cst_64 : f32 to vector<16x128xf32>
    %311 = arith.cmpf olt, %303, %310 : vector<16x128xf32>
    %cst_65 = arith.constant 0.166666672 : f32
    %312 = vector.broadcast %cst_65 : f32 to vector<16x128xf32>
    %313 = arith.mulf %303, %312 : vector<16x128xf32>
    %cst_66 = arith.constant 1.000000e+00 : f32
    %314 = vector.broadcast %cst_66 : f32 to vector<16x128xf32>
    %315 = arith.subf %314, %313 : vector<16x128xf32>
    %316 = arith.mulf %304, %309 : vector<16x128xf32>
    %317 = arith.select %311, %315, %316 : vector<16x128xi1>, vector<16x128xf32>
    %318 = arith.mulf %297, %317 : vector<16x128xf32>
    %319 = vector.extract_strided_slice %7 {offsets = [0, 14], sizes = [16, 1], strides = [1, 1]} : vector<16x32xf32> to vector<16x1xf32>
    %320 = vector.extract_strided_slice %11 {offsets = [14, 0], sizes = [1, 128], strides = [1, 1]} : vector<32x128xf32> to vector<1x128xf32>
    %321 = vector.broadcast %319 : vector<16x1xf32> to vector<16x128xf32>
    %322 = vector.broadcast %320 : vector<1x128xf32> to vector<16x128xf32>
    %323 = arith.subf %321, %322 : vector<16x128xf32>
    %324 = arith.mulf %323, %323 : vector<16x128xf32>
    %325 = math.sin %323 : vector<16x128xf32>
    %326 = tpu.reciprocal %323 {approx = true} : vector<16x128xf32> -> vector<16x128xf32>
    %327 = arith.mulf %323, %326 : vector<16x128xf32>
    %cst_67 = arith.constant 2.000000e+00 : f32
    %328 = vector.broadcast %cst_67 : f32 to vector<16x128xf32>
    %329 = arith.subf %328, %327 : vector<16x128xf32>
    %330 = arith.mulf %326, %329 : vector<16x128xf32>
    %cst_68 = arith.constant 9.99999997E-7 : f32
    %331 = vector.broadcast %cst_68 : f32 to vector<16x128xf32>
    %332 = arith.cmpf olt, %324, %331 : vector<16x128xf32>
    %cst_69 = arith.constant 0.166666672 : f32
    %333 = vector.broadcast %cst_69 : f32 to vector<16x128xf32>
    %334 = arith.mulf %324, %333 : vector<16x128xf32>
    %cst_70 = arith.constant 1.000000e+00 : f32
    %335 = vector.broadcast %cst_70 : f32 to vector<16x128xf32>
    %336 = arith.subf %335, %334 : vector<16x128xf32>
    %337 = arith.mulf %325, %330 : vector<16x128xf32>
    %338 = arith.select %332, %336, %337 : vector<16x128xi1>, vector<16x128xf32>
    %339 = arith.mulf %318, %338 : vector<16x128xf32>
    %340 = vector.extract_strided_slice %7 {offsets = [0, 15], sizes = [16, 1], strides = [1, 1]} : vector<16x32xf32> to vector<16x1xf32>
    %341 = vector.extract_strided_slice %11 {offsets = [15, 0], sizes = [1, 128], strides = [1, 1]} : vector<32x128xf32> to vector<1x128xf32>
    %342 = vector.broadcast %340 : vector<16x1xf32> to vector<16x128xf32>
    %343 = vector.broadcast %341 : vector<1x128xf32> to vector<16x128xf32>
    %344 = arith.subf %342, %343 : vector<16x128xf32>
    %345 = arith.mulf %344, %344 : vector<16x128xf32>
    %346 = math.sin %344 : vector<16x128xf32>
    %347 = tpu.reciprocal %344 {approx = true} : vector<16x128xf32> -> vector<16x128xf32>
    %348 = arith.mulf %344, %347 : vector<16x128xf32>
    %cst_71 = arith.constant 2.000000e+00 : f32
    %349 = vector.broadcast %cst_71 : f32 to vector<16x128xf32>
    %350 = arith.subf %349, %348 : vector<16x128xf32>
    %351 = arith.mulf %347, %350 : vector<16x128xf32>
    %cst_72 = arith.constant 9.99999997E-7 : f32
    %352 = vector.broadcast %cst_72 : f32 to vector<16x128xf32>
    %353 = arith.cmpf olt, %345, %352 : vector<16x128xf32>
    %cst_73 = arith.constant 0.166666672 : f32
    %354 = vector.broadcast %cst_73 : f32 to vector<16x128xf32>
    %355 = arith.mulf %345, %354 : vector<16x128xf32>
    %cst_74 = arith.constant 1.000000e+00 : f32
    %356 = vector.broadcast %cst_74 : f32 to vector<16x128xf32>
    %357 = arith.subf %356, %355 : vector<16x128xf32>
    %358 = arith.mulf %346, %351 : vector<16x128xf32>
    %359 = arith.select %353, %357, %358 : vector<16x128xi1>, vector<16x128xf32>
    %360 = arith.mulf %339, %359 : vector<16x128xf32>
    %361 = arith.mulf %360, %360 : vector<16x128xf32>
    %362 = arith.mulf %361, %361 : vector<16x128xf32>
    %cst_75 = arith.constant 0.000000e+00 : f32
    %363 = vector.broadcast %cst_75 : f32 to vector<16x128xf32>
    %364 = arith.select %19, %362, %363 : vector<16x128xi1>, vector<16x128xf32>
    %365 = arith.truncf %364 : vector<16x128xf32> to vector<16x128xbf16>
    %366 = vector.extract_strided_slice %13 {offsets = [0, 9], sizes = [128, 9], strides = [1, 1]} : vector<128x36xbf16> to vector<128x9xbf16>
    %cst_76 = arith.constant dense<0.000000e+00> : vector<16x9xf32>
    %367 = tpu.matmul %365, %366, %cst_76 {dimension_numbers = #tpu.dot_dimension_numbers<[1], [0], [0], [1], [0, 0, 1, 1], [], []>} : vector<16x128xbf16>, vector<128x9xbf16>, vector<16x9xf32> -> vector<16x9xf32>
    %368 = vector.extract_strided_slice %7 {offsets = [0, 16], sizes = [16, 1], strides = [1, 1]} : vector<16x32xf32> to vector<16x1xf32>
    %369 = vector.extract_strided_slice %11 {offsets = [16, 0], sizes = [1, 128], strides = [1, 1]} : vector<32x128xf32> to vector<1x128xf32>
    %370 = vector.broadcast %368 : vector<16x1xf32> to vector<16x128xf32>
    %371 = vector.broadcast %369 : vector<1x128xf32> to vector<16x128xf32>
    %372 = arith.subf %370, %371 : vector<16x128xf32>
    %373 = arith.mulf %372, %372 : vector<16x128xf32>
    %374 = math.sin %372 : vector<16x128xf32>
    %375 = tpu.reciprocal %372 {approx = true} : vector<16x128xf32> -> vector<16x128xf32>
    %376 = arith.mulf %372, %375 : vector<16x128xf32>
    %cst_77 = arith.constant 2.000000e+00 : f32
    %377 = vector.broadcast %cst_77 : f32 to vector<16x128xf32>
    %378 = arith.subf %377, %376 : vector<16x128xf32>
    %379 = arith.mulf %375, %378 : vector<16x128xf32>
    %cst_78 = arith.constant 9.99999997E-7 : f32
    %380 = vector.broadcast %cst_78 : f32 to vector<16x128xf32>
    %381 = arith.cmpf olt, %373, %380 : vector<16x128xf32>
    %cst_79 = arith.constant 0.166666672 : f32
    %382 = vector.broadcast %cst_79 : f32 to vector<16x128xf32>
    %383 = arith.mulf %373, %382 : vector<16x128xf32>
    %cst_80 = arith.constant 1.000000e+00 : f32
    %384 = vector.broadcast %cst_80 : f32 to vector<16x128xf32>
    %385 = arith.subf %384, %383 : vector<16x128xf32>
    %386 = arith.mulf %374, %379 : vector<16x128xf32>
    %387 = arith.select %381, %385, %386 : vector<16x128xi1>, vector<16x128xf32>
    %388 = vector.extract_strided_slice %7 {offsets = [0, 17], sizes = [16, 1], strides = [1, 1]} : vector<16x32xf32> to vector<16x1xf32>
    %389 = vector.extract_strided_slice %11 {offsets = [17, 0], sizes = [1, 128], strides = [1, 1]} : vector<32x128xf32> to vector<1x128xf32>
    %390 = vector.broadcast %388 : vector<16x1xf32> to vector<16x128xf32>
    %391 = vector.broadcast %389 : vector<1x128xf32> to vector<16x128xf32>
    %392 = arith.subf %390, %391 : vector<16x128xf32>
    %393 = arith.mulf %392, %392 : vector<16x128xf32>
    %394 = math.sin %392 : vector<16x128xf32>
    %395 = tpu.reciprocal %392 {approx = true} : vector<16x128xf32> -> vector<16x128xf32>
    %396 = arith.mulf %392, %395 : vector<16x128xf32>
    %cst_81 = arith.constant 2.000000e+00 : f32
    %397 = vector.broadcast %cst_81 : f32 to vector<16x128xf32>
    %398 = arith.subf %397, %396 : vector<16x128xf32>
    %399 = arith.mulf %395, %398 : vector<16x128xf32>
    %cst_82 = arith.constant 9.99999997E-7 : f32
    %400 = vector.broadcast %cst_82 : f32 to vector<16x128xf32>
    %401 = arith.cmpf olt, %393, %400 : vector<16x128xf32>
    %cst_83 = arith.constant 0.166666672 : f32
    %402 = vector.broadcast %cst_83 : f32 to vector<16x128xf32>
    %403 = arith.mulf %393, %402 : vector<16x128xf32>
    %cst_84 = arith.constant 1.000000e+00 : f32
    %404 = vector.broadcast %cst_84 : f32 to vector<16x128xf32>
    %405 = arith.subf %404, %403 : vector<16x128xf32>
    %406 = arith.mulf %394, %399 : vector<16x128xf32>
    %407 = arith.select %401, %405, %406 : vector<16x128xi1>, vector<16x128xf32>
    %408 = arith.mulf %387, %407 : vector<16x128xf32>
    %409 = vector.extract_strided_slice %7 {offsets = [0, 18], sizes = [16, 1], strides = [1, 1]} : vector<16x32xf32> to vector<16x1xf32>
    %410 = vector.extract_strided_slice %11 {offsets = [18, 0], sizes = [1, 128], strides = [1, 1]} : vector<32x128xf32> to vector<1x128xf32>
    %411 = vector.broadcast %409 : vector<16x1xf32> to vector<16x128xf32>
    %412 = vector.broadcast %410 : vector<1x128xf32> to vector<16x128xf32>
    %413 = arith.subf %411, %412 : vector<16x128xf32>
    %414 = arith.mulf %413, %413 : vector<16x128xf32>
    %415 = math.sin %413 : vector<16x128xf32>
    %416 = tpu.reciprocal %413 {approx = true} : vector<16x128xf32> -> vector<16x128xf32>
    %417 = arith.mulf %413, %416 : vector<16x128xf32>
    %cst_85 = arith.constant 2.000000e+00 : f32
    %418 = vector.broadcast %cst_85 : f32 to vector<16x128xf32>
    %419 = arith.subf %418, %417 : vector<16x128xf32>
    %420 = arith.mulf %416, %419 : vector<16x128xf32>
    %cst_86 = arith.constant 9.99999997E-7 : f32
    %421 = vector.broadcast %cst_86 : f32 to vector<16x128xf32>
    %422 = arith.cmpf olt, %414, %421 : vector<16x128xf32>
    %cst_87 = arith.constant 0.166666672 : f32
    %423 = vector.broadcast %cst_87 : f32 to vector<16x128xf32>
    %424 = arith.mulf %414, %423 : vector<16x128xf32>
    %cst_88 = arith.constant 1.000000e+00 : f32
    %425 = vector.broadcast %cst_88 : f32 to vector<16x128xf32>
    %426 = arith.subf %425, %424 : vector<16x128xf32>
    %427 = arith.mulf %415, %420 : vector<16x128xf32>
    %428 = arith.select %422, %426, %427 : vector<16x128xi1>, vector<16x128xf32>
    %429 = arith.mulf %408, %428 : vector<16x128xf32>
    %430 = vector.extract_strided_slice %7 {offsets = [0, 19], sizes = [16, 1], strides = [1, 1]} : vector<16x32xf32> to vector<16x1xf32>
    %431 = vector.extract_strided_slice %11 {offsets = [19, 0], sizes = [1, 128], strides = [1, 1]} : vector<32x128xf32> to vector<1x128xf32>
    %432 = vector.broadcast %430 : vector<16x1xf32> to vector<16x128xf32>
    %433 = vector.broadcast %431 : vector<1x128xf32> to vector<16x128xf32>
    %434 = arith.subf %432, %433 : vector<16x128xf32>
    %435 = arith.mulf %434, %434 : vector<16x128xf32>
    %436 = math.sin %434 : vector<16x128xf32>
    %437 = tpu.reciprocal %434 {approx = true} : vector<16x128xf32> -> vector<16x128xf32>
    %438 = arith.mulf %434, %437 : vector<16x128xf32>
    %cst_89 = arith.constant 2.000000e+00 : f32
    %439 = vector.broadcast %cst_89 : f32 to vector<16x128xf32>
    %440 = arith.subf %439, %438 : vector<16x128xf32>
    %441 = arith.mulf %437, %440 : vector<16x128xf32>
    %cst_90 = arith.constant 9.99999997E-7 : f32
    %442 = vector.broadcast %cst_90 : f32 to vector<16x128xf32>
    %443 = arith.cmpf olt, %435, %442 : vector<16x128xf32>
    %cst_91 = arith.constant 0.166666672 : f32
    %444 = vector.broadcast %cst_91 : f32 to vector<16x128xf32>
    %445 = arith.mulf %435, %444 : vector<16x128xf32>
    %cst_92 = arith.constant 1.000000e+00 : f32
    %446 = vector.broadcast %cst_92 : f32 to vector<16x128xf32>
    %447 = arith.subf %446, %445 : vector<16x128xf32>
    %448 = arith.mulf %436, %441 : vector<16x128xf32>
    %449 = arith.select %443, %447, %448 : vector<16x128xi1>, vector<16x128xf32>
    %450 = arith.mulf %429, %449 : vector<16x128xf32>
    %451 = vector.extract_strided_slice %7 {offsets = [0, 20], sizes = [16, 1], strides = [1, 1]} : vector<16x32xf32> to vector<16x1xf32>
    %452 = vector.extract_strided_slice %11 {offsets = [20, 0], sizes = [1, 128], strides = [1, 1]} : vector<32x128xf32> to vector<1x128xf32>
    %453 = vector.broadcast %451 : vector<16x1xf32> to vector<16x128xf32>
    %454 = vector.broadcast %452 : vector<1x128xf32> to vector<16x128xf32>
    %455 = arith.subf %453, %454 : vector<16x128xf32>
    %456 = arith.mulf %455, %455 : vector<16x128xf32>
    %457 = math.sin %455 : vector<16x128xf32>
    %458 = tpu.reciprocal %455 {approx = true} : vector<16x128xf32> -> vector<16x128xf32>
    %459 = arith.mulf %455, %458 : vector<16x128xf32>
    %cst_93 = arith.constant 2.000000e+00 : f32
    %460 = vector.broadcast %cst_93 : f32 to vector<16x128xf32>
    %461 = arith.subf %460, %459 : vector<16x128xf32>
    %462 = arith.mulf %458, %461 : vector<16x128xf32>
    %cst_94 = arith.constant 9.99999997E-7 : f32
    %463 = vector.broadcast %cst_94 : f32 to vector<16x128xf32>
    %464 = arith.cmpf olt, %456, %463 : vector<16x128xf32>
    %cst_95 = arith.constant 0.166666672 : f32
    %465 = vector.broadcast %cst_95 : f32 to vector<16x128xf32>
    %466 = arith.mulf %456, %465 : vector<16x128xf32>
    %cst_96 = arith.constant 1.000000e+00 : f32
    %467 = vector.broadcast %cst_96 : f32 to vector<16x128xf32>
    %468 = arith.subf %467, %466 : vector<16x128xf32>
    %469 = arith.mulf %457, %462 : vector<16x128xf32>
    %470 = arith.select %464, %468, %469 : vector<16x128xi1>, vector<16x128xf32>
    %471 = arith.mulf %450, %470 : vector<16x128xf32>
    %472 = vector.extract_strided_slice %7 {offsets = [0, 21], sizes = [16, 1], strides = [1, 1]} : vector<16x32xf32> to vector<16x1xf32>
    %473 = vector.extract_strided_slice %11 {offsets = [21, 0], sizes = [1, 128], strides = [1, 1]} : vector<32x128xf32> to vector<1x128xf32>
    %474 = vector.broadcast %472 : vector<16x1xf32> to vector<16x128xf32>
    %475 = vector.broadcast %473 : vector<1x128xf32> to vector<16x128xf32>
    %476 = arith.subf %474, %475 : vector<16x128xf32>
    %477 = arith.mulf %476, %476 : vector<16x128xf32>
    %478 = math.sin %476 : vector<16x128xf32>
    %479 = tpu.reciprocal %476 {approx = true} : vector<16x128xf32> -> vector<16x128xf32>
    %480 = arith.mulf %476, %479 : vector<16x128xf32>
    %cst_97 = arith.constant 2.000000e+00 : f32
    %481 = vector.broadcast %cst_97 : f32 to vector<16x128xf32>
    %482 = arith.subf %481, %480 : vector<16x128xf32>
    %483 = arith.mulf %479, %482 : vector<16x128xf32>
    %cst_98 = arith.constant 9.99999997E-7 : f32
    %484 = vector.broadcast %cst_98 : f32 to vector<16x128xf32>
    %485 = arith.cmpf olt, %477, %484 : vector<16x128xf32>
    %cst_99 = arith.constant 0.166666672 : f32
    %486 = vector.broadcast %cst_99 : f32 to vector<16x128xf32>
    %487 = arith.mulf %477, %486 : vector<16x128xf32>
    %cst_100 = arith.constant 1.000000e+00 : f32
    %488 = vector.broadcast %cst_100 : f32 to vector<16x128xf32>
    %489 = arith.subf %488, %487 : vector<16x128xf32>
    %490 = arith.mulf %478, %483 : vector<16x128xf32>
    %491 = arith.select %485, %489, %490 : vector<16x128xi1>, vector<16x128xf32>
    %492 = arith.mulf %471, %491 : vector<16x128xf32>
    %493 = vector.extract_strided_slice %7 {offsets = [0, 22], sizes = [16, 1], strides = [1, 1]} : vector<16x32xf32> to vector<16x1xf32>
    %494 = vector.extract_strided_slice %11 {offsets = [22, 0], sizes = [1, 128], strides = [1, 1]} : vector<32x128xf32> to vector<1x128xf32>
    %495 = vector.broadcast %493 : vector<16x1xf32> to vector<16x128xf32>
    %496 = vector.broadcast %494 : vector<1x128xf32> to vector<16x128xf32>
    %497 = arith.subf %495, %496 : vector<16x128xf32>
    %498 = arith.mulf %497, %497 : vector<16x128xf32>
    %499 = math.sin %497 : vector<16x128xf32>
    %500 = tpu.reciprocal %497 {approx = true} : vector<16x128xf32> -> vector<16x128xf32>
    %501 = arith.mulf %497, %500 : vector<16x128xf32>
    %cst_101 = arith.constant 2.000000e+00 : f32
    %502 = vector.broadcast %cst_101 : f32 to vector<16x128xf32>
    %503 = arith.subf %502, %501 : vector<16x128xf32>
    %504 = arith.mulf %500, %503 : vector<16x128xf32>
    %cst_102 = arith.constant 9.99999997E-7 : f32
    %505 = vector.broadcast %cst_102 : f32 to vector<16x128xf32>
    %506 = arith.cmpf olt, %498, %505 : vector<16x128xf32>
    %cst_103 = arith.constant 0.166666672 : f32
    %507 = vector.broadcast %cst_103 : f32 to vector<16x128xf32>
    %508 = arith.mulf %498, %507 : vector<16x128xf32>
    %cst_104 = arith.constant 1.000000e+00 : f32
    %509 = vector.broadcast %cst_104 : f32 to vector<16x128xf32>
    %510 = arith.subf %509, %508 : vector<16x128xf32>
    %511 = arith.mulf %499, %504 : vector<16x128xf32>
    %512 = arith.select %506, %510, %511 : vector<16x128xi1>, vector<16x128xf32>
    %513 = arith.mulf %492, %512 : vector<16x128xf32>
    %514 = vector.extract_strided_slice %7 {offsets = [0, 23], sizes = [16, 1], strides = [1, 1]} : vector<16x32xf32> to vector<16x1xf32>
    %515 = vector.extract_strided_slice %11 {offsets = [23, 0], sizes = [1, 128], strides = [1, 1]} : vector<32x128xf32> to vector<1x128xf32>
    %516 = vector.broadcast %514 : vector<16x1xf32> to vector<16x128xf32>
    %517 = vector.broadcast %515 : vector<1x128xf32> to vector<16x128xf32>
    %518 = arith.subf %516, %517 : vector<16x128xf32>
    %519 = arith.mulf %518, %518 : vector<16x128xf32>
    %520 = math.sin %518 : vector<16x128xf32>
    %521 = tpu.reciprocal %518 {approx = true} : vector<16x128xf32> -> vector<16x128xf32>
    %522 = arith.mulf %518, %521 : vector<16x128xf32>
    %cst_105 = arith.constant 2.000000e+00 : f32
    %523 = vector.broadcast %cst_105 : f32 to vector<16x128xf32>
    %524 = arith.subf %523, %522 : vector<16x128xf32>
    %525 = arith.mulf %521, %524 : vector<16x128xf32>
    %cst_106 = arith.constant 9.99999997E-7 : f32
    %526 = vector.broadcast %cst_106 : f32 to vector<16x128xf32>
    %527 = arith.cmpf olt, %519, %526 : vector<16x128xf32>
    %cst_107 = arith.constant 0.166666672 : f32
    %528 = vector.broadcast %cst_107 : f32 to vector<16x128xf32>
    %529 = arith.mulf %519, %528 : vector<16x128xf32>
    %cst_108 = arith.constant 1.000000e+00 : f32
    %530 = vector.broadcast %cst_108 : f32 to vector<16x128xf32>
    %531 = arith.subf %530, %529 : vector<16x128xf32>
    %532 = arith.mulf %520, %525 : vector<16x128xf32>
    %533 = arith.select %527, %531, %532 : vector<16x128xi1>, vector<16x128xf32>
    %534 = arith.mulf %513, %533 : vector<16x128xf32>
    %535 = arith.mulf %534, %534 : vector<16x128xf32>
    %536 = arith.mulf %535, %535 : vector<16x128xf32>
    %cst_109 = arith.constant 0.000000e+00 : f32
    %537 = vector.broadcast %cst_109 : f32 to vector<16x128xf32>
    %538 = arith.select %19, %536, %537 : vector<16x128xi1>, vector<16x128xf32>
    %539 = arith.truncf %538 : vector<16x128xf32> to vector<16x128xbf16>
    %540 = vector.extract_strided_slice %13 {offsets = [0, 18], sizes = [128, 9], strides = [1, 1]} : vector<128x36xbf16> to vector<128x9xbf16>
    %cst_110 = arith.constant dense<0.000000e+00> : vector<16x9xf32>
    %541 = tpu.matmul %539, %540, %cst_110 {dimension_numbers = #tpu.dot_dimension_numbers<[1], [0], [0], [1], [0, 0, 1, 1], [], []>} : vector<16x128xbf16>, vector<128x9xbf16>, vector<16x9xf32> -> vector<16x9xf32>
    %542 = vector.extract_strided_slice %7 {offsets = [0, 24], sizes = [16, 1], strides = [1, 1]} : vector<16x32xf32> to vector<16x1xf32>
    %543 = vector.extract_strided_slice %11 {offsets = [24, 0], sizes = [1, 128], strides = [1, 1]} : vector<32x128xf32> to vector<1x128xf32>
    %544 = vector.broadcast %542 : vector<16x1xf32> to vector<16x128xf32>
    %545 = vector.broadcast %543 : vector<1x128xf32> to vector<16x128xf32>
    %546 = arith.subf %544, %545 : vector<16x128xf32>
    %547 = arith.mulf %546, %546 : vector<16x128xf32>
    %548 = math.sin %546 : vector<16x128xf32>
    %549 = tpu.reciprocal %546 {approx = true} : vector<16x128xf32> -> vector<16x128xf32>
    %550 = arith.mulf %546, %549 : vector<16x128xf32>
    %cst_111 = arith.constant 2.000000e+00 : f32
    %551 = vector.broadcast %cst_111 : f32 to vector<16x128xf32>
    %552 = arith.subf %551, %550 : vector<16x128xf32>
    %553 = arith.mulf %549, %552 : vector<16x128xf32>
    %cst_112 = arith.constant 9.99999997E-7 : f32
    %554 = vector.broadcast %cst_112 : f32 to vector<16x128xf32>
    %555 = arith.cmpf olt, %547, %554 : vector<16x128xf32>
    %cst_113 = arith.constant 0.166666672 : f32
    %556 = vector.broadcast %cst_113 : f32 to vector<16x128xf32>
    %557 = arith.mulf %547, %556 : vector<16x128xf32>
    %cst_114 = arith.constant 1.000000e+00 : f32
    %558 = vector.broadcast %cst_114 : f32 to vector<16x128xf32>
    %559 = arith.subf %558, %557 : vector<16x128xf32>
    %560 = arith.mulf %548, %553 : vector<16x128xf32>
    %561 = arith.select %555, %559, %560 : vector<16x128xi1>, vector<16x128xf32>
    %562 = vector.extract_strided_slice %7 {offsets = [0, 25], sizes = [16, 1], strides = [1, 1]} : vector<16x32xf32> to vector<16x1xf32>
    %563 = vector.extract_strided_slice %11 {offsets = [25, 0], sizes = [1, 128], strides = [1, 1]} : vector<32x128xf32> to vector<1x128xf32>
    %564 = vector.broadcast %562 : vector<16x1xf32> to vector<16x128xf32>
    %565 = vector.broadcast %563 : vector<1x128xf32> to vector<16x128xf32>
    %566 = arith.subf %564, %565 : vector<16x128xf32>
    %567 = arith.mulf %566, %566 : vector<16x128xf32>
    %568 = math.sin %566 : vector<16x128xf32>
    %569 = tpu.reciprocal %566 {approx = true} : vector<16x128xf32> -> vector<16x128xf32>
    %570 = arith.mulf %566, %569 : vector<16x128xf32>
    %cst_115 = arith.constant 2.000000e+00 : f32
    %571 = vector.broadcast %cst_115 : f32 to vector<16x128xf32>
    %572 = arith.subf %571, %570 : vector<16x128xf32>
    %573 = arith.mulf %569, %572 : vector<16x128xf32>
    %cst_116 = arith.constant 9.99999997E-7 : f32
    %574 = vector.broadcast %cst_116 : f32 to vector<16x128xf32>
    %575 = arith.cmpf olt, %567, %574 : vector<16x128xf32>
    %cst_117 = arith.constant 0.166666672 : f32
    %576 = vector.broadcast %cst_117 : f32 to vector<16x128xf32>
    %577 = arith.mulf %567, %576 : vector<16x128xf32>
    %cst_118 = arith.constant 1.000000e+00 : f32
    %578 = vector.broadcast %cst_118 : f32 to vector<16x128xf32>
    %579 = arith.subf %578, %577 : vector<16x128xf32>
    %580 = arith.mulf %568, %573 : vector<16x128xf32>
    %581 = arith.select %575, %579, %580 : vector<16x128xi1>, vector<16x128xf32>
    %582 = arith.mulf %561, %581 : vector<16x128xf32>
    %583 = vector.extract_strided_slice %7 {offsets = [0, 26], sizes = [16, 1], strides = [1, 1]} : vector<16x32xf32> to vector<16x1xf32>
    %584 = vector.extract_strided_slice %11 {offsets = [26, 0], sizes = [1, 128], strides = [1, 1]} : vector<32x128xf32> to vector<1x128xf32>
    %585 = vector.broadcast %583 : vector<16x1xf32> to vector<16x128xf32>
    %586 = vector.broadcast %584 : vector<1x128xf32> to vector<16x128xf32>
    %587 = arith.subf %585, %586 : vector<16x128xf32>
    %588 = arith.mulf %587, %587 : vector<16x128xf32>
    %589 = math.sin %587 : vector<16x128xf32>
    %590 = tpu.reciprocal %587 {approx = true} : vector<16x128xf32> -> vector<16x128xf32>
    %591 = arith.mulf %587, %590 : vector<16x128xf32>
    %cst_119 = arith.constant 2.000000e+00 : f32
    %592 = vector.broadcast %cst_119 : f32 to vector<16x128xf32>
    %593 = arith.subf %592, %591 : vector<16x128xf32>
    %594 = arith.mulf %590, %593 : vector<16x128xf32>
    %cst_120 = arith.constant 9.99999997E-7 : f32
    %595 = vector.broadcast %cst_120 : f32 to vector<16x128xf32>
    %596 = arith.cmpf olt, %588, %595 : vector<16x128xf32>
    %cst_121 = arith.constant 0.166666672 : f32
    %597 = vector.broadcast %cst_121 : f32 to vector<16x128xf32>
    %598 = arith.mulf %588, %597 : vector<16x128xf32>
    %cst_122 = arith.constant 1.000000e+00 : f32
    %599 = vector.broadcast %cst_122 : f32 to vector<16x128xf32>
    %600 = arith.subf %599, %598 : vector<16x128xf32>
    %601 = arith.mulf %589, %594 : vector<16x128xf32>
    %602 = arith.select %596, %600, %601 : vector<16x128xi1>, vector<16x128xf32>
    %603 = arith.mulf %582, %602 : vector<16x128xf32>
    %604 = vector.extract_strided_slice %7 {offsets = [0, 27], sizes = [16, 1], strides = [1, 1]} : vector<16x32xf32> to vector<16x1xf32>
    %605 = vector.extract_strided_slice %11 {offsets = [27, 0], sizes = [1, 128], strides = [1, 1]} : vector<32x128xf32> to vector<1x128xf32>
    %606 = vector.broadcast %604 : vector<16x1xf32> to vector<16x128xf32>
    %607 = vector.broadcast %605 : vector<1x128xf32> to vector<16x128xf32>
    %608 = arith.subf %606, %607 : vector<16x128xf32>
    %609 = arith.mulf %608, %608 : vector<16x128xf32>
    %610 = math.sin %608 : vector<16x128xf32>
    %611 = tpu.reciprocal %608 {approx = true} : vector<16x128xf32> -> vector<16x128xf32>
    %612 = arith.mulf %608, %611 : vector<16x128xf32>
    %cst_123 = arith.constant 2.000000e+00 : f32
    %613 = vector.broadcast %cst_123 : f32 to vector<16x128xf32>
    %614 = arith.subf %613, %612 : vector<16x128xf32>
    %615 = arith.mulf %611, %614 : vector<16x128xf32>
    %cst_124 = arith.constant 9.99999997E-7 : f32
    %616 = vector.broadcast %cst_124 : f32 to vector<16x128xf32>
    %617 = arith.cmpf olt, %609, %616 : vector<16x128xf32>
    %cst_125 = arith.constant 0.166666672 : f32
    %618 = vector.broadcast %cst_125 : f32 to vector<16x128xf32>
    %619 = arith.mulf %609, %618 : vector<16x128xf32>
    %cst_126 = arith.constant 1.000000e+00 : f32
    %620 = vector.broadcast %cst_126 : f32 to vector<16x128xf32>
    %621 = arith.subf %620, %619 : vector<16x128xf32>
    %622 = arith.mulf %610, %615 : vector<16x128xf32>
    %623 = arith.select %617, %621, %622 : vector<16x128xi1>, vector<16x128xf32>
    %624 = arith.mulf %603, %623 : vector<16x128xf32>
    %625 = vector.extract_strided_slice %7 {offsets = [0, 28], sizes = [16, 1], strides = [1, 1]} : vector<16x32xf32> to vector<16x1xf32>
    %626 = vector.extract_strided_slice %11 {offsets = [28, 0], sizes = [1, 128], strides = [1, 1]} : vector<32x128xf32> to vector<1x128xf32>
    %627 = vector.broadcast %625 : vector<16x1xf32> to vector<16x128xf32>
    %628 = vector.broadcast %626 : vector<1x128xf32> to vector<16x128xf32>
    %629 = arith.subf %627, %628 : vector<16x128xf32>
    %630 = arith.mulf %629, %629 : vector<16x128xf32>
    %631 = math.sin %629 : vector<16x128xf32>
    %632 = tpu.reciprocal %629 {approx = true} : vector<16x128xf32> -> vector<16x128xf32>
    %633 = arith.mulf %629, %632 : vector<16x128xf32>
    %cst_127 = arith.constant 2.000000e+00 : f32
    %634 = vector.broadcast %cst_127 : f32 to vector<16x128xf32>
    %635 = arith.subf %634, %633 : vector<16x128xf32>
    %636 = arith.mulf %632, %635 : vector<16x128xf32>
    %cst_128 = arith.constant 9.99999997E-7 : f32
    %637 = vector.broadcast %cst_128 : f32 to vector<16x128xf32>
    %638 = arith.cmpf olt, %630, %637 : vector<16x128xf32>
    %cst_129 = arith.constant 0.166666672 : f32
    %639 = vector.broadcast %cst_129 : f32 to vector<16x128xf32>
    %640 = arith.mulf %630, %639 : vector<16x128xf32>
    %cst_130 = arith.constant 1.000000e+00 : f32
    %641 = vector.broadcast %cst_130 : f32 to vector<16x128xf32>
    %642 = arith.subf %641, %640 : vector<16x128xf32>
    %643 = arith.mulf %631, %636 : vector<16x128xf32>
    %644 = arith.select %638, %642, %643 : vector<16x128xi1>, vector<16x128xf32>
    %645 = arith.mulf %624, %644 : vector<16x128xf32>
    %646 = vector.extract_strided_slice %7 {offsets = [0, 29], sizes = [16, 1], strides = [1, 1]} : vector<16x32xf32> to vector<16x1xf32>
    %647 = vector.extract_strided_slice %11 {offsets = [29, 0], sizes = [1, 128], strides = [1, 1]} : vector<32x128xf32> to vector<1x128xf32>
    %648 = vector.broadcast %646 : vector<16x1xf32> to vector<16x128xf32>
    %649 = vector.broadcast %647 : vector<1x128xf32> to vector<16x128xf32>
    %650 = arith.subf %648, %649 : vector<16x128xf32>
    %651 = arith.mulf %650, %650 : vector<16x128xf32>
    %652 = math.sin %650 : vector<16x128xf32>
    %653 = tpu.reciprocal %650 {approx = true} : vector<16x128xf32> -> vector<16x128xf32>
    %654 = arith.mulf %650, %653 : vector<16x128xf32>
    %cst_131 = arith.constant 2.000000e+00 : f32
    %655 = vector.broadcast %cst_131 : f32 to vector<16x128xf32>
    %656 = arith.subf %655, %654 : vector<16x128xf32>
    %657 = arith.mulf %653, %656 : vector<16x128xf32>
    %cst_132 = arith.constant 9.99999997E-7 : f32
    %658 = vector.broadcast %cst_132 : f32 to vector<16x128xf32>
    %659 = arith.cmpf olt, %651, %658 : vector<16x128xf32>
    %cst_133 = arith.constant 0.166666672 : f32
    %660 = vector.broadcast %cst_133 : f32 to vector<16x128xf32>
    %661 = arith.mulf %651, %660 : vector<16x128xf32>
    %cst_134 = arith.constant 1.000000e+00 : f32
    %662 = vector.broadcast %cst_134 : f32 to vector<16x128xf32>
    %663 = arith.subf %662, %661 : vector<16x128xf32>
    %664 = arith.mulf %652, %657 : vector<16x128xf32>
    %665 = arith.select %659, %663, %664 : vector<16x128xi1>, vector<16x128xf32>
    %666 = arith.mulf %645, %665 : vector<16x128xf32>
    %667 = vector.extract_strided_slice %7 {offsets = [0, 30], sizes = [16, 1], strides = [1, 1]} : vector<16x32xf32> to vector<16x1xf32>
    %668 = vector.extract_strided_slice %11 {offsets = [30, 0], sizes = [1, 128], strides = [1, 1]} : vector<32x128xf32> to vector<1x128xf32>
    %669 = vector.broadcast %667 : vector<16x1xf32> to vector<16x128xf32>
    %670 = vector.broadcast %668 : vector<1x128xf32> to vector<16x128xf32>
    %671 = arith.subf %669, %670 : vector<16x128xf32>
    %672 = arith.mulf %671, %671 : vector<16x128xf32>
    %673 = math.sin %671 : vector<16x128xf32>
    %674 = tpu.reciprocal %671 {approx = true} : vector<16x128xf32> -> vector<16x128xf32>
    %675 = arith.mulf %671, %674 : vector<16x128xf32>
    %cst_135 = arith.constant 2.000000e+00 : f32
    %676 = vector.broadcast %cst_135 : f32 to vector<16x128xf32>
    %677 = arith.subf %676, %675 : vector<16x128xf32>
    %678 = arith.mulf %674, %677 : vector<16x128xf32>
    %cst_136 = arith.constant 9.99999997E-7 : f32
    %679 = vector.broadcast %cst_136 : f32 to vector<16x128xf32>
    %680 = arith.cmpf olt, %672, %679 : vector<16x128xf32>
    %cst_137 = arith.constant 0.166666672 : f32
    %681 = vector.broadcast %cst_137 : f32 to vector<16x128xf32>
    %682 = arith.mulf %672, %681 : vector<16x128xf32>
    %cst_138 = arith.constant 1.000000e+00 : f32
    %683 = vector.broadcast %cst_138 : f32 to vector<16x128xf32>
    %684 = arith.subf %683, %682 : vector<16x128xf32>
    %685 = arith.mulf %673, %678 : vector<16x128xf32>
    %686 = arith.select %680, %684, %685 : vector<16x128xi1>, vector<16x128xf32>
    %687 = arith.mulf %666, %686 : vector<16x128xf32>
    %688 = vector.extract_strided_slice %7 {offsets = [0, 31], sizes = [16, 1], strides = [1, 1]} : vector<16x32xf32> to vector<16x1xf32>
    %689 = vector.extract_strided_slice %11 {offsets = [31, 0], sizes = [1, 128], strides = [1, 1]} : vector<32x128xf32> to vector<1x128xf32>
    %690 = vector.broadcast %688 : vector<16x1xf32> to vector<16x128xf32>
    %691 = vector.broadcast %689 : vector<1x128xf32> to vector<16x128xf32>
    %692 = arith.subf %690, %691 : vector<16x128xf32>
    %693 = arith.mulf %692, %692 : vector<16x128xf32>
    %694 = math.sin %692 : vector<16x128xf32>
    %695 = tpu.reciprocal %692 {approx = true} : vector<16x128xf32> -> vector<16x128xf32>
    %696 = arith.mulf %692, %695 : vector<16x128xf32>
    %cst_139 = arith.constant 2.000000e+00 : f32
    %697 = vector.broadcast %cst_139 : f32 to vector<16x128xf32>
    %698 = arith.subf %697, %696 : vector<16x128xf32>
    %699 = arith.mulf %695, %698 : vector<16x128xf32>
    %cst_140 = arith.constant 9.99999997E-7 : f32
    %700 = vector.broadcast %cst_140 : f32 to vector<16x128xf32>
    %701 = arith.cmpf olt, %693, %700 : vector<16x128xf32>
    %cst_141 = arith.constant 0.166666672 : f32
    %702 = vector.broadcast %cst_141 : f32 to vector<16x128xf32>
    %703 = arith.mulf %693, %702 : vector<16x128xf32>
    %cst_142 = arith.constant 1.000000e+00 : f32
    %704 = vector.broadcast %cst_142 : f32 to vector<16x128xf32>
    %705 = arith.subf %704, %703 : vector<16x128xf32>
    %706 = arith.mulf %694, %699 : vector<16x128xf32>
    %707 = arith.select %701, %705, %706 : vector<16x128xi1>, vector<16x128xf32>
    %708 = arith.mulf %687, %707 : vector<16x128xf32>
    %709 = arith.mulf %708, %708 : vector<16x128xf32>
    %710 = arith.mulf %709, %709 : vector<16x128xf32>
    %cst_143 = arith.constant 0.000000e+00 : f32
    %711 = vector.broadcast %cst_143 : f32 to vector<16x128xf32>
    %712 = arith.select %19, %710, %711 : vector<16x128xi1>, vector<16x128xf32>
    %713 = arith.truncf %712 : vector<16x128xf32> to vector<16x128xbf16>
    %714 = vector.extract_strided_slice %13 {offsets = [0, 27], sizes = [128, 9], strides = [1, 1]} : vector<128x36xbf16> to vector<128x9xbf16>
    %cst_144 = arith.constant dense<0.000000e+00> : vector<16x9xf32>
    %715 = tpu.matmul %713, %714, %cst_144 {dimension_numbers = #tpu.dot_dimension_numbers<[1], [0], [0], [1], [0, 0, 1, 1], [], []>} : vector<16x128xbf16>, vector<128x9xbf16>, vector<16x9xf32> -> vector<16x9xf32>
    %c0_145 = arith.constant 0 : index
    %c0_146 = arith.constant 0 : index
    %716 = vector.load %arg8[%c0_145, %c0_146] : memref<16x36xf32, #tpu.memory_space<vmem>>, vector<16x36xf32>
    %717 = tpu.concatenate %193, %367, %541, %715 in 1 : vector<16x9xf32>, vector<16x9xf32>, vector<16x9xf32>, vector<16x9xf32> -> vector<16x36xf32>
    %718 = arith.addf %716, %717 : vector<16x36xf32>
    %c0_147 = arith.constant 0 : index
    %c0_148 = arith.constant 0 : index
    %719 = vector.load %arg8[%c0_147, %c0_148] : memref<16x36xf32, #tpu.memory_space<vmem>>, vector<16x36xf32>
    tpu.vector_store %arg8[%c0_147, %c0_148], %718 {strides = array<i32>} : memref<16x36xf32, #tpu.memory_space<vmem>>, vector<16x36xf32>,
    %c0_i32_149 = arith.constant 0 : i32
    %720 = arith.cmpi eq, %arg2, %c0_i32_149 : i32
    %721 = arith.extui %720 : i1 to i32
    %c0_i32_150 = arith.constant 0 : i32
    %722 = arith.cmpi ne, %721, %c0_i32_150 : i32
    scf.if %722 {
      %c0_151 = arith.constant 0 : index
      %c0_152 = arith.constant 0 : index
      %723 = vector.load %arg8[%c0_151, %c0_152] : memref<16x36xf32, #tpu.memory_space<vmem>>, vector<16x36xf32>
      %724 = vector.extract_strided_slice %723 {offsets = [0, 0], sizes = [16, 8], strides = [1, 1]} : vector<16x36xf32> to vector<16x8xf32>
      %725 = vector.extract_strided_slice %723 {offsets = [0, 8], sizes = [16, 1], strides = [1, 1]} : vector<16x36xf32> to vector<16x1xf32>
      %cst_153 = arith.constant 9.99999997E-7 : f32
      %726 = vector.broadcast %cst_153 : f32 to vector<16x1xf32>
      %727 = arith.addf %725, %726 : vector<16x1xf32>
      %728 = vector.broadcast %727 : vector<16x1xf32> to vector<16x8xf32>
      %729 = arith.divf %724, %728 : vector<16x8xf32>
      %730 = vector.extract_strided_slice %723 {offsets = [0, 9], sizes = [16, 8], strides = [1, 1]} : vector<16x36xf32> to vector<16x8xf32>
      %731 = vector.extract_strided_slice %723 {offsets = [0, 17], sizes = [16, 1], strides = [1, 1]} : vector<16x36xf32> to vector<16x1xf32>
      %cst_154 = arith.constant 9.99999997E-7 : f32
      %732 = vector.broadcast %cst_154 : f32 to vector<16x1xf32>
      %733 = arith.addf %731, %732 : vector<16x1xf32>
      %734 = vector.broadcast %733 : vector<16x1xf32> to vector<16x8xf32>
      %735 = arith.divf %730, %734 : vector<16x8xf32>
      %736 = vector.extract_strided_slice %723 {offsets = [0, 18], sizes = [16, 8], strides = [1, 1]} : vector<16x36xf32> to vector<16x8xf32>
      %737 = vector.extract_strided_slice %723 {offsets = [0, 26], sizes = [16, 1], strides = [1, 1]} : vector<16x36xf32> to vector<16x1xf32>
      %cst_155 = arith.constant 9.99999997E-7 : f32
      %738 = vector.broadcast %cst_155 : f32 to vector<16x1xf32>
      %739 = arith.addf %737, %738 : vector<16x1xf32>
      %740 = vector.broadcast %739 : vector<16x1xf32> to vector<16x8xf32>
      %741 = arith.divf %736, %740 : vector<16x8xf32>
      %742 = vector.extract_strided_slice %723 {offsets = [0, 27], sizes = [16, 8], strides = [1, 1]} : vector<16x36xf32> to vector<16x8xf32>
      %743 = vector.extract_strided_slice %723 {offsets = [0, 35], sizes = [16, 1], strides = [1, 1]} : vector<16x36xf32> to vector<16x1xf32>
      %cst_156 = arith.constant 9.99999997E-7 : f32
      %744 = vector.broadcast %cst_156 : f32 to vector<16x1xf32>
      %745 = arith.addf %743, %744 : vector<16x1xf32>
      %746 = vector.broadcast %745 : vector<16x1xf32> to vector<16x8xf32>
      %747 = arith.divf %742, %746 : vector<16x8xf32>
      %748 = tpu.concatenate %729, %735, %741, %747 in 1 : vector<16x8xf32>, vector<16x8xf32>, vector<16x8xf32>, vector<16x8xf32> -> vector<16x32xf32>
      %c0_157 = arith.constant 0 : index
      %c0_158 = arith.constant 0 : index
      %c0_159 = arith.constant 0 : index
      %749 = vector.load %arg7[%c0_157, %c0_158, %c0_159] : memref<1x16x32xf32, #tpu.memory_space<vmem>>, vector<1x16x32xf32>
      %750 = vector.shape_cast %749 : vector<1x16x32xf32> to vector<16x32xf32>
      %751 = vector.shape_cast %748 : vector<16x32xf32> to vector<1x16x32xf32>
      tpu.vector_store %arg7[%c0_157, %c0_158, %c0_159], %751 {strides = array<i32>} : memref<1x16x32xf32, #tpu.memory_space<vmem>>, vector<1x16x32xf32>,
    } else {
    }
    return
  }
  func.func @transform_0(%arg0: i32, %arg1: i32, %arg2: i32, %arg3: memref<1xf32, #tpu.memory_space<smem>>) -> (i32, i32, i32) {
    %c0_i32 = arith.constant 0 : i32
    %c0_i32_0 = arith.constant 0 : i32
    return %arg0, %arg1, %c0_i32 : i32, i32, i32
  }
  func.func @transform_1(%arg0: i32, %arg1: i32, %arg2: i32, %arg3: memref<1xf32, #tpu.memory_space<smem>>) -> (i32, i32, i32) {
    %c0_i32 = arith.constant 0 : i32
    %c0_i32_0 = arith.constant 0 : i32
    return %arg0, %c0_i32, %arg2 : i32, i32, i32
  }
  func.func @transform_2(%arg0: i32, %arg1: i32, %arg2: i32, %arg3: memref<1xf32, #tpu.memory_space<smem>>) -> (i32, i32, i32) {
    %c0_i32 = arith.constant 0 : i32
    %c0_i32_0 = arith.constant 0 : i32
    return %arg0, %arg2, %c0_i32 : i32, i32, i32
  }
  func.func @transform_3(%arg0: i32, %arg1: i32, %arg2: i32, %arg3: memref<1xf32, #tpu.memory_space<smem>>) -> (i32, i32, i32) {
    %c0_i32 = arith.constant 0 : i32
    %c0_i32_0 = arith.constant 0 : i32
    return %arg0, %arg1, %c0_i32 : i32, i32, i32
  }
}

</mosaic_0001>

<llo_original>
// kernel: tpu_custom_call.1
$region0: #{tpu_custom_call.1}
  #allocation0 [shape = 'u32[]', space=smem, size = 0x4, offset = 0x4, fixed_abs, tag = 'smem constant byte address 0x4 - core index']
  #allocation1 [shape = 'u32[144,128]{1,0:T(1,128)}', space=vmem, size = 0x12000, scoped, tag = 'internal scratch']
  #allocation2 [shape = 'f32[16,36]{1,0:T(8,128)}', space=vmem, size = 0x2000, scoped, tag = 'scratch operand']
  #allocation3 [shape = 's32[1]{0}', space=sflag, size = 0x4, scoped, tag = 'scoped memory for tpu_custom_call.1']
  #allocation4 [shape = 'f32[1]{0:T(128)S(6)}', space=smem, size = 0x200, scoped, tag = 'prefetched SMEM operand 0']
  %s0 = inlined_call_operand.<no memory space> [shape: f32[1], index: 0, kind: input, shape index: {}]
  %s1 = inlined_call_operand.vmem [shape: f32[2,16,32], index: 1, kind: input, shape index: {}]
  %s2 = inlined_call_operand.vmem [shape: f32[2,32,128], index: 2, kind: input, shape index: {}]
  %s3 = inlined_call_operand.vmem [shape: bf16[2,128,36], index: 3, kind: input, shape index: {}]
  %s4 = inlined_call_operand.hbm [shape: f32[2,16,32], index: 4, kind: output, shape index: {}]
  %s5 = sld [smem:[#allocation0]]
  $region53: #{tpu_custom_call.1} parent=0
    _
  %s7 = ssub.s32 1, %s5
  %s8 = scalar_select 0, %s7, %s5
  %9 = sst [smem:[#allocation4]] %s0
  $region1: #{tpu_custom_call.1} parent=0
    #allocation5 [shape = 'u8[16384]{0}', space=vmem, size = 0x4000, scoped, tag = 'output window, operand 0']
    #allocation6 [shape = 's32[2]{0}', space=sflag, size = 0x8, scoped, tag = 'scoped memory for tpu_custom_call.1']
    %10 = vsyncpa [#allocation6], 0
    %s11 = scalar_lea.sflag [#allocation6], 1
    %12 = vsyncpa %s11, 0
    loop: start=0, step=1, limit=4
    $region2: #{tpu_custom_call.1} parent=1 // loop_pre_header
      _
    $region3: #{tpu_custom_call.1} parent=1 // loop_header
      %s14 = sphi 0, %s18
      %p15 = scmp.ge.s32.totalorder %s14, 4
      %s21 = sphi 0, %s40
      %s22 = sphi 0, %s36
      %s23 = sphi 0, %s32
      %s24 = sphi 0, %s21
      %s25 = sphi 0, %s22
      %s26 = sphi 0, %s23
      %s27 = sphi 0, %s24
      %s28 = sphi 0, %s25
      %s29 = sphi 0, %s26
      %s45 = sphi 0, %s47
      %s48 = sphi 0, %s45
      %s49 = sphi 0, %s48
      %s65 = sphi 0, %s49
      %s73 = sphi 0, %s75
      %s76 = sphi 0, %s73
      %s77 = sphi 0, %s76
      %s93 = sphi 0, %s77
      %s101 = sphi 0, %s103
      %s104 = sphi 0, %s101
      %s105 = sphi 0, %s104
      %s121 = sphi 0, %s105
      %s129 = sphi 0, %s131
      %s132 = sphi 0, %s129
      %s133 = sphi 0, %s132
      %s149 = sphi 0, %s133
    $region4: #{tpu_custom_call.1} parent=1 // loop_header_branch
      %17 = sbr.rel (%p15) target = $region8
    $region5: #{tpu_custom_call.1} parent=1 // loop_body
      %s19 = ssub.s32 %s14, 1
      %s20 = ssub.s32 %s14, 2
      %s30 = sadd.s32 1, %s23
      %p31 = scmp.ge.s32.totalorder %s30, 1
      %s32 = scalar_select %p31, 0, %s30
      %s33 = sadd.s32 1, %s22
      %s34 = scalar_select %p31, %s33, %s22
      %p35 = scmp.ge.s32.totalorder %s34, 1
      %s36 = scalar_select %p35, 0, %s34
      %s37 = sadd.s32 1, %s21
      %s38 = scalar_select %p35, %s37, %s21
      %p39 = scmp.ge.s32.totalorder %s38, 2
      %s40 = scalar_select %p39, 0, %s38
      %s41 = ssub.s32 %s21, %s40
      %s42 = ssub.s32 %s22, %s36
      %s43 = sor.u32 %s41, %s42
      %p44 = scmp.eq.s32.totalorder %s43, 0
      %s46 = sadd.s32 %s45, 1
      %s47 = scalar_select %p44, %s45, %s46
      %p50 = pneg %p44
      %p51 = scmp.eq.s32.totalorder %s14, 1
      %p52 = por %p50, %p51
      %p53 = scmp.ne.s32.totalorder %s45, %s48
      %p54 = scmp.eq.s32.totalorder %s14, 0
      %p55 = por %p53, %p54
      %p56 = scmp.ne.s32.totalorder %s45, %s48
      %p57 = scmp.eq.s32.totalorder %s19, 1
      %p58 = por %p56, %p57
      %p59 = scmp.ne.s32.totalorder %s48, %s49
      %p60 = scmp.eq.s32.totalorder %s19, 0
      %p61 = por %p59, %p60
      %p62 = scmp.ne.s32.totalorder %s48, %s49
      %p63 = scmp.eq.s32.totalorder %s20, 1
      %p64 = por %p62, %p63
      %p66 = scmp.ne.s32.totalorder %s49, %s65
      %p67 = scmp.eq.s32.totalorder %s20, 0
      %p68 = por %p66, %p67
      %s69 = ssub.s32 %s21, %s40
      %s70 = ssub.s32 %s23, %s32
      %s71 = sor.u32 %s69, %s70
      %p72 = scmp.eq.s32.totalorder %s71, 0
      %s74 = sadd.s32 %s73, 1
      %s75 = scalar_select %p72, %s73, %s74
      %p78 = pneg %p72
      %p79 = scmp.eq.s32.totalorder %s14, 1
      %p80 = por %p78, %p79
      %p81 = scmp.ne.s32.totalorder %s73, %s76
      %p82 = scmp.eq.s32.totalorder %s14, 0
      %p83 = por %p81, %p82
      %p84 = scmp.ne.s32.totalorder %s73, %s76
      %p85 = scmp.eq.s32.totalorder %s19, 1
      %p86 = por %p84, %p85
      %p87 = scmp.ne.s32.totalorder %s76, %s77
      %p88 = scmp.eq.s32.totalorder %s19, 0
      %p89 = por %p87, %p88
      %p90 = scmp.ne.s32.totalorder %s76, %s77
      %p91 = scmp.eq.s32.totalorder %s20, 1
      %p92 = por %p90, %p91
      %p94 = scmp.ne.s32.totalorder %s77, %s93
      %p95 = scmp.eq.s32.totalorder %s20, 0
      %p96 = por %p94, %p95
      %s97 = ssub.s32 %s21, %s40
      %s98 = ssub.s32 %s23, %s32
      %s99 = sor.u32 %s97, %s98
      %p100 = scmp.eq.s32.totalorder %s99, 0
      %s102 = sadd.s32 %s101, 1
      %s103 = scalar_select %p100, %s101, %s102
      %p106 = pneg %p100
      %p107 = scmp.eq.s32.totalorder %s14, 1
      %p108 = por %p106, %p107
      %p109 = scmp.ne.s32.totalorder %s101, %s104
      %p110 = scmp.eq.s32.totalorder %s14, 0
      %p111 = por %p109, %p110
      %p112 = scmp.ne.s32.totalorder %s101, %s104
      %p113 = scmp.eq.s32.totalorder %s19, 1
      %p114 = por %p112, %p113
      %p115 = scmp.ne.s32.totalorder %s104, %s105
      %p116 = scmp.eq.s32.totalorder %s19, 0
      %p117 = por %p115, %p116
      %p118 = scmp.ne.s32.totalorder %s104, %s105
      %p119 = scmp.eq.s32.totalorder %s20, 1
      %p120 = por %p118, %p119
      %p122 = scmp.ne.s32.totalorder %s105, %s121
      %p123 = scmp.eq.s32.totalorder %s20, 0
      %p124 = por %p122, %p123
      %s125 = ssub.s32 %s21, %s40
      %s126 = ssub.s32 %s22, %s36
      %s127 = sor.u32 %s125, %s126
      %p128 = scmp.eq.s32.totalorder %s127, 0
      %s130 = sadd.s32 %s129, 1
      %s131 = scalar_select %p128, %s129, %s130
      %p134 = pneg %p128
      %p135 = scmp.eq.s32.totalorder %s14, 1
      %p136 = por %p134, %p135
      %p137 = scmp.ne.s32.totalorder %s129, %s132
      %p138 = scmp.eq.s32.totalorder %s14, 0
      %p139 = por %p137, %p138
      %p140 = scmp.ne.s32.totalorder %s129, %s132
      %p141 = scmp.eq.s32.totalorder %s19, 1
      %p142 = por %p140, %p141
      %p143 = scmp.ne.s32.totalorder %s132, %s133
      %p144 = scmp.eq.s32.totalorder %s19, 0
      %p145 = por %p143, %p144
      %p146 = scmp.ne.s32.totalorder %s132, %s133
      %p147 = scmp.eq.s32.totalorder %s20, 1
      %p148 = por %p146, %p147
      %p150 = scmp.ne.s32.totalorder %s133, %s149
      %p151 = scmp.eq.s32.totalorder %s20, 0
      %p152 = por %p150, %p151
      %p153 = scmp.le.s32.totalorder 1, %s14
      %p154 = scmp.lt.s32.totalorder %s14, 3
      %p155 = pnand %p153, %p154
      %p156 = pneg %p155
      // Predicated region
      $region9: #{tpu_custom_call.1} parent=5 // pred_check
        _
      $region10: #{tpu_custom_call.1} parent=5 // pred_check_branch
        %158 = sbr.rel (%p155) target = $region12
      $region11: #{tpu_custom_call.1} parent=5 // pred_region
        %s159 = ssub.s32 %s14, 1
      $region12: #{tpu_custom_call.1} parent=5 // pred_fallthru
        _
      %p160 = scmp.lt.s32.totalorder %s14, 2
      // Predicated region
      $region13: #{tpu_custom_call.1} parent=5 // pred_check
        %p161 = pneg %p160
      $region14: #{tpu_custom_call.1} parent=5 // pred_check_branch
        %163 = sbr.rel (%p161) target = $region16
      $region15: #{tpu_custom_call.1} parent=5 // pred_region
        // Predicated region
        $region17: #{tpu_custom_call.1} parent=15 // pred_check
          %p164 = pneg %p55
        $region18: #{tpu_custom_call.1} parent=15 // pred_check_branch
          %166 = sbr.rel (%p164) target = $region20
        $region19: #{tpu_custom_call.1} parent=15 // pred_region
          %s167 = smul.u32 2, %s22
          %p168 = scmp.lt.s32.totalorder %s21, 1
          %s169 = scalar_select %p168, %s21, 1
          %p170 = scmp.lt.s32.totalorder %s167, 1
          %s171 = scalar_select %p170, %s167, 1
          %s172 = smul.addr %s169, 2
          %s173 = sadd.s32 %s171, %s172
          %s174 = smul.addr %s173, 8
          %s175 = scalar_lea.vmem %s1, %s174
          %s176 = smul.u32 2, %s22
        $region20: #{tpu_custom_call.1} parent=15 // pred_fallthru
          _
        // Predicated region
        $region21: #{tpu_custom_call.1} parent=15 // pred_check
          %p177 = pneg %p83
        $region22: #{tpu_custom_call.1} parent=15 // pred_check_branch
          %179 = sbr.rel (%p177) target = $region24
        $region23: #{tpu_custom_call.1} parent=15 // pred_region
          %p180 = scmp.lt.s32.totalorder %s21, 1
          %s181 = scalar_select %p180, %s21, 1
          %p182 = scmp.lt.s32.totalorder %s23, 0
          %s183 = scalar_select %p182, %s23, 0
          %s184 = smul.addr %s181, 4
          %s185 = sadd.s32 %s183, %s184
          %s186 = smul.addr %s185, 8
          %s187 = scalar_lea.vmem %s2, %s186
        $region24: #{tpu_custom_call.1} parent=15 // pred_fallthru
          _
        // Predicated region
        $region25: #{tpu_custom_call.1} parent=15 // pred_check
          %p188 = pneg %p111
        $region26: #{tpu_custom_call.1} parent=15 // pred_check_branch
          %190 = sbr.rel (%p188) target = $region28
        $region27: #{tpu_custom_call.1} parent=15 // pred_region
          %s191 = smul.u32 16, %s23
          %p192 = scmp.lt.s32.totalorder %s21, 1
          %s193 = scalar_select %p192, %s21, 1
          %p194 = scmp.lt.s32.totalorder %s191, 15
          %s195 = scalar_select %p194, %s191, 15
          %s196 = smul.addr %s193, 16
          %s197 = sadd.s32 %s195, %s196
          %s198 = smul.addr %s197, 4
          %s199 = scalar_lea.vmem %s3, %s198
          %s200 = smul.u32 16, %s23
        $region28: #{tpu_custom_call.1} parent=15 // pred_fallthru
          _
      $region16: #{tpu_custom_call.1} parent=5 // pred_fallthru
        _
      %p201 = scmp.le.s32.totalorder 1, %s14
      %p202 = scmp.lt.s32.totalorder %s14, 3
      %p203 = pnand %p201, %p202
      %p204 = pneg %p203
      // Predicated region
      $region29: #{tpu_custom_call.1} parent=5 // pred_check
        _
      $region30: #{tpu_custom_call.1} parent=5 // pred_check_branch
        %206 = sbr.rel (%p203) target = $region32
      $region31: #{tpu_custom_call.1} parent=5 // pred_region
        %s207 = ssub.s32 %s14, 1
        %s208 = smul.u32 2, %s25
        %p209 = scmp.lt.s32.totalorder %s24, 1
        %s210 = scalar_select %p209, %s24, 1
        %p211 = scmp.lt.s32.totalorder %s208, 1
        %s212 = scalar_select %p211, %s208, 1
        %s213 = smul.addr %s210, 2
        %s214 = sadd.s32 %s212, %s213
        %s215 = smul.addr %s214, 8
        %s216 = scalar_lea.vmem %s1, %s215
        %p217 = pneg %p61
        %p218 = pneg %p58
        %p219 = scmp.lt.s32.totalorder %s24, 1
        %s220 = scalar_select %p219, %s24, 1
        %p221 = scmp.lt.s32.totalorder %s26, 0
        %s222 = scalar_select %p221, %s26, 0
        %s223 = smul.addr %s220, 4
        %s224 = sadd.s32 %s222, %s223
        %s225 = smul.addr %s224, 8
        %s226 = scalar_lea.vmem %s2, %s225
        %p227 = pneg %p89
        %p228 = pneg %p86
        %s229 = smul.u32 16, %s26
        %p230 = scmp.lt.s32.totalorder %s24, 1
        %s231 = scalar_select %p230, %s24, 1
        %p232 = scmp.lt.s32.totalorder %s229, 15
        %s233 = scalar_select %p232, %s229, 15
        %s234 = smul.addr %s231, 16
        %s235 = sadd.s32 %s233, %s234
        %s236 = smul.addr %s235, 4
        %s237 = scalar_lea.vmem %s3, %s236
        %p238 = pneg %p117
        %p239 = pneg %p114
        %p240 = pneg %p145
        %p241 = pneg %p142
        %s242 = sand.u32 %s132, 1
        %s243 = scalar_lea.sflag [#allocation6], %s242
        %s244 = sand.u32 %s132, 1
        %s245 = smul.addr %s244, 16
        %s246 = scalar_lea.vmem [#allocation5], %s245
        %s247 = smul.u32 2, %s25
        %p248 = scmp.lt.s32.totalorder %s24, 1
        %s249 = scalar_select %p248, %s24, 1
        %p250 = scmp.lt.s32.totalorder %s247, 1
        %s251 = scalar_select %p250, %s247, 1
        %s252 = smul.addr %s249, 2
        %s253 = sadd.s32 %s251, %s252
        %s254 = smul.addr %s253, 8
        %s255 = scalar_lea.vmem %s1, %s254
        %s256 = smul.u32 2, %s25
        %p257 = scmp.lt.s32.totalorder %s24, 1
        %s258 = scalar_select %p257, %s24, 1
        %p259 = scmp.lt.s32.totalorder %s26, 0
        %s260 = scalar_select %p259, %s26, 0
        %s261 = smul.addr %s258, 4
        %s262 = sadd.s32 %s260, %s261
        %s263 = smul.addr %s262, 8
        %s264 = scalar_lea.vmem %s2, %s263
        %s265 = smul.u32 16, %s26
        %p266 = scmp.lt.s32.totalorder %s24, 1
        %s267 = scalar_select %p266, %s24, 1
        %p268 = scmp.lt.s32.totalorder %s265, 15
        %s269 = scalar_select %p268, %s265, 15
        %s270 = smul.addr %s267, 16
        %s271 = sadd.s32 %s269, %s270
        %s272 = smul.addr %s271, 4
        %s273 = scalar_lea.vmem %s3, %s272
        %s274 = smul.u32 16, %s26
        %s275 = smul.u32 2, %s25
        %p277 = scmp.eq.s32.totalorder %s26, 0
        // Predicated region
        $region33: #{tpu_custom_call.1} parent=31 // pred_check
          %p278 = pneg %p277
        $region34: #{tpu_custom_call.1} parent=31 // pred_check_branch
          %280 = sbr.rel (%p278) target = $region36
        $region35: #{tpu_custom_call.1} parent=31 // pred_region
          %vm281 = vcmask 293888
          %282 = vst.msk [vmem:[#allocation2] sm:$0xff] %vm281, 0.0
          %283 = vst.msk [vmem:[#allocation2 + $0x8] sm:$0xff] %vm281, 0.0
        $region36: #{tpu_custom_call.1} parent=31 // pred_fallthru
          _
        %s284 = sld [smem:[#allocation4]]
        %v285 = vld [vmem:[%s255] sm:$0xff]
        %v286 = vld [vmem:[%s255 + $0x8] sm:$0xff]
        %v287 = vstv %s284
        %v288 = vmul.f32 %v285, %v287
        %v289 = vmul.f32 %v286, %v287
        %v290 = vld [vmem:[%s264] sm:$0xff]
        %v291 = vld [vmem:[%s264 + $0x8] sm:$0xff]
        %v292 = vld [vmem:[%s264 + $0x10] sm:$0xff]
        %v293 = vld [vmem:[%s264 + $0x18] sm:$0xff]
        %v294 = vmul.f32 %v290, %v287
        %v295 = vmul.f32 %v291, %v287
        %v296 = vmul.f32 %v292, %v287
        %v297 = vmul.f32 %v293, %v287
        %v298 = vld [vmem:[%s273] sm:$0xf]
        %v299 = vld [vmem:[%s273 + $0x4] sm:$0xf]
        %v300 = vld [vmem:[%s273 + $0x8] sm:$0xf]
        %v301 = vld [vmem:[%s273 + $0xc] sm:$0xf]
        %v302 = vld [vmem:[%s273 + $0x10] sm:$0xf]
        %v303 = vld [vmem:[%s273 + $0x14] sm:$0xf]
        %v304 = vld [vmem:[%s273 + $0x18] sm:$0xf]
        %v305 = vld [vmem:[%s273 + $0x1c] sm:$0xf]
        %v306 = vld [vmem:[%s273 + $0x20] sm:$0xf]
        %v307 = vld [vmem:[%s273 + $0x24] sm:$0xf]
        %v308 = vld [vmem:[%s273 + $0x28] sm:$0xf]
        %v309 = vld [vmem:[%s273 + $0x2c] sm:$0xf]
        %v310 = vld [vmem:[%s273 + $0x30] sm:$0xf]
        %v311 = vld [vmem:[%s273 + $0x34] sm:$0xf]
        %v312 = vld [vmem:[%s273 + $0x38] sm:$0xf]
        %v313 = vld [vmem:[%s273 + $0x3c] sm:$0xf]
        %v314 = vlaneseq
        %v315 = vand.u32 %v314, 127
        %s316 = smul.u32 %s26, 128
        %v317 = vstv %s316
        %v318 = vadd.s32 %v315, %v317
        %vm319 = vcmp.lt.s32.totalorder %v318, 15
        %321 = vset.pattern.permute.xlu0 0
        %322 = vperm.xlu0 %321, %v288
        %v323 = vpop.permute.xlu0 %322
        %326 = vset.pattern.permute.xlu0 0
        %327 = vperm.xlu0 %326, %v289
        %v328 = vpop.permute.xlu0 %327
        %v330 = vlaneseq
        %v331 = vshrl.u32 %v330, 7
        %v332 = vsub.s32 0, %v331
        %v333 = vrot.slane %v294, %v332
        %v334 = vsub.f32 %v323, %v333
        %v335 = vsub.f32 %v328, %v333
        %v336 = vmul.f32 %v334, %v334
        %v337 = vmul.f32 %v335, %v335
        %v338 = vand.u32 2147483647, %v334
        %vm339 = vcmp.le.f32.partialorder %v338, 0.7853982
        %vm340 = vcmp.lt.s32.totalorder %v334, 0
        %v341 = vand.u32 %v334, 2139095040
        %v342 = vshrl.u32 %v341, 23
        %v343 = vsub.s32 %v342, 127
        %v344 = vand.u32 2147483647, %v334
        %v345 = vand.u32 %v344, 8388607
        %v346 = vor.u32 %v345, 8388608
        %v347 = vsub.s32 0, %v346
        %v348 = vadd.s32 %v343, 1
        %vm349 = vcmp.gt.s32.totalorder %v348, 0
        %v350 = vsel %vm349, %v348, 0
        %v351 = vshrl.u32 %v350, 5
        %v352 = vand.u32 %v350, 31
        %v353 = vsub.s32 32, %v352
        %v354 = vshrl.u32 683565275, %v353
        %v355 = vshll.u32 683565275, %v352
        %v356 = vshrl.u32 2475754826, %v353
        %v357 = vor.u32 %v355, %v356
        %v358 = vshll.u32 2475754826, %v352
        %v359 = vshrl.u32 2131351028, %v353
        %v360 = vor.u32 %v358, %v359
        %v361 = vshll.u32 2131351028, %v352
        %v362 = vshrl.u32 2102212464, %v353
        %v363 = vor.u32 %v361, %v362
        %v364 = vshll.u32 2102212464, %v352
        %v365 = vshrl.u32 920167782, %v353
        %v366 = vor.u32 %v364, %v365
        %v367 = vshll.u32 920167782, %v352
        %v368 = vshrl.u32 1326507024, %v353
        %v369 = vor.u32 %v367, %v368
        %vm370 = vcmp.lt.s32.totalorder %v351, 1
        %vm371 = vcmp.lt.s32.totalorder %v351, 2
        %vm372 = vcmp.lt.s32.totalorder %v351, 3
        %vm373 = vcmp.lt.s32.totalorder %v351, 4
        %v374 = vsel %vm370, %v354, %v357
        %v375 = vsel %vm373, %v363, 2102212464
        %v376 = vsel %vm372, %v360, %v375
        %v377 = vsel %vm371, %v374, %v376
        %v378 = vsel %vm370, %v357, %v360
        %v379 = vsel %vm373, %v366, 920167782
        %v380 = vsel %vm372, %v363, %v379
        %v381 = vsel %vm371, %v378, %v380
        %v382 = vsel %vm370, %v360, %v363
        %v383 = vsel %vm373, %v369, 1326507024
        %v384 = vsel %vm372, %v366, %v383
        %v385 = vsel %vm371, %v382, %v384
        %v386 = vshll.u32 %v346, 8
        %v387 = vmul.u32.u64.compose %v386, %v385
        %v388 = vextract.low.u32 %v387
        %v389 = vextract.high.u32 %v387
        %v390 = vmul.u32.u64.compose %v386, %v381
        %v391 = vextract.low.u32 %v390
        %v392 = vextract.high.u32 %v390
        %v393 = vmul.u32 %v386, %v377
        %v394 = vadd.s32 %v389, %v391
        %vm395 = vc.u32 %v389, %v391
        %v396 = vadd.s32 %v392, 1
        %v397 = vsel %vm395, %v396, %v392
        %v398 = vadd.s32 %v393, %v397
        %v399 = vadd.s32 %v398, 536870912
        %v400 = vshrl.u32 %v399, 30
        %v401 = vshll.u32 %v400, 30
        %v402 = vsub.s32 %v398, %v401
        %vm403 = vcmp.lt.s32.totalorder %v402, 0
        %v404 = vsub.s32 0, %v402
        %v405 = vsel %vm403, %v404, %v402
        %v406 = vclz %v405
        %v407 = vsub.s32 %v406, 2
        %vm408 = vcmp.gt.s32.totalorder 0, %v407
        %v409 = vsel %vm408, 0, %v407
        %v410 = vsub.s32 32, %v409
        %v411 = vshll.u32 %v402, %v409
        %v412 = vshrl.u32 %v394, %v410
        %v413 = vor.u32 %v411, %v412
        %v414 = vsub.s32 4294967266, %v409
        %v415 = vadd.s32 %v414, 127
        %v416 = vshll.u32 %v415, 23
        %v417 = vor.u32 4788187, %v416
        %v418 = vand.u32 2147483647, %v417
        %v420 = vcvt.s32.f32 %v413
        %v421 = vmul.f32 %v420, %v418
        %v422 = vxor.u32 %v421, 2147483648
        %v423 = vsel %vm340, %v422, %v421
        %v424 = vsub.s32 4, %v400
        %v425 = vsel %vm340, %v424, %v400
        %v426 = vsel %vm339, %v334, %v423
        %v427 = vsel %vm339, 0, %v425
        %v428 = vcosq.f32.pop %v426
        %v429 = vsinq.f32.pop %v426
        %vm430 = vweird.f32 %v334
        %v431 = vadd.s32 %v427, 3
        %v432 = vand.u32 %v431, 3
        %vm433 = vcmp.lt.s32.totalorder %v432, 2
        %vm434 = vcmp.eq.s32.totalorder %v432, 0
        %v435 = vxor.u32 %v429, 2147483648
        %v436 = vsel %vm434, %v428, %v435
        %vm437 = vcmp.eq.s32.totalorder %v432, 2
        %v438 = vxor.u32 %v428, 2147483648
        %v439 = vsel %vm437, %v438, %v429
        %v440 = vsel %vm433, %v436, %v439
        %v441 = vsel %vm430, nan, %v440
        %v442 = vand.u32 2147483647, %v335
        %vm443 = vcmp.le.f32.partialorder %v442, 0.7853982
        %vm444 = vcmp.lt.s32.totalorder %v335, 0
        %v445 = vand.u32 %v335, 2139095040
        %v446 = vshrl.u32 %v445, 23
        %v447 = vsub.s32 %v446, 127
        %v448 = vand.u32 2147483647, %v335
        %v449 = vand.u32 %v448, 8388607
        %v450 = vor.u32 %v449, 8388608
        %v451 = vsub.s32 0, %v450
        %v452 = vadd.s32 %v447, 1
        %vm453 = vcmp.gt.s32.totalorder %v452, 0
        %v454 = vsel %vm453, %v452, 0
        %v455 = vshrl.u32 %v454, 5
        %v456 = vand.u32 %v454, 31
        %v457 = vsub.s32 32, %v456
        %v458 = vshrl.u32 683565275, %v457
        %v459 = vshll.u32 683565275, %v456
        %v460 = vshrl.u32 2475754826, %v457
        %v461 = vor.u32 %v459, %v460
        %v462 = vshll.u32 2475754826, %v456
        %v463 = vshrl.u32 2131351028, %v457
        %v464 = vor.u32 %v462, %v463
        %v465 = vshll.u32 2131351028, %v456
        %v466 = vshrl.u32 2102212464, %v457
        %v467 = vor.u32 %v465, %v466
        %v468 = vshll.u32 2102212464, %v456
        %v469 = vshrl.u32 920167782, %v457
        %v470 = vor.u32 %v468, %v469
        %v471 = vshll.u32 920167782, %v456
        %v472 = vshrl.u32 1326507024, %v457
        %v473 = vor.u32 %v471, %v472
        %vm474 = vcmp.lt.s32.totalorder %v455, 1
        %vm475 = vcmp.lt.s32.totalorder %v455, 2
        %vm476 = vcmp.lt.s32.totalorder %v455, 3
        %vm477 = vcmp.lt.s32.totalorder %v455, 4
        %v478 = vsel %vm474, %v458, %v461
        %v479 = vsel %vm477, %v467, 2102212464
        %v480 = vsel %vm476, %v464, %v479
        %v481 = vsel %vm475, %v478, %v480
        %v482 = vsel %vm474, %v461, %v464
        %v483 = vsel %vm477, %v470, 920167782
        %v484 = vsel %vm476, %v467, %v483
        %v485 = vsel %vm475, %v482, %v484
        %v486 = vsel %vm474, %v464, %v467
        %v487 = vsel %vm477, %v473, 1326507024
        %v488 = vsel %vm476, %v470, %v487
        %v489 = vsel %vm475, %v486, %v488
        %v490 = vshll.u32 %v450, 8
        %v491 = vmul.u32.u64.compose %v490, %v489
        %v492 = vextract.low.u32 %v491
        %v493 = vextract.high.u32 %v491
        %v494 = vmul.u32.u64.compose %v490, %v485
        %v495 = vextract.low.u32 %v494
        %v496 = vextract.high.u32 %v494
        %v497 = vmul.u32 %v490, %v481
        %v498 = vadd.s32 %v493, %v495
        %vm499 = vc.u32 %v493, %v495
        %v500 = vadd.s32 %v496, 1
        %v501 = vsel %vm499, %v500, %v496
        %v502 = vadd.s32 %v497, %v501
        %v503 = vadd.s32 %v502, 536870912
        %v504 = vshrl.u32 %v503, 30
        %v505 = vshll.u32 %v504, 30
        %v506 = vsub.s32 %v502, %v505
        %vm507 = vcmp.lt.s32.totalorder %v506, 0
        %v508 = vsub.s32 0, %v506
        %v509 = vsel %vm507, %v508, %v506
        %v510 = vclz %v509
        %v511 = vsub.s32 %v510, 2
        %vm512 = vcmp.gt.s32.totalorder 0, %v511
        %v513 = vsel %vm512, 0, %v511
        %v514 = vsub.s32 32, %v513
        %v515 = vshll.u32 %v506, %v513
        %v516 = vshrl.u32 %v498, %v514
        %v517 = vor.u32 %v515, %v516
        %v518 = vsub.s32 4294967266, %v513
        %v519 = vadd.s32 %v518, 127
        %v520 = vshll.u32 %v519, 23
        %v521 = vor.u32 4788187, %v520
        %v522 = vand.u32 2147483647, %v521
        %v524 = vcvt.s32.f32 %v517
        %v525 = vmul.f32 %v524, %v522
        %v526 = vxor.u32 %v525, 2147483648
        %v527 = vsel %vm444, %v526, %v525
        %v528 = vsub.s32 4, %v504
        %v529 = vsel %vm444, %v528, %v504
        %v530 = vsel %vm443, %v335, %v527
        %v531 = vsel %vm443, 0, %v529
        %v532 = vcosq.f32.pop %v530
        %v533 = vsinq.f32.pop %v530
        %vm534 = vweird.f32 %v335
        %v535 = vadd.s32 %v531, 3
        %v536 = vand.u32 %v535, 3
        %vm537 = vcmp.lt.s32.totalorder %v536, 2
        %vm538 = vcmp.eq.s32.totalorder %v536, 0
        %v539 = vxor.u32 %v533, 2147483648
        %v540 = vsel %vm538, %v532, %v539
        %vm541 = vcmp.eq.s32.totalorder %v536, 2
        %v542 = vxor.u32 %v532, 2147483648
        %v543 = vsel %vm541, %v542, %v533
        %v544 = vsel %vm537, %v540, %v543
        %v545 = vsel %vm534, nan, %v544
        %v546 = vrcp.pop %v334
        %v547 = vrcp.pop %v335
        %v548 = vmul.f32 %v334, %v546
        %v549 = vmul.f32 %v335, %v547
        %v550 = vsub.f32 2.0, %v548
        %v551 = vsub.f32 2.0, %v549
        %v552 = vmul.f32 %v546, %v550
        %v553 = vmul.f32 %v547, %v551
        %vm554 = vcmp.lt.f32.partialorder %v336, 1e-06
        %vm555 = vcmp.lt.f32.partialorder %v337, 1e-06
        %v556 = vmul.f32 %v336, 0.16666667
        %v557 = vmul.f32 %v337, 0.16666667
        %v558 = vsub.f32 1.0, %v556
        %v559 = vsub.f32 1.0, %v557
        %v560 = vmul.f32 %v441, %v552
        %v561 = vmul.f32 %v545, %v553
        %v562 = vsel %vm554, %v558, %v560
        %v563 = vsel %vm555, %v559, %v561
        %564 = vset.pattern.permute.xlu0 1
        %565 = vperm.xlu0 %564, %v288
        %v566 = vpop.permute.xlu0 %565
        %568 = vset.pattern.permute.xlu0 1
        %569 = vperm.xlu0 %568, %v289
        %v570 = vpop.permute.xlu0 %569
        %v572 = vlaneseq
        %v573 = vshrl.u32 %v572, 7
        %v574 = vsub.s32 1, %v573
        %v575 = vrot.slane %v294, %v574
        %v576 = vsub.f32 %v566, %v575
        %v577 = vsub.f32 %v570, %v575
        %v578 = vmul.f32 %v576, %v576
        %v579 = vmul.f32 %v577, %v577
        %v580 = vand.u32 2147483647, %v576
        %vm581 = vcmp.le.f32.partialorder %v580, 0.7853982
        %vm582 = vcmp.lt.s32.totalorder %v576, 0
        %v583 = vand.u32 %v576, 2139095040
        %v584 = vshrl.u32 %v583, 23
        %v585 = vsub.s32 %v584, 127
        %v586 = vand.u32 2147483647, %v576
        %v587 = vand.u32 %v586, 8388607
        %v588 = vor.u32 %v587, 8388608
        %v589 = vsub.s32 0, %v588
        %v590 = vadd.s32 %v585, 1
        %vm591 = vcmp.gt.s32.totalorder %v590, 0
        %v592 = vsel %vm591, %v590, 0
        %v593 = vshrl.u32 %v592, 5
        %v594 = vand.u32 %v592, 31
        %v595 = vsub.s32 32, %v594
        %v596 = vshrl.u32 683565275, %v595
        %v597 = vshll.u32 683565275, %v594
        %v598 = vshrl.u32 2475754826, %v595
        %v599 = vor.u32 %v597, %v598
        %v600 = vshll.u32 2475754826, %v594
        %v601 = vshrl.u32 2131351028, %v595
        %v602 = vor.u32 %v600, %v601
        %v603 = vshll.u32 2131351028, %v594
        %v604 = vshrl.u32 2102212464, %v595
        %v605 = vor.u32 %v603, %v604
        %v606 = vshll.u32 2102212464, %v594
        %v607 = vshrl.u32 920167782, %v595
        %v608 = vor.u32 %v606, %v607
        %v609 = vshll.u32 920167782, %v594
        %v610 = vshrl.u32 1326507024, %v595
        %v611 = vor.u32 %v609, %v610
        %vm612 = vcmp.lt.s32.totalorder %v593, 1
        %vm613 = vcmp.lt.s32.totalorder %v593, 2
        %vm614 = vcmp.lt.s32.totalorder %v593, 3
        %vm615 = vcmp.lt.s32.totalorder %v593, 4
        %v616 = vsel %vm612, %v596, %v599
        %v617 = vsel %vm615, %v605, 2102212464
        %v618 = vsel %vm614, %v602, %v617
        %v619 = vsel %vm613, %v616, %v618
        %v620 = vsel %vm612, %v599, %v602
        %v621 = vsel %vm615, %v608, 920167782
        %v622 = vsel %vm614, %v605, %v621
        %v623 = vsel %vm613, %v620, %v622
        %v624 = vsel %vm612, %v602, %v605
        %v625 = vsel %vm615, %v611, 1326507024
        %v626 = vsel %vm614, %v608, %v625
        %v627 = vsel %vm613, %v624, %v626
        %v628 = vshll.u32 %v588, 8
        %v629 = vmul.u32.u64.compose %v628, %v627
        %v630 = vextract.low.u32 %v629
        %v631 = vextract.high.u32 %v629
        %v632 = vmul.u32.u64.compose %v628, %v623
        %v633 = vextract.low.u32 %v632
        %v634 = vextract.high.u32 %v632
        %v635 = vmul.u32 %v628, %v619
        %v636 = vadd.s32 %v631, %v633
        %vm637 = vc.u32 %v631, %v633
        %v638 = vadd.s32 %v634, 1
        %v639 = vsel %vm637, %v638, %v634
        %v640 = vadd.s32 %v635, %v639
        %v641 = vadd.s32 %v640, 536870912
        %v642 = vshrl.u32 %v641, 30
        %v643 = vshll.u32 %v642, 30
        %v644 = vsub.s32 %v640, %v643
        %vm645 = vcmp.lt.s32.totalorder %v644, 0
        %v646 = vsub.s32 0, %v644
        %v647 = vsel %vm645, %v646, %v644
        %v648 = vclz %v647
        %v649 = vsub.s32 %v648, 2
        %vm650 = vcmp.gt.s32.totalorder 0, %v649
        %v651 = vsel %vm650, 0, %v649
        %v652 = vsub.s32 32, %v651
        %v653 = vshll.u32 %v644, %v651
        %v654 = vshrl.u32 %v636, %v652
        %v655 = vor.u32 %v653, %v654
        %v656 = vsub.s32 4294967266, %v651
        %v657 = vadd.s32 %v656, 127
        %v658 = vshll.u32 %v657, 23
        %v659 = vor.u32 4788187, %v658
        %v660 = vand.u32 2147483647, %v659
        %v662 = vcvt.s32.f32 %v655
        %v663 = vmul.f32 %v662, %v660
        %v664 = vxor.u32 %v663, 2147483648
        %v665 = vsel %vm582, %v664, %v663
        %v666 = vsub.s32 4, %v642
        %v667 = vsel %vm582, %v666, %v642
        %v668 = vsel %vm581, %v576, %v665
        %v669 = vsel %vm581, 0, %v667
        %v670 = vcosq.f32.pop %v668
        %v671 = vsinq.f32.pop %v668
        %vm672 = vweird.f32 %v576
        %v673 = vadd.s32 %v669, 3
        %v674 = vand.u32 %v673, 3
        %vm675 = vcmp.lt.s32.totalorder %v674, 2
        %vm676 = vcmp.eq.s32.totalorder %v674, 0
        %v677 = vxor.u32 %v671, 2147483648
        %v678 = vsel %vm676, %v670, %v677
        %vm679 = vcmp.eq.s32.totalorder %v674, 2
        %v680 = vxor.u32 %v670, 2147483648
        %v681 = vsel %vm679, %v680, %v671
        %v682 = vsel %vm675, %v678, %v681
        %v683 = vsel %vm672, nan, %v682
        %v684 = vand.u32 2147483647, %v577
        %vm685 = vcmp.le.f32.partialorder %v684, 0.7853982
        %vm686 = vcmp.lt.s32.totalorder %v577, 0
        %v687 = vand.u32 %v577, 2139095040
        %v688 = vshrl.u32 %v687, 23
        %v689 = vsub.s32 %v688, 127
        %v690 = vand.u32 2147483647, %v577
        %v691 = vand.u32 %v690, 8388607
        %v692 = vor.u32 %v691, 8388608
        %v693 = vsub.s32 0, %v692
        %v694 = vadd.s32 %v689, 1
        %vm695 = vcmp.gt.s32.totalorder %v694, 0
        %v696 = vsel %vm695, %v694, 0
        %v697 = vshrl.u32 %v696, 5
        %v698 = vand.u32 %v696, 31
        %v699 = vsub.s32 32, %v698
        %v700 = vshrl.u32 683565275, %v699
        %v701 = vshll.u32 683565275, %v698
        %v702 = vshrl.u32 2475754826, %v699
        %v703 = vor.u32 %v701, %v702
        %v704 = vshll.u32 2475754826, %v698
        %v705 = vshrl.u32 2131351028, %v699
        %v706 = vor.u32 %v704, %v705
        %v707 = vshll.u32 2131351028, %v698
        %v708 = vshrl.u32 2102212464, %v699
        %v709 = vor.u32 %v707, %v708
        %v710 = vshll.u32 2102212464, %v698
        %v711 = vshrl.u32 920167782, %v699
        %v712 = vor.u32 %v710, %v711
        %v713 = vshll.u32 920167782, %v698
        %v714 = vshrl.u32 1326507024, %v699
        %v715 = vor.u32 %v713, %v714
        %vm716 = vcmp.lt.s32.totalorder %v697, 1
        %vm717 = vcmp.lt.s32.totalorder %v697, 2
        %vm718 = vcmp.lt.s32.totalorder %v697, 3
        %vm719 = vcmp.lt.s32.totalorder %v697, 4
        %v720 = vsel %vm716, %v700, %v703
        %v721 = vsel %vm719, %v709, 2102212464
        %v722 = vsel %vm718, %v706, %v721
        %v723 = vsel %vm717, %v720, %v722
        %v724 = vsel %vm716, %v703, %v706
        %v725 = vsel %vm719, %v712, 920167782
        %v726 = vsel %vm718, %v709, %v725
        %v727 = vsel %vm717, %v724, %v726
        %v728 = vsel %vm716, %v706, %v709
        %v729 = vsel %vm719, %v715, 1326507024
        %v730 = vsel %vm718, %v712, %v729
        %v731 = vsel %vm717, %v728, %v730
        %v732 = vshll.u32 %v692, 8
        %v733 = vmul.u32.u64.compose %v732, %v731
        %v734 = vextract.low.u32 %v733
        %v735 = vextract.high.u32 %v733
        %v736 = vmul.u32.u64.compose %v732, %v727
        %v737 = vextract.low.u32 %v736
        %v738 = vextract.high.u32 %v736
        %v739 = vmul.u32 %v732, %v723
        %v740 = vadd.s32 %v735, %v737
        %vm741 = vc.u32 %v735, %v737
        %v742 = vadd.s32 %v738, 1
        %v743 = vsel %vm741, %v742, %v738
        %v744 = vadd.s32 %v739, %v743
        %v745 = vadd.s32 %v744, 536870912
        %v746 = vshrl.u32 %v745, 30
        %v747 = vshll.u32 %v746, 30
        %v748 = vsub.s32 %v744, %v747
        %vm749 = vcmp.lt.s32.totalorder %v748, 0
        %v750 = vsub.s32 0, %v748
        %v751 = vsel %vm749, %v750, %v748
        %v752 = vclz %v751
        %v753 = vsub.s32 %v752, 2
        %vm754 = vcmp.gt.s32.totalorder 0, %v753
        %v755 = vsel %vm754, 0, %v753
        %v756 = vsub.s32 32, %v755
        %v757 = vshll.u32 %v748, %v755
        %v758 = vshrl.u32 %v740, %v756
        %v759 = vor.u32 %v757, %v758
        %v760 = vsub.s32 4294967266, %v755
        %v761 = vadd.s32 %v760, 127
        %v762 = vshll.u32 %v761, 23
        %v763 = vor.u32 4788187, %v762
        %v764 = vand.u32 2147483647, %v763
        %v766 = vcvt.s32.f32 %v759
        %v767 = vmul.f32 %v766, %v764
        %v768 = vxor.u32 %v767, 2147483648
        %v769 = vsel %vm686, %v768, %v767
        %v770 = vsub.s32 4, %v746
        %v771 = vsel %vm686, %v770, %v746
        %v772 = vsel %vm685, %v577, %v769
        %v773 = vsel %vm685, 0, %v771
        %v774 = vcosq.f32.pop %v772
        %v775 = vsinq.f32.pop %v772
        %vm776 = vweird.f32 %v577
        %v777 = vadd.s32 %v773, 3
        %v778 = vand.u32 %v777, 3
        %vm779 = vcmp.lt.s32.totalorder %v778, 2
        %vm780 = vcmp.eq.s32.totalorder %v778, 0
        %v781 = vxor.u32 %v775, 2147483648
        %v782 = vsel %vm780, %v774, %v781
        %vm783 = vcmp.eq.s32.totalorder %v778, 2
        %v784 = vxor.u32 %v774, 2147483648
        %v785 = vsel %vm783, %v784, %v775
        %v786 = vsel %vm779, %v782, %v785
        %v787 = vsel %vm776, nan, %v786
        %v788 = vrcp.pop %v576
        %v789 = vrcp.pop %v577
        %v790 = vmul.f32 %v576, %v788
        %v791 = vmul.f32 %v577, %v789
        %v792 = vsub.f32 2.0, %v790
        %v793 = vsub.f32 2.0, %v791
        %v794 = vmul.f32 %v788, %v792
        %v795 = vmul.f32 %v789, %v793
        %vm796 = vcmp.lt.f32.partialorder %v578, 1e-06
        %vm797 = vcmp.lt.f32.partialorder %v579, 1e-06
        %v798 = vmul.f32 %v578, 0.16666667
        %v799 = vmul.f32 %v579, 0.16666667
        %v800 = vsub.f32 1.0, %v798
        %v801 = vsub.f32 1.0, %v799
        %v802 = vmul.f32 %v683, %v794
        %v803 = vmul.f32 %v787, %v795
        %v804 = vsel %vm796, %v800, %v802
        %v805 = vsel %vm797, %v801, %v803
        %v806 = vmul.f32 %v562, %v804
        %v807 = vmul.f32 %v563, %v805
        %808 = vset.pattern.permute.xlu0 2
        %809 = vperm.xlu0 %808, %v288
        %v810 = vpop.permute.xlu0 %809
        %812 = vset.pattern.permute.xlu0 2
        %813 = vperm.xlu0 %812, %v289
        %v814 = vpop.permute.xlu0 %813
        %v816 = vlaneseq
        %v817 = vshrl.u32 %v816, 7
        %v818 = vsub.s32 2, %v817
        %v819 = vrot.slane %v294, %v818
        %v820 = vsub.f32 %v810, %v819
        %v821 = vsub.f32 %v814, %v819
        %v822 = vmul.f32 %v820, %v820
        %v823 = vmul.f32 %v821, %v821
        %v824 = vand.u32 2147483647, %v820
        %vm825 = vcmp.le.f32.partialorder %v824, 0.7853982
        %vm826 = vcmp.lt.s32.totalorder %v820, 0
        %v827 = vand.u32 %v820, 2139095040
        %v828 = vshrl.u32 %v827, 23
        %v829 = vsub.s32 %v828, 127
        %v830 = vand.u32 2147483647, %v820
        %v831 = vand.u32 %v830, 8388607
        %v832 = vor.u32 %v831, 8388608
        %v833 = vsub.s32 0, %v832
        %v834 = vadd.s32 %v829, 1
        %vm835 = vcmp.gt.s32.totalorder %v834, 0
        %v836 = vsel %vm835, %v834, 0
        %v837 = vshrl.u32 %v836, 5
        %v838 = vand.u32 %v836, 31
        %v839 = vsub.s32 32, %v838
        %v840 = vshrl.u32 683565275, %v839
        %v841 = vshll.u32 683565275, %v838
        %v842 = vshrl.u32 2475754826, %v839
        %v843 = vor.u32 %v841, %v842
        %v844 = vshll.u32 2475754826, %v838
        %v845 = vshrl.u32 2131351028, %v839
        %v846 = vor.u32 %v844, %v845
        %v847 = vshll.u32 2131351028, %v838
        %v848 = vshrl.u32 2102212464, %v839
        %v849 = vor.u32 %v847, %v848
        %v850 = vshll.u32 2102212464, %v838
        %v851 = vshrl.u32 920167782, %v839
        %v852 = vor.u32 %v850, %v851
        %v853 = vshll.u32 920167782, %v838
        %v854 = vshrl.u32 1326507024, %v839
        %v855 = vor.u32 %v853, %v854
        %vm856 = vcmp.lt.s32.totalorder %v837, 1
        %vm857 = vcmp.lt.s32.totalorder %v837, 2
        %vm858 = vcmp.lt.s32.totalorder %v837, 3
        %vm859 = vcmp.lt.s32.totalorder %v837, 4
        %v860 = vsel %vm856, %v840, %v843
        %v861 = vsel %vm859, %v849, 2102212464
        %v862 = vsel %vm858, %v846, %v861
        %v863 = vsel %vm857, %v860, %v862
        %v864 = vsel %vm856, %v843, %v846
        %v865 = vsel %vm859, %v852, 920167782
        %v866 = vsel %vm858, %v849, %v865
        %v867 = vsel %vm857, %v864, %v866
        %v868 = vsel %vm856, %v846, %v849
        %v869 = vsel %vm859, %v855, 1326507024
        %v870 = vsel %vm858, %v852, %v869
        %v871 = vsel %vm857, %v868, %v870
        %v872 = vshll.u32 %v832, 8
        %v873 = vmul.u32.u64.compose %v872, %v871
        %v874 = vextract.low.u32 %v873
        %v875 = vextract.high.u32 %v873
        %v876 = vmul.u32.u64.compose %v872, %v867
        %v877 = vextract.low.u32 %v876
        %v878 = vextract.high.u32 %v876
        %v879 = vmul.u32 %v872, %v863
        %v880 = vadd.s32 %v875, %v877
        %vm881 = vc.u32 %v875, %v877
        %v882 = vadd.s32 %v878, 1
        %v883 = vsel %vm881, %v882, %v878
        %v884 = vadd.s32 %v879, %v883
        %v885 = vadd.s32 %v884, 536870912
        %v886 = vshrl.u32 %v885, 30
        %v887 = vshll.u32 %v886, 30
        %v888 = vsub.s32 %v884, %v887
        %vm889 = vcmp.lt.s32.totalorder %v888, 0
        %v890 = vsub.s32 0, %v888
        %v891 = vsel %vm889, %v890, %v888
        %v892 = vclz %v891
        %v893 = vsub.s32 %v892, 2
        %vm894 = vcmp.gt.s32.totalorder 0, %v893
        %v895 = vsel %vm894, 0, %v893
        %v896 = vsub.s32 32, %v895
        %v897 = vshll.u32 %v888, %v895
        %v898 = vshrl.u32 %v880, %v896
        %v899 = vor.u32 %v897, %v898
        %v900 = vsub.s32 4294967266, %v895
        %v901 = vadd.s32 %v900, 127
        %v902 = vshll.u32 %v901, 23
        %v903 = vor.u32 4788187, %v902
        %v904 = vand.u32 2147483647, %v903
        %v906 = vcvt.s32.f32 %v899
        %v907 = vmul.f32 %v906, %v904
        %v908 = vxor.u32 %v907, 2147483648
        %v909 = vsel %vm826, %v908, %v907
        %v910 = vsub.s32 4, %v886
        %v911 = vsel %vm826, %v910, %v886
        %v912 = vsel %vm825, %v820, %v909
        %v913 = vsel %vm825, 0, %v911
        %v914 = vcosq.f32.pop %v912
        %v915 = vsinq.f32.pop %v912
        %vm916 = vweird.f32 %v820
        %v917 = vadd.s32 %v913, 3
        %v918 = vand.u32 %v917, 3
        %vm919 = vcmp.lt.s32.totalorder %v918, 2
        %vm920 = vcmp.eq.s32.totalorder %v918, 0
        %v921 = vxor.u32 %v915, 2147483648
        %v922 = vsel %vm920, %v914, %v921
        %vm923 = vcmp.eq.s32.totalorder %v918, 2
        %v924 = vxor.u32 %v914, 2147483648
        %v925 = vsel %vm923, %v924, %v915
        %v926 = vsel %vm919, %v922, %v925
        %v927 = vsel %vm916, nan, %v926
        %v928 = vand.u32 2147483647, %v821
        %vm929 = vcmp.le.f32.partialorder %v928, 0.7853982
        %vm930 = vcmp.lt.s32.totalorder %v821, 0
        %v931 = vand.u32 %v821, 2139095040
        %v932 = vshrl.u32 %v931, 23
        %v933 = vsub.s32 %v932, 127
        %v934 = vand.u32 2147483647, %v821
        %v935 = vand.u32 %v934, 8388607
        %v936 = vor.u32 %v935, 8388608
        %v937 = vsub.s32 0, %v936
        %v938 = vadd.s32 %v933, 1
        %vm939 = vcmp.gt.s32.totalorder %v938, 0
        %v940 = vsel %vm939, %v938, 0
        %v941 = vshrl.u32 %v940, 5
        %v942 = vand.u32 %v940, 31
        %v943 = vsub.s32 32, %v942
        %v944 = vshrl.u32 683565275, %v943
        %v945 = vshll.u32 683565275, %v942
        %v946 = vshrl.u32 2475754826, %v943
        %v947 = vor.u32 %v945, %v946
        %v948 = vshll.u32 2475754826, %v942
        %v949 = vshrl.u32 2131351028, %v943
        %v950 = vor.u32 %v948, %v949
        %v951 = vshll.u32 2131351028, %v942
        %v952 = vshrl.u32 2102212464, %v943
        %v953 = vor.u32 %v951, %v952
        %v954 = vshll.u32 2102212464, %v942
        %v955 = vshrl.u32 920167782, %v943
        %v956 = vor.u32 %v954, %v955
        %v957 = vshll.u32 920167782, %v942
        %v958 = vshrl.u32 1326507024, %v943
        %v959 = vor.u32 %v957, %v958
        %vm960 = vcmp.lt.s32.totalorder %v941, 1
        %vm961 = vcmp.lt.s32.totalorder %v941, 2
        %vm962 = vcmp.lt.s32.totalorder %v941, 3
        %vm963 = vcmp.lt.s32.totalorder %v941, 4
        %v964 = vsel %vm960, %v944, %v947
        %v965 = vsel %vm963, %v953, 2102212464
        %v966 = vsel %vm962, %v950, %v965
        %v967 = vsel %vm961, %v964, %v966
        %v968 = vsel %vm960, %v947, %v950
        %v969 = vsel %vm963, %v956, 920167782
        %v970 = vsel %vm962, %v953, %v969
        %v971 = vsel %vm961, %v968, %v970
        %v972 = vsel %vm960, %v950, %v953
        %v973 = vsel %vm963, %v959, 1326507024
        %v974 = vsel %vm962, %v956, %v973
        %v975 = vsel %vm961, %v972, %v974
        %v976 = vshll.u32 %v936, 8
        %v977 = vmul.u32.u64.compose %v976, %v975
        %v978 = vextract.low.u32 %v977
        %v979 = vextract.high.u32 %v977
        %v980 = vmul.u32.u64.compose %v976, %v971
        %v981 = vextract.low.u32 %v980
        %v982 = vextract.high.u32 %v980
        %v983 = vmul.u32 %v976, %v967
        %v984 = vadd.s32 %v979, %v981
        %vm985 = vc.u32 %v979, %v981
        %v986 = vadd.s32 %v982, 1
        %v987 = vsel %vm985, %v986, %v982
        %v988 = vadd.s32 %v983, %v987
        %v989 = vadd.s32 %v988, 536870912
        %v990 = vshrl.u32 %v989, 30
        %v991 = vshll.u32 %v990, 30
        %v992 = vsub.s32 %v988, %v991
        %vm993 = vcmp.lt.s32.totalorder %v992, 0
        %v994 = vsub.s32 0, %v992
        %v995 = vsel %vm993, %v994, %v992
        %v996 = vclz %v995
        %v997 = vsub.s32 %v996, 2
        %vm998 = vcmp.gt.s32.totalorder 0, %v997
        %v999 = vsel %vm998, 0, %v997
        %v1000 = vsub.s32 32, %v999
        %v1001 = vshll.u32 %v992, %v999
        %v1002 = vshrl.u32 %v984, %v1000
        %v1003 = vor.u32 %v1001, %v1002
        %v1004 = vsub.s32 4294967266, %v999
        %v1005 = vadd.s32 %v1004, 127
        %v1006 = vshll.u32 %v1005, 23
        %v1007 = vor.u32 4788187, %v1006
        %v1008 = vand.u32 2147483647, %v1007
        %v1010 = vcvt.s32.f32 %v1003
        %v1011 = vmul.f32 %v1010, %v1008
        %v1012 = vxor.u32 %v1011, 2147483648
        %v1013 = vsel %vm930, %v1012, %v1011
        %v1014 = vsub.s32 4, %v990
        %v1015 = vsel %vm930, %v1014, %v990
        %v1016 = vsel %vm929, %v821, %v1013
        %v1017 = vsel %vm929, 0, %v1015
        %v1018 = vcosq.f32.pop %v1016
        %v1019 = vsinq.f32.pop %v1016
        %vm1020 = vweird.f32 %v821
        %v1021 = vadd.s32 %v1017, 3
        %v1022 = vand.u32 %v1021, 3
        %vm1023 = vcmp.lt.s32.totalorder %v1022, 2
        %vm1024 = vcmp.eq.s32.totalorder %v1022, 0
        %v1025 = vxor.u32 %v1019, 2147483648
        %v1026 = vsel %vm1024, %v1018, %v1025
        %vm1027 = vcmp.eq.s32.totalorder %v1022, 2
        %v1028 = vxor.u32 %v1018, 2147483648
        %v1029 = vsel %vm1027, %v1028, %v1019
        %v1030 = vsel %vm1023, %v1026, %v1029
        %v1031 = vsel %vm1020, nan, %v1030
        %v1032 = vrcp.pop %v820
        %v1033 = vrcp.pop %v821
        %v1034 = vmul.f32 %v820, %v1032
        %v1035 = vmul.f32 %v821, %v1033
        %v1036 = vsub.f32 2.0, %v1034
        %v1037 = vsub.f32 2.0, %v1035
        %v1038 = vmul.f32 %v1032, %v1036
        %v1039 = vmul.f32 %v1033, %v1037
        %vm1040 = vcmp.lt.f32.partialorder %v822, 1e-06
        %vm1041 = vcmp.lt.f32.partialorder %v823, 1e-06
        %v1042 = vmul.f32 %v822, 0.16666667
        %v1043 = vmul.f32 %v823, 0.16666667
        %v1044 = vsub.f32 1.0, %v1042
        %v1045 = vsub.f32 1.0, %v1043
        %v1046 = vmul.f32 %v927, %v1038
        %v1047 = vmul.f32 %v1031, %v1039
        %v1048 = vsel %vm1040, %v1044, %v1046
        %v1049 = vsel %vm1041, %v1045, %v1047
        %v1050 = vmul.f32 %v806, %v1048
        %v1051 = vmul.f32 %v807, %v1049
        %1052 = vset.pattern.permute.xlu0 3
        %1053 = vperm.xlu0 %1052, %v288
        %v1054 = vpop.permute.xlu0 %1053
        %1056 = vset.pattern.permute.xlu0 3
        %1057 = vperm.xlu0 %1056, %v289
        %v1058 = vpop.permute.xlu0 %1057
        %v1060 = vlaneseq
        %v1061 = vshrl.u32 %v1060, 7
        %v1062 = vsub.s32 3, %v1061
        %v1063 = vrot.slane %v294, %v1062
        %v1064 = vsub.f32 %v1054, %v1063
        %v1065 = vsub.f32 %v1058, %v1063
        %v1066 = vmul.f32 %v1064, %v1064
        %v1067 = vmul.f32 %v1065, %v1065
        %v1068 = vand.u32 2147483647, %v1064
        %vm1069 = vcmp.le.f32.partialorder %v1068, 0.7853982
        %vm1070 = vcmp.lt.s32.totalorder %v1064, 0
        %v1071 = vand.u32 %v1064, 2139095040
        %v1072 = vshrl.u32 %v1071, 23
        %v1073 = vsub.s32 %v1072, 127
        %v1074 = vand.u32 2147483647, %v1064
        %v1075 = vand.u32 %v1074, 8388607
        %v1076 = vor.u32 %v1075, 8388608
        %v1077 = vsub.s32 0, %v1076
        %v1078 = vadd.s32 %v1073, 1
        %vm1079 = vcmp.gt.s32.totalorder %v1078, 0
        %v1080 = vsel %vm1079, %v1078, 0
        %v1081 = vshrl.u32 %v1080, 5
        %v1082 = vand.u32 %v1080, 31
        %v1083 = vsub.s32 32, %v1082
        %v1084 = vshrl.u32 683565275, %v1083
        %v1085 = vshll.u32 683565275, %v1082
        %v1086 = vshrl.u32 2475754826, %v1083
        %v1087 = vor.u32 %v1085, %v1086
        %v1088 = vshll.u32 2475754826, %v1082
        %v1089 = vshrl.u32 2131351028, %v1083
        %v1090 = vor.u32 %v1088, %v1089
        %v1091 = vshll.u32 2131351028, %v1082
        %v1092 = vshrl.u32 2102212464, %v1083
        %v1093 = vor.u32 %v1091, %v1092
        %v1094 = vshll.u32 2102212464, %v1082
        %v1095 = vshrl.u32 920167782, %v1083
        %v1096 = vor.u32 %v1094, %v1095
        %v1097 = vshll.u32 920167782, %v1082
        %v1098 = vshrl.u32 1326507024, %v1083
        %v1099 = vor.u32 %v1097, %v1098
        %vm1100 = vcmp.lt.s32.totalorder %v1081, 1
        %vm1101 = vcmp.lt.s32.totalorder %v1081, 2
        %vm1102 = vcmp.lt.s32.totalorder %v1081, 3
        %vm1103 = vcmp.lt.s32.totalorder %v1081, 4
        %v1104 = vsel %vm1100, %v1084, %v1087
        %v1105 = vsel %vm1103, %v1093, 2102212464
        %v1106 = vsel %vm1102, %v1090, %v1105
        %v1107 = vsel %vm1101, %v1104, %v1106
        %v1108 = vsel %vm1100, %v1087, %v1090
        %v1109 = vsel %vm1103, %v1096, 920167782
        %v1110 = vsel %vm1102, %v1093, %v1109
        %v1111 = vsel %vm1101, %v1108, %v1110
        %v1112 = vsel %vm1100, %v1090, %v1093
        %v1113 = vsel %vm1103, %v1099, 1326507024
        %v1114 = vsel %vm1102, %v1096, %v1113
        %v1115 = vsel %vm1101, %v1112, %v1114
        %v1116 = vshll.u32 %v1076, 8
        %v1117 = vmul.u32.u64.compose %v1116, %v1115
        %v1118 = vextract.low.u32 %v1117
        %v1119 = vextract.high.u32 %v1117
        %v1120 = vmul.u32.u64.compose %v1116, %v1111
        %v1121 = vextract.low.u32 %v1120
        %v1122 = vextract.high.u32 %v1120
        %v1123 = vmul.u32 %v1116, %v1107
        %v1124 = vadd.s32 %v1119, %v1121
        %vm1125 = vc.u32 %v1119, %v1121
        %v1126 = vadd.s32 %v1122, 1
        %v1127 = vsel %vm1125, %v1126, %v1122
        %v1128 = vadd.s32 %v1123, %v1127
        %v1129 = vadd.s32 %v1128, 536870912
        %v1130 = vshrl.u32 %v1129, 30
        %v1131 = vshll.u32 %v1130, 30
        %v1132 = vsub.s32 %v1128, %v1131
        %vm1133 = vcmp.lt.s32.totalorder %v1132, 0
        %v1134 = vsub.s32 0, %v1132
        %v1135 = vsel %vm1133, %v1134, %v1132
        %v1136 = vclz %v1135
        %v1137 = vsub.s32 %v1136, 2
        %vm1138 = vcmp.gt.s32.totalorder 0, %v1137
        %v1139 = vsel %vm1138, 0, %v1137
        %v1140 = vsub.s32 32, %v1139
        %v1141 = vshll.u32 %v1132, %v1139
        %v1142 = vshrl.u32 %v1124, %v1140
        %v1143 = vor.u32 %v1141, %v1142
        %v1144 = vsub.s32 4294967266, %v1139
        %v1145 = vadd.s32 %v1144, 127
        %v1146 = vshll.u32 %v1145, 23
        %v1147 = vor.u32 4788187, %v1146
        %v1148 = vand.u32 2147483647, %v1147
        %v1150 = vcvt.s32.f32 %v1143
        %v1151 = vmul.f32 %v1150, %v1148
        %v1152 = vxor.u32 %v1151, 2147483648
        %v1153 = vsel %vm1070, %v1152, %v1151
        %v1154 = vsub.s32 4, %v1130
        %v1155 = vsel %vm1070, %v1154, %v1130
        %v1156 = vsel %vm1069, %v1064, %v1153
        %v1157 = vsel %vm1069, 0, %v1155
        %v1158 = vcosq.f32.pop %v1156
        %v1159 = vsinq.f32.pop %v1156
        %vm1160 = vweird.f32 %v1064
        %v1161 = vadd.s32 %v1157, 3
        %v1162 = vand.u32 %v1161, 3
        %vm1163 = vcmp.lt.s32.totalorder %v1162, 2
        %vm1164 = vcmp.eq.s32.totalorder %v1162, 0
        %v1165 = vxor.u32 %v1159, 2147483648
        %v1166 = vsel %vm1164, %v1158, %v1165
        %vm1167 = vcmp.eq.s32.totalorder %v1162, 2
        %v1168 = vxor.u32 %v1158, 2147483648
        %v1169 = vsel %vm1167, %v1168, %v1159
        %v1170 = vsel %vm1163, %v1166, %v1169
        %v1171 = vsel %vm1160, nan, %v1170
        %v1172 = vand.u32 2147483647, %v1065
        %vm1173 = vcmp.le.f32.partialorder %v1172, 0.7853982
        %vm1174 = vcmp.lt.s32.totalorder %v1065, 0
        %v1175 = vand.u32 %v1065, 2139095040
        %v1176 = vshrl.u32 %v1175, 23
        %v1177 = vsub.s32 %v1176, 127
        %v1178 = vand.u32 2147483647, %v1065
        %v1179 = vand.u32 %v1178, 8388607
        %v1180 = vor.u32 %v1179, 8388608
        %v1181 = vsub.s32 0, %v1180
        %v1182 = vadd.s32 %v1177, 1
        %vm1183 = vcmp.gt.s32.totalorder %v1182, 0
        %v1184 = vsel %vm1183, %v1182, 0
        %v1185 = vshrl.u32 %v1184, 5
        %v1186 = vand.u32 %v1184, 31
        %v1187 = vsub.s32 32, %v1186
        %v1188 = vshrl.u32 683565275, %v1187
        %v1189 = vshll.u32 683565275, %v1186
        %v1190 = vshrl.u32 2475754826, %v1187
        %v1191 = vor.u32 %v1189, %v1190
        %v1192 = vshll.u32 2475754826, %v1186
        %v1193 = vshrl.u32 2131351028, %v1187
        %v1194 = vor.u32 %v1192, %v1193
        %v1195 = vshll.u32 2131351028, %v1186
        %v1196 = vshrl.u32 2102212464, %v1187
        %v1197 = vor.u32 %v1195, %v1196
        %v1198 = vshll.u32 2102212464, %v1186
        %v1199 = vshrl.u32 920167782, %v1187
        %v1200 = vor.u32 %v1198, %v1199
        %v1201 = vshll.u32 920167782, %v1186
        %v1202 = vshrl.u32 1326507024, %v1187
        %v1203 = vor.u32 %v1201, %v1202
        %vm1204 = vcmp.lt.s32.totalorder %v1185, 1
        %vm1205 = vcmp.lt.s32.totalorder %v1185, 2
        %vm1206 = vcmp.lt.s32.totalorder %v1185, 3
        %vm1207 = vcmp.lt.s32.totalorder %v1185, 4
        %v1208 = vsel %vm1204, %v1188, %v1191
        %v1209 = vsel %vm1207, %v1197, 2102212464
        %v1210 = vsel %vm1206, %v1194, %v1209
        %v1211 = vsel %vm1205, %v1208, %v1210
        %v1212 = vsel %vm1204, %v1191, %v1194
        %v1213 = vsel %vm1207, %v1200, 920167782
        %v1214 = vsel %vm1206, %v1197, %v1213
        %v1215 = vsel %vm1205, %v1212, %v1214
        %v1216 = vsel %vm1204, %v1194, %v1197
        %v1217 = vsel %vm1207, %v1203, 1326507024
        %v1218 = vsel %vm1206, %v1200, %v1217
        %v1219 = vsel %vm1205, %v1216, %v1218
        %v1220 = vshll.u32 %v1180, 8
        %v1221 = vmul.u32.u64.compose %v1220, %v1219
        %v1222 = vextract.low.u32 %v1221
        %v1223 = vextract.high.u32 %v1221
        %v1224 = vmul.u32.u64.compose %v1220, %v1215
        %v1225 = vextract.low.u32 %v1224
        %v1226 = vextract.high.u32 %v1224
        %v1227 = vmul.u32 %v1220, %v1211
        %v1228 = vadd.s32 %v1223, %v1225
        %vm1229 = vc.u32 %v1223, %v1225
        %v1230 = vadd.s32 %v1226, 1
        %v1231 = vsel %vm1229, %v1230, %v1226
        %v1232 = vadd.s32 %v1227, %v1231
        %v1233 = vadd.s32 %v1232, 536870912
        %v1234 = vshrl.u32 %v1233, 30
        %v1235 = vshll.u32 %v1234, 30
        %v1236 = vsub.s32 %v1232, %v1235
        %vm1237 = vcmp.lt.s32.totalorder %v1236, 0
        %v1238 = vsub.s32 0, %v1236
        %v1239 = vsel %vm1237, %v1238, %v1236
        %v1240 = vclz %v1239
        %v1241 = vsub.s32 %v1240, 2
        %vm1242 = vcmp.gt.s32.totalorder 0, %v1241
        %v1243 = vsel %vm1242, 0, %v1241
        %v1244 = vsub.s32 32, %v1243
        %v1245 = vshll.u32 %v1236, %v1243
        %v1246 = vshrl.u32 %v1228, %v1244
        %v1247 = vor.u32 %v1245, %v1246
        %v1248 = vsub.s32 4294967266, %v1243
        %v1249 = vadd.s32 %v1248, 127
        %v1250 = vshll.u32 %v1249, 23
        %v1251 = vor.u32 4788187, %v1250
        %v1252 = vand.u32 2147483647, %v1251
        %v1254 = vcvt.s32.f32 %v1247
        %v1255 = vmul.f32 %v1254, %v1252
        %v1256 = vxor.u32 %v1255, 2147483648
        %v1257 = vsel %vm1174, %v1256, %v1255
        %v1258 = vsub.s32 4, %v1234
        %v1259 = vsel %vm1174, %v1258, %v1234
        %v1260 = vsel %vm1173, %v1065, %v1257
        %v1261 = vsel %vm1173, 0, %v1259
        %v1262 = vcosq.f32.pop %v1260
        %v1263 = vsinq.f32.pop %v1260
        %vm1264 = vweird.f32 %v1065
        %v1265 = vadd.s32 %v1261, 3
        %v1266 = vand.u32 %v1265, 3
        %vm1267 = vcmp.lt.s32.totalorder %v1266, 2
        %vm1268 = vcmp.eq.s32.totalorder %v1266, 0
        %v1269 = vxor.u32 %v1263, 2147483648
        %v1270 = vsel %vm1268, %v1262, %v1269
        %vm1271 = vcmp.eq.s32.totalorder %v1266, 2
        %v1272 = vxor.u32 %v1262, 2147483648
        %v1273 = vsel %vm1271, %v1272, %v1263
        %v1274 = vsel %vm1267, %v1270, %v1273
        %v1275 = vsel %vm1264, nan, %v1274
        %v1276 = vrcp.pop %v1064
        %v1277 = vrcp.pop %v1065
        %v1278 = vmul.f32 %v1064, %v1276
        %v1279 = vmul.f32 %v1065, %v1277
        %v1280 = vsub.f32 2.0, %v1278
        %v1281 = vsub.f32 2.0, %v1279
        %v1282 = vmul.f32 %v1276, %v1280
        %v1283 = vmul.f32 %v1277, %v1281
        %vm1284 = vcmp.lt.f32.partialorder %v1066, 1e-06
        %vm1285 = vcmp.lt.f32.partialorder %v1067, 1e-06
        %v1286 = vmul.f32 %v1066, 0.16666667
        %v1287 = vmul.f32 %v1067, 0.16666667
        %v1288 = vsub.f32 1.0, %v1286
        %v1289 = vsub.f32 1.0, %v1287
        %v1290 = vmul.f32 %v1171, %v1282
        %v1291 = vmul.f32 %v1275, %v1283
        %v1292 = vsel %vm1284, %v1288, %v1290
        %v1293 = vsel %vm1285, %v1289, %v1291
        %v1294 = vmul.f32 %v1050, %v1292
        %v1295 = vmul.f32 %v1051, %v1293
        %1296 = vset.pattern.permute.xlu0 4
        %1297 = vperm.xlu0 %1296, %v288
        %v1298 = vpop.permute.xlu0 %1297
        %1300 = vset.pattern.permute.xlu0 4
        %1301 = vperm.xlu0 %1300, %v289
        %v1302 = vpop.permute.xlu0 %1301
        %v1304 = vlaneseq
        %v1305 = vshrl.u32 %v1304, 7
        %v1306 = vsub.s32 4, %v1305
        %v1307 = vrot.slane %v294, %v1306
        %v1308 = vsub.f32 %v1298, %v1307
        %v1309 = vsub.f32 %v1302, %v1307
        %v1310 = vmul.f32 %v1308, %v1308
        %v1311 = vmul.f32 %v1309, %v1309
        %v1312 = vand.u32 2147483647, %v1308
        %vm1313 = vcmp.le.f32.partialorder %v1312, 0.7853982
        %vm1314 = vcmp.lt.s32.totalorder %v1308, 0
        %v1315 = vand.u32 %v1308, 2139095040
        %v1316 = vshrl.u32 %v1315, 23
        %v1317 = vsub.s32 %v1316, 127
        %v1318 = vand.u32 2147483647, %v1308
        %v1319 = vand.u32 %v1318, 8388607
        %v1320 = vor.u32 %v1319, 8388608
        %v1321 = vsub.s32 0, %v1320
        %v1322 = vadd.s32 %v1317, 1
        %vm1323 = vcmp.gt.s32.totalorder %v1322, 0
        %v1324 = vsel %vm1323, %v1322, 0
        %v1325 = vshrl.u32 %v1324, 5
        %v1326 = vand.u32 %v1324, 31
        %v1327 = vsub.s32 32, %v1326
        %v1328 = vshrl.u32 683565275, %v1327
        %v1329 = vshll.u32 683565275, %v1326
        %v1330 = vshrl.u32 2475754826, %v1327
        %v1331 = vor.u32 %v1329, %v1330
        %v1332 = vshll.u32 2475754826, %v1326
        %v1333 = vshrl.u32 2131351028, %v1327
        %v1334 = vor.u32 %v1332, %v1333
        %v1335 = vshll.u32 2131351028, %v1326
        %v1336 = vshrl.u32 2102212464, %v1327
        %v1337 = vor.u32 %v1335, %v1336
        %v1338 = vshll.u32 2102212464, %v1326
        %v1339 = vshrl.u32 920167782, %v1327
        %v1340 = vor.u32 %v1338, %v1339
        %v1341 = vshll.u32 920167782, %v1326
        %v1342 = vshrl.u32 1326507024, %v1327
        %v1343 = vor.u32 %v1341, %v1342
        %vm1344 = vcmp.lt.s32.totalorder %v1325, 1
        %vm1345 = vcmp.lt.s32.totalorder %v1325, 2
        %vm1346 = vcmp.lt.s32.totalorder %v1325, 3
        %vm1347 = vcmp.lt.s32.totalorder %v1325, 4
        %v1348 = vsel %vm1344, %v1328, %v1331
        %v1349 = vsel %vm1347, %v1337, 2102212464
        %v1350 = vsel %vm1346, %v1334, %v1349
        %v1351 = vsel %vm1345, %v1348, %v1350
        %v1352 = vsel %vm1344, %v1331, %v1334
        %v1353 = vsel %vm1347, %v1340, 920167782
        %v1354 = vsel %vm1346, %v1337, %v1353
        %v1355 = vsel %vm1345, %v1352, %v1354
        %v1356 = vsel %vm1344, %v1334, %v1337
        %v1357 = vsel %vm1347, %v1343, 1326507024
        %v1358 = vsel %vm1346, %v1340, %v1357
        %v1359 = vsel %vm1345, %v1356, %v1358
        %v1360 = vshll.u32 %v1320, 8
        %v1361 = vmul.u32.u64.compose %v1360, %v1359
        %v1362 = vextract.low.u32 %v1361
        %v1363 = vextract.high.u32 %v1361
        %v1364 = vmul.u32.u64.compose %v1360, %v1355
        %v1365 = vextract.low.u32 %v1364
        %v1366 = vextract.high.u32 %v1364
        %v1367 = vmul.u32 %v1360, %v1351
        %v1368 = vadd.s32 %v1363, %v1365
        %vm1369 = vc.u32 %v1363, %v1365
        %v1370 = vadd.s32 %v1366, 1
        %v1371 = vsel %vm1369, %v1370, %v1366
        %v1372 = vadd.s32 %v1367, %v1371
        %v1373 = vadd.s32 %v1372, 536870912
        %v1374 = vshrl.u32 %v1373, 30
        %v1375 = vshll.u32 %v1374, 30
        %v1376 = vsub.s32 %v1372, %v1375
        %vm1377 = vcmp.lt.s32.totalorder %v1376, 0
        %v1378 = vsub.s32 0, %v1376
        %v1379 = vsel %vm1377, %v1378, %v1376
        %v1380 = vclz %v1379
        %v1381 = vsub.s32 %v1380, 2
        %vm1382 = vcmp.gt.s32.totalorder 0, %v1381
        %v1383 = vsel %vm1382, 0, %v1381
        %v1384 = vsub.s32 32, %v1383
        %v1385 = vshll.u32 %v1376, %v1383
        %v1386 = vshrl.u32 %v1368, %v1384
        %v1387 = vor.u32 %v1385, %v1386
        %v1388 = vsub.s32 4294967266, %v1383
        %v1389 = vadd.s32 %v1388, 127
        %v1390 = vshll.u32 %v1389, 23
        %v1391 = vor.u32 4788187, %v1390
        %v1392 = vand.u32 2147483647, %v1391
        %v1394 = vcvt.s32.f32 %v1387
        %v1395 = vmul.f32 %v1394, %v1392
        %v1396 = vxor.u32 %v1395, 2147483648
        %v1397 = vsel %vm1314, %v1396, %v1395
        %v1398 = vsub.s32 4, %v1374
        %v1399 = vsel %vm1314, %v1398, %v1374
        %v1400 = vsel %vm1313, %v1308, %v1397
        %v1401 = vsel %vm1313, 0, %v1399
        %v1402 = vcosq.f32.pop %v1400
        %v1403 = vsinq.f32.pop %v1400
        %vm1404 = vweird.f32 %v1308
        %v1405 = vadd.s32 %v1401, 3
        %v1406 = vand.u32 %v1405, 3
        %vm1407 = vcmp.lt.s32.totalorder %v1406, 2
        %vm1408 = vcmp.eq.s32.totalorder %v1406, 0
        %v1409 = vxor.u32 %v1403, 2147483648
        %v1410 = vsel %vm1408, %v1402, %v1409
        %vm1411 = vcmp.eq.s32.totalorder %v1406, 2
        %v1412 = vxor.u32 %v1402, 2147483648
        %v1413 = vsel %vm1411, %v1412, %v1403
        %v1414 = vsel %vm1407, %v1410, %v1413
        %v1415 = vsel %vm1404, nan, %v1414
        %v1416 = vand.u32 2147483647, %v1309
        %vm1417 = vcmp.le.f32.partialorder %v1416, 0.7853982
        %vm1418 = vcmp.lt.s32.totalorder %v1309, 0
        %v1419 = vand.u32 %v1309, 2139095040
        %v1420 = vshrl.u32 %v1419, 23
        %v1421 = vsub.s32 %v1420, 127
        %v1422 = vand.u32 2147483647, %v1309
        %v1423 = vand.u32 %v1422, 8388607
        %v1424 = vor.u32 %v1423, 8388608
        %v1425 = vsub.s32 0, %v1424
        %v1426 = vadd.s32 %v1421, 1
        %vm1427 = vcmp.gt.s32.totalorder %v1426, 0
        %v1428 = vsel %vm1427, %v1426, 0
        %v1429 = vshrl.u32 %v1428, 5
        %v1430 = vand.u32 %v1428, 31
        %v1431 = vsub.s32 32, %v1430
        %v1432 = vshrl.u32 683565275, %v1431
        %v1433 = vshll.u32 683565275, %v1430
        %v1434 = vshrl.u32 2475754826, %v1431
        %v1435 = vor.u32 %v1433, %v1434
        %v1436 = vshll.u32 2475754826, %v1430
        %v1437 = vshrl.u32 2131351028, %v1431
        %v1438 = vor.u32 %v1436, %v1437
        %v1439 = vshll.u32 2131351028, %v1430
        %v1440 = vshrl.u32 2102212464, %v1431
        %v1441 = vor.u32 %v1439, %v1440
        %v1442 = vshll.u32 2102212464, %v1430
        %v1443 = vshrl.u32 920167782, %v1431
        %v1444 = vor.u32 %v1442, %v1443
        %v1445 = vshll.u32 920167782, %v1430
        %v1446 = vshrl.u32 1326507024, %v1431
        %v1447 = vor.u32 %v1445, %v1446
        %vm1448 = vcmp.lt.s32.totalorder %v1429, 1
        %vm1449 = vcmp.lt.s32.totalorder %v1429, 2
        %vm1450 = vcmp.lt.s32.totalorder %v1429, 3
        %vm1451 = vcmp.lt.s32.totalorder %v1429, 4
        %v1452 = vsel %vm1448, %v1432, %v1435
        %v1453 = vsel %vm1451, %v1441, 2102212464
        %v1454 = vsel %vm1450, %v1438, %v1453
        %v1455 = vsel %vm1449, %v1452, %v1454
        %v1456 = vsel %vm1448, %v1435, %v1438
        %v1457 = vsel %vm1451, %v1444, 920167782
        %v1458 = vsel %vm1450, %v1441, %v1457
        %v1459 = vsel %vm1449, %v1456, %v1458
        %v1460 = vsel %vm1448, %v1438, %v1441
        %v1461 = vsel %vm1451, %v1447, 1326507024
        %v1462 = vsel %vm1450, %v1444, %v1461
        %v1463 = vsel %vm1449, %v1460, %v1462
        %v1464 = vshll.u32 %v1424, 8
        %v1465 = vmul.u32.u64.compose %v1464, %v1463
        %v1466 = vextract.low.u32 %v1465
        %v1467 = vextract.high.u32 %v1465
        %v1468 = vmul.u32.u64.compose %v1464, %v1459
        %v1469 = vextract.low.u32 %v1468
        %v1470 = vextract.high.u32 %v1468
        %v1471 = vmul.u32 %v1464, %v1455
        %v1472 = vadd.s32 %v1467, %v1469
        %vm1473 = vc.u32 %v1467, %v1469
        %v1474 = vadd.s32 %v1470, 1
        %v1475 = vsel %vm1473, %v1474, %v1470
        %v1476 = vadd.s32 %v1471, %v1475
        %v1477 = vadd.s32 %v1476, 536870912
        %v1478 = vshrl.u32 %v1477, 30
        %v1479 = vshll.u32 %v1478, 30
        %v1480 = vsub.s32 %v1476, %v1479
        %vm1481 = vcmp.lt.s32.totalorder %v1480, 0
        %v1482 = vsub.s32 0, %v1480
        %v1483 = vsel %vm1481, %v1482, %v1480
        %v1484 = vclz %v1483
        %v1485 = vsub.s32 %v1484, 2
        %vm1486 = vcmp.gt.s32.totalorder 0, %v1485
        %v1487 = vsel %vm1486, 0, %v1485
        %v1488 = vsub.s32 32, %v1487
        %v1489 = vshll.u32 %v1480, %v1487
        %v1490 = vshrl.u32 %v1472, %v1488
        %v1491 = vor.u32 %v1489, %v1490
        %v1492 = vsub.s32 4294967266, %v1487
        %v1493 = vadd.s32 %v1492, 127
        %v1494 = vshll.u32 %v1493, 23
        %v1495 = vor.u32 4788187, %v1494
        %v1496 = vand.u32 2147483647, %v1495
        %v1498 = vcvt.s32.f32 %v1491
        %v1499 = vmul.f32 %v1498, %v1496
        %v1500 = vxor.u32 %v1499, 2147483648
        %v1501 = vsel %vm1418, %v1500, %v1499
        %v1502 = vsub.s32 4, %v1478
        %v1503 = vsel %vm1418, %v1502, %v1478
        %v1504 = vsel %vm1417, %v1309, %v1501
        %v1505 = vsel %vm1417, 0, %v1503
        %v1506 = vcosq.f32.pop %v1504
        %v1507 = vsinq.f32.pop %v1504
        %vm1508 = vweird.f32 %v1309
        %v1509 = vadd.s32 %v1505, 3
        %v1510 = vand.u32 %v1509, 3
        %vm1511 = vcmp.lt.s32.totalorder %v1510, 2
        %vm1512 = vcmp.eq.s32.totalorder %v1510, 0
        %v1513 = vxor.u32 %v1507, 2147483648
        %v1514 = vsel %vm1512, %v1506, %v1513
        %vm1515 = vcmp.eq.s32.totalorder %v1510, 2
        %v1516 = vxor.u32 %v1506, 2147483648
        %v1517 = vsel %vm1515, %v1516, %v1507
        %v1518 = vsel %vm1511, %v1514, %v1517
        %v1519 = vsel %vm1508, nan, %v1518
        %v1520 = vrcp.pop %v1308
        %v1521 = vrcp.pop %v1309
        %v1522 = vmul.f32 %v1308, %v1520
        %v1523 = vmul.f32 %v1309, %v1521
        %v1524 = vsub.f32 2.0, %v1522
        %v1525 = vsub.f32 2.0, %v1523
        %v1526 = vmul.f32 %v1520, %v1524
        %v1527 = vmul.f32 %v1521, %v1525
        %vm1528 = vcmp.lt.f32.partialorder %v1310, 1e-06
        %vm1529 = vcmp.lt.f32.partialorder %v1311, 1e-06
        %v1530 = vmul.f32 %v1310, 0.16666667
        %v1531 = vmul.f32 %v1311, 0.16666667
        %v1532 = vsub.f32 1.0, %v1530
        %v1533 = vsub.f32 1.0, %v1531
        %v1534 = vmul.f32 %v1415, %v1526
        %v1535 = vmul.f32 %v1519, %v1527
        %v1536 = vsel %vm1528, %v1532, %v1534
        %v1537 = vsel %vm1529, %v1533, %v1535
        %v1538 = vmul.f32 %v1294, %v1536
        %v1539 = vmul.f32 %v1295, %v1537
        %1540 = vset.pattern.permute.xlu0 5
        %1541 = vperm.xlu0 %1540, %v288
        %v1542 = vpop.permute.xlu0 %1541
        %1544 = vset.pattern.permute.xlu0 5
        %1545 = vperm.xlu0 %1544, %v289
        %v1546 = vpop.permute.xlu0 %1545
        %v1548 = vlaneseq
        %v1549 = vshrl.u32 %v1548, 7
        %v1550 = vsub.s32 5, %v1549
        %v1551 = vrot.slane %v294, %v1550
        %v1552 = vsub.f32 %v1542, %v1551
        %v1553 = vsub.f32 %v1546, %v1551
        %v1554 = vmul.f32 %v1552, %v1552
        %v1555 = vmul.f32 %v1553, %v1553
        %v1556 = vand.u32 2147483647, %v1552
        %vm1557 = vcmp.le.f32.partialorder %v1556, 0.7853982
        %vm1558 = vcmp.lt.s32.totalorder %v1552, 0
        %v1559 = vand.u32 %v1552, 2139095040
        %v1560 = vshrl.u32 %v1559, 23
        %v1561 = vsub.s32 %v1560, 127
        %v1562 = vand.u32 2147483647, %v1552
        %v1563 = vand.u32 %v1562, 8388607
        %v1564 = vor.u32 %v1563, 8388608
        %v1565 = vsub.s32 0, %v1564
        %v1566 = vadd.s32 %v1561, 1
        %vm1567 = vcmp.gt.s32.totalorder %v1566, 0
        %v1568 = vsel %vm1567, %v1566, 0
        %v1569 = vshrl.u32 %v1568, 5
        %v1570 = vand.u32 %v1568, 31
        %v1571 = vsub.s32 32, %v1570
        %v1572 = vshrl.u32 683565275, %v1571
        %v1573 = vshll.u32 683565275, %v1570
        %v1574 = vshrl.u32 2475754826, %v1571
        %v1575 = vor.u32 %v1573, %v1574
        %v1576 = vshll.u32 2475754826, %v1570
        %v1577 = vshrl.u32 2131351028, %v1571
        %v1578 = vor.u32 %v1576, %v1577
        %v1579 = vshll.u32 2131351028, %v1570
        %v1580 = vshrl.u32 2102212464, %v1571
        %v1581 = vor.u32 %v1579, %v1580
        %v1582 = vshll.u32 2102212464, %v1570
        %v1583 = vshrl.u32 920167782, %v1571
        %v1584 = vor.u32 %v1582, %v1583
        %v1585 = vshll.u32 920167782, %v1570
        %v1586 = vshrl.u32 1326507024, %v1571
        %v1587 = vor.u32 %v1585, %v1586
        %vm1588 = vcmp.lt.s32.totalorder %v1569, 1
        %vm1589 = vcmp.lt.s32.totalorder %v1569, 2
        %vm1590 = vcmp.lt.s32.totalorder %v1569, 3
        %vm1591 = vcmp.lt.s32.totalorder %v1569, 4
        %v1592 = vsel %vm1588, %v1572, %v1575
        %v1593 = vsel %vm1591, %v1581, 2102212464
        %v1594 = vsel %vm1590, %v1578, %v1593
        %v1595 = vsel %vm1589, %v1592, %v1594
        %v1596 = vsel %vm1588, %v1575, %v1578
        %v1597 = vsel %vm1591, %v1584, 920167782
        %v1598 = vsel %vm1590, %v1581, %v1597
        %v1599 = vsel %vm1589, %v1596, %v1598
        %v1600 = vsel %vm1588, %v1578, %v1581
        %v1601 = vsel %vm1591, %v1587, 1326507024
        %v1602 = vsel %vm1590, %v1584, %v1601
        %v1603 = vsel %vm1589, %v1600, %v1602
        %v1604 = vshll.u32 %v1564, 8
        %v1605 = vmul.u32.u64.compose %v1604, %v1603
        %v1606 = vextract.low.u32 %v1605
        %v1607 = vextract.high.u32 %v1605
        %v1608 = vmul.u32.u64.compose %v1604, %v1599
        %v1609 = vextract.low.u32 %v1608
        %v1610 = vextract.high.u32 %v1608
        %v1611 = vmul.u32 %v1604, %v1595
        %v1612 = vadd.s32 %v1607, %v1609
        %vm1613 = vc.u32 %v1607, %v1609
        %v1614 = vadd.s32 %v1610, 1
        %v1615 = vsel %vm1613, %v1614, %v1610
        %v1616 = vadd.s32 %v1611, %v1615
        %v1617 = vadd.s32 %v1616, 536870912
        %v1618 = vshrl.u32 %v1617, 30
        %v1619 = vshll.u32 %v1618, 30
        %v1620 = vsub.s32 %v1616, %v1619
        %vm1621 = vcmp.lt.s32.totalorder %v1620, 0
        %v1622 = vsub.s32 0, %v1620
        %v1623 = vsel %vm1621, %v1622, %v1620
        %v1624 = vclz %v1623
        %v1625 = vsub.s32 %v1624, 2
        %vm1626 = vcmp.gt.s32.totalorder 0, %v1625
        %v1627 = vsel %vm1626, 0, %v1625
        %v1628 = vsub.s32 32, %v1627
        %v1629 = vshll.u32 %v1620, %v1627
        %v1630 = vshrl.u32 %v1612, %v1628
        %v1631 = vor.u32 %v1629, %v1630
        %v1632 = vsub.s32 4294967266, %v1627
        %v1633 = vadd.s32 %v1632, 127
        %v1634 = vshll.u32 %v1633, 23
        %v1635 = vor.u32 4788187, %v1634
        %v1636 = vand.u32 2147483647, %v1635
        %v1638 = vcvt.s32.f32 %v1631
        %v1639 = vmul.f32 %v1638, %v1636
        %v1640 = vxor.u32 %v1639, 2147483648
        %v1641 = vsel %vm1558, %v1640, %v1639
        %v1642 = vsub.s32 4, %v1618
        %v1643 = vsel %vm1558, %v1642, %v1618
        %v1644 = vsel %vm1557, %v1552, %v1641
        %v1645 = vsel %vm1557, 0, %v1643
        %v1646 = vcosq.f32.pop %v1644
        %v1647 = vsinq.f32.pop %v1644
        %vm1648 = vweird.f32 %v1552
        %v1649 = vadd.s32 %v1645, 3
        %v1650 = vand.u32 %v1649, 3
        %vm1651 = vcmp.lt.s32.totalorder %v1650, 2
        %vm1652 = vcmp.eq.s32.totalorder %v1650, 0
        %v1653 = vxor.u32 %v1647, 2147483648
        %v1654 = vsel %vm1652, %v1646, %v1653
        %vm1655 = vcmp.eq.s32.totalorder %v1650, 2
        %v1656 = vxor.u32 %v1646, 2147483648
        %v1657 = vsel %vm1655, %v1656, %v1647
        %v1658 = vsel %vm1651, %v1654, %v1657
        %v1659 = vsel %vm1648, nan, %v1658
        %v1660 = vand.u32 2147483647, %v1553
        %vm1661 = vcmp.le.f32.partialorder %v1660, 0.7853982
        %vm1662 = vcmp.lt.s32.totalorder %v1553, 0
        %v1663 = vand.u32 %v1553, 2139095040
        %v1664 = vshrl.u32 %v1663, 23
        %v1665 = vsub.s32 %v1664, 127
        %v1666 = vand.u32 2147483647, %v1553
        %v1667 = vand.u32 %v1666, 8388607
        %v1668 = vor.u32 %v1667, 8388608
        %v1669 = vsub.s32 0, %v1668
        %v1670 = vadd.s32 %v1665, 1
        %vm1671 = vcmp.gt.s32.totalorder %v1670, 0
        %v1672 = vsel %vm1671, %v1670, 0
        %v1673 = vshrl.u32 %v1672, 5
        %v1674 = vand.u32 %v1672, 31
        %v1675 = vsub.s32 32, %v1674
        %v1676 = vshrl.u32 683565275, %v1675
        %v1677 = vshll.u32 683565275, %v1674
        %v1678 = vshrl.u32 2475754826, %v1675
        %v1679 = vor.u32 %v1677, %v1678
        %v1680 = vshll.u32 2475754826, %v1674
        %v1681 = vshrl.u32 2131351028, %v1675
        %v1682 = vor.u32 %v1680, %v1681
        %v1683 = vshll.u32 2131351028, %v1674
        %v1684 = vshrl.u32 2102212464, %v1675
        %v1685 = vor.u32 %v1683, %v1684
        %v1686 = vshll.u32 2102212464, %v1674
        %v1687 = vshrl.u32 920167782, %v1675
        %v1688 = vor.u32 %v1686, %v1687
        %v1689 = vshll.u32 920167782, %v1674
        %v1690 = vshrl.u32 1326507024, %v1675
        %v1691 = vor.u32 %v1689, %v1690
        %vm1692 = vcmp.lt.s32.totalorder %v1673, 1
        %vm1693 = vcmp.lt.s32.totalorder %v1673, 2
        %vm1694 = vcmp.lt.s32.totalorder %v1673, 3
        %vm1695 = vcmp.lt.s32.totalorder %v1673, 4
        %v1696 = vsel %vm1692, %v1676, %v1679
        %v1697 = vsel %vm1695, %v1685, 2102212464
        %v1698 = vsel %vm1694, %v1682, %v1697
        %v1699 = vsel %vm1693, %v1696, %v1698
        %v1700 = vsel %vm1692, %v1679, %v1682
        %v1701 = vsel %vm1695, %v1688, 920167782
        %v1702 = vsel %vm1694, %v1685, %v1701
        %v1703 = vsel %vm1693, %v1700, %v1702
        %v1704 = vsel %vm1692, %v1682, %v1685
        %v1705 = vsel %vm1695, %v1691, 1326507024
        %v1706 = vsel %vm1694, %v1688, %v1705
        %v1707 = vsel %vm1693, %v1704, %v1706
        %v1708 = vshll.u32 %v1668, 8
        %v1709 = vmul.u32.u64.compose %v1708, %v1707
        %v1710 = vextract.low.u32 %v1709
        %v1711 = vextract.high.u32 %v1709
        %v1712 = vmul.u32.u64.compose %v1708, %v1703
        %v1713 = vextract.low.u32 %v1712
        %v1714 = vextract.high.u32 %v1712
        %v1715 = vmul.u32 %v1708, %v1699
        %v1716 = vadd.s32 %v1711, %v1713
        %vm1717 = vc.u32 %v1711, %v1713
        %v1718 = vadd.s32 %v1714, 1
        %v1719 = vsel %vm1717, %v1718, %v1714
        %v1720 = vadd.s32 %v1715, %v1719
        %v1721 = vadd.s32 %v1720, 536870912
        %v1722 = vshrl.u32 %v1721, 30
        %v1723 = vshll.u32 %v1722, 30
        %v1724 = vsub.s32 %v1720, %v1723
        %vm1725 = vcmp.lt.s32.totalorder %v1724, 0
        %v1726 = vsub.s32 0, %v1724
        %v1727 = vsel %vm1725, %v1726, %v1724
        %v1728 = vclz %v1727
        %v1729 = vsub.s32 %v1728, 2
        %vm1730 = vcmp.gt.s32.totalorder 0, %v1729
        %v1731 = vsel %vm1730, 0, %v1729
        %v1732 = vsub.s32 32, %v1731
        %v1733 = vshll.u32 %v1724, %v1731
        %v1734 = vshrl.u32 %v1716, %v1732
        %v1735 = vor.u32 %v1733, %v1734
        %v1736 = vsub.s32 4294967266, %v1731
        %v1737 = vadd.s32 %v1736, 127
        %v1738 = vshll.u32 %v1737, 23
        %v1739 = vor.u32 4788187, %v1738
        %v1740 = vand.u32 2147483647, %v1739
        %v1742 = vcvt.s32.f32 %v1735
        %v1743 = vmul.f32 %v1742, %v1740
        %v1744 = vxor.u32 %v1743, 2147483648
        %v1745 = vsel %vm1662, %v1744, %v1743
        %v1746 = vsub.s32 4, %v1722
        %v1747 = vsel %vm1662, %v1746, %v1722
        %v1748 = vsel %vm1661, %v1553, %v1745
        %v1749 = vsel %vm1661, 0, %v1747
        %v1750 = vcosq.f32.pop %v1748
        %v1751 = vsinq.f32.pop %v1748
        %vm1752 = vweird.f32 %v1553
        %v1753 = vadd.s32 %v1749, 3
        %v1754 = vand.u32 %v1753, 3
        %vm1755 = vcmp.lt.s32.totalorder %v1754, 2
        %vm1756 = vcmp.eq.s32.totalorder %v1754, 0
        %v1757 = vxor.u32 %v1751, 2147483648
        %v1758 = vsel %vm1756, %v1750, %v1757
        %vm1759 = vcmp.eq.s32.totalorder %v1754, 2
        %v1760 = vxor.u32 %v1750, 2147483648
        %v1761 = vsel %vm1759, %v1760, %v1751
        %v1762 = vsel %vm1755, %v1758, %v1761
        %v1763 = vsel %vm1752, nan, %v1762
        %v1764 = vrcp.pop %v1552
        %v1765 = vrcp.pop %v1553
        %v1766 = vmul.f32 %v1552, %v1764
        %v1767 = vmul.f32 %v1553, %v1765
        %v1768 = vsub.f32 2.0, %v1766
        %v1769 = vsub.f32 2.0, %v1767
        %v1770 = vmul.f32 %v1764, %v1768
        %v1771 = vmul.f32 %v1765, %v1769
        %vm1772 = vcmp.lt.f32.partialorder %v1554, 1e-06
        %vm1773 = vcmp.lt.f32.partialorder %v1555, 1e-06
        %v1774 = vmul.f32 %v1554, 0.16666667
        %v1775 = vmul.f32 %v1555, 0.16666667
        %v1776 = vsub.f32 1.0, %v1774
        %v1777 = vsub.f32 1.0, %v1775
        %v1778 = vmul.f32 %v1659, %v1770
        %v1779 = vmul.f32 %v1763, %v1771
        %v1780 = vsel %vm1772, %v1776, %v1778
        %v1781 = vsel %vm1773, %v1777, %v1779
        %v1782 = vmul.f32 %v1538, %v1780
        %v1783 = vmul.f32 %v1539, %v1781
        %1784 = vset.pattern.permute.xlu0 6
        %1785 = vperm.xlu0 %1784, %v288
        %v1786 = vpop.permute.xlu0 %1785
        %1788 = vset.pattern.permute.xlu0 6
        %1789 = vperm.xlu0 %1788, %v289
        %v1790 = vpop.permute.xlu0 %1789
        %v1792 = vlaneseq
        %v1793 = vshrl.u32 %v1792, 7
        %v1794 = vsub.s32 6, %v1793
        %v1795 = vrot.slane %v294, %v1794
        %v1796 = vsub.f32 %v1786, %v1795
        %v1797 = vsub.f32 %v1790, %v1795
        %v1798 = vmul.f32 %v1796, %v1796
        %v1799 = vmul.f32 %v1797, %v1797
        %v1800 = vand.u32 2147483647, %v1796
        %vm1801 = vcmp.le.f32.partialorder %v1800, 0.7853982
        %vm1802 = vcmp.lt.s32.totalorder %v1796, 0
        %v1803 = vand.u32 %v1796, 2139095040
        %v1804 = vshrl.u32 %v1803, 23
        %v1805 = vsub.s32 %v1804, 127
        %v1806 = vand.u32 2147483647, %v1796
        %v1807 = vand.u32 %v1806, 8388607
        %v1808 = vor.u32 %v1807, 8388608
        %v1809 = vsub.s32 0, %v1808
        %v1810 = vadd.s32 %v1805, 1
        %vm1811 = vcmp.gt.s32.totalorder %v1810, 0
        %v1812 = vsel %vm1811, %v1810, 0
        %v1813 = vshrl.u32 %v1812, 5
        %v1814 = vand.u32 %v1812, 31
        %v1815 = vsub.s32 32, %v1814
        %v1816 = vshrl.u32 683565275, %v1815
        %v1817 = vshll.u32 683565275, %v1814
        %v1818 = vshrl.u32 2475754826, %v1815
        %v1819 = vor.u32 %v1817, %v1818
        %v1820 = vshll.u32 2475754826, %v1814
        %v1821 = vshrl.u32 2131351028, %v1815
        %v1822 = vor.u32 %v1820, %v1821
        %v1823 = vshll.u32 2131351028, %v1814
        %v1824 = vshrl.u32 2102212464, %v1815
        %v1825 = vor.u32 %v1823, %v1824
        %v1826 = vshll.u32 2102212464, %v1814
        %v1827 = vshrl.u32 920167782, %v1815
        %v1828 = vor.u32 %v1826, %v1827
        %v1829 = vshll.u32 920167782, %v1814
        %v1830 = vshrl.u32 1326507024, %v1815
        %v1831 = vor.u32 %v1829, %v1830
        %vm1832 = vcmp.lt.s32.totalorder %v1813, 1
        %vm1833 = vcmp.lt.s32.totalorder %v1813, 2
        %vm1834 = vcmp.lt.s32.totalorder %v1813, 3
        %vm1835 = vcmp.lt.s32.totalorder %v1813, 4
        %v1836 = vsel %vm1832, %v1816, %v1819
        %v1837 = vsel %vm1835, %v1825, 2102212464
        %v1838 = vsel %vm1834, %v1822, %v1837
        %v1839 = vsel %vm1833, %v1836, %v1838
        %v1840 = vsel %vm1832, %v1819, %v1822
        %v1841 = vsel %vm1835, %v1828, 920167782
        %v1842 = vsel %vm1834, %v1825, %v1841
        %v1843 = vsel %vm1833, %v1840, %v1842
        %v1844 = vsel %vm1832, %v1822, %v1825
        %v1845 = vsel %vm1835, %v1831, 1326507024
        %v1846 = vsel %vm1834, %v1828, %v1845
        %v1847 = vsel %vm1833, %v1844, %v1846
        %v1848 = vshll.u32 %v1808, 8
        %v1849 = vmul.u32.u64.compose %v1848, %v1847
        %v1850 = vextract.low.u32 %v1849
        %v1851 = vextract.high.u32 %v1849
        %v1852 = vmul.u32.u64.compose %v1848, %v1843
        %v1853 = vextract.low.u32 %v1852
        %v1854 = vextract.high.u32 %v1852
        %v1855 = vmul.u32 %v1848, %v1839
        %v1856 = vadd.s32 %v1851, %v1853
        %vm1857 = vc.u32 %v1851, %v1853
        %v1858 = vadd.s32 %v1854, 1
        %v1859 = vsel %vm1857, %v1858, %v1854
        %v1860 = vadd.s32 %v1855, %v1859
        %v1861 = vadd.s32 %v1860, 536870912
        %v1862 = vshrl.u32 %v1861, 30
        %v1863 = vshll.u32 %v1862, 30
        %v1864 = vsub.s32 %v1860, %v1863
        %vm1865 = vcmp.lt.s32.totalorder %v1864, 0
        %v1866 = vsub.s32 0, %v1864
        %v1867 = vsel %vm1865, %v1866, %v1864
        %v1868 = vclz %v1867
        %v1869 = vsub.s32 %v1868, 2
        %vm1870 = vcmp.gt.s32.totalorder 0, %v1869
        %v1871 = vsel %vm1870, 0, %v1869
        %v1872 = vsub.s32 32, %v1871
        %v1873 = vshll.u32 %v1864, %v1871
        %v1874 = vshrl.u32 %v1856, %v1872
        %v1875 = vor.u32 %v1873, %v1874
        %v1876 = vsub.s32 4294967266, %v1871
        %v1877 = vadd.s32 %v1876, 127
        %v1878 = vshll.u32 %v1877, 23
        %v1879 = vor.u32 4788187, %v1878
        %v1880 = vand.u32 2147483647, %v1879
        %v1882 = vcvt.s32.f32 %v1875
        %v1883 = vmul.f32 %v1882, %v1880
        %v1884 = vxor.u32 %v1883, 2147483648
        %v1885 = vsel %vm1802, %v1884, %v1883
        %v1886 = vsub.s32 4, %v1862
        %v1887 = vsel %vm1802, %v1886, %v1862
        %v1888 = vsel %vm1801, %v1796, %v1885
        %v1889 = vsel %vm1801, 0, %v1887
        %v1890 = vcosq.f32.pop %v1888
        %v1891 = vsinq.f32.pop %v1888
        %vm1892 = vweird.f32 %v1796
        %v1893 = vadd.s32 %v1889, 3
        %v1894 = vand.u32 %v1893, 3
        %vm1895 = vcmp.lt.s32.totalorder %v1894, 2
        %vm1896 = vcmp.eq.s32.totalorder %v1894, 0
        %v1897 = vxor.u32 %v1891, 2147483648
        %v1898 = vsel %vm1896, %v1890, %v1897
        %vm1899 = vcmp.eq.s32.totalorder %v1894, 2
        %v1900 = vxor.u32 %v1890, 2147483648
        %v1901 = vsel %vm1899, %v1900, %v1891
        %v1902 = vsel %vm1895, %v1898, %v1901
        %v1903 = vsel %vm1892, nan, %v1902
        %v1904 = vand.u32 2147483647, %v1797
        %vm1905 = vcmp.le.f32.partialorder %v1904, 0.7853982
        %vm1906 = vcmp.lt.s32.totalorder %v1797, 0
        %v1907 = vand.u32 %v1797, 2139095040
        %v1908 = vshrl.u32 %v1907, 23
        %v1909 = vsub.s32 %v1908, 127
        %v1910 = vand.u32 2147483647, %v1797
        %v1911 = vand.u32 %v1910, 8388607
        %v1912 = vor.u32 %v1911, 8388608
        %v1913 = vsub.s32 0, %v1912
        %v1914 = vadd.s32 %v1909, 1
        %vm1915 = vcmp.gt.s32.totalorder %v1914, 0
        %v1916 = vsel %vm1915, %v1914, 0
        %v1917 = vshrl.u32 %v1916, 5
        %v1918 = vand.u32 %v1916, 31
        %v1919 = vsub.s32 32, %v1918
        %v1920 = vshrl.u32 683565275, %v1919
        %v1921 = vshll.u32 683565275, %v1918
        %v1922 = vshrl.u32 2475754826, %v1919
        %v1923 = vor.u32 %v1921, %v1922
        %v1924 = vshll.u32 2475754826, %v1918
        %v1925 = vshrl.u32 2131351028, %v1919
        %v1926 = vor.u32 %v1924, %v1925
        %v1927 = vshll.u32 2131351028, %v1918
        %v1928 = vshrl.u32 2102212464, %v1919
        %v1929 = vor.u32 %v1927, %v1928
        %v1930 = vshll.u32 2102212464, %v1918
        %v1931 = vshrl.u32 920167782, %v1919
        %v1932 = vor.u32 %v1930, %v1931
        %v1933 = vshll.u32 920167782, %v1918
        %v1934 = vshrl.u32 1326507024, %v1919
        %v1935 = vor.u32 %v1933, %v1934
        %vm1936 = vcmp.lt.s32.totalorder %v1917, 1
        %vm1937 = vcmp.lt.s32.totalorder %v1917, 2
        %vm1938 = vcmp.lt.s32.totalorder %v1917, 3
        %vm1939 = vcmp.lt.s32.totalorder %v1917, 4
        %v1940 = vsel %vm1936, %v1920, %v1923
        %v1941 = vsel %vm1939, %v1929, 2102212464
        %v1942 = vsel %vm1938, %v1926, %v1941
        %v1943 = vsel %vm1937, %v1940, %v1942
        %v1944 = vsel %vm1936, %v1923, %v1926
        %v1945 = vsel %vm1939, %v1932, 920167782
        %v1946 = vsel %vm1938, %v1929, %v1945
        %v1947 = vsel %vm1937, %v1944, %v1946
        %v1948 = vsel %vm1936, %v1926, %v1929
        %v1949 = vsel %vm1939, %v1935, 1326507024
        %v1950 = vsel %vm1938, %v1932, %v1949
        %v1951 = vsel %vm1937, %v1948, %v1950
        %v1952 = vshll.u32 %v1912, 8
        %v1953 = vmul.u32.u64.compose %v1952, %v1951
        %v1954 = vextract.low.u32 %v1953
        %v1955 = vextract.high.u32 %v1953
        %v1956 = vmul.u32.u64.compose %v1952, %v1947
        %v1957 = vextract.low.u32 %v1956
        %v1958 = vextract.high.u32 %v1956
        %v1959 = vmul.u32 %v1952, %v1943
        %v1960 = vadd.s32 %v1955, %v1957
        %vm1961 = vc.u32 %v1955, %v1957
        %v1962 = vadd.s32 %v1958, 1
        %v1963 = vsel %vm1961, %v1962, %v1958
        %v1964 = vadd.s32 %v1959, %v1963
        %v1965 = vadd.s32 %v1964, 536870912
        %v1966 = vshrl.u32 %v1965, 30
        %v1967 = vshll.u32 %v1966, 30
        %v1968 = vsub.s32 %v1964, %v1967
        %vm1969 = vcmp.lt.s32.totalorder %v1968, 0
        %v1970 = vsub.s32 0, %v1968
        %v1971 = vsel %vm1969, %v1970, %v1968
        %v1972 = vclz %v1971
        %v1973 = vsub.s32 %v1972, 2
        %vm1974 = vcmp.gt.s32.totalorder 0, %v1973
        %v1975 = vsel %vm1974, 0, %v1973
        %v1976 = vsub.s32 32, %v1975
        %v1977 = vshll.u32 %v1968, %v1975
        %v1978 = vshrl.u32 %v1960, %v1976
        %v1979 = vor.u32 %v1977, %v1978
        %v1980 = vsub.s32 4294967266, %v1975
        %v1981 = vadd.s32 %v1980, 127
        %v1982 = vshll.u32 %v1981, 23
        %v1983 = vor.u32 4788187, %v1982
        %v1984 = vand.u32 2147483647, %v1983
        %v1986 = vcvt.s32.f32 %v1979
        %v1987 = vmul.f32 %v1986, %v1984
        %v1988 = vxor.u32 %v1987, 2147483648
        %v1989 = vsel %vm1906, %v1988, %v1987
        %v1990 = vsub.s32 4, %v1966
        %v1991 = vsel %vm1906, %v1990, %v1966
        %v1992 = vsel %vm1905, %v1797, %v1989
        %v1993 = vsel %vm1905, 0, %v1991
        %v1994 = vcosq.f32.pop %v1992
        %v1995 = vsinq.f32.pop %v1992
        %vm1996 = vweird.f32 %v1797
        %v1997 = vadd.s32 %v1993, 3
        %v1998 = vand.u32 %v1997, 3
        %vm1999 = vcmp.lt.s32.totalorder %v1998, 2
        %vm2000 = vcmp.eq.s32.totalorder %v1998, 0
        %v2001 = vxor.u32 %v1995, 2147483648
        %v2002 = vsel %vm2000, %v1994, %v2001
        %vm2003 = vcmp.eq.s32.totalorder %v1998, 2
        %v2004 = vxor.u32 %v1994, 2147483648
        %v2005 = vsel %vm2003, %v2004, %v1995
        %v2006 = vsel %vm1999, %v2002, %v2005
        %v2007 = vsel %vm1996, nan, %v2006
        %v2008 = vrcp.pop %v1796
        %v2009 = vrcp.pop %v1797
        %v2010 = vmul.f32 %v1796, %v2008
        %v2011 = vmul.f32 %v1797, %v2009
        %v2012 = vsub.f32 2.0, %v2010
        %v2013 = vsub.f32 2.0, %v2011
        %v2014 = vmul.f32 %v2008, %v2012
        %v2015 = vmul.f32 %v2009, %v2013
        %vm2016 = vcmp.lt.f32.partialorder %v1798, 1e-06
        %vm2017 = vcmp.lt.f32.partialorder %v1799, 1e-06
        %v2018 = vmul.f32 %v1798, 0.16666667
        %v2019 = vmul.f32 %v1799, 0.16666667
        %v2020 = vsub.f32 1.0, %v2018
        %v2021 = vsub.f32 1.0, %v2019
        %v2022 = vmul.f32 %v1903, %v2014
        %v2023 = vmul.f32 %v2007, %v2015
        %v2024 = vsel %vm2016, %v2020, %v2022
        %v2025 = vsel %vm2017, %v2021, %v2023
        %v2026 = vmul.f32 %v1782, %v2024
        %v2027 = vmul.f32 %v1783, %v2025
        %2028 = vset.pattern.permute.xlu0 7
        %2029 = vperm.xlu0 %2028, %v288
        %v2030 = vpop.permute.xlu0 %2029
        %2032 = vset.pattern.permute.xlu0 7
        %2033 = vperm.xlu0 %2032, %v289
        %v2034 = vpop.permute.xlu0 %2033
        %v2036 = vlaneseq
        %v2037 = vshrl.u32 %v2036, 7
        %v2038 = vsub.s32 7, %v2037
        %v2039 = vrot.slane %v294, %v2038
        %v2040 = vsub.f32 %v2030, %v2039
        %v2041 = vsub.f32 %v2034, %v2039
        %v2042 = vmul.f32 %v2040, %v2040
        %v2043 = vmul.f32 %v2041, %v2041
        %v2044 = vand.u32 2147483647, %v2040
        %vm2045 = vcmp.le.f32.partialorder %v2044, 0.7853982
        %vm2046 = vcmp.lt.s32.totalorder %v2040, 0
        %v2047 = vand.u32 %v2040, 2139095040
        %v2048 = vshrl.u32 %v2047, 23
        %v2049 = vsub.s32 %v2048, 127
        %v2050 = vand.u32 2147483647, %v2040
        %v2051 = vand.u32 %v2050, 8388607
        %v2052 = vor.u32 %v2051, 8388608
        %v2053 = vsub.s32 0, %v2052
        %v2054 = vadd.s32 %v2049, 1
        %vm2055 = vcmp.gt.s32.totalorder %v2054, 0
        %v2056 = vsel %vm2055, %v2054, 0
        %v2057 = vshrl.u32 %v2056, 5
        %v2058 = vand.u32 %v2056, 31
        %v2059 = vsub.s32 32, %v2058
        %v2060 = vshrl.u32 683565275, %v2059
        %v2061 = vshll.u32 683565275, %v2058
        %v2062 = vshrl.u32 2475754826, %v2059
        %v2063 = vor.u32 %v2061, %v2062
        %v2064 = vshll.u32 2475754826, %v2058
        %v2065 = vshrl.u32 2131351028, %v2059
        %v2066 = vor.u32 %v2064, %v2065
        %v2067 = vshll.u32 2131351028, %v2058
        %v2068 = vshrl.u32 2102212464, %v2059
        %v2069 = vor.u32 %v2067, %v2068
        %v2070 = vshll.u32 2102212464, %v2058
        %v2071 = vshrl.u32 920167782, %v2059
        %v2072 = vor.u32 %v2070, %v2071
        %v2073 = vshll.u32 920167782, %v2058
        %v2074 = vshrl.u32 1326507024, %v2059
        %v2075 = vor.u32 %v2073, %v2074
        %vm2076 = vcmp.lt.s32.totalorder %v2057, 1
        %vm2077 = vcmp.lt.s32.totalorder %v2057, 2
        %vm2078 = vcmp.lt.s32.totalorder %v2057, 3
        %vm2079 = vcmp.lt.s32.totalorder %v2057, 4
        %v2080 = vsel %vm2076, %v2060, %v2063
        %v2081 = vsel %vm2079, %v2069, 2102212464
        %v2082 = vsel %vm2078, %v2066, %v2081
        %v2083 = vsel %vm2077, %v2080, %v2082
        %v2084 = vsel %vm2076, %v2063, %v2066
        %v2085 = vsel %vm2079, %v2072, 920167782
        %v2086 = vsel %vm2078, %v2069, %v2085
        %v2087 = vsel %vm2077, %v2084, %v2086
        %v2088 = vsel %vm2076, %v2066, %v2069
        %v2089 = vsel %vm2079, %v2075, 1326507024
        %v2090 = vsel %vm2078, %v2072, %v2089
        %v2091 = vsel %vm2077, %v2088, %v2090
        %v2092 = vshll.u32 %v2052, 8
        %v2093 = vmul.u32.u64.compose %v2092, %v2091
        %v2094 = vextract.low.u32 %v2093
        %v2095 = vextract.high.u32 %v2093
        %v2096 = vmul.u32.u64.compose %v2092, %v2087
        %v2097 = vextract.low.u32 %v2096
        %v2098 = vextract.high.u32 %v2096
        %v2099 = vmul.u32 %v2092, %v2083
        %v2100 = vadd.s32 %v2095, %v2097
        %vm2101 = vc.u32 %v2095, %v2097
        %v2102 = vadd.s32 %v2098, 1
        %v2103 = vsel %vm2101, %v2102, %v2098
        %v2104 = vadd.s32 %v2099, %v2103
        %v2105 = vadd.s32 %v2104, 536870912
        %v2106 = vshrl.u32 %v2105, 30
        %v2107 = vshll.u32 %v2106, 30
        %v2108 = vsub.s32 %v2104, %v2107
        %vm2109 = vcmp.lt.s32.totalorder %v2108, 0
        %v2110 = vsub.s32 0, %v2108
        %v2111 = vsel %vm2109, %v2110, %v2108
        %v2112 = vclz %v2111
        %v2113 = vsub.s32 %v2112, 2
        %vm2114 = vcmp.gt.s32.totalorder 0, %v2113
        %v2115 = vsel %vm2114, 0, %v2113
        %v2116 = vsub.s32 32, %v2115
        %v2117 = vshll.u32 %v2108, %v2115
        %v2118 = vshrl.u32 %v2100, %v2116
        %v2119 = vor.u32 %v2117, %v2118
        %v2120 = vsub.s32 4294967266, %v2115
        %v2121 = vadd.s32 %v2120, 127
        %v2122 = vshll.u32 %v2121, 23
        %v2123 = vor.u32 4788187, %v2122
        %v2124 = vand.u32 2147483647, %v2123
        %v2126 = vcvt.s32.f32 %v2119
        %v2127 = vmul.f32 %v2126, %v2124
        %v2128 = vxor.u32 %v2127, 2147483648
        %v2129 = vsel %vm2046, %v2128, %v2127
        %v2130 = vsub.s32 4, %v2106
        %v2131 = vsel %vm2046, %v2130, %v2106
        %v2132 = vsel %vm2045, %v2040, %v2129
        %v2133 = vsel %vm2045, 0, %v2131
        %v2134 = vcosq.f32.pop %v2132
        %v2135 = vsinq.f32.pop %v2132
        %vm2136 = vweird.f32 %v2040
        %v2137 = vadd.s32 %v2133, 3
        %v2138 = vand.u32 %v2137, 3
        %vm2139 = vcmp.lt.s32.totalorder %v2138, 2
        %vm2140 = vcmp.eq.s32.totalorder %v2138, 0
        %v2141 = vxor.u32 %v2135, 2147483648
        %v2142 = vsel %vm2140, %v2134, %v2141
        %vm2143 = vcmp.eq.s32.totalorder %v2138, 2
        %v2144 = vxor.u32 %v2134, 2147483648
        %v2145 = vsel %vm2143, %v2144, %v2135
        %v2146 = vsel %vm2139, %v2142, %v2145
        %v2147 = vsel %vm2136, nan, %v2146
        %v2148 = vand.u32 2147483647, %v2041
        %vm2149 = vcmp.le.f32.partialorder %v2148, 0.7853982
        %vm2150 = vcmp.lt.s32.totalorder %v2041, 0
        %v2151 = vand.u32 %v2041, 2139095040
        %v2152 = vshrl.u32 %v2151, 23
        %v2153 = vsub.s32 %v2152, 127
        %v2154 = vand.u32 2147483647, %v2041
        %v2155 = vand.u32 %v2154, 8388607
        %v2156 = vor.u32 %v2155, 8388608
        %v2157 = vsub.s32 0, %v2156
        %v2158 = vadd.s32 %v2153, 1
        %vm2159 = vcmp.gt.s32.totalorder %v2158, 0
        %v2160 = vsel %vm2159, %v2158, 0
        %v2161 = vshrl.u32 %v2160, 5
        %v2162 = vand.u32 %v2160, 31
        %v2163 = vsub.s32 32, %v2162
        %v2164 = vshrl.u32 683565275, %v2163
        %v2165 = vshll.u32 683565275, %v2162
        %v2166 = vshrl.u32 2475754826, %v2163
        %v2167 = vor.u32 %v2165, %v2166
        %v2168 = vshll.u32 2475754826, %v2162
        %v2169 = vshrl.u32 2131351028, %v2163
        %v2170 = vor.u32 %v2168, %v2169
        %v2171 = vshll.u32 2131351028, %v2162
        %v2172 = vshrl.u32 2102212464, %v2163
        %v2173 = vor.u32 %v2171, %v2172
        %v2174 = vshll.u32 2102212464, %v2162
        %v2175 = vshrl.u32 920167782, %v2163
        %v2176 = vor.u32 %v2174, %v2175
        %v2177 = vshll.u32 920167782, %v2162
        %v2178 = vshrl.u32 1326507024, %v2163
        %v2179 = vor.u32 %v2177, %v2178
        %vm2180 = vcmp.lt.s32.totalorder %v2161, 1
        %vm2181 = vcmp.lt.s32.totalorder %v2161, 2
        %vm2182 = vcmp.lt.s32.totalorder %v2161, 3
        %vm2183 = vcmp.lt.s32.totalorder %v2161, 4
        %v2184 = vsel %vm2180, %v2164, %v2167
        %v2185 = vsel %vm2183, %v2173, 2102212464
        %v2186 = vsel %vm2182, %v2170, %v2185
        %v2187 = vsel %vm2181, %v2184, %v2186
        %v2188 = vsel %vm2180, %v2167, %v2170
        %v2189 = vsel %vm2183, %v2176, 920167782
        %v2190 = vsel %vm2182, %v2173, %v2189
        %v2191 = vsel %vm2181, %v2188, %v2190
        %v2192 = vsel %vm2180, %v2170, %v2173
        %v2193 = vsel %vm2183, %v2179, 1326507024
        %v2194 = vsel %vm2182, %v2176, %v2193
        %v2195 = vsel %vm2181, %v2192, %v2194
        %v2196 = vshll.u32 %v2156, 8
        %v2197 = vmul.u32.u64.compose %v2196, %v2195
        %v2198 = vextract.low.u32 %v2197
        %v2199 = vextract.high.u32 %v2197
        %v2200 = vmul.u32.u64.compose %v2196, %v2191
        %v2201 = vextract.low.u32 %v2200
        %v2202 = vextract.high.u32 %v2200
        %v2203 = vmul.u32 %v2196, %v2187
        %v2204 = vadd.s32 %v2199, %v2201
        %vm2205 = vc.u32 %v2199, %v2201
        %v2206 = vadd.s32 %v2202, 1
        %v2207 = vsel %vm2205, %v2206, %v2202
        %v2208 = vadd.s32 %v2203, %v2207
        %v2209 = vadd.s32 %v2208, 536870912
        %v2210 = vshrl.u32 %v2209, 30
        %v2211 = vshll.u32 %v2210, 30
        %v2212 = vsub.s32 %v2208, %v2211
        %vm2213 = vcmp.lt.s32.totalorder %v2212, 0
        %v2214 = vsub.s32 0, %v2212
        %v2215 = vsel %vm2213, %v2214, %v2212
        %v2216 = vclz %v2215
        %v2217 = vsub.s32 %v2216, 2
        %vm2218 = vcmp.gt.s32.totalorder 0, %v2217
        %v2219 = vsel %vm2218, 0, %v2217
        %v2220 = vsub.s32 32, %v2219
        %v2221 = vshll.u32 %v2212, %v2219
        %v2222 = vshrl.u32 %v2204, %v2220
        %v2223 = vor.u32 %v2221, %v2222
        %v2224 = vsub.s32 4294967266, %v2219
        %v2225 = vadd.s32 %v2224, 127
        %v2226 = vshll.u32 %v2225, 23
        %v2227 = vor.u32 4788187, %v2226
        %v2228 = vand.u32 2147483647, %v2227
        %v2230 = vcvt.s32.f32 %v2223
        %v2231 = vmul.f32 %v2230, %v2228
        %v2232 = vxor.u32 %v2231, 2147483648
        %v2233 = vsel %vm2150, %v2232, %v2231
        %v2234 = vsub.s32 4, %v2210
        %v2235 = vsel %vm2150, %v2234, %v2210
        %v2236 = vsel %vm2149, %v2041, %v2233
        %v2237 = vsel %vm2149, 0, %v2235
        %v2238 = vcosq.f32.pop %v2236
        %v2239 = vsinq.f32.pop %v2236
        %vm2240 = vweird.f32 %v2041
        %v2241 = vadd.s32 %v2237, 3
        %v2242 = vand.u32 %v2241, 3
        %vm2243 = vcmp.lt.s32.totalorder %v2242, 2
        %vm2244 = vcmp.eq.s32.totalorder %v2242, 0
        %v2245 = vxor.u32 %v2239, 2147483648
        %v2246 = vsel %vm2244, %v2238, %v2245
        %vm2247 = vcmp.eq.s32.totalorder %v2242, 2
        %v2248 = vxor.u32 %v2238, 2147483648
        %v2249 = vsel %vm2247, %v2248, %v2239
        %v2250 = vsel %vm2243, %v2246, %v2249
        %v2251 = vsel %vm2240, nan, %v2250
        %v2252 = vrcp.pop %v2040
        %v2253 = vrcp.pop %v2041
        %v2254 = vmul.f32 %v2040, %v2252
        %v2255 = vmul.f32 %v2041, %v2253
        %v2256 = vsub.f32 2.0, %v2254
        %v2257 = vsub.f32 2.0, %v2255
        %v2258 = vmul.f32 %v2252, %v2256
        %v2259 = vmul.f32 %v2253, %v2257
        %vm2260 = vcmp.lt.f32.partialorder %v2042, 1e-06
        %vm2261 = vcmp.lt.f32.partialorder %v2043, 1e-06
        %v2262 = vmul.f32 %v2042, 0.16666667
        %v2263 = vmul.f32 %v2043, 0.16666667
        %v2264 = vsub.f32 1.0, %v2262
        %v2265 = vsub.f32 1.0, %v2263
        %v2266 = vmul.f32 %v2147, %v2258
        %v2267 = vmul.f32 %v2251, %v2259
        %v2268 = vsel %vm2260, %v2264, %v2266
        %v2269 = vsel %vm2261, %v2265, %v2267
        %v2270 = vmul.f32 %v2026, %v2268
        %v2271 = vmul.f32 %v2027, %v2269
        %v2272 = vmul.f32 %v2270, %v2270
        %v2273 = vmul.f32 %v2271, %v2271
        %v2274 = vmul.f32 %v2272, %v2272
        %v2275 = vmul.f32 %v2273, %v2273
        %v2276 = vsel %vm319, %v2274, 0.0
        %v2277 = vsel %vm319, %v2275, 0.0
        %v2278 = vpack.c.bf16 %v2277, %v2276
        %v2295 = vunpack.c.l.b16 %v298
        %v2296 = vunpack.c.l.b16 %v299
        %v2297 = vunpack.c.l.b16 %v300
        %v2298 = vunpack.c.l.b16 %v301
        %v2299 = vunpack.c.l.b16 %v302
        %v2300 = vunpack.c.l.b16 %v303
        %v2301 = vunpack.c.l.b16 %v304
        %v2302 = vunpack.c.l.b16 %v305
        %v2303 = vunpack.c.l.b16 %v306
        %v2304 = vunpack.c.l.b16 %v307
        %v2305 = vunpack.c.l.b16 %v308
        %v2306 = vunpack.c.l.b16 %v309
        %v2307 = vunpack.c.l.b16 %v310
        %v2308 = vunpack.c.l.b16 %v311
        %v2309 = vunpack.c.l.b16 %v312
        %v2310 = vunpack.c.l.b16 %v313
        %v2311 = vpack.c.b16 %v2296, %v2295
        %v2312 = vpack.c.b16 %v2298, %v2297
        %v2313 = vpack.c.b16 %v2300, %v2299
        %v2314 = vpack.c.b16 %v2302, %v2301
        %v2315 = vpack.c.b16 %v2304, %v2303
        %v2316 = vpack.c.b16 %v2306, %v2305
        %v2317 = vpack.c.b16 %v2308, %v2307
        %v2318 = vpack.c.b16 %v2310, %v2309
        %2327 = vmatprep.subr.bf16.mxu0 0
        %2328 = vmatpush1.bf16.msra.mxu0 %v2311
        %2329 = vmatprep.subr.bf16.mxu0 0
        %2330 = vmatpush1.bf16.msra.mxu0 %v2312
        %2331 = vmatprep.subr.bf16.mxu0 0
        %2332 = vmatpush1.bf16.msra.mxu0 %v2313
        %2333 = vmatprep.subr.bf16.mxu0 0
        %2334 = vmatpush1.bf16.msra.mxu0 %v2314
        %2335 = vmatprep.subr.bf16.mxu0 0
        %2336 = vmatpush1.bf16.msra.mxu0 %v2315
        %2337 = vmatprep.subr.bf16.mxu0 0
        %2338 = vmatpush1.bf16.msra.mxu0 %v2316
        %2339 = vmatprep.subr.bf16.mxu0 0
        %2340 = vmatpush1.bf16.msra.mxu0 %v2317
        %2341 = vmatprep.subr.bf16.mxu0 0
        %2342 = vmatpush1.bf16.msra.mxu0 %v2318
        %2343 = vmatprep.subr.bf16.mxu0 0
        %2344 = vmatpush1.bf16.msra.mxu0 0
        %2345 = vmatprep.subr.bf16.mxu0 0
        %2346 = vmatpush1.bf16.msra.mxu0 0
        %2347 = vmatprep.subr.bf16.mxu0 0
        %2348 = vmatpush1.bf16.msra.mxu0 0
        %2349 = vmatprep.subr.bf16.mxu0 0
        %2350 = vmatpush1.bf16.msra.mxu0 0
        %2351 = vmatprep.subr.bf16.mxu0 0
        %2352 = vmatpush1.bf16.msra.mxu0 0
        %2353 = vmatprep.subr.bf16.mxu0 0
        %2354 = vmatpush1.bf16.msra.mxu0 0
        %2355 = vmatprep.subr.bf16.mxu0 0
        %2356 = vmatpush1.bf16.msra.mxu0 0
        %2357 = vmatprep.subr.bf16.mxu0 0
        %2358 = vmatpush1.bf16.msra.mxu0 0
        %2359 = vmatprep.mubr.bf16.mxu0 0
        %2360 = vmatmul.mubr.bf16.gmra.mrb[0].mxu0 %v2278
        %v2361 = vpop.f32.mrb[0].mxu0
        %v2362 = vadd.f32 0.0, %v2361
        %v2363 = vpop.f32.mrb[0].mxu0
        %v2364 = vpop.f32.mrb[0].mxu0
        %v2365 = vadd.f32 0.0, %v2364
        %v2366 = vpop.f32.mrb[0].mxu0
        %2367 = vdwg.mxu0
        %2368 = vset.pattern.permute.xlu0 8
        %2369 = vperm.xlu0 %2368, %v288
        %v2370 = vpop.permute.xlu0 %2369
        %2372 = vset.pattern.permute.xlu0 8
        %2373 = vperm.xlu0 %2372, %v289
        %v2374 = vpop.permute.xlu0 %2373
        %v2376 = vlaneseq
        %v2377 = vshrl.u32 %v2376, 7
        %v2378 = vsub.s32 0, %v2377
        %v2379 = vrot.slane %v295, %v2378
        %v2380 = vsub.f32 %v2370, %v2379
        %v2381 = vsub.f32 %v2374, %v2379
        %v2382 = vmul.f32 %v2380, %v2380
        %v2383 = vmul.f32 %v2381, %v2381
        %v2384 = vand.u32 2147483647, %v2380
        %vm2385 = vcmp.le.f32.partialorder %v2384, 0.7853982
        %vm2386 = vcmp.lt.s32.totalorder %v2380, 0
        %v2387 = vand.u32 %v2380, 2139095040
        %v2388 = vshrl.u32 %v2387, 23
        %v2389 = vsub.s32 %v2388, 127
        %v2390 = vand.u32 2147483647, %v2380
        %v2391 = vand.u32 %v2390, 8388607
        %v2392 = vor.u32 %v2391, 8388608
        %v2393 = vsub.s32 0, %v2392
        %v2394 = vadd.s32 %v2389, 1
        %vm2395 = vcmp.gt.s32.totalorder %v2394, 0
        %v2396 = vsel %vm2395, %v2394, 0
        %v2397 = vshrl.u32 %v2396, 5
        %v2398 = vand.u32 %v2396, 31
        %v2399 = vsub.s32 32, %v2398
        %v2400 = vshrl.u32 683565275, %v2399
        %v2401 = vshll.u32 683565275, %v2398
        %v2402 = vshrl.u32 2475754826, %v2399
        %v2403 = vor.u32 %v2401, %v2402
        %v2404 = vshll.u32 2475754826, %v2398
        %v2405 = vshrl.u32 2131351028, %v2399
        %v2406 = vor.u32 %v2404, %v2405
        %v2407 = vshll.u32 2131351028, %v2398
        %v2408 = vshrl.u32 2102212464, %v2399
        %v2409 = vor.u32 %v2407, %v2408
        %v2410 = vshll.u32 2102212464, %v2398
        %v2411 = vshrl.u32 920167782, %v2399
        %v2412 = vor.u32 %v2410, %v2411
        %v2413 = vshll.u32 920167782, %v2398
        %v2414 = vshrl.u32 1326507024, %v2399
        %v2415 = vor.u32 %v2413, %v2414
        %vm2416 = vcmp.lt.s32.totalorder %v2397, 1
        %vm2417 = vcmp.lt.s32.totalorder %v2397, 2
        %vm2418 = vcmp.lt.s32.totalorder %v2397, 3
        %vm2419 = vcmp.lt.s32.totalorder %v2397, 4
        %v2420 = vsel %vm2416, %v2400, %v2403
        %v2421 = vsel %vm2419, %v2409, 2102212464
        %v2422 = vsel %vm2418, %v2406, %v2421
        %v2423 = vsel %vm2417, %v2420, %v2422
        %v2424 = vsel %vm2416, %v2403, %v2406
        %v2425 = vsel %vm2419, %v2412, 920167782
        %v2426 = vsel %vm2418, %v2409, %v2425
        %v2427 = vsel %vm2417, %v2424, %v2426
        %v2428 = vsel %vm2416, %v2406, %v2409
        %v2429 = vsel %vm2419, %v2415, 1326507024
        %v2430 = vsel %vm2418, %v2412, %v2429
        %v2431 = vsel %vm2417, %v2428, %v2430
        %v2432 = vshll.u32 %v2392, 8
        %v2433 = vmul.u32.u64.compose %v2432, %v2431
        %v2434 = vextract.low.u32 %v2433
        %v2435 = vextract.high.u32 %v2433
        %v2436 = vmul.u32.u64.compose %v2432, %v2427
        %v2437 = vextract.low.u32 %v2436
        %v2438 = vextract.high.u32 %v2436
        %v2439 = vmul.u32 %v2432, %v2423
        %v2440 = vadd.s32 %v2435, %v2437
        %vm2441 = vc.u32 %v2435, %v2437
        %v2442 = vadd.s32 %v2438, 1
        %v2443 = vsel %vm2441, %v2442, %v2438
        %v2444 = vadd.s32 %v2439, %v2443
        %v2445 = vadd.s32 %v2444, 536870912
        %v2446 = vshrl.u32 %v2445, 30
        %v2447 = vshll.u32 %v2446, 30
        %v2448 = vsub.s32 %v2444, %v2447
        %vm2449 = vcmp.lt.s32.totalorder %v2448, 0
        %v2450 = vsub.s32 0, %v2448
        %v2451 = vsel %vm2449, %v2450, %v2448
        %v2452 = vclz %v2451
        %v2453 = vsub.s32 %v2452, 2
        %vm2454 = vcmp.gt.s32.totalorder 0, %v2453
        %v2455 = vsel %vm2454, 0, %v2453
        %v2456 = vsub.s32 32, %v2455
        %v2457 = vshll.u32 %v2448, %v2455
        %v2458 = vshrl.u32 %v2440, %v2456
        %v2459 = vor.u32 %v2457, %v2458
        %v2460 = vsub.s32 4294967266, %v2455
        %v2461 = vadd.s32 %v2460, 127
        %v2462 = vshll.u32 %v2461, 23
        %v2463 = vor.u32 4788187, %v2462
        %v2464 = vand.u32 2147483647, %v2463
        %v2466 = vcvt.s32.f32 %v2459
        %v2467 = vmul.f32 %v2466, %v2464
        %v2468 = vxor.u32 %v2467, 2147483648
        %v2469 = vsel %vm2386, %v2468, %v2467
        %v2470 = vsub.s32 4, %v2446
        %v2471 = vsel %vm2386, %v2470, %v2446
        %v2472 = vsel %vm2385, %v2380, %v2469
        %v2473 = vsel %vm2385, 0, %v2471
        %v2474 = vcosq.f32.pop %v2472
        %v2475 = vsinq.f32.pop %v2472
        %vm2476 = vweird.f32 %v2380
        %v2477 = vadd.s32 %v2473, 3
        %v2478 = vand.u32 %v2477, 3
        %vm2479 = vcmp.lt.s32.totalorder %v2478, 2
        %vm2480 = vcmp.eq.s32.totalorder %v2478, 0
        %v2481 = vxor.u32 %v2475, 2147483648
        %v2482 = vsel %vm2480, %v2474, %v2481
        %vm2483 = vcmp.eq.s32.totalorder %v2478, 2
        %v2484 = vxor.u32 %v2474, 2147483648
        %v2485 = vsel %vm2483, %v2484, %v2475
        %v2486 = vsel %vm2479, %v2482, %v2485
        %v2487 = vsel %vm2476, nan, %v2486
        %v2488 = vand.u32 2147483647, %v2381
        %vm2489 = vcmp.le.f32.partialorder %v2488, 0.7853982
        %vm2490 = vcmp.lt.s32.totalorder %v2381, 0
        %v2491 = vand.u32 %v2381, 2139095040
        %v2492 = vshrl.u32 %v2491, 23
        %v2493 = vsub.s32 %v2492, 127
        %v2494 = vand.u32 2147483647, %v2381
        %v2495 = vand.u32 %v2494, 8388607
        %v2496 = vor.u32 %v2495, 8388608
        %v2497 = vsub.s32 0, %v2496
        %v2498 = vadd.s32 %v2493, 1
        %vm2499 = vcmp.gt.s32.totalorder %v2498, 0
        %v2500 = vsel %vm2499, %v2498, 0
        %v2501 = vshrl.u32 %v2500, 5
        %v2502 = vand.u32 %v2500, 31
        %v2503 = vsub.s32 32, %v2502
        %v2504 = vshrl.u32 683565275, %v2503
        %v2505 = vshll.u32 683565275, %v2502
        %v2506 = vshrl.u32 2475754826, %v2503
        %v2507 = vor.u32 %v2505, %v2506
        %v2508 = vshll.u32 2475754826, %v2502
        %v2509 = vshrl.u32 2131351028, %v2503
        %v2510 = vor.u32 %v2508, %v2509
        %v2511 = vshll.u32 2131351028, %v2502
        %v2512 = vshrl.u32 2102212464, %v2503
        %v2513 = vor.u32 %v2511, %v2512
        %v2514 = vshll.u32 2102212464, %v2502
        %v2515 = vshrl.u32 920167782, %v2503
        %v2516 = vor.u32 %v2514, %v2515
        %v2517 = vshll.u32 920167782, %v2502
        %v2518 = vshrl.u32 1326507024, %v2503
        %v2519 = vor.u32 %v2517, %v2518
        %vm2520 = vcmp.lt.s32.totalorder %v2501, 1
        %vm2521 = vcmp.lt.s32.totalorder %v2501, 2
        %vm2522 = vcmp.lt.s32.totalorder %v2501, 3
        %vm2523 = vcmp.lt.s32.totalorder %v2501, 4
        %v2524 = vsel %vm2520, %v2504, %v2507
        %v2525 = vsel %vm2523, %v2513, 2102212464
        %v2526 = vsel %vm2522, %v2510, %v2525
        %v2527 = vsel %vm2521, %v2524, %v2526
        %v2528 = vsel %vm2520, %v2507, %v2510
        %v2529 = vsel %vm2523, %v2516, 920167782
        %v2530 = vsel %vm2522, %v2513, %v2529
        %v2531 = vsel %vm2521, %v2528, %v2530
        %v2532 = vsel %vm2520, %v2510, %v2513
        %v2533 = vsel %vm2523, %v2519, 1326507024
        %v2534 = vsel %vm2522, %v2516, %v2533
        %v2535 = vsel %vm2521, %v2532, %v2534
        %v2536 = vshll.u32 %v2496, 8
        %v2537 = vmul.u32.u64.compose %v2536, %v2535
        %v2538 = vextract.low.u32 %v2537
        %v2539 = vextract.high.u32 %v2537
        %v2540 = vmul.u32.u64.compose %v2536, %v2531
        %v2541 = vextract.low.u32 %v2540
        %v2542 = vextract.high.u32 %v2540
        %v2543 = vmul.u32 %v2536, %v2527
        %v2544 = vadd.s32 %v2539, %v2541
        %vm2545 = vc.u32 %v2539, %v2541
        %v2546 = vadd.s32 %v2542, 1
        %v2547 = vsel %vm2545, %v2546, %v2542
        %v2548 = vadd.s32 %v2543, %v2547
        %v2549 = vadd.s32 %v2548, 536870912
        %v2550 = vshrl.u32 %v2549, 30
        %v2551 = vshll.u32 %v2550, 30
        %v2552 = vsub.s32 %v2548, %v2551
        %vm2553 = vcmp.lt.s32.totalorder %v2552, 0
        %v2554 = vsub.s32 0, %v2552
        %v2555 = vsel %vm2553, %v2554, %v2552
        %v2556 = vclz %v2555
        %v2557 = vsub.s32 %v2556, 2
        %vm2558 = vcmp.gt.s32.totalorder 0, %v2557
        %v2559 = vsel %vm2558, 0, %v2557
        %v2560 = vsub.s32 32, %v2559
        %v2561 = vshll.u32 %v2552, %v2559
        %v2562 = vshrl.u32 %v2544, %v2560
        %v2563 = vor.u32 %v2561, %v2562
        %v2564 = vsub.s32 4294967266, %v2559
        %v2565 = vadd.s32 %v2564, 127
        %v2566 = vshll.u32 %v2565, 23
        %v2567 = vor.u32 4788187, %v2566
        %v2568 = vand.u32 2147483647, %v2567
        %v2570 = vcvt.s32.f32 %v2563
        %v2571 = vmul.f32 %v2570, %v2568
        %v2572 = vxor.u32 %v2571, 2147483648
        %v2573 = vsel %vm2490, %v2572, %v2571
        %v2574 = vsub.s32 4, %v2550
        %v2575 = vsel %vm2490, %v2574, %v2550
        %v2576 = vsel %vm2489, %v2381, %v2573
        %v2577 = vsel %vm2489, 0, %v2575
        %v2578 = vcosq.f32.pop %v2576
        %v2579 = vsinq.f32.pop %v2576
        %vm2580 = vweird.f32 %v2381
        %v2581 = vadd.s32 %v2577, 3
        %v2582 = vand.u32 %v2581, 3
        %vm2583 = vcmp.lt.s32.totalorder %v2582, 2
        %vm2584 = vcmp.eq.s32.totalorder %v2582, 0
        %v2585 = vxor.u32 %v2579, 2147483648
        %v2586 = vsel %vm2584, %v2578, %v2585
        %vm2587 = vcmp.eq.s32.totalorder %v2582, 2
        %v2588 = vxor.u32 %v2578, 2147483648
        %v2589 = vsel %vm2587, %v2588, %v2579
        %v2590 = vsel %vm2583, %v2586, %v2589
        %v2591 = vsel %vm2580, nan, %v2590
        %v2592 = vrcp.pop %v2380
        %v2593 = vrcp.pop %v2381
        %v2594 = vmul.f32 %v2380, %v2592
        %v2595 = vmul.f32 %v2381, %v2593
        %v2596 = vsub.f32 2.0, %v2594
        %v2597 = vsub.f32 2.0, %v2595
        %v2598 = vmul.f32 %v2592, %v2596
        %v2599 = vmul.f32 %v2593, %v2597
        %vm2600 = vcmp.lt.f32.partialorder %v2382, 1e-06
        %vm2601 = vcmp.lt.f32.partialorder %v2383, 1e-06
        %v2602 = vmul.f32 %v2382, 0.16666667
        %v2603 = vmul.f32 %v2383, 0.16666667
        %v2604 = vsub.f32 1.0, %v2602
        %v2605 = vsub.f32 1.0, %v2603
        %v2606 = vmul.f32 %v2487, %v2598
        %v2607 = vmul.f32 %v2591, %v2599
        %v2608 = vsel %vm2600, %v2604, %v2606
        %v2609 = vsel %vm2601, %v2605, %v2607
        %2610 = vset.pattern.permute.xlu0 9
        %2611 = vperm.xlu0 %2610, %v288
        %v2612 = vpop.permute.xlu0 %2611
        %2614 = vset.pattern.permute.xlu0 9
        %2615 = vperm.xlu0 %2614, %v289
        %v2616 = vpop.permute.xlu0 %2615
        %v2618 = vlaneseq
        %v2619 = vshrl.u32 %v2618, 7
        %v2620 = vsub.s32 1, %v2619
        %v2621 = vrot.slane %v295, %v2620
        %v2622 = vsub.f32 %v2612, %v2621
        %v2623 = vsub.f32 %v2616, %v2621
        %v2624 = vmul.f32 %v2622, %v2622
        %v2625 = vmul.f32 %v2623, %v2623
        %v2626 = vand.u32 2147483647, %v2622
        %vm2627 = vcmp.le.f32.partialorder %v2626, 0.7853982
        %vm2628 = vcmp.lt.s32.totalorder %v2622, 0
        %v2629 = vand.u32 %v2622, 2139095040
        %v2630 = vshrl.u32 %v2629, 23
        %v2631 = vsub.s32 %v2630, 127
        %v2632 = vand.u32 2147483647, %v2622
        %v2633 = vand.u32 %v2632, 8388607
        %v2634 = vor.u32 %v2633, 8388608
        %v2635 = vsub.s32 0, %v2634
        %v2636 = vadd.s32 %v2631, 1
        %vm2637 = vcmp.gt.s32.totalorder %v2636, 0
        %v2638 = vsel %vm2637, %v2636, 0
        %v2639 = vshrl.u32 %v2638, 5
        %v2640 = vand.u32 %v2638, 31
        %v2641 = vsub.s32 32, %v2640
        %v2642 = vshrl.u32 683565275, %v2641
        %v2643 = vshll.u32 683565275, %v2640
        %v2644 = vshrl.u32 2475754826, %v2641
        %v2645 = vor.u32 %v2643, %v2644
        %v2646 = vshll.u32 2475754826, %v2640
        %v2647 = vshrl.u32 2131351028, %v2641
        %v2648 = vor.u32 %v2646, %v2647
        %v2649 = vshll.u32 2131351028, %v2640
        %v2650 = vshrl.u32 2102212464, %v2641
        %v2651 = vor.u32 %v2649, %v2650
        %v2652 = vshll.u32 2102212464, %v2640
        %v2653 = vshrl.u32 920167782, %v2641
        %v2654 = vor.u32 %v2652, %v2653
        %v2655 = vshll.u32 920167782, %v2640
        %v2656 = vshrl.u32 1326507024, %v2641
        %v2657 = vor.u32 %v2655, %v2656
        %vm2658 = vcmp.lt.s32.totalorder %v2639, 1
        %vm2659 = vcmp.lt.s32.totalorder %v2639, 2
        %vm2660 = vcmp.lt.s32.totalorder %v2639, 3
        %vm2661 = vcmp.lt.s32.totalorder %v2639, 4
        %v2662 = vsel %vm2658, %v2642, %v2645
        %v2663 = vsel %vm2661, %v2651, 2102212464
        %v2664 = vsel %vm2660, %v2648, %v2663
        %v2665 = vsel %vm2659, %v2662, %v2664
        %v2666 = vsel %vm2658, %v2645, %v2648
        %v2667 = vsel %vm2661, %v2654, 920167782
        %v2668 = vsel %vm2660, %v2651, %v2667
        %v2669 = vsel %vm2659, %v2666, %v2668
        %v2670 = vsel %vm2658, %v2648, %v2651
        %v2671 = vsel %vm2661, %v2657, 1326507024
        %v2672 = vsel %vm2660, %v2654, %v2671
        %v2673 = vsel %vm2659, %v2670, %v2672
        %v2674 = vshll.u32 %v2634, 8
        %v2675 = vmul.u32.u64.compose %v2674, %v2673
        %v2676 = vextract.low.u32 %v2675
        %v2677 = vextract.high.u32 %v2675
        %v2678 = vmul.u32.u64.compose %v2674, %v2669
        %v2679 = vextract.low.u32 %v2678
        %v2680 = vextract.high.u32 %v2678
        %v2681 = vmul.u32 %v2674, %v2665
        %v2682 = vadd.s32 %v2677, %v2679
        %vm2683 = vc.u32 %v2677, %v2679
        %v2684 = vadd.s32 %v2680, 1
        %v2685 = vsel %vm2683, %v2684, %v2680
        %v2686 = vadd.s32 %v2681, %v2685
        %v2687 = vadd.s32 %v2686, 536870912
        %v2688 = vshrl.u32 %v2687, 30
        %v2689 = vshll.u32 %v2688, 30
        %v2690 = vsub.s32 %v2686, %v2689
        %vm2691 = vcmp.lt.s32.totalorder %v2690, 0
        %v2692 = vsub.s32 0, %v2690
        %v2693 = vsel %vm2691, %v2692, %v2690
        %v2694 = vclz %v2693
        %v2695 = vsub.s32 %v2694, 2
        %vm2696 = vcmp.gt.s32.totalorder 0, %v2695
        %v2697 = vsel %vm2696, 0, %v2695
        %v2698 = vsub.s32 32, %v2697
        %v2699 = vshll.u32 %v2690, %v2697
        %v2700 = vshrl.u32 %v2682, %v2698
        %v2701 = vor.u32 %v2699, %v2700
        %v2702 = vsub.s32 4294967266, %v2697
        %v2703 = vadd.s32 %v2702, 127
        %v2704 = vshll.u32 %v2703, 23
        %v2705 = vor.u32 4788187, %v2704
        %v2706 = vand.u32 2147483647, %v2705
        %v2708 = vcvt.s32.f32 %v2701
        %v2709 = vmul.f32 %v2708, %v2706
        %v2710 = vxor.u32 %v2709, 2147483648
        %v2711 = vsel %vm2628, %v2710, %v2709
        %v2712 = vsub.s32 4, %v2688
        %v2713 = vsel %vm2628, %v2712, %v2688
        %v2714 = vsel %vm2627, %v2622, %v2711
        %v2715 = vsel %vm2627, 0, %v2713
        %v2716 = vcosq.f32.pop %v2714
        %v2717 = vsinq.f32.pop %v2714
        %vm2718 = vweird.f32 %v2622
        %v2719 = vadd.s32 %v2715, 3
        %v2720 = vand.u32 %v2719, 3
        %vm2721 = vcmp.lt.s32.totalorder %v2720, 2
        %vm2722 = vcmp.eq.s32.totalorder %v2720, 0
        %v2723 = vxor.u32 %v2717, 2147483648
        %v2724 = vsel %vm2722, %v2716, %v2723
        %vm2725 = vcmp.eq.s32.totalorder %v2720, 2
        %v2726 = vxor.u32 %v2716, 2147483648
        %v2727 = vsel %vm2725, %v2726, %v2717
        %v2728 = vsel %vm2721, %v2724, %v2727
        %v2729 = vsel %vm2718, nan, %v2728
        %v2730 = vand.u32 2147483647, %v2623
        %vm2731 = vcmp.le.f32.partialorder %v2730, 0.7853982
        %vm2732 = vcmp.lt.s32.totalorder %v2623, 0
        %v2733 = vand.u32 %v2623, 2139095040
        %v2734 = vshrl.u32 %v2733, 23
        %v2735 = vsub.s32 %v2734, 127
        %v2736 = vand.u32 2147483647, %v2623
        %v2737 = vand.u32 %v2736, 8388607
        %v2738 = vor.u32 %v2737, 8388608
        %v2739 = vsub.s32 0, %v2738
        %v2740 = vadd.s32 %v2735, 1
        %vm2741 = vcmp.gt.s32.totalorder %v2740, 0
        %v2742 = vsel %vm2741, %v2740, 0
        %v2743 = vshrl.u32 %v2742, 5
        %v2744 = vand.u32 %v2742, 31
        %v2745 = vsub.s32 32, %v2744
        %v2746 = vshrl.u32 683565275, %v2745
        %v2747 = vshll.u32 683565275, %v2744
        %v2748 = vshrl.u32 2475754826, %v2745
        %v2749 = vor.u32 %v2747, %v2748
        %v2750 = vshll.u32 2475754826, %v2744
        %v2751 = vshrl.u32 2131351028, %v2745
        %v2752 = vor.u32 %v2750, %v2751
        %v2753 = vshll.u32 2131351028, %v2744
        %v2754 = vshrl.u32 2102212464, %v2745
        %v2755 = vor.u32 %v2753, %v2754
        %v2756 = vshll.u32 2102212464, %v2744
        %v2757 = vshrl.u32 920167782, %v2745
        %v2758 = vor.u32 %v2756, %v2757
        %v2759 = vshll.u32 920167782, %v2744
        %v2760 = vshrl.u32 1326507024, %v2745
        %v2761 = vor.u32 %v2759, %v2760
        %vm2762 = vcmp.lt.s32.totalorder %v2743, 1
        %vm2763 = vcmp.lt.s32.totalorder %v2743, 2
        %vm2764 = vcmp.lt.s32.totalorder %v2743, 3
        %vm2765 = vcmp.lt.s32.totalorder %v2743, 4
        %v2766 = vsel %vm2762, %v2746, %v2749
        %v2767 = vsel %vm2765, %v2755, 2102212464
        %v2768 = vsel %vm2764, %v2752, %v2767
        %v2769 = vsel %vm2763, %v2766, %v2768
        %v2770 = vsel %vm2762, %v2749, %v2752
        %v2771 = vsel %vm2765, %v2758, 920167782
        %v2772 = vsel %vm2764, %v2755, %v2771
        %v2773 = vsel %vm2763, %v2770, %v2772
        %v2774 = vsel %vm2762, %v2752, %v2755
        %v2775 = vsel %vm2765, %v2761, 1326507024
        %v2776 = vsel %vm2764, %v2758, %v2775
        %v2777 = vsel %vm2763, %v2774, %v2776
        %v2778 = vshll.u32 %v2738, 8
        %v2779 = vmul.u32.u64.compose %v2778, %v2777
        %v2780 = vextract.low.u32 %v2779
        %v2781 = vextract.high.u32 %v2779
        %v2782 = vmul.u32.u64.compose %v2778, %v2773
        %v2783 = vextract.low.u32 %v2782
        %v2784 = vextract.high.u32 %v2782
        %v2785 = vmul.u32 %v2778, %v2769
        %v2786 = vadd.s32 %v2781, %v2783
        %vm2787 = vc.u32 %v2781, %v2783
        %v2788 = vadd.s32 %v2784, 1
        %v2789 = vsel %vm2787, %v2788, %v2784
        %v2790 = vadd.s32 %v2785, %v2789
        %v2791 = vadd.s32 %v2790, 536870912
        %v2792 = vshrl.u32 %v2791, 30
        %v2793 = vshll.u32 %v2792, 30
        %v2794 = vsub.s32 %v2790, %v2793
        %vm2795 = vcmp.lt.s32.totalorder %v2794, 0
        %v2796 = vsub.s32 0, %v2794
        %v2797 = vsel %vm2795, %v2796, %v2794
        %v2798 = vclz %v2797
        %v2799 = vsub.s32 %v2798, 2
        %vm2800 = vcmp.gt.s32.totalorder 0, %v2799
        %v2801 = vsel %vm2800, 0, %v2799
        %v2802 = vsub.s32 32, %v2801
        %v2803 = vshll.u32 %v2794, %v2801
        %v2804 = vshrl.u32 %v2786, %v2802
        %v2805 = vor.u32 %v2803, %v2804
        %v2806 = vsub.s32 4294967266, %v2801
        %v2807 = vadd.s32 %v2806, 127
        %v2808 = vshll.u32 %v2807, 23
        %v2809 = vor.u32 4788187, %v2808
        %v2810 = vand.u32 2147483647, %v2809
        %v2812 = vcvt.s32.f32 %v2805
        %v2813 = vmul.f32 %v2812, %v2810
        %v2814 = vxor.u32 %v2813, 2147483648
        %v2815 = vsel %vm2732, %v2814, %v2813
        %v2816 = vsub.s32 4, %v2792
        %v2817 = vsel %vm2732, %v2816, %v2792
        %v2818 = vsel %vm2731, %v2623, %v2815
        %v2819 = vsel %vm2731, 0, %v2817
        %v2820 = vcosq.f32.pop %v2818
        %v2821 = vsinq.f32.pop %v2818
        %vm2822 = vweird.f32 %v2623
        %v2823 = vadd.s32 %v2819, 3
        %v2824 = vand.u32 %v2823, 3
        %vm2825 = vcmp.lt.s32.totalorder %v2824, 2
        %vm2826 = vcmp.eq.s32.totalorder %v2824, 0
        %v2827 = vxor.u32 %v2821, 2147483648
        %v2828 = vsel %vm2826, %v2820, %v2827
        %vm2829 = vcmp.eq.s32.totalorder %v2824, 2
        %v2830 = vxor.u32 %v2820, 2147483648
        %v2831 = vsel %vm2829, %v2830, %v2821
        %v2832 = vsel %vm2825, %v2828, %v2831
        %v2833 = vsel %vm2822, nan, %v2832
        %v2834 = vrcp.pop %v2622
        %v2835 = vrcp.pop %v2623
        %v2836 = vmul.f32 %v2622, %v2834
        %v2837 = vmul.f32 %v2623, %v2835
        %v2838 = vsub.f32 2.0, %v2836
        %v2839 = vsub.f32 2.0, %v2837
        %v2840 = vmul.f32 %v2834, %v2838
        %v2841 = vmul.f32 %v2835, %v2839
        %vm2842 = vcmp.lt.f32.partialorder %v2624, 1e-06
        %vm2843 = vcmp.lt.f32.partialorder %v2625, 1e-06
        %v2844 = vmul.f32 %v2624, 0.16666667
        %v2845 = vmul.f32 %v2625, 0.16666667
        %v2846 = vsub.f32 1.0, %v2844
        %v2847 = vsub.f32 1.0, %v2845
        %v2848 = vmul.f32 %v2729, %v2840
        %v2849 = vmul.f32 %v2833, %v2841
        %v2850 = vsel %vm2842, %v2846, %v2848
        %v2851 = vsel %vm2843, %v2847, %v2849
        %v2852 = vmul.f32 %v2608, %v2850
        %v2853 = vmul.f32 %v2609, %v2851
        %2854 = vset.pattern.permute.xlu0 10
        %2855 = vperm.xlu0 %2854, %v288
        %v2856 = vpop.permute.xlu0 %2855
        %2858 = vset.pattern.permute.xlu0 10
        %2859 = vperm.xlu0 %2858, %v289
        %v2860 = vpop.permute.xlu0 %2859
        %v2862 = vlaneseq
        %v2863 = vshrl.u32 %v2862, 7
        %v2864 = vsub.s32 2, %v2863
        %v2865 = vrot.slane %v295, %v2864
        %v2866 = vsub.f32 %v2856, %v2865
        %v2867 = vsub.f32 %v2860, %v2865
        %v2868 = vmul.f32 %v2866, %v2866
        %v2869 = vmul.f32 %v2867, %v2867
        %v2870 = vand.u32 2147483647, %v2866
        %vm2871 = vcmp.le.f32.partialorder %v2870, 0.7853982
        %vm2872 = vcmp.lt.s32.totalorder %v2866, 0
        %v2873 = vand.u32 %v2866, 2139095040
        %v2874 = vshrl.u32 %v2873, 23
        %v2875 = vsub.s32 %v2874, 127
        %v2876 = vand.u32 2147483647, %v2866
        %v2877 = vand.u32 %v2876, 8388607
        %v2878 = vor.u32 %v2877, 8388608
        %v2879 = vsub.s32 0, %v2878
        %v2880 = vadd.s32 %v2875, 1
        %vm2881 = vcmp.gt.s32.totalorder %v2880, 0
        %v2882 = vsel %vm2881, %v2880, 0
        %v2883 = vshrl.u32 %v2882, 5
        %v2884 = vand.u32 %v2882, 31
        %v2885 = vsub.s32 32, %v2884
        %v2886 = vshrl.u32 683565275, %v2885
        %v2887 = vshll.u32 683565275, %v2884
        %v2888 = vshrl.u32 2475754826, %v2885
        %v2889 = vor.u32 %v2887, %v2888
        %v2890 = vshll.u32 2475754826, %v2884
        %v2891 = vshrl.u32 2131351028, %v2885
        %v2892 = vor.u32 %v2890, %v2891
        %v2893 = vshll.u32 2131351028, %v2884
        %v2894 = vshrl.u32 2102212464, %v2885
        %v2895 = vor.u32 %v2893, %v2894
        %v2896 = vshll.u32 2102212464, %v2884
        %v2897 = vshrl.u32 920167782, %v2885
        %v2898 = vor.u32 %v2896, %v2897
        %v2899 = vshll.u32 920167782, %v2884
        %v2900 = vshrl.u32 1326507024, %v2885
        %v2901 = vor.u32 %v2899, %v2900
        %vm2902 = vcmp.lt.s32.totalorder %v2883, 1
        %vm2903 = vcmp.lt.s32.totalorder %v2883, 2
        %vm2904 = vcmp.lt.s32.totalorder %v2883, 3
        %vm2905 = vcmp.lt.s32.totalorder %v2883, 4
        %v2906 = vsel %vm2902, %v2886, %v2889
        %v2907 = vsel %vm2905, %v2895, 2102212464
        %v2908 = vsel %vm2904, %v2892, %v2907
        %v2909 = vsel %vm2903, %v2906, %v2908
        %v2910 = vsel %vm2902, %v2889, %v2892
        %v2911 = vsel %vm2905, %v2898, 920167782
        %v2912 = vsel %vm2904, %v2895, %v2911
        %v2913 = vsel %vm2903, %v2910, %v2912
        %v2914 = vsel %vm2902, %v2892, %v2895
        %v2915 = vsel %vm2905, %v2901, 1326507024
        %v2916 = vsel %vm2904, %v2898, %v2915
        %v2917 = vsel %vm2903, %v2914, %v2916
        %v2918 = vshll.u32 %v2878, 8
        %v2919 = vmul.u32.u64.compose %v2918, %v2917
        %v2920 = vextract.low.u32 %v2919
        %v2921 = vextract.high.u32 %v2919
        %v2922 = vmul.u32.u64.compose %v2918, %v2913
        %v2923 = vextract.low.u32 %v2922
        %v2924 = vextract.high.u32 %v2922
        %v2925 = vmul.u32 %v2918, %v2909
        %v2926 = vadd.s32 %v2921, %v2923
        %vm2927 = vc.u32 %v2921, %v2923
        %v2928 = vadd.s32 %v2924, 1
        %v2929 = vsel %vm2927, %v2928, %v2924
        %v2930 = vadd.s32 %v2925, %v2929
        %v2931 = vadd.s32 %v2930, 536870912
        %v2932 = vshrl.u32 %v2931, 30
        %v2933 = vshll.u32 %v2932, 30
        %v2934 = vsub.s32 %v2930, %v2933
        %vm2935 = vcmp.lt.s32.totalorder %v2934, 0
        %v2936 = vsub.s32 0, %v2934
        %v2937 = vsel %vm2935, %v2936, %v2934
        %v2938 = vclz %v2937
        %v2939 = vsub.s32 %v2938, 2
        %vm2940 = vcmp.gt.s32.totalorder 0, %v2939
        %v2941 = vsel %vm2940, 0, %v2939
        %v2942 = vsub.s32 32, %v2941
        %v2943 = vshll.u32 %v2934, %v2941
        %v2944 = vshrl.u32 %v2926, %v2942
        %v2945 = vor.u32 %v2943, %v2944
        %v2946 = vsub.s32 4294967266, %v2941
        %v2947 = vadd.s32 %v2946, 127
        %v2948 = vshll.u32 %v2947, 23
        %v2949 = vor.u32 4788187, %v2948
        %v2950 = vand.u32 2147483647, %v2949
        %v2952 = vcvt.s32.f32 %v2945
        %v2953 = vmul.f32 %v2952, %v2950
        %v2954 = vxor.u32 %v2953, 2147483648
        %v2955 = vsel %vm2872, %v2954, %v2953
        %v2956 = vsub.s32 4, %v2932
        %v2957 = vsel %vm2872, %v2956, %v2932
        %v2958 = vsel %vm2871, %v2866, %v2955
        %v2959 = vsel %vm2871, 0, %v2957
        %v2960 = vcosq.f32.pop %v2958
        %v2961 = vsinq.f32.pop %v2958
        %vm2962 = vweird.f32 %v2866
        %v2963 = vadd.s32 %v2959, 3
        %v2964 = vand.u32 %v2963, 3
        %vm2965 = vcmp.lt.s32.totalorder %v2964, 2
        %vm2966 = vcmp.eq.s32.totalorder %v2964, 0
        %v2967 = vxor.u32 %v2961, 2147483648
        %v2968 = vsel %vm2966, %v2960, %v2967
        %vm2969 = vcmp.eq.s32.totalorder %v2964, 2
        %v2970 = vxor.u32 %v2960, 2147483648
        %v2971 = vsel %vm2969, %v2970, %v2961
        %v2972 = vsel %vm2965, %v2968, %v2971
        %v2973 = vsel %vm2962, nan, %v2972
        %v2974 = vand.u32 2147483647, %v2867
        %vm2975 = vcmp.le.f32.partialorder %v2974, 0.7853982
        %vm2976 = vcmp.lt.s32.totalorder %v2867, 0
        %v2977 = vand.u32 %v2867, 2139095040
        %v2978 = vshrl.u32 %v2977, 23
        %v2979 = vsub.s32 %v2978, 127
        %v2980 = vand.u32 2147483647, %v2867
        %v2981 = vand.u32 %v2980, 8388607
        %v2982 = vor.u32 %v2981, 8388608
        %v2983 = vsub.s32 0, %v2982
        %v2984 = vadd.s32 %v2979, 1
        %vm2985 = vcmp.gt.s32.totalorder %v2984, 0
        %v2986 = vsel %vm2985, %v2984, 0
        %v2987 = vshrl.u32 %v2986, 5
        %v2988 = vand.u32 %v2986, 31
        %v2989 = vsub.s32 32, %v2988
        %v2990 = vshrl.u32 683565275, %v2989
        %v2991 = vshll.u32 683565275, %v2988
        %v2992 = vshrl.u32 2475754826, %v2989
        %v2993 = vor.u32 %v2991, %v2992
        %v2994 = vshll.u32 2475754826, %v2988
        %v2995 = vshrl.u32 2131351028, %v2989
        %v2996 = vor.u32 %v2994, %v2995
        %v2997 = vshll.u32 2131351028, %v2988
        %v2998 = vshrl.u32 2102212464, %v2989
        %v2999 = vor.u32 %v2997, %v2998
        %v3000 = vshll.u32 2102212464, %v2988
        %v3001 = vshrl.u32 920167782, %v2989
        %v3002 = vor.u32 %v3000, %v3001
        %v3003 = vshll.u32 920167782, %v2988
        %v3004 = vshrl.u32 1326507024, %v2989
        %v3005 = vor.u32 %v3003, %v3004
        %vm3006 = vcmp.lt.s32.totalorder %v2987, 1
        %vm3007 = vcmp.lt.s32.totalorder %v2987, 2
        %vm3008 = vcmp.lt.s32.totalorder %v2987, 3
        %vm3009 = vcmp.lt.s32.totalorder %v2987, 4
        %v3010 = vsel %vm3006, %v2990, %v2993
        %v3011 = vsel %vm3009, %v2999, 2102212464
        %v3012 = vsel %vm3008, %v2996, %v3011
        %v3013 = vsel %vm3007, %v3010, %v3012
        %v3014 = vsel %vm3006, %v2993, %v2996
        %v3015 = vsel %vm3009, %v3002, 920167782
        %v3016 = vsel %vm3008, %v2999, %v3015
        %v3017 = vsel %vm3007, %v3014, %v3016
        %v3018 = vsel %vm3006, %v2996, %v2999
        %v3019 = vsel %vm3009, %v3005, 1326507024
        %v3020 = vsel %vm3008, %v3002, %v3019
        %v3021 = vsel %vm3007, %v3018, %v3020
        %v3022 = vshll.u32 %v2982, 8
        %v3023 = vmul.u32.u64.compose %v3022, %v3021
        %v3024 = vextract.low.u32 %v3023
        %v3025 = vextract.high.u32 %v3023
        %v3026 = vmul.u32.u64.compose %v3022, %v3017
        %v3027 = vextract.low.u32 %v3026
        %v3028 = vextract.high.u32 %v3026
        %v3029 = vmul.u32 %v3022, %v3013
        %v3030 = vadd.s32 %v3025, %v3027
        %vm3031 = vc.u32 %v3025, %v3027
        %v3032 = vadd.s32 %v3028, 1
        %v3033 = vsel %vm3031, %v3032, %v3028
        %v3034 = vadd.s32 %v3029, %v3033
        %v3035 = vadd.s32 %v3034, 536870912
        %v3036 = vshrl.u32 %v3035, 30
        %v3037 = vshll.u32 %v3036, 30
        %v3038 = vsub.s32 %v3034, %v3037
        %vm3039 = vcmp.lt.s32.totalorder %v3038, 0
        %v3040 = vsub.s32 0, %v3038
        %v3041 = vsel %vm3039, %v3040, %v3038
        %v3042 = vclz %v3041
        %v3043 = vsub.s32 %v3042, 2
        %vm3044 = vcmp.gt.s32.totalorder 0, %v3043
        %v3045 = vsel %vm3044, 0, %v3043
        %v3046 = vsub.s32 32, %v3045
        %v3047 = vshll.u32 %v3038, %v3045
        %v3048 = vshrl.u32 %v3030, %v3046
        %v3049 = vor.u32 %v3047, %v3048
        %v3050 = vsub.s32 4294967266, %v3045
        %v3051 = vadd.s32 %v3050, 127
        %v3052 = vshll.u32 %v3051, 23
        %v3053 = vor.u32 4788187, %v3052
        %v3054 = vand.u32 2147483647, %v3053
        %v3056 = vcvt.s32.f32 %v3049
        %v3057 = vmul.f32 %v3056, %v3054
        %v3058 = vxor.u32 %v3057, 2147483648
        %v3059 = vsel %vm2976, %v3058, %v3057
        %v3060 = vsub.s32 4, %v3036
        %v3061 = vsel %vm2976, %v3060, %v3036
        %v3062 = vsel %vm2975, %v2867, %v3059
        %v3063 = vsel %vm2975, 0, %v3061
        %v3064 = vcosq.f32.pop %v3062
        %v3065 = vsinq.f32.pop %v3062
        %vm3066 = vweird.f32 %v2867
        %v3067 = vadd.s32 %v3063, 3
        %v3068 = vand.u32 %v3067, 3
        %vm3069 = vcmp.lt.s32.totalorder %v3068, 2
        %vm3070 = vcmp.eq.s32.totalorder %v3068, 0
        %v3071 = vxor.u32 %v3065, 2147483648
        %v3072 = vsel %vm3070, %v3064, %v3071
        %vm3073 = vcmp.eq.s32.totalorder %v3068, 2
        %v3074 = vxor.u32 %v3064, 2147483648
        %v3075 = vsel %vm3073, %v3074, %v3065
        %v3076 = vsel %vm3069, %v3072, %v3075
        %v3077 = vsel %vm3066, nan, %v3076
        %v3078 = vrcp.pop %v2866
        %v3079 = vrcp.pop %v2867
        %v3080 = vmul.f32 %v2866, %v3078
        %v3081 = vmul.f32 %v2867, %v3079
        %v3082 = vsub.f32 2.0, %v3080
        %v3083 = vsub.f32 2.0, %v3081
        %v3084 = vmul.f32 %v3078, %v3082
        %v3085 = vmul.f32 %v3079, %v3083
        %vm3086 = vcmp.lt.f32.partialorder %v2868, 1e-06
        %vm3087 = vcmp.lt.f32.partialorder %v2869, 1e-06
        %v3088 = vmul.f32 %v2868, 0.16666667
        %v3089 = vmul.f32 %v2869, 0.16666667
        %v3090 = vsub.f32 1.0, %v3088
        %v3091 = vsub.f32 1.0, %v3089
        %v3092 = vmul.f32 %v2973, %v3084
        %v3093 = vmul.f32 %v3077, %v3085
        %v3094 = vsel %vm3086, %v3090, %v3092
        %v3095 = vsel %vm3087, %v3091, %v3093
        %v3096 = vmul.f32 %v2852, %v3094
        %v3097 = vmul.f32 %v2853, %v3095
        %3098 = vset.pattern.permute.xlu0 11
        %3099 = vperm.xlu0 %3098, %v288
        %v3100 = vpop.permute.xlu0 %3099
        %3102 = vset.pattern.permute.xlu0 11
        %3103 = vperm.xlu0 %3102, %v289
        %v3104 = vpop.permute.xlu0 %3103
        %v3106 = vlaneseq
        %v3107 = vshrl.u32 %v3106, 7
        %v3108 = vsub.s32 3, %v3107
        %v3109 = vrot.slane %v295, %v3108
        %v3110 = vsub.f32 %v3100, %v3109
        %v3111 = vsub.f32 %v3104, %v3109
        %v3112 = vmul.f32 %v3110, %v3110
        %v3113 = vmul.f32 %v3111, %v3111
        %v3114 = vand.u32 2147483647, %v3110
        %vm3115 = vcmp.le.f32.partialorder %v3114, 0.7853982
        %vm3116 = vcmp.lt.s32.totalorder %v3110, 0
        %v3117 = vand.u32 %v3110, 2139095040
        %v3118 = vshrl.u32 %v3117, 23
        %v3119 = vsub.s32 %v3118, 127
        %v3120 = vand.u32 2147483647, %v3110
        %v3121 = vand.u32 %v3120, 8388607
        %v3122 = vor.u32 %v3121, 8388608
        %v3123 = vsub.s32 0, %v3122
        %v3124 = vadd.s32 %v3119, 1
        %vm3125 = vcmp.gt.s32.totalorder %v3124, 0
        %v3126 = vsel %vm3125, %v3124, 0
        %v3127 = vshrl.u32 %v3126, 5
        %v3128 = vand.u32 %v3126, 31
        %v3129 = vsub.s32 32, %v3128
        %v3130 = vshrl.u32 683565275, %v3129
        %v3131 = vshll.u32 683565275, %v3128
        %v3132 = vshrl.u32 2475754826, %v3129
        %v3133 = vor.u32 %v3131, %v3132
        %v3134 = vshll.u32 2475754826, %v3128
        %v3135 = vshrl.u32 2131351028, %v3129
        %v3136 = vor.u32 %v3134, %v3135
        %v3137 = vshll.u32 2131351028, %v3128
        %v3138 = vshrl.u32 2102212464, %v3129
        %v3139 = vor.u32 %v3137, %v3138
        %v3140 = vshll.u32 2102212464, %v3128
        %v3141 = vshrl.u32 920167782, %v3129
        %v3142 = vor.u32 %v3140, %v3141
        %v3143 = vshll.u32 920167782, %v3128
        %v3144 = vshrl.u32 1326507024, %v3129
        %v3145 = vor.u32 %v3143, %v3144
        %vm3146 = vcmp.lt.s32.totalorder %v3127, 1
        %vm3147 = vcmp.lt.s32.totalorder %v3127, 2
        %vm3148 = vcmp.lt.s32.totalorder %v3127, 3
        %vm3149 = vcmp.lt.s32.totalorder %v3127, 4
        %v3150 = vsel %vm3146, %v3130, %v3133
        %v3151 = vsel %vm3149, %v3139, 2102212464
        %v3152 = vsel %vm3148, %v3136, %v3151
        %v3153 = vsel %vm3147, %v3150, %v3152
        %v3154 = vsel %vm3146, %v3133, %v3136
        %v3155 = vsel %vm3149, %v3142, 920167782
        %v3156 = vsel %vm3148, %v3139, %v3155
        %v3157 = vsel %vm3147, %v3154, %v3156
        %v3158 = vsel %vm3146, %v3136, %v3139
        %v3159 = vsel %vm3149, %v3145, 1326507024
        %v3160 = vsel %vm3148, %v3142, %v3159
        %v3161 = vsel %vm3147, %v3158, %v3160
        %v3162 = vshll.u32 %v3122, 8
        %v3163 = vmul.u32.u64.compose %v3162, %v3161
        %v3164 = vextract.low.u32 %v3163
        %v3165 = vextract.high.u32 %v3163
        %v3166 = vmul.u32.u64.compose %v3162, %v3157
        %v3167 = vextract.low.u32 %v3166
        %v3168 = vextract.high.u32 %v3166
        %v3169 = vmul.u32 %v3162, %v3153
        %v3170 = vadd.s32 %v3165, %v3167
        %vm3171 = vc.u32 %v3165, %v3167
        %v3172 = vadd.s32 %v3168, 1
        %v3173 = vsel %vm3171, %v3172, %v3168
        %v3174 = vadd.s32 %v3169, %v3173
        %v3175 = vadd.s32 %v3174, 536870912
        %v3176 = vshrl.u32 %v3175, 30
        %v3177 = vshll.u32 %v3176, 30
        %v3178 = vsub.s32 %v3174, %v3177
        %vm3179 = vcmp.lt.s32.totalorder %v3178, 0
        %v3180 = vsub.s32 0, %v3178
        %v3181 = vsel %vm3179, %v3180, %v3178
        %v3182 = vclz %v3181
        %v3183 = vsub.s32 %v3182, 2
        %vm3184 = vcmp.gt.s32.totalorder 0, %v3183
        %v3185 = vsel %vm3184, 0, %v3183
        %v3186 = vsub.s32 32, %v3185
        %v3187 = vshll.u32 %v3178, %v3185
        %v3188 = vshrl.u32 %v3170, %v3186
        %v3189 = vor.u32 %v3187, %v3188
        %v3190 = vsub.s32 4294967266, %v3185
        %v3191 = vadd.s32 %v3190, 127
        %v3192 = vshll.u32 %v3191, 23
        %v3193 = vor.u32 4788187, %v3192
        %v3194 = vand.u32 2147483647, %v3193
        %v3196 = vcvt.s32.f32 %v3189
        %v3197 = vmul.f32 %v3196, %v3194
        %v3198 = vxor.u32 %v3197, 2147483648
        %v3199 = vsel %vm3116, %v3198, %v3197
        %v3200 = vsub.s32 4, %v3176
        %v3201 = vsel %vm3116, %v3200, %v3176
        %v3202 = vsel %vm3115, %v3110, %v3199
        %v3203 = vsel %vm3115, 0, %v3201
        %v3204 = vcosq.f32.pop %v3202
        %v3205 = vsinq.f32.pop %v3202
        %vm3206 = vweird.f32 %v3110
        %v3207 = vadd.s32 %v3203, 3
        %v3208 = vand.u32 %v3207, 3
        %vm3209 = vcmp.lt.s32.totalorder %v3208, 2
        %vm3210 = vcmp.eq.s32.totalorder %v3208, 0
        %v3211 = vxor.u32 %v3205, 2147483648
        %v3212 = vsel %vm3210, %v3204, %v3211
        %vm3213 = vcmp.eq.s32.totalorder %v3208, 2
        %v3214 = vxor.u32 %v3204, 2147483648
        %v3215 = vsel %vm3213, %v3214, %v3205
        %v3216 = vsel %vm3209, %v3212, %v3215
        %v3217 = vsel %vm3206, nan, %v3216
        %v3218 = vand.u32 2147483647, %v3111
        %vm3219 = vcmp.le.f32.partialorder %v3218, 0.7853982
        %vm3220 = vcmp.lt.s32.totalorder %v3111, 0
        %v3221 = vand.u32 %v3111, 2139095040
        %v3222 = vshrl.u32 %v3221, 23
        %v3223 = vsub.s32 %v3222, 127
        %v3224 = vand.u32 2147483647, %v3111
        %v3225 = vand.u32 %v3224, 8388607
        %v3226 = vor.u32 %v3225, 8388608
        %v3227 = vsub.s32 0, %v3226
        %v3228 = vadd.s32 %v3223, 1
        %vm3229 = vcmp.gt.s32.totalorder %v3228, 0
        %v3230 = vsel %vm3229, %v3228, 0
        %v3231 = vshrl.u32 %v3230, 5
        %v3232 = vand.u32 %v3230, 31
        %v3233 = vsub.s32 32, %v3232
        %v3234 = vshrl.u32 683565275, %v3233
        %v3235 = vshll.u32 683565275, %v3232
        %v3236 = vshrl.u32 2475754826, %v3233
        %v3237 = vor.u32 %v3235, %v3236
        %v3238 = vshll.u32 2475754826, %v3232
        %v3239 = vshrl.u32 2131351028, %v3233
        %v3240 = vor.u32 %v3238, %v3239
        %v3241 = vshll.u32 2131351028, %v3232
        %v3242 = vshrl.u32 2102212464, %v3233
        %v3243 = vor.u32 %v3241, %v3242
        %v3244 = vshll.u32 2102212464, %v3232
        %v3245 = vshrl.u32 920167782, %v3233
        %v3246 = vor.u32 %v3244, %v3245
        %v3247 = vshll.u32 920167782, %v3232
        %v3248 = vshrl.u32 1326507024, %v3233
        %v3249 = vor.u32 %v3247, %v3248
        %vm3250 = vcmp.lt.s32.totalorder %v3231, 1
        %vm3251 = vcmp.lt.s32.totalorder %v3231, 2
        %vm3252 = vcmp.lt.s32.totalorder %v3231, 3
        %vm3253 = vcmp.lt.s32.totalorder %v3231, 4
        %v3254 = vsel %vm3250, %v3234, %v3237
        %v3255 = vsel %vm3253, %v3243, 2102212464
        %v3256 = vsel %vm3252, %v3240, %v3255
        %v3257 = vsel %vm3251, %v3254, %v3256
        %v3258 = vsel %vm3250, %v3237, %v3240
        %v3259 = vsel %vm3253, %v3246, 920167782
        %v3260 = vsel %vm3252, %v3243, %v3259
        %v3261 = vsel %vm3251, %v3258, %v3260
        %v3262 = vsel %vm3250, %v3240, %v3243
        %v3263 = vsel %vm3253, %v3249, 1326507024
        %v3264 = vsel %vm3252, %v3246, %v3263
        %v3265 = vsel %vm3251, %v3262, %v3264
        %v3266 = vshll.u32 %v3226, 8
        %v3267 = vmul.u32.u64.compose %v3266, %v3265
        %v3268 = vextract.low.u32 %v3267
        %v3269 = vextract.high.u32 %v3267
        %v3270 = vmul.u32.u64.compose %v3266, %v3261
        %v3271 = vextract.low.u32 %v3270
        %v3272 = vextract.high.u32 %v3270
        %v3273 = vmul.u32 %v3266, %v3257
        %v3274 = vadd.s32 %v3269, %v3271
        %vm3275 = vc.u32 %v3269, %v3271
        %v3276 = vadd.s32 %v3272, 1
        %v3277 = vsel %vm3275, %v3276, %v3272
        %v3278 = vadd.s32 %v3273, %v3277
        %v3279 = vadd.s32 %v3278, 536870912
        %v3280 = vshrl.u32 %v3279, 30
        %v3281 = vshll.u32 %v3280, 30
        %v3282 = vsub.s32 %v3278, %v3281
        %vm3283 = vcmp.lt.s32.totalorder %v3282, 0
        %v3284 = vsub.s32 0, %v3282
        %v3285 = vsel %vm3283, %v3284, %v3282
        %v3286 = vclz %v3285
        %v3287 = vsub.s32 %v3286, 2
        %vm3288 = vcmp.gt.s32.totalorder 0, %v3287
        %v3289 = vsel %vm3288, 0, %v3287
        %v3290 = vsub.s32 32, %v3289
        %v3291 = vshll.u32 %v3282, %v3289
        %v3292 = vshrl.u32 %v3274, %v3290
        %v3293 = vor.u32 %v3291, %v3292
        %v3294 = vsub.s32 4294967266, %v3289
        %v3295 = vadd.s32 %v3294, 127
        %v3296 = vshll.u32 %v3295, 23
        %v3297 = vor.u32 4788187, %v3296
        %v3298 = vand.u32 2147483647, %v3297
        %v3300 = vcvt.s32.f32 %v3293
        %v3301 = vmul.f32 %v3300, %v3298
        %v3302 = vxor.u32 %v3301, 2147483648
        %v3303 = vsel %vm3220, %v3302, %v3301
        %v3304 = vsub.s32 4, %v3280
        %v3305 = vsel %vm3220, %v3304, %v3280
        %v3306 = vsel %vm3219, %v3111, %v3303
        %v3307 = vsel %vm3219, 0, %v3305
        %v3308 = vcosq.f32.pop %v3306
        %v3309 = vsinq.f32.pop %v3306
        %vm3310 = vweird.f32 %v3111
        %v3311 = vadd.s32 %v3307, 3
        %v3312 = vand.u32 %v3311, 3
        %vm3313 = vcmp.lt.s32.totalorder %v3312, 2
        %vm3314 = vcmp.eq.s32.totalorder %v3312, 0
        %v3315 = vxor.u32 %v3309, 2147483648
        %v3316 = vsel %vm3314, %v3308, %v3315
        %vm3317 = vcmp.eq.s32.totalorder %v3312, 2
        %v3318 = vxor.u32 %v3308, 2147483648
        %v3319 = vsel %vm3317, %v3318, %v3309
        %v3320 = vsel %vm3313, %v3316, %v3319
        %v3321 = vsel %vm3310, nan, %v3320
        %v3322 = vrcp.pop %v3110
        %v3323 = vrcp.pop %v3111
        %v3324 = vmul.f32 %v3110, %v3322
        %v3325 = vmul.f32 %v3111, %v3323
        %v3326 = vsub.f32 2.0, %v3324
        %v3327 = vsub.f32 2.0, %v3325
        %v3328 = vmul.f32 %v3322, %v3326
        %v3329 = vmul.f32 %v3323, %v3327
        %vm3330 = vcmp.lt.f32.partialorder %v3112, 1e-06
        %vm3331 = vcmp.lt.f32.partialorder %v3113, 1e-06
        %v3332 = vmul.f32 %v3112, 0.16666667
        %v3333 = vmul.f32 %v3113, 0.16666667
        %v3334 = vsub.f32 1.0, %v3332
        %v3335 = vsub.f32 1.0, %v3333
        %v3336 = vmul.f32 %v3217, %v3328
        %v3337 = vmul.f32 %v3321, %v3329
        %v3338 = vsel %vm3330, %v3334, %v3336
        %v3339 = vsel %vm3331, %v3335, %v3337
        %v3340 = vmul.f32 %v3096, %v3338
        %v3341 = vmul.f32 %v3097, %v3339
        %3342 = vset.pattern.permute.xlu0 12
        %3343 = vperm.xlu0 %3342, %v288
        %v3344 = vpop.permute.xlu0 %3343
        %3346 = vset.pattern.permute.xlu0 12
        %3347 = vperm.xlu0 %3346, %v289
        %v3348 = vpop.permute.xlu0 %3347
        %v3350 = vlaneseq
        %v3351 = vshrl.u32 %v3350, 7
        %v3352 = vsub.s32 4, %v3351
        %v3353 = vrot.slane %v295, %v3352
        %v3354 = vsub.f32 %v3344, %v3353
        %v3355 = vsub.f32 %v3348, %v3353
        %v3356 = vmul.f32 %v3354, %v3354
        %v3357 = vmul.f32 %v3355, %v3355
        %v3358 = vand.u32 2147483647, %v3354
        %vm3359 = vcmp.le.f32.partialorder %v3358, 0.7853982
        %vm3360 = vcmp.lt.s32.totalorder %v3354, 0
        %v3361 = vand.u32 %v3354, 2139095040
        %v3362 = vshrl.u32 %v3361, 23
        %v3363 = vsub.s32 %v3362, 127
        %v3364 = vand.u32 2147483647, %v3354
        %v3365 = vand.u32 %v3364, 8388607
        %v3366 = vor.u32 %v3365, 8388608
        %v3367 = vsub.s32 0, %v3366
        %v3368 = vadd.s32 %v3363, 1
        %vm3369 = vcmp.gt.s32.totalorder %v3368, 0
        %v3370 = vsel %vm3369, %v3368, 0
        %v3371 = vshrl.u32 %v3370, 5
        %v3372 = vand.u32 %v3370, 31
        %v3373 = vsub.s32 32, %v3372
        %v3374 = vshrl.u32 683565275, %v3373
        %v3375 = vshll.u32 683565275, %v3372
        %v3376 = vshrl.u32 2475754826, %v3373
        %v3377 = vor.u32 %v3375, %v3376
        %v3378 = vshll.u32 2475754826, %v3372
        %v3379 = vshrl.u32 2131351028, %v3373
        %v3380 = vor.u32 %v3378, %v3379
        %v3381 = vshll.u32 2131351028, %v3372
        %v3382 = vshrl.u32 2102212464, %v3373
        %v3383 = vor.u32 %v3381, %v3382
        %v3384 = vshll.u32 2102212464, %v3372
        %v3385 = vshrl.u32 920167782, %v3373
        %v3386 = vor.u32 %v3384, %v3385
        %v3387 = vshll.u32 920167782, %v3372
        %v3388 = vshrl.u32 1326507024, %v3373
        %v3389 = vor.u32 %v3387, %v3388
        %vm3390 = vcmp.lt.s32.totalorder %v3371, 1
        %vm3391 = vcmp.lt.s32.totalorder %v3371, 2
        %vm3392 = vcmp.lt.s32.totalorder %v3371, 3
        %vm3393 = vcmp.lt.s32.totalorder %v3371, 4
        %v3394 = vsel %vm3390, %v3374, %v3377
        %v3395 = vsel %vm3393, %v3383, 2102212464
        %v3396 = vsel %vm3392, %v3380, %v3395
        %v3397 = vsel %vm3391, %v3394, %v3396
        %v3398 = vsel %vm3390, %v3377, %v3380
        %v3399 = vsel %vm3393, %v3386, 920167782
        %v3400 = vsel %vm3392, %v3383, %v3399
        %v3401 = vsel %vm3391, %v3398, %v3400
        %v3402 = vsel %vm3390, %v3380, %v3383
        %v3403 = vsel %vm3393, %v3389, 1326507024
        %v3404 = vsel %vm3392, %v3386, %v3403
        %v3405 = vsel %vm3391, %v3402, %v3404
        %v3406 = vshll.u32 %v3366, 8
        %v3407 = vmul.u32.u64.compose %v3406, %v3405
        %v3408 = vextract.low.u32 %v3407
        %v3409 = vextract.high.u32 %v3407
        %v3410 = vmul.u32.u64.compose %v3406, %v3401
        %v3411 = vextract.low.u32 %v3410
        %v3412 = vextract.high.u32 %v3410
        %v3413 = vmul.u32 %v3406, %v3397
        %v3414 = vadd.s32 %v3409, %v3411
        %vm3415 = vc.u32 %v3409, %v3411
        %v3416 = vadd.s32 %v3412, 1
        %v3417 = vsel %vm3415, %v3416, %v3412
        %v3418 = vadd.s32 %v3413, %v3417
        %v3419 = vadd.s32 %v3418, 536870912
        %v3420 = vshrl.u32 %v3419, 30
        %v3421 = vshll.u32 %v3420, 30
        %v3422 = vsub.s32 %v3418, %v3421
        %vm3423 = vcmp.lt.s32.totalorder %v3422, 0
        %v3424 = vsub.s32 0, %v3422
        %v3425 = vsel %vm3423, %v3424, %v3422
        %v3426 = vclz %v3425
        %v3427 = vsub.s32 %v3426, 2
        %vm3428 = vcmp.gt.s32.totalorder 0, %v3427
        %v3429 = vsel %vm3428, 0, %v3427
        %v3430 = vsub.s32 32, %v3429
        %v3431 = vshll.u32 %v3422, %v3429
        %v3432 = vshrl.u32 %v3414, %v3430
        %v3433 = vor.u32 %v3431, %v3432
        %v3434 = vsub.s32 4294967266, %v3429
        %v3435 = vadd.s32 %v3434, 127
        %v3436 = vshll.u32 %v3435, 23
        %v3437 = vor.u32 4788187, %v3436
        %v3438 = vand.u32 2147483647, %v3437
        %v3440 = vcvt.s32.f32 %v3433
        %v3441 = vmul.f32 %v3440, %v3438
        %v3442 = vxor.u32 %v3441, 2147483648
        %v3443 = vsel %vm3360, %v3442, %v3441
        %v3444 = vsub.s32 4, %v3420
        %v3445 = vsel %vm3360, %v3444, %v3420
        %v3446 = vsel %vm3359, %v3354, %v3443
        %v3447 = vsel %vm3359, 0, %v3445
        %v3448 = vcosq.f32.pop %v3446
        %v3449 = vsinq.f32.pop %v3446
        %vm3450 = vweird.f32 %v3354
        %v3451 = vadd.s32 %v3447, 3
        %v3452 = vand.u32 %v3451, 3
        %vm3453 = vcmp.lt.s32.totalorder %v3452, 2
        %vm3454 = vcmp.eq.s32.totalorder %v3452, 0
        %v3455 = vxor.u32 %v3449, 2147483648
        %v3456 = vsel %vm3454, %v3448, %v3455
        %vm3457 = vcmp.eq.s32.totalorder %v3452, 2
        %v3458 = vxor.u32 %v3448, 2147483648
        %v3459 = vsel %vm3457, %v3458, %v3449
        %v3460 = vsel %vm3453, %v3456, %v3459
        %v3461 = vsel %vm3450, nan, %v3460
        %v3462 = vand.u32 2147483647, %v3355
        %vm3463 = vcmp.le.f32.partialorder %v3462, 0.7853982
        %vm3464 = vcmp.lt.s32.totalorder %v3355, 0
        %v3465 = vand.u32 %v3355, 2139095040
        %v3466 = vshrl.u32 %v3465, 23
        %v3467 = vsub.s32 %v3466, 127
        %v3468 = vand.u32 2147483647, %v3355
        %v3469 = vand.u32 %v3468, 8388607
        %v3470 = vor.u32 %v3469, 8388608
        %v3471 = vsub.s32 0, %v3470
        %v3472 = vadd.s32 %v3467, 1
        %vm3473 = vcmp.gt.s32.totalorder %v3472, 0
        %v3474 = vsel %vm3473, %v3472, 0
        %v3475 = vshrl.u32 %v3474, 5
        %v3476 = vand.u32 %v3474, 31
        %v3477 = vsub.s32 32, %v3476
        %v3478 = vshrl.u32 683565275, %v3477
        %v3479 = vshll.u32 683565275, %v3476
        %v3480 = vshrl.u32 2475754826, %v3477
        %v3481 = vor.u32 %v3479, %v3480
        %v3482 = vshll.u32 2475754826, %v3476
        %v3483 = vshrl.u32 2131351028, %v3477
        %v3484 = vor.u32 %v3482, %v3483
        %v3485 = vshll.u32 2131351028, %v3476
        %v3486 = vshrl.u32 2102212464, %v3477
        %v3487 = vor.u32 %v3485, %v3486
        %v3488 = vshll.u32 2102212464, %v3476
        %v3489 = vshrl.u32 920167782, %v3477
        %v3490 = vor.u32 %v3488, %v3489
        %v3491 = vshll.u32 920167782, %v3476
        %v3492 = vshrl.u32 1326507024, %v3477
        %v3493 = vor.u32 %v3491, %v3492
        %vm3494 = vcmp.lt.s32.totalorder %v3475, 1
        %vm3495 = vcmp.lt.s32.totalorder %v3475, 2
        %vm3496 = vcmp.lt.s32.totalorder %v3475, 3
        %vm3497 = vcmp.lt.s32.totalorder %v3475, 4
        %v3498 = vsel %vm3494, %v3478, %v3481
        %v3499 = vsel %vm3497, %v3487, 2102212464
        %v3500 = vsel %vm3496, %v3484, %v3499
        %v3501 = vsel %vm3495, %v3498, %v3500
        %v3502 = vsel %vm3494, %v3481, %v3484
        %v3503 = vsel %vm3497, %v3490, 920167782
        %v3504 = vsel %vm3496, %v3487, %v3503
        %v3505 = vsel %vm3495, %v3502, %v3504
        %v3506 = vsel %vm3494, %v3484, %v3487
        %v3507 = vsel %vm3497, %v3493, 1326507024
        %v3508 = vsel %vm3496, %v3490, %v3507
        %v3509 = vsel %vm3495, %v3506, %v3508
        %v3510 = vshll.u32 %v3470, 8
        %v3511 = vmul.u32.u64.compose %v3510, %v3509
        %v3512 = vextract.low.u32 %v3511
        %v3513 = vextract.high.u32 %v3511
        %v3514 = vmul.u32.u64.compose %v3510, %v3505
        %v3515 = vextract.low.u32 %v3514
        %v3516 = vextract.high.u32 %v3514
        %v3517 = vmul.u32 %v3510, %v3501
        %v3518 = vadd.s32 %v3513, %v3515
        %vm3519 = vc.u32 %v3513, %v3515
        %v3520 = vadd.s32 %v3516, 1
        %v3521 = vsel %vm3519, %v3520, %v3516
        %v3522 = vadd.s32 %v3517, %v3521
        %v3523 = vadd.s32 %v3522, 536870912
        %v3524 = vshrl.u32 %v3523, 30
        %v3525 = vshll.u32 %v3524, 30
        %v3526 = vsub.s32 %v3522, %v3525
        %vm3527 = vcmp.lt.s32.totalorder %v3526, 0
        %v3528 = vsub.s32 0, %v3526
        %v3529 = vsel %vm3527, %v3528, %v3526
        %v3530 = vclz %v3529
        %v3531 = vsub.s32 %v3530, 2
        %vm3532 = vcmp.gt.s32.totalorder 0, %v3531
        %v3533 = vsel %vm3532, 0, %v3531
        %v3534 = vsub.s32 32, %v3533
        %v3535 = vshll.u32 %v3526, %v3533
        %v3536 = vshrl.u32 %v3518, %v3534
        %v3537 = vor.u32 %v3535, %v3536
        %v3538 = vsub.s32 4294967266, %v3533
        %v3539 = vadd.s32 %v3538, 127
        %v3540 = vshll.u32 %v3539, 23
        %v3541 = vor.u32 4788187, %v3540
        %v3542 = vand.u32 2147483647, %v3541
        %v3544 = vcvt.s32.f32 %v3537
        %v3545 = vmul.f32 %v3544, %v3542
        %v3546 = vxor.u32 %v3545, 2147483648
        %v3547 = vsel %vm3464, %v3546, %v3545
        %v3548 = vsub.s32 4, %v3524
        %v3549 = vsel %vm3464, %v3548, %v3524
        %v3550 = vsel %vm3463, %v3355, %v3547
        %v3551 = vsel %vm3463, 0, %v3549
        %v3552 = vcosq.f32.pop %v3550
        %v3553 = vsinq.f32.pop %v3550
        %vm3554 = vweird.f32 %v3355
        %v3555 = vadd.s32 %v3551, 3
        %v3556 = vand.u32 %v3555, 3
        %vm3557 = vcmp.lt.s32.totalorder %v3556, 2
        %vm3558 = vcmp.eq.s32.totalorder %v3556, 0
        %v3559 = vxor.u32 %v3553, 2147483648
        %v3560 = vsel %vm3558, %v3552, %v3559
        %vm3561 = vcmp.eq.s32.totalorder %v3556, 2
        %v3562 = vxor.u32 %v3552, 2147483648
        %v3563 = vsel %vm3561, %v3562, %v3553
        %v3564 = vsel %vm3557, %v3560, %v3563
        %v3565 = vsel %vm3554, nan, %v3564
        %v3566 = vrcp.pop %v3354
        %v3567 = vrcp.pop %v3355
        %v3568 = vmul.f32 %v3354, %v3566
        %v3569 = vmul.f32 %v3355, %v3567
        %v3570 = vsub.f32 2.0, %v3568
        %v3571 = vsub.f32 2.0, %v3569
        %v3572 = vmul.f32 %v3566, %v3570
        %v3573 = vmul.f32 %v3567, %v3571
        %vm3574 = vcmp.lt.f32.partialorder %v3356, 1e-06
        %vm3575 = vcmp.lt.f32.partialorder %v3357, 1e-06
        %v3576 = vmul.f32 %v3356, 0.16666667
        %v3577 = vmul.f32 %v3357, 0.16666667
        %v3578 = vsub.f32 1.0, %v3576
        %v3579 = vsub.f32 1.0, %v3577
        %v3580 = vmul.f32 %v3461, %v3572
        %v3581 = vmul.f32 %v3565, %v3573
        %v3582 = vsel %vm3574, %v3578, %v3580
        %v3583 = vsel %vm3575, %v3579, %v3581
        %v3584 = vmul.f32 %v3340, %v3582
        %v3585 = vmul.f32 %v3341, %v3583
        %3586 = vset.pattern.permute.xlu0 13
        %3587 = vperm.xlu0 %3586, %v288
        %v3588 = vpop.permute.xlu0 %3587
        %3590 = vset.pattern.permute.xlu0 13
        %3591 = vperm.xlu0 %3590, %v289
        %v3592 = vpop.permute.xlu0 %3591
        %v3594 = vlaneseq
        %v3595 = vshrl.u32 %v3594, 7
        %v3596 = vsub.s32 5, %v3595
        %v3597 = vrot.slane %v295, %v3596
        %v3598 = vsub.f32 %v3588, %v3597
        %v3599 = vsub.f32 %v3592, %v3597
        %v3600 = vmul.f32 %v3598, %v3598
        %v3601 = vmul.f32 %v3599, %v3599
        %v3602 = vand.u32 2147483647, %v3598
        %vm3603 = vcmp.le.f32.partialorder %v3602, 0.7853982
        %vm3604 = vcmp.lt.s32.totalorder %v3598, 0
        %v3605 = vand.u32 %v3598, 2139095040
        %v3606 = vshrl.u32 %v3605, 23
        %v3607 = vsub.s32 %v3606, 127
        %v3608 = vand.u32 2147483647, %v3598
        %v3609 = vand.u32 %v3608, 8388607
        %v3610 = vor.u32 %v3609, 8388608
        %v3611 = vsub.s32 0, %v3610
        %v3612 = vadd.s32 %v3607, 1
        %vm3613 = vcmp.gt.s32.totalorder %v3612, 0
        %v3614 = vsel %vm3613, %v3612, 0
        %v3615 = vshrl.u32 %v3614, 5
        %v3616 = vand.u32 %v3614, 31
        %v3617 = vsub.s32 32, %v3616
        %v3618 = vshrl.u32 683565275, %v3617
        %v3619 = vshll.u32 683565275, %v3616
        %v3620 = vshrl.u32 2475754826, %v3617
        %v3621 = vor.u32 %v3619, %v3620
        %v3622 = vshll.u32 2475754826, %v3616
        %v3623 = vshrl.u32 2131351028, %v3617
        %v3624 = vor.u32 %v3622, %v3623
        %v3625 = vshll.u32 2131351028, %v3616
        %v3626 = vshrl.u32 2102212464, %v3617
        %v3627 = vor.u32 %v3625, %v3626
        %v3628 = vshll.u32 2102212464, %v3616
        %v3629 = vshrl.u32 920167782, %v3617
        %v3630 = vor.u32 %v3628, %v3629
        %v3631 = vshll.u32 920167782, %v3616
        %v3632 = vshrl.u32 1326507024, %v3617
        %v3633 = vor.u32 %v3631, %v3632
        %vm3634 = vcmp.lt.s32.totalorder %v3615, 1
        %vm3635 = vcmp.lt.s32.totalorder %v3615, 2
        %vm3636 = vcmp.lt.s32.totalorder %v3615, 3
        %vm3637 = vcmp.lt.s32.totalorder %v3615, 4
        %v3638 = vsel %vm3634, %v3618, %v3621
        %v3639 = vsel %vm3637, %v3627, 2102212464
        %v3640 = vsel %vm3636, %v3624, %v3639
        %v3641 = vsel %vm3635, %v3638, %v3640
        %v3642 = vsel %vm3634, %v3621, %v3624
        %v3643 = vsel %vm3637, %v3630, 920167782
        %v3644 = vsel %vm3636, %v3627, %v3643
        %v3645 = vsel %vm3635, %v3642, %v3644
        %v3646 = vsel %vm3634, %v3624, %v3627
        %v3647 = vsel %vm3637, %v3633, 1326507024
        %v3648 = vsel %vm3636, %v3630, %v3647
        %v3649 = vsel %vm3635, %v3646, %v3648
        %v3650 = vshll.u32 %v3610, 8
        %v3651 = vmul.u32.u64.compose %v3650, %v3649
        %v3652 = vextract.low.u32 %v3651
        %v3653 = vextract.high.u32 %v3651
        %v3654 = vmul.u32.u64.compose %v3650, %v3645
        %v3655 = vextract.low.u32 %v3654
        %v3656 = vextract.high.u32 %v3654
        %v3657 = vmul.u32 %v3650, %v3641
        %v3658 = vadd.s32 %v3653, %v3655
        %vm3659 = vc.u32 %v3653, %v3655
        %v3660 = vadd.s32 %v3656, 1
        %v3661 = vsel %vm3659, %v3660, %v3656
        %v3662 = vadd.s32 %v3657, %v3661
        %v3663 = vadd.s32 %v3662, 536870912
        %v3664 = vshrl.u32 %v3663, 30
        %v3665 = vshll.u32 %v3664, 30
        %v3666 = vsub.s32 %v3662, %v3665
        %vm3667 = vcmp.lt.s32.totalorder %v3666, 0
        %v3668 = vsub.s32 0, %v3666
        %v3669 = vsel %vm3667, %v3668, %v3666
        %v3670 = vclz %v3669
        %v3671 = vsub.s32 %v3670, 2
        %vm3672 = vcmp.gt.s32.totalorder 0, %v3671
        %v3673 = vsel %vm3672, 0, %v3671
        %v3674 = vsub.s32 32, %v3673
        %v3675 = vshll.u32 %v3666, %v3673
        %v3676 = vshrl.u32 %v3658, %v3674
        %v3677 = vor.u32 %v3675, %v3676
        %v3678 = vsub.s32 4294967266, %v3673
        %v3679 = vadd.s32 %v3678, 127
        %v3680 = vshll.u32 %v3679, 23
        %v3681 = vor.u32 4788187, %v3680
        %v3682 = vand.u32 2147483647, %v3681
        %v3684 = vcvt.s32.f32 %v3677
        %v3685 = vmul.f32 %v3684, %v3682
        %v3686 = vxor.u32 %v3685, 2147483648
        %v3687 = vsel %vm3604, %v3686, %v3685
        %v3688 = vsub.s32 4, %v3664
        %v3689 = vsel %vm3604, %v3688, %v3664
        %v3690 = vsel %vm3603, %v3598, %v3687
        %v3691 = vsel %vm3603, 0, %v3689
        %v3692 = vcosq.f32.pop %v3690
        %v3693 = vsinq.f32.pop %v3690
        %vm3694 = vweird.f32 %v3598
        %v3695 = vadd.s32 %v3691, 3
        %v3696 = vand.u32 %v3695, 3
        %vm3697 = vcmp.lt.s32.totalorder %v3696, 2
        %vm3698 = vcmp.eq.s32.totalorder %v3696, 0
        %v3699 = vxor.u32 %v3693, 2147483648
        %v3700 = vsel %vm3698, %v3692, %v3699
        %vm3701 = vcmp.eq.s32.totalorder %v3696, 2
        %v3702 = vxor.u32 %v3692, 2147483648
        %v3703 = vsel %vm3701, %v3702, %v3693
        %v3704 = vsel %vm3697, %v3700, %v3703
        %v3705 = vsel %vm3694, nan, %v3704
        %v3706 = vand.u32 2147483647, %v3599
        %vm3707 = vcmp.le.f32.partialorder %v3706, 0.7853982
        %vm3708 = vcmp.lt.s32.totalorder %v3599, 0
        %v3709 = vand.u32 %v3599, 2139095040
        %v3710 = vshrl.u32 %v3709, 23
        %v3711 = vsub.s32 %v3710, 127
        %v3712 = vand.u32 2147483647, %v3599
        %v3713 = vand.u32 %v3712, 8388607
        %v3714 = vor.u32 %v3713, 8388608
        %v3715 = vsub.s32 0, %v3714
        %v3716 = vadd.s32 %v3711, 1
        %vm3717 = vcmp.gt.s32.totalorder %v3716, 0
        %v3718 = vsel %vm3717, %v3716, 0
        %v3719 = vshrl.u32 %v3718, 5
        %v3720 = vand.u32 %v3718, 31
        %v3721 = vsub.s32 32, %v3720
        %v3722 = vshrl.u32 683565275, %v3721
        %v3723 = vshll.u32 683565275, %v3720
        %v3724 = vshrl.u32 2475754826, %v3721
        %v3725 = vor.u32 %v3723, %v3724
        %v3726 = vshll.u32 2475754826, %v3720
        %v3727 = vshrl.u32 2131351028, %v3721
        %v3728 = vor.u32 %v3726, %v3727
        %v3729 = vshll.u32 2131351028, %v3720
        %v3730 = vshrl.u32 2102212464, %v3721
        %v3731 = vor.u32 %v3729, %v3730
        %v3732 = vshll.u32 2102212464, %v3720
        %v3733 = vshrl.u32 920167782, %v3721
        %v3734 = vor.u32 %v3732, %v3733
        %v3735 = vshll.u32 920167782, %v3720
        %v3736 = vshrl.u32 1326507024, %v3721
        %v3737 = vor.u32 %v3735, %v3736
        %vm3738 = vcmp.lt.s32.totalorder %v3719, 1
        %vm3739 = vcmp.lt.s32.totalorder %v3719, 2
        %vm3740 = vcmp.lt.s32.totalorder %v3719, 3
        %vm3741 = vcmp.lt.s32.totalorder %v3719, 4
        %v3742 = vsel %vm3738, %v3722, %v3725
        %v3743 = vsel %vm3741, %v3731, 2102212464
        %v3744 = vsel %vm3740, %v3728, %v3743
        %v3745 = vsel %vm3739, %v3742, %v3744
        %v3746 = vsel %vm3738, %v3725, %v3728
        %v3747 = vsel %vm3741, %v3734, 920167782
        %v3748 = vsel %vm3740, %v3731, %v3747
        %v3749 = vsel %vm3739, %v3746, %v3748
        %v3750 = vsel %vm3738, %v3728, %v3731
        %v3751 = vsel %vm3741, %v3737, 1326507024
        %v3752 = vsel %vm3740, %v3734, %v3751
        %v3753 = vsel %vm3739, %v3750, %v3752
        %v3754 = vshll.u32 %v3714, 8
        %v3755 = vmul.u32.u64.compose %v3754, %v3753
        %v3756 = vextract.low.u32 %v3755
        %v3757 = vextract.high.u32 %v3755
        %v3758 = vmul.u32.u64.compose %v3754, %v3749
        %v3759 = vextract.low.u32 %v3758
        %v3760 = vextract.high.u32 %v3758
        %v3761 = vmul.u32 %v3754, %v3745
        %v3762 = vadd.s32 %v3757, %v3759
        %vm3763 = vc.u32 %v3757, %v3759
        %v3764 = vadd.s32 %v3760, 1
        %v3765 = vsel %vm3763, %v3764, %v3760
        %v3766 = vadd.s32 %v3761, %v3765
        %v3767 = vadd.s32 %v3766, 536870912
        %v3768 = vshrl.u32 %v3767, 30
        %v3769 = vshll.u32 %v3768, 30
        %v3770 = vsub.s32 %v3766, %v3769
        %vm3771 = vcmp.lt.s32.totalorder %v3770, 0
        %v3772 = vsub.s32 0, %v3770
        %v3773 = vsel %vm3771, %v3772, %v3770
        %v3774 = vclz %v3773
        %v3775 = vsub.s32 %v3774, 2
        %vm3776 = vcmp.gt.s32.totalorder 0, %v3775
        %v3777 = vsel %vm3776, 0, %v3775
        %v3778 = vsub.s32 32, %v3777
        %v3779 = vshll.u32 %v3770, %v3777
        %v3780 = vshrl.u32 %v3762, %v3778
        %v3781 = vor.u32 %v3779, %v3780
        %v3782 = vsub.s32 4294967266, %v3777
        %v3783 = vadd.s32 %v3782, 127
        %v3784 = vshll.u32 %v3783, 23
        %v3785 = vor.u32 4788187, %v3784
        %v3786 = vand.u32 2147483647, %v3785
        %v3788 = vcvt.s32.f32 %v3781
        %v3789 = vmul.f32 %v3788, %v3786
        %v3790 = vxor.u32 %v3789, 2147483648
        %v3791 = vsel %vm3708, %v3790, %v3789
        %v3792 = vsub.s32 4, %v3768
        %v3793 = vsel %vm3708, %v3792, %v3768
        %v3794 = vsel %vm3707, %v3599, %v3791
        %v3795 = vsel %vm3707, 0, %v3793
        %v3796 = vcosq.f32.pop %v3794
        %v3797 = vsinq.f32.pop %v3794
        %vm3798 = vweird.f32 %v3599
        %v3799 = vadd.s32 %v3795, 3
        %v3800 = vand.u32 %v3799, 3
        %vm3801 = vcmp.lt.s32.totalorder %v3800, 2
        %vm3802 = vcmp.eq.s32.totalorder %v3800, 0
        %v3803 = vxor.u32 %v3797, 2147483648
        %v3804 = vsel %vm3802, %v3796, %v3803
        %vm3805 = vcmp.eq.s32.totalorder %v3800, 2
        %v3806 = vxor.u32 %v3796, 2147483648
        %v3807 = vsel %vm3805, %v3806, %v3797
        %v3808 = vsel %vm3801, %v3804, %v3807
        %v3809 = vsel %vm3798, nan, %v3808
        %v3810 = vrcp.pop %v3598
        %v3811 = vrcp.pop %v3599
        %v3812 = vmul.f32 %v3598, %v3810
        %v3813 = vmul.f32 %v3599, %v3811
        %v3814 = vsub.f32 2.0, %v3812
        %v3815 = vsub.f32 2.0, %v3813
        %v3816 = vmul.f32 %v3810, %v3814
        %v3817 = vmul.f32 %v3811, %v3815
        %vm3818 = vcmp.lt.f32.partialorder %v3600, 1e-06
        %vm3819 = vcmp.lt.f32.partialorder %v3601, 1e-06
        %v3820 = vmul.f32 %v3600, 0.16666667
        %v3821 = vmul.f32 %v3601, 0.16666667
        %v3822 = vsub.f32 1.0, %v3820
        %v3823 = vsub.f32 1.0, %v3821
        %v3824 = vmul.f32 %v3705, %v3816
        %v3825 = vmul.f32 %v3809, %v3817
        %v3826 = vsel %vm3818, %v3822, %v3824
        %v3827 = vsel %vm3819, %v3823, %v3825
        %v3828 = vmul.f32 %v3584, %v3826
        %v3829 = vmul.f32 %v3585, %v3827
        %3830 = vset.pattern.permute.xlu0 14
        %3831 = vperm.xlu0 %3830, %v288
        %v3832 = vpop.permute.xlu0 %3831
        %3834 = vset.pattern.permute.xlu0 14
        %3835 = vperm.xlu0 %3834, %v289
        %v3836 = vpop.permute.xlu0 %3835
        %v3838 = vlaneseq
        %v3839 = vshrl.u32 %v3838, 7
        %v3840 = vsub.s32 6, %v3839
        %v3841 = vrot.slane %v295, %v3840
        %v3842 = vsub.f32 %v3832, %v3841
        %v3843 = vsub.f32 %v3836, %v3841
        %v3844 = vmul.f32 %v3842, %v3842
        %v3845 = vmul.f32 %v3843, %v3843
        %v3846 = vand.u32 2147483647, %v3842
        %vm3847 = vcmp.le.f32.partialorder %v3846, 0.7853982
        %vm3848 = vcmp.lt.s32.totalorder %v3842, 0
        %v3849 = vand.u32 %v3842, 2139095040
        %v3850 = vshrl.u32 %v3849, 23
        %v3851 = vsub.s32 %v3850, 127
        %v3852 = vand.u32 2147483647, %v3842
        %v3853 = vand.u32 %v3852, 8388607
        %v3854 = vor.u32 %v3853, 8388608
        %v3855 = vsub.s32 0, %v3854
        %v3856 = vadd.s32 %v3851, 1
        %vm3857 = vcmp.gt.s32.totalorder %v3856, 0
        %v3858 = vsel %vm3857, %v3856, 0
        %v3859 = vshrl.u32 %v3858, 5
        %v3860 = vand.u32 %v3858, 31
        %v3861 = vsub.s32 32, %v3860
        %v3862 = vshrl.u32 683565275, %v3861
        %v3863 = vshll.u32 683565275, %v3860
        %v3864 = vshrl.u32 2475754826, %v3861
        %v3865 = vor.u32 %v3863, %v3864
        %v3866 = vshll.u32 2475754826, %v3860
        %v3867 = vshrl.u32 2131351028, %v3861
        %v3868 = vor.u32 %v3866, %v3867
        %v3869 = vshll.u32 2131351028, %v3860
        %v3870 = vshrl.u32 2102212464, %v3861
        %v3871 = vor.u32 %v3869, %v3870
        %v3872 = vshll.u32 2102212464, %v3860
        %v3873 = vshrl.u32 920167782, %v3861
        %v3874 = vor.u32 %v3872, %v3873
        %v3875 = vshll.u32 920167782, %v3860
        %v3876 = vshrl.u32 1326507024, %v3861
        %v3877 = vor.u32 %v3875, %v3876
        %vm3878 = vcmp.lt.s32.totalorder %v3859, 1
        %vm3879 = vcmp.lt.s32.totalorder %v3859, 2
        %vm3880 = vcmp.lt.s32.totalorder %v3859, 3
        %vm3881 = vcmp.lt.s32.totalorder %v3859, 4
        %v3882 = vsel %vm3878, %v3862, %v3865
        %v3883 = vsel %vm3881, %v3871, 2102212464
        %v3884 = vsel %vm3880, %v3868, %v3883
        %v3885 = vsel %vm3879, %v3882, %v3884
        %v3886 = vsel %vm3878, %v3865, %v3868
        %v3887 = vsel %vm3881, %v3874, 920167782
        %v3888 = vsel %vm3880, %v3871, %v3887
        %v3889 = vsel %vm3879, %v3886, %v3888
        %v3890 = vsel %vm3878, %v3868, %v3871
        %v3891 = vsel %vm3881, %v3877, 1326507024
        %v3892 = vsel %vm3880, %v3874, %v3891
        %v3893 = vsel %vm3879, %v3890, %v3892
        %v3894 = vshll.u32 %v3854, 8
        %v3895 = vmul.u32.u64.compose %v3894, %v3893
        %v3896 = vextract.low.u32 %v3895
        %v3897 = vextract.high.u32 %v3895
        %v3898 = vmul.u32.u64.compose %v3894, %v3889
        %v3899 = vextract.low.u32 %v3898
        %v3900 = vextract.high.u32 %v3898
        %v3901 = vmul.u32 %v3894, %v3885
        %v3902 = vadd.s32 %v3897, %v3899
        %vm3903 = vc.u32 %v3897, %v3899
        %v3904 = vadd.s32 %v3900, 1
        %v3905 = vsel %vm3903, %v3904, %v3900
        %v3906 = vadd.s32 %v3901, %v3905
        %v3907 = vadd.s32 %v3906, 536870912
        %v3908 = vshrl.u32 %v3907, 30
        %v3909 = vshll.u32 %v3908, 30
        %v3910 = vsub.s32 %v3906, %v3909
        %vm3911 = vcmp.lt.s32.totalorder %v3910, 0
        %v3912 = vsub.s32 0, %v3910
        %v3913 = vsel %vm3911, %v3912, %v3910
        %v3914 = vclz %v3913
        %v3915 = vsub.s32 %v3914, 2
        %vm3916 = vcmp.gt.s32.totalorder 0, %v3915
        %v3917 = vsel %vm3916, 0, %v3915
        %v3918 = vsub.s32 32, %v3917
        %v3919 = vshll.u32 %v3910, %v3917
        %v3920 = vshrl.u32 %v3902, %v3918
        %v3921 = vor.u32 %v3919, %v3920
        %v3922 = vsub.s32 4294967266, %v3917
        %v3923 = vadd.s32 %v3922, 127
        %v3924 = vshll.u32 %v3923, 23
        %v3925 = vor.u32 4788187, %v3924
        %v3926 = vand.u32 2147483647, %v3925
        %v3928 = vcvt.s32.f32 %v3921
        %v3929 = vmul.f32 %v3928, %v3926
        %v3930 = vxor.u32 %v3929, 2147483648
        %v3931 = vsel %vm3848, %v3930, %v3929
        %v3932 = vsub.s32 4, %v3908
        %v3933 = vsel %vm3848, %v3932, %v3908
        %v3934 = vsel %vm3847, %v3842, %v3931
        %v3935 = vsel %vm3847, 0, %v3933
        %v3936 = vcosq.f32.pop %v3934
        %v3937 = vsinq.f32.pop %v3934
        %vm3938 = vweird.f32 %v3842
        %v3939 = vadd.s32 %v3935, 3
        %v3940 = vand.u32 %v3939, 3
        %vm3941 = vcmp.lt.s32.totalorder %v3940, 2
        %vm3942 = vcmp.eq.s32.totalorder %v3940, 0
        %v3943 = vxor.u32 %v3937, 2147483648
        %v3944 = vsel %vm3942, %v3936, %v3943
        %vm3945 = vcmp.eq.s32.totalorder %v3940, 2
        %v3946 = vxor.u32 %v3936, 2147483648
        %v3947 = vsel %vm3945, %v3946, %v3937
        %v3948 = vsel %vm3941, %v3944, %v3947
        %v3949 = vsel %vm3938, nan, %v3948
        %v3950 = vand.u32 2147483647, %v3843
        %vm3951 = vcmp.le.f32.partialorder %v3950, 0.7853982
        %vm3952 = vcmp.lt.s32.totalorder %v3843, 0
        %v3953 = vand.u32 %v3843, 2139095040
        %v3954 = vshrl.u32 %v3953, 23
        %v3955 = vsub.s32 %v3954, 127
        %v3956 = vand.u32 2147483647, %v3843
        %v3957 = vand.u32 %v3956, 8388607
        %v3958 = vor.u32 %v3957, 8388608
        %v3959 = vsub.s32 0, %v3958
        %v3960 = vadd.s32 %v3955, 1
        %vm3961 = vcmp.gt.s32.totalorder %v3960, 0
        %v3962 = vsel %vm3961, %v3960, 0
        %v3963 = vshrl.u32 %v3962, 5
        %v3964 = vand.u32 %v3962, 31
        %v3965 = vsub.s32 32, %v3964
        %v3966 = vshrl.u32 683565275, %v3965
        %v3967 = vshll.u32 683565275, %v3964
        %v3968 = vshrl.u32 2475754826, %v3965
        %v3969 = vor.u32 %v3967, %v3968
        %v3970 = vshll.u32 2475754826, %v3964
        %v3971 = vshrl.u32 2131351028, %v3965
        %v3972 = vor.u32 %v3970, %v3971
        %v3973 = vshll.u32 2131351028, %v3964
        %v3974 = vshrl.u32 2102212464, %v3965
        %v3975 = vor.u32 %v3973, %v3974
        %v3976 = vshll.u32 2102212464, %v3964
        %v3977 = vshrl.u32 920167782, %v3965
        %v3978 = vor.u32 %v3976, %v3977
        %v3979 = vshll.u32 920167782, %v3964
        %v3980 = vshrl.u32 1326507024, %v3965
        %v3981 = vor.u32 %v3979, %v3980
        %vm3982 = vcmp.lt.s32.totalorder %v3963, 1
        %vm3983 = vcmp.lt.s32.totalorder %v3963, 2
        %vm3984 = vcmp.lt.s32.totalorder %v3963, 3
        %vm3985 = vcmp.lt.s32.totalorder %v3963, 4
        %v3986 = vsel %vm3982, %v3966, %v3969
        %v3987 = vsel %vm3985, %v3975, 2102212464
        %v3988 = vsel %vm3984, %v3972, %v3987
        %v3989 = vsel %vm3983, %v3986, %v3988
        %v3990 = vsel %vm3982, %v3969, %v3972
        %v3991 = vsel %vm3985, %v3978, 920167782
        %v3992 = vsel %vm3984, %v3975, %v3991
        %v3993 = vsel %vm3983, %v3990, %v3992
        %v3994 = vsel %vm3982, %v3972, %v3975
        %v3995 = vsel %vm3985, %v3981, 1326507024
        %v3996 = vsel %vm3984, %v3978, %v3995
        %v3997 = vsel %vm3983, %v3994, %v3996
        %v3998 = vshll.u32 %v3958, 8
        %v3999 = vmul.u32.u64.compose %v3998, %v3997
        %v4000 = vextract.low.u32 %v3999
        %v4001 = vextract.high.u32 %v3999
        %v4002 = vmul.u32.u64.compose %v3998, %v3993
        %v4003 = vextract.low.u32 %v4002
        %v4004 = vextract.high.u32 %v4002
        %v4005 = vmul.u32 %v3998, %v3989
        %v4006 = vadd.s32 %v4001, %v4003
        %vm4007 = vc.u32 %v4001, %v4003
        %v4008 = vadd.s32 %v4004, 1
        %v4009 = vsel %vm4007, %v4008, %v4004
        %v4010 = vadd.s32 %v4005, %v4009
        %v4011 = vadd.s32 %v4010, 536870912
        %v4012 = vshrl.u32 %v4011, 30
        %v4013 = vshll.u32 %v4012, 30
        %v4014 = vsub.s32 %v4010, %v4013
        %vm4015 = vcmp.lt.s32.totalorder %v4014, 0
        %v4016 = vsub.s32 0, %v4014
        %v4017 = vsel %vm4015, %v4016, %v4014
        %v4018 = vclz %v4017
        %v4019 = vsub.s32 %v4018, 2
        %vm4020 = vcmp.gt.s32.totalorder 0, %v4019
        %v4021 = vsel %vm4020, 0, %v4019
        %v4022 = vsub.s32 32, %v4021
        %v4023 = vshll.u32 %v4014, %v4021
        %v4024 = vshrl.u32 %v4006, %v4022
        %v4025 = vor.u32 %v4023, %v4024
        %v4026 = vsub.s32 4294967266, %v4021
        %v4027 = vadd.s32 %v4026, 127
        %v4028 = vshll.u32 %v4027, 23
        %v4029 = vor.u32 4788187, %v4028
        %v4030 = vand.u32 2147483647, %v4029
        %v4032 = vcvt.s32.f32 %v4025
        %v4033 = vmul.f32 %v4032, %v4030
        %v4034 = vxor.u32 %v4033, 2147483648
        %v4035 = vsel %vm3952, %v4034, %v4033
        %v4036 = vsub.s32 4, %v4012
        %v4037 = vsel %vm3952, %v4036, %v4012
        %v4038 = vsel %vm3951, %v3843, %v4035
        %v4039 = vsel %vm3951, 0, %v4037
        %v4040 = vcosq.f32.pop %v4038
        %v4041 = vsinq.f32.pop %v4038
        %vm4042 = vweird.f32 %v3843
        %v4043 = vadd.s32 %v4039, 3
        %v4044 = vand.u32 %v4043, 3
        %vm4045 = vcmp.lt.s32.totalorder %v4044, 2
        %vm4046 = vcmp.eq.s32.totalorder %v4044, 0
        %v4047 = vxor.u32 %v4041, 2147483648
        %v4048 = vsel %vm4046, %v4040, %v4047
        %vm4049 = vcmp.eq.s32.totalorder %v4044, 2
        %v4050 = vxor.u32 %v4040, 2147483648
        %v4051 = vsel %vm4049, %v4050, %v4041
        %v4052 = vsel %vm4045, %v4048, %v4051
        %v4053 = vsel %vm4042, nan, %v4052
        %v4054 = vrcp.pop %v3842
        %v4055 = vrcp.pop %v3843
        %v4056 = vmul.f32 %v3842, %v4054
        %v4057 = vmul.f32 %v3843, %v4055
        %v4058 = vsub.f32 2.0, %v4056
        %v4059 = vsub.f32 2.0, %v4057
        %v4060 = vmul.f32 %v4054, %v4058
        %v4061 = vmul.f32 %v4055, %v4059
        %vm4062 = vcmp.lt.f32.partialorder %v3844, 1e-06
        %vm4063 = vcmp.lt.f32.partialorder %v3845, 1e-06
        %v4064 = vmul.f32 %v3844, 0.16666667
        %v4065 = vmul.f32 %v3845, 0.16666667
        %v4066 = vsub.f32 1.0, %v4064
        %v4067 = vsub.f32 1.0, %v4065
        %v4068 = vmul.f32 %v3949, %v4060
        %v4069 = vmul.f32 %v4053, %v4061
        %v4070 = vsel %vm4062, %v4066, %v4068
        %v4071 = vsel %vm4063, %v4067, %v4069
        %v4072 = vmul.f32 %v3828, %v4070
        %v4073 = vmul.f32 %v3829, %v4071
        %4074 = vset.pattern.permute.xlu0 15
        %4075 = vperm.xlu0 %4074, %v288
        %v4076 = vpop.permute.xlu0 %4075
        %4078 = vset.pattern.permute.xlu0 15
        %4079 = vperm.xlu0 %4078, %v289
        %v4080 = vpop.permute.xlu0 %4079
        %v4082 = vlaneseq
        %v4083 = vshrl.u32 %v4082, 7
        %v4084 = vsub.s32 7, %v4083
        %v4085 = vrot.slane %v295, %v4084
        %v4086 = vsub.f32 %v4076, %v4085
        %v4087 = vsub.f32 %v4080, %v4085
        %v4088 = vmul.f32 %v4086, %v4086
        %v4089 = vmul.f32 %v4087, %v4087
        %v4090 = vand.u32 2147483647, %v4086
        %vm4091 = vcmp.le.f32.partialorder %v4090, 0.7853982
        %vm4092 = vcmp.lt.s32.totalorder %v4086, 0
        %v4093 = vand.u32 %v4086, 2139095040
        %v4094 = vshrl.u32 %v4093, 23
        %v4095 = vsub.s32 %v4094, 127
        %v4096 = vand.u32 2147483647, %v4086
        %v4097 = vand.u32 %v4096, 8388607
        %v4098 = vor.u32 %v4097, 8388608
        %v4099 = vsub.s32 0, %v4098
        %v4100 = vadd.s32 %v4095, 1
        %vm4101 = vcmp.gt.s32.totalorder %v4100, 0
        %v4102 = vsel %vm4101, %v4100, 0
        %v4103 = vshrl.u32 %v4102, 5
        %v4104 = vand.u32 %v4102, 31
        %v4105 = vsub.s32 32, %v4104
        %v4106 = vshrl.u32 683565275, %v4105
        %v4107 = vshll.u32 683565275, %v4104
        %v4108 = vshrl.u32 2475754826, %v4105
        %v4109 = vor.u32 %v4107, %v4108
        %v4110 = vshll.u32 2475754826, %v4104
        %v4111 = vshrl.u32 2131351028, %v4105
        %v4112 = vor.u32 %v4110, %v4111
        %v4113 = vshll.u32 2131351028, %v4104
        %v4114 = vshrl.u32 2102212464, %v4105
        %v4115 = vor.u32 %v4113, %v4114
        %v4116 = vshll.u32 2102212464, %v4104
        %v4117 = vshrl.u32 920167782, %v4105
        %v4118 = vor.u32 %v4116, %v4117
        %v4119 = vshll.u32 920167782, %v4104
        %v4120 = vshrl.u32 1326507024, %v4105
        %v4121 = vor.u32 %v4119, %v4120
        %vm4122 = vcmp.lt.s32.totalorder %v4103, 1
        %vm4123 = vcmp.lt.s32.totalorder %v4103, 2
        %vm4124 = vcmp.lt.s32.totalorder %v4103, 3
        %vm4125 = vcmp.lt.s32.totalorder %v4103, 4
        %v4126 = vsel %vm4122, %v4106, %v4109
        %v4127 = vsel %vm4125, %v4115, 2102212464
        %v4128 = vsel %vm4124, %v4112, %v4127
        %v4129 = vsel %vm4123, %v4126, %v4128
        %v4130 = vsel %vm4122, %v4109, %v4112
        %v4131 = vsel %vm4125, %v4118, 920167782
        %v4132 = vsel %vm4124, %v4115, %v4131
        %v4133 = vsel %vm4123, %v4130, %v4132
        %v4134 = vsel %vm4122, %v4112, %v4115
        %v4135 = vsel %vm4125, %v4121, 1326507024
        %v4136 = vsel %vm4124, %v4118, %v4135
        %v4137 = vsel %vm4123, %v4134, %v4136
        %v4138 = vshll.u32 %v4098, 8
        %v4139 = vmul.u32.u64.compose %v4138, %v4137
        %v4140 = vextract.low.u32 %v4139
        %v4141 = vextract.high.u32 %v4139
        %v4142 = vmul.u32.u64.compose %v4138, %v4133
        %v4143 = vextract.low.u32 %v4142
        %v4144 = vextract.high.u32 %v4142
        %v4145 = vmul.u32 %v4138, %v4129
        %v4146 = vadd.s32 %v4141, %v4143
        %vm4147 = vc.u32 %v4141, %v4143
        %v4148 = vadd.s32 %v4144, 1
        %v4149 = vsel %vm4147, %v4148, %v4144
        %v4150 = vadd.s32 %v4145, %v4149
        %v4151 = vadd.s32 %v4150, 536870912
        %v4152 = vshrl.u32 %v4151, 30
        %v4153 = vshll.u32 %v4152, 30
        %v4154 = vsub.s32 %v4150, %v4153
        %vm4155 = vcmp.lt.s32.totalorder %v4154, 0
        %v4156 = vsub.s32 0, %v4154
        %v4157 = vsel %vm4155, %v4156, %v4154
        %v4158 = vclz %v4157
        %v4159 = vsub.s32 %v4158, 2
        %vm4160 = vcmp.gt.s32.totalorder 0, %v4159
        %v4161 = vsel %vm4160, 0, %v4159
        %v4162 = vsub.s32 32, %v4161
        %v4163 = vshll.u32 %v4154, %v4161
        %v4164 = vshrl.u32 %v4146, %v4162
        %v4165 = vor.u32 %v4163, %v4164
        %v4166 = vsub.s32 4294967266, %v4161
        %v4167 = vadd.s32 %v4166, 127
        %v4168 = vshll.u32 %v4167, 23
        %v4169 = vor.u32 4788187, %v4168
        %v4170 = vand.u32 2147483647, %v4169
        %v4172 = vcvt.s32.f32 %v4165
        %v4173 = vmul.f32 %v4172, %v4170
        %v4174 = vxor.u32 %v4173, 2147483648
        %v4175 = vsel %vm4092, %v4174, %v4173
        %v4176 = vsub.s32 4, %v4152
        %v4177 = vsel %vm4092, %v4176, %v4152
        %v4178 = vsel %vm4091, %v4086, %v4175
        %v4179 = vsel %vm4091, 0, %v4177
        %v4180 = vcosq.f32.pop %v4178
        %v4181 = vsinq.f32.pop %v4178
        %vm4182 = vweird.f32 %v4086
        %v4183 = vadd.s32 %v4179, 3
        %v4184 = vand.u32 %v4183, 3
        %vm4185 = vcmp.lt.s32.totalorder %v4184, 2
        %vm4186 = vcmp.eq.s32.totalorder %v4184, 0
        %v4187 = vxor.u32 %v4181, 2147483648
        %v4188 = vsel %vm4186, %v4180, %v4187
        %vm4189 = vcmp.eq.s32.totalorder %v4184, 2
        %v4190 = vxor.u32 %v4180, 2147483648
        %v4191 = vsel %vm4189, %v4190, %v4181
        %v4192 = vsel %vm4185, %v4188, %v4191
        %v4193 = vsel %vm4182, nan, %v4192
        %v4194 = vand.u32 2147483647, %v4087
        %vm4195 = vcmp.le.f32.partialorder %v4194, 0.7853982
        %vm4196 = vcmp.lt.s32.totalorder %v4087, 0
        %v4197 = vand.u32 %v4087, 2139095040
        %v4198 = vshrl.u32 %v4197, 23
        %v4199 = vsub.s32 %v4198, 127
        %v4200 = vand.u32 2147483647, %v4087
        %v4201 = vand.u32 %v4200, 8388607
        %v4202 = vor.u32 %v4201, 8388608
        %v4203 = vsub.s32 0, %v4202
        %v4204 = vadd.s32 %v4199, 1
        %vm4205 = vcmp.gt.s32.totalorder %v4204, 0
        %v4206 = vsel %vm4205, %v4204, 0
        %v4207 = vshrl.u32 %v4206, 5
        %v4208 = vand.u32 %v4206, 31
        %v4209 = vsub.s32 32, %v4208
        %v4210 = vshrl.u32 683565275, %v4209
        %v4211 = vshll.u32 683565275, %v4208
        %v4212 = vshrl.u32 2475754826, %v4209
        %v4213 = vor.u32 %v4211, %v4212
        %v4214 = vshll.u32 2475754826, %v4208
        %v4215 = vshrl.u32 2131351028, %v4209
        %v4216 = vor.u32 %v4214, %v4215
        %v4217 = vshll.u32 2131351028, %v4208
        %v4218 = vshrl.u32 2102212464, %v4209
        %v4219 = vor.u32 %v4217, %v4218
        %v4220 = vshll.u32 2102212464, %v4208
        %v4221 = vshrl.u32 920167782, %v4209
        %v4222 = vor.u32 %v4220, %v4221
        %v4223 = vshll.u32 920167782, %v4208
        %v4224 = vshrl.u32 1326507024, %v4209
        %v4225 = vor.u32 %v4223, %v4224
        %vm4226 = vcmp.lt.s32.totalorder %v4207, 1
        %vm4227 = vcmp.lt.s32.totalorder %v4207, 2
        %vm4228 = vcmp.lt.s32.totalorder %v4207, 3
        %vm4229 = vcmp.lt.s32.totalorder %v4207, 4
        %v4230 = vsel %vm4226, %v4210, %v4213
        %v4231 = vsel %vm4229, %v4219, 2102212464
        %v4232 = vsel %vm4228, %v4216, %v4231
        %v4233 = vsel %vm4227, %v4230, %v4232
        %v4234 = vsel %vm4226, %v4213, %v4216
        %v4235 = vsel %vm4229, %v4222, 920167782
        %v4236 = vsel %vm4228, %v4219, %v4235
        %v4237 = vsel %vm4227, %v4234, %v4236
        %v4238 = vsel %vm4226, %v4216, %v4219
        %v4239 = vsel %vm4229, %v4225, 1326507024
        %v4240 = vsel %vm4228, %v4222, %v4239
        %v4241 = vsel %vm4227, %v4238, %v4240
        %v4242 = vshll.u32 %v4202, 8
        %v4243 = vmul.u32.u64.compose %v4242, %v4241
        %v4244 = vextract.low.u32 %v4243
        %v4245 = vextract.high.u32 %v4243
        %v4246 = vmul.u32.u64.compose %v4242, %v4237
        %v4247 = vextract.low.u32 %v4246
        %v4248 = vextract.high.u32 %v4246
        %v4249 = vmul.u32 %v4242, %v4233
        %v4250 = vadd.s32 %v4245, %v4247
        %vm4251 = vc.u32 %v4245, %v4247
        %v4252 = vadd.s32 %v4248, 1
        %v4253 = vsel %vm4251, %v4252, %v4248
        %v4254 = vadd.s32 %v4249, %v4253
        %v4255 = vadd.s32 %v4254, 536870912
        %v4256 = vshrl.u32 %v4255, 30
        %v4257 = vshll.u32 %v4256, 30
        %v4258 = vsub.s32 %v4254, %v4257
        %vm4259 = vcmp.lt.s32.totalorder %v4258, 0
        %v4260 = vsub.s32 0, %v4258
        %v4261 = vsel %vm4259, %v4260, %v4258
        %v4262 = vclz %v4261
        %v4263 = vsub.s32 %v4262, 2
        %vm4264 = vcmp.gt.s32.totalorder 0, %v4263
        %v4265 = vsel %vm4264, 0, %v4263
        %v4266 = vsub.s32 32, %v4265
        %v4267 = vshll.u32 %v4258, %v4265
        %v4268 = vshrl.u32 %v4250, %v4266
        %v4269 = vor.u32 %v4267, %v4268
        %v4270 = vsub.s32 4294967266, %v4265
        %v4271 = vadd.s32 %v4270, 127
        %v4272 = vshll.u32 %v4271, 23
        %v4273 = vor.u32 4788187, %v4272
        %v4274 = vand.u32 2147483647, %v4273
        %v4276 = vcvt.s32.f32 %v4269
        %v4277 = vmul.f32 %v4276, %v4274
        %v4278 = vxor.u32 %v4277, 2147483648
        %v4279 = vsel %vm4196, %v4278, %v4277
        %v4280 = vsub.s32 4, %v4256
        %v4281 = vsel %vm4196, %v4280, %v4256
        %v4282 = vsel %vm4195, %v4087, %v4279
        %v4283 = vsel %vm4195, 0, %v4281
        %v4284 = vcosq.f32.pop %v4282
        %v4285 = vsinq.f32.pop %v4282
        %vm4286 = vweird.f32 %v4087
        %v4287 = vadd.s32 %v4283, 3
        %v4288 = vand.u32 %v4287, 3
        %vm4289 = vcmp.lt.s32.totalorder %v4288, 2
        %vm4290 = vcmp.eq.s32.totalorder %v4288, 0
        %v4291 = vxor.u32 %v4285, 2147483648
        %v4292 = vsel %vm4290, %v4284, %v4291
        %vm4293 = vcmp.eq.s32.totalorder %v4288, 2
        %v4294 = vxor.u32 %v4284, 2147483648
        %v4295 = vsel %vm4293, %v4294, %v4285
        %v4296 = vsel %vm4289, %v4292, %v4295
        %v4297 = vsel %vm4286, nan, %v4296
        %v4298 = vrcp.pop %v4086
        %v4299 = vrcp.pop %v4087
        %v4300 = vmul.f32 %v4086, %v4298
        %v4301 = vmul.f32 %v4087, %v4299
        %v4302 = vsub.f32 2.0, %v4300
        %v4303 = vsub.f32 2.0, %v4301
        %v4304 = vmul.f32 %v4298, %v4302
        %v4305 = vmul.f32 %v4299, %v4303
        %vm4306 = vcmp.lt.f32.partialorder %v4088, 1e-06
        %vm4307 = vcmp.lt.f32.partialorder %v4089, 1e-06
        %v4308 = vmul.f32 %v4088, 0.16666667
        %v4309 = vmul.f32 %v4089, 0.16666667
        %v4310 = vsub.f32 1.0, %v4308
        %v4311 = vsub.f32 1.0, %v4309
        %v4312 = vmul.f32 %v4193, %v4304
        %v4313 = vmul.f32 %v4297, %v4305
        %v4314 = vsel %vm4306, %v4310, %v4312
        %v4315 = vsel %vm4307, %v4311, %v4313
        %v4316 = vmul.f32 %v4072, %v4314
        %v4317 = vmul.f32 %v4073, %v4315
        %v4318 = vmul.f32 %v4316, %v4316
        %v4319 = vmul.f32 %v4317, %v4317
        %v4320 = vmul.f32 %v4318, %v4318
        %v4321 = vmul.f32 %v4319, %v4319
        %v4322 = vsel %vm319, %v4320, 0.0
        %v4323 = vsel %vm319, %v4321, 0.0
        %v4324 = vpack.c.bf16 %v4323, %v4322
        %4325 = vrot.lane.b32.xlu0 %v2311, 119
        %v4326 = vpop.permute.xlu0 %4325
        %4327 = vrot.lane.b32.xlu0 %v2312, 119
        %v4328 = vpop.permute.xlu0 %4327
        %4329 = vrot.lane.b32.xlu0 %v2313, 119
        %v4330 = vpop.permute.xlu0 %4329
        %4331 = vrot.lane.b32.xlu0 %v2314, 119
        %v4332 = vpop.permute.xlu0 %4331
        %4333 = vrot.lane.b32.xlu0 %v2315, 119
        %v4334 = vpop.permute.xlu0 %4333
        %4335 = vrot.lane.b32.xlu0 %v2316, 119
        %v4336 = vpop.permute.xlu0 %4335
        %4337 = vrot.lane.b32.xlu0 %v2317, 119
        %v4338 = vpop.permute.xlu0 %4337
        %4339 = vrot.lane.b32.xlu0 %v2318, 119
        %v4340 = vpop.permute.xlu0 %4339
        %4349 = vmatprep.subr.bf16.mxu0 0
        %4350 = vmatpush1.bf16.msra.mxu0 %v4326
        %4351 = vmatprep.subr.bf16.mxu0 0
        %4352 = vmatpush1.bf16.msra.mxu0 %v4328
        %4353 = vmatprep.subr.bf16.mxu0 0
        %4354 = vmatpush1.bf16.msra.mxu0 %v4330
        %4355 = vmatprep.subr.bf16.mxu0 0
        %4356 = vmatpush1.bf16.msra.mxu0 %v4332
        %4357 = vmatprep.subr.bf16.mxu0 0
        %4358 = vmatpush1.bf16.msra.mxu0 %v4334
        %4359 = vmatprep.subr.bf16.mxu0 0
        %4360 = vmatpush1.bf16.msra.mxu0 %v4336
        %4361 = vmatprep.subr.bf16.mxu0 0
        %4362 = vmatpush1.bf16.msra.mxu0 %v4338
        %4363 = vmatprep.subr.bf16.mxu0 0
        %4364 = vmatpush1.bf16.msra.mxu0 %v4340
        %4365 = vmatprep.subr.bf16.mxu0 0
        %4366 = vmatpush1.bf16.msra.mxu0 0
        %4367 = vmatprep.subr.bf16.mxu0 0
        %4368 = vmatpush1.bf16.msra.mxu0 0
        %4369 = vmatprep.subr.bf16.mxu0 0
        %4370 = vmatpush1.bf16.msra.mxu0 0
        %4371 = vmatprep.subr.bf16.mxu0 0
        %4372 = vmatpush1.bf16.msra.mxu0 0
        %4373 = vmatprep.subr.bf16.mxu0 0
        %4374 = vmatpush1.bf16.msra.mxu0 0
        %4375 = vmatprep.subr.bf16.mxu0 0
        %4376 = vmatpush1.bf16.msra.mxu0 0
        %4377 = vmatprep.subr.bf16.mxu0 0
        %4378 = vmatpush1.bf16.msra.mxu0 0
        %4379 = vmatprep.subr.bf16.mxu0 0
        %4380 = vmatpush1.bf16.msra.mxu0 0
        %4381 = vmatprep.mubr.bf16.mxu0 0
        %4382 = vmatmul.mubr.bf16.gmra.mrb[0].mxu0 %v4324
        %v4383 = vpop.f32.mrb[0].mxu0
        %v4384 = vadd.f32 0.0, %v4383
        %v4385 = vpop.f32.mrb[0].mxu0
        %v4386 = vpop.f32.mrb[0].mxu0
        %v4387 = vadd.f32 0.0, %v4386
        %v4388 = vpop.f32.mrb[0].mxu0
        %4389 = vdwg.mxu0
        %4390 = vset.pattern.permute.xlu0 16
        %4391 = vperm.xlu0 %4390, %v288
        %v4392 = vpop.permute.xlu0 %4391
        %4394 = vset.pattern.permute.xlu0 16
        %4395 = vperm.xlu0 %4394, %v289
        %v4396 = vpop.permute.xlu0 %4395
        %v4398 = vlaneseq
        %v4399 = vshrl.u32 %v4398, 7
        %v4400 = vsub.s32 0, %v4399
        %v4401 = vrot.slane %v296, %v4400
        %v4402 = vsub.f32 %v4392, %v4401
        %v4403 = vsub.f32 %v4396, %v4401
        %v4404 = vmul.f32 %v4402, %v4402
        %v4405 = vmul.f32 %v4403, %v4403
        %v4406 = vand.u32 2147483647, %v4402
        %vm4407 = vcmp.le.f32.partialorder %v4406, 0.7853982
        %vm4408 = vcmp.lt.s32.totalorder %v4402, 0
        %v4409 = vand.u32 %v4402, 2139095040
        %v4410 = vshrl.u32 %v4409, 23
        %v4411 = vsub.s32 %v4410, 127
        %v4412 = vand.u32 2147483647, %v4402
        %v4413 = vand.u32 %v4412, 8388607
        %v4414 = vor.u32 %v4413, 8388608
        %v4415 = vsub.s32 0, %v4414
        %v4416 = vadd.s32 %v4411, 1
        %vm4417 = vcmp.gt.s32.totalorder %v4416, 0
        %v4418 = vsel %vm4417, %v4416, 0
        %v4419 = vshrl.u32 %v4418, 5
        %v4420 = vand.u32 %v4418, 31
        %v4421 = vsub.s32 32, %v4420
        %v4422 = vshrl.u32 683565275, %v4421
        %v4423 = vshll.u32 683565275, %v4420
        %v4424 = vshrl.u32 2475754826, %v4421
        %v4425 = vor.u32 %v4423, %v4424
        %v4426 = vshll.u32 2475754826, %v4420
        %v4427 = vshrl.u32 2131351028, %v4421
        %v4428 = vor.u32 %v4426, %v4427
        %v4429 = vshll.u32 2131351028, %v4420
        %v4430 = vshrl.u32 2102212464, %v4421
        %v4431 = vor.u32 %v4429, %v4430
        %v4432 = vshll.u32 2102212464, %v4420
        %v4433 = vshrl.u32 920167782, %v4421
        %v4434 = vor.u32 %v4432, %v4433
        %v4435 = vshll.u32 920167782, %v4420
        %v4436 = vshrl.u32 1326507024, %v4421
        %v4437 = vor.u32 %v4435, %v4436
        %vm4438 = vcmp.lt.s32.totalorder %v4419, 1
        %vm4439 = vcmp.lt.s32.totalorder %v4419, 2
        %vm4440 = vcmp.lt.s32.totalorder %v4419, 3
        %vm4441 = vcmp.lt.s32.totalorder %v4419, 4
        %v4442 = vsel %vm4438, %v4422, %v4425
        %v4443 = vsel %vm4441, %v4431, 2102212464
        %v4444 = vsel %vm4440, %v4428, %v4443
        %v4445 = vsel %vm4439, %v4442, %v4444
        %v4446 = vsel %vm4438, %v4425, %v4428
        %v4447 = vsel %vm4441, %v4434, 920167782
        %v4448 = vsel %vm4440, %v4431, %v4447
        %v4449 = vsel %vm4439, %v4446, %v4448
        %v4450 = vsel %vm4438, %v4428, %v4431
        %v4451 = vsel %vm4441, %v4437, 1326507024
        %v4452 = vsel %vm4440, %v4434, %v4451
        %v4453 = vsel %vm4439, %v4450, %v4452
        %v4454 = vshll.u32 %v4414, 8
        %v4455 = vmul.u32.u64.compose %v4454, %v4453
        %v4456 = vextract.low.u32 %v4455
        %v4457 = vextract.high.u32 %v4455
        %v4458 = vmul.u32.u64.compose %v4454, %v4449
        %v4459 = vextract.low.u32 %v4458
        %v4460 = vextract.high.u32 %v4458
        %v4461 = vmul.u32 %v4454, %v4445
        %v4462 = vadd.s32 %v4457, %v4459
        %vm4463 = vc.u32 %v4457, %v4459
        %v4464 = vadd.s32 %v4460, 1
        %v4465 = vsel %vm4463, %v4464, %v4460
        %v4466 = vadd.s32 %v4461, %v4465
        %v4467 = vadd.s32 %v4466, 536870912
        %v4468 = vshrl.u32 %v4467, 30
        %v4469 = vshll.u32 %v4468, 30
        %v4470 = vsub.s32 %v4466, %v4469
        %vm4471 = vcmp.lt.s32.totalorder %v4470, 0
        %v4472 = vsub.s32 0, %v4470
        %v4473 = vsel %vm4471, %v4472, %v4470
        %v4474 = vclz %v4473
        %v4475 = vsub.s32 %v4474, 2
        %vm4476 = vcmp.gt.s32.totalorder 0, %v4475
        %v4477 = vsel %vm4476, 0, %v4475
        %v4478 = vsub.s32 32, %v4477
        %v4479 = vshll.u32 %v4470, %v4477
        %v4480 = vshrl.u32 %v4462, %v4478
        %v4481 = vor.u32 %v4479, %v4480
        %v4482 = vsub.s32 4294967266, %v4477
        %v4483 = vadd.s32 %v4482, 127
        %v4484 = vshll.u32 %v4483, 23
        %v4485 = vor.u32 4788187, %v4484
        %v4486 = vand.u32 2147483647, %v4485
        %v4488 = vcvt.s32.f32 %v4481
        %v4489 = vmul.f32 %v4488, %v4486
        %v4490 = vxor.u32 %v4489, 2147483648
        %v4491 = vsel %vm4408, %v4490, %v4489
        %v4492 = vsub.s32 4, %v4468
        %v4493 = vsel %vm4408, %v4492, %v4468
        %v4494 = vsel %vm4407, %v4402, %v4491
        %v4495 = vsel %vm4407, 0, %v4493
        %v4496 = vcosq.f32.pop %v4494
        %v4497 = vsinq.f32.pop %v4494
        %vm4498 = vweird.f32 %v4402
        %v4499 = vadd.s32 %v4495, 3
        %v4500 = vand.u32 %v4499, 3
        %vm4501 = vcmp.lt.s32.totalorder %v4500, 2
        %vm4502 = vcmp.eq.s32.totalorder %v4500, 0
        %v4503 = vxor.u32 %v4497, 2147483648
        %v4504 = vsel %vm4502, %v4496, %v4503
        %vm4505 = vcmp.eq.s32.totalorder %v4500, 2
        %v4506 = vxor.u32 %v4496, 2147483648
        %v4507 = vsel %vm4505, %v4506, %v4497
        %v4508 = vsel %vm4501, %v4504, %v4507
        %v4509 = vsel %vm4498, nan, %v4508
        %v4510 = vand.u32 2147483647, %v4403
        %vm4511 = vcmp.le.f32.partialorder %v4510, 0.7853982
        %vm4512 = vcmp.lt.s32.totalorder %v4403, 0
        %v4513 = vand.u32 %v4403, 2139095040
        %v4514 = vshrl.u32 %v4513, 23
        %v4515 = vsub.s32 %v4514, 127
        %v4516 = vand.u32 2147483647, %v4403
        %v4517 = vand.u32 %v4516, 8388607
        %v4518 = vor.u32 %v4517, 8388608
        %v4519 = vsub.s32 0, %v4518
        %v4520 = vadd.s32 %v4515, 1
        %vm4521 = vcmp.gt.s32.totalorder %v4520, 0
        %v4522 = vsel %vm4521, %v4520, 0
        %v4523 = vshrl.u32 %v4522, 5
        %v4524 = vand.u32 %v4522, 31
        %v4525 = vsub.s32 32, %v4524
        %v4526 = vshrl.u32 683565275, %v4525
        %v4527 = vshll.u32 683565275, %v4524
        %v4528 = vshrl.u32 2475754826, %v4525
        %v4529 = vor.u32 %v4527, %v4528
        %v4530 = vshll.u32 2475754826, %v4524
        %v4531 = vshrl.u32 2131351028, %v4525
        %v4532 = vor.u32 %v4530, %v4531
        %v4533 = vshll.u32 2131351028, %v4524
        %v4534 = vshrl.u32 2102212464, %v4525
        %v4535 = vor.u32 %v4533, %v4534
        %v4536 = vshll.u32 2102212464, %v4524
        %v4537 = vshrl.u32 920167782, %v4525
        %v4538 = vor.u32 %v4536, %v4537
        %v4539 = vshll.u32 920167782, %v4524
        %v4540 = vshrl.u32 1326507024, %v4525
        %v4541 = vor.u32 %v4539, %v4540
        %vm4542 = vcmp.lt.s32.totalorder %v4523, 1
        %vm4543 = vcmp.lt.s32.totalorder %v4523, 2
        %vm4544 = vcmp.lt.s32.totalorder %v4523, 3
        %vm4545 = vcmp.lt.s32.totalorder %v4523, 4
        %v4546 = vsel %vm4542, %v4526, %v4529
        %v4547 = vsel %vm4545, %v4535, 2102212464
        %v4548 = vsel %vm4544, %v4532, %v4547
        %v4549 = vsel %vm4543, %v4546, %v4548
        %v4550 = vsel %vm4542, %v4529, %v4532
        %v4551 = vsel %vm4545, %v4538, 920167782
        %v4552 = vsel %vm4544, %v4535, %v4551
        %v4553 = vsel %vm4543, %v4550, %v4552
        %v4554 = vsel %vm4542, %v4532, %v4535
        %v4555 = vsel %vm4545, %v4541, 1326507024
        %v4556 = vsel %vm4544, %v4538, %v4555
        %v4557 = vsel %vm4543, %v4554, %v4556
        %v4558 = vshll.u32 %v4518, 8
        %v4559 = vmul.u32.u64.compose %v4558, %v4557
        %v4560 = vextract.low.u32 %v4559
        %v4561 = vextract.high.u32 %v4559
        %v4562 = vmul.u32.u64.compose %v4558, %v4553
        %v4563 = vextract.low.u32 %v4562
        %v4564 = vextract.high.u32 %v4562
        %v4565 = vmul.u32 %v4558, %v4549
        %v4566 = vadd.s32 %v4561, %v4563
        %vm4567 = vc.u32 %v4561, %v4563
        %v4568 = vadd.s32 %v4564, 1
        %v4569 = vsel %vm4567, %v4568, %v4564
        %v4570 = vadd.s32 %v4565, %v4569
        %v4571 = vadd.s32 %v4570, 536870912
        %v4572 = vshrl.u32 %v4571, 30
        %v4573 = vshll.u32 %v4572, 30
        %v4574 = vsub.s32 %v4570, %v4573
        %vm4575 = vcmp.lt.s32.totalorder %v4574, 0
        %v4576 = vsub.s32 0, %v4574
        %v4577 = vsel %vm4575, %v4576, %v4574
        %v4578 = vclz %v4577
        %v4579 = vsub.s32 %v4578, 2
        %vm4580 = vcmp.gt.s32.totalorder 0, %v4579
        %v4581 = vsel %vm4580, 0, %v4579
        %v4582 = vsub.s32 32, %v4581
        %v4583 = vshll.u32 %v4574, %v4581
        %v4584 = vshrl.u32 %v4566, %v4582
        %v4585 = vor.u32 %v4583, %v4584
        %v4586 = vsub.s32 4294967266, %v4581
        %v4587 = vadd.s32 %v4586, 127
        %v4588 = vshll.u32 %v4587, 23
        %v4589 = vor.u32 4788187, %v4588
        %v4590 = vand.u32 2147483647, %v4589
        %v4592 = vcvt.s32.f32 %v4585
        %v4593 = vmul.f32 %v4592, %v4590
        %v4594 = vxor.u32 %v4593, 2147483648
        %v4595 = vsel %vm4512, %v4594, %v4593
        %v4596 = vsub.s32 4, %v4572
        %v4597 = vsel %vm4512, %v4596, %v4572
        %v4598 = vsel %vm4511, %v4403, %v4595
        %v4599 = vsel %vm4511, 0, %v4597
        %v4600 = vcosq.f32.pop %v4598
        %v4601 = vsinq.f32.pop %v4598
        %vm4602 = vweird.f32 %v4403
        %v4603 = vadd.s32 %v4599, 3
        %v4604 = vand.u32 %v4603, 3
        %vm4605 = vcmp.lt.s32.totalorder %v4604, 2
        %vm4606 = vcmp.eq.s32.totalorder %v4604, 0
        %v4607 = vxor.u32 %v4601, 2147483648
        %v4608 = vsel %vm4606, %v4600, %v4607
        %vm4609 = vcmp.eq.s32.totalorder %v4604, 2
        %v4610 = vxor.u32 %v4600, 2147483648
        %v4611 = vsel %vm4609, %v4610, %v4601
        %v4612 = vsel %vm4605, %v4608, %v4611
        %v4613 = vsel %vm4602, nan, %v4612
        %v4614 = vrcp.pop %v4402
        %v4615 = vrcp.pop %v4403
        %v4616 = vmul.f32 %v4402, %v4614
        %v4617 = vmul.f32 %v4403, %v4615
        %v4618 = vsub.f32 2.0, %v4616
        %v4619 = vsub.f32 2.0, %v4617
        %v4620 = vmul.f32 %v4614, %v4618
        %v4621 = vmul.f32 %v4615, %v4619
        %vm4622 = vcmp.lt.f32.partialorder %v4404, 1e-06
        %vm4623 = vcmp.lt.f32.partialorder %v4405, 1e-06
        %v4624 = vmul.f32 %v4404, 0.16666667
        %v4625 = vmul.f32 %v4405, 0.16666667
        %v4626 = vsub.f32 1.0, %v4624
        %v4627 = vsub.f32 1.0, %v4625
        %v4628 = vmul.f32 %v4509, %v4620
        %v4629 = vmul.f32 %v4613, %v4621
        %v4630 = vsel %vm4622, %v4626, %v4628
        %v4631 = vsel %vm4623, %v4627, %v4629
        %4632 = vset.pattern.permute.xlu0 17
        %4633 = vperm.xlu0 %4632, %v288
        %v4634 = vpop.permute.xlu0 %4633
        %4636 = vset.pattern.permute.xlu0 17
        %4637 = vperm.xlu0 %4636, %v289
        %v4638 = vpop.permute.xlu0 %4637
        %v4640 = vlaneseq
        %v4641 = vshrl.u32 %v4640, 7
        %v4642 = vsub.s32 1, %v4641
        %v4643 = vrot.slane %v296, %v4642
        %v4644 = vsub.f32 %v4634, %v4643
        %v4645 = vsub.f32 %v4638, %v4643
        %v4646 = vmul.f32 %v4644, %v4644
        %v4647 = vmul.f32 %v4645, %v4645
        %v4648 = vand.u32 2147483647, %v4644
        %vm4649 = vcmp.le.f32.partialorder %v4648, 0.7853982
        %vm4650 = vcmp.lt.s32.totalorder %v4644, 0
        %v4651 = vand.u32 %v4644, 2139095040
        %v4652 = vshrl.u32 %v4651, 23
        %v4653 = vsub.s32 %v4652, 127
        %v4654 = vand.u32 2147483647, %v4644
        %v4655 = vand.u32 %v4654, 8388607
        %v4656 = vor.u32 %v4655, 8388608
        %v4657 = vsub.s32 0, %v4656
        %v4658 = vadd.s32 %v4653, 1
        %vm4659 = vcmp.gt.s32.totalorder %v4658, 0
        %v4660 = vsel %vm4659, %v4658, 0
        %v4661 = vshrl.u32 %v4660, 5
        %v4662 = vand.u32 %v4660, 31
        %v4663 = vsub.s32 32, %v4662
        %v4664 = vshrl.u32 683565275, %v4663
        %v4665 = vshll.u32 683565275, %v4662
        %v4666 = vshrl.u32 2475754826, %v4663
        %v4667 = vor.u32 %v4665, %v4666
        %v4668 = vshll.u32 2475754826, %v4662
        %v4669 = vshrl.u32 2131351028, %v4663
        %v4670 = vor.u32 %v4668, %v4669
        %v4671 = vshll.u32 2131351028, %v4662
        %v4672 = vshrl.u32 2102212464, %v4663
        %v4673 = vor.u32 %v4671, %v4672
        %v4674 = vshll.u32 2102212464, %v4662
        %v4675 = vshrl.u32 920167782, %v4663
        %v4676 = vor.u32 %v4674, %v4675
        %v4677 = vshll.u32 920167782, %v4662
        %v4678 = vshrl.u32 1326507024, %v4663
        %v4679 = vor.u32 %v4677, %v4678
        %vm4680 = vcmp.lt.s32.totalorder %v4661, 1
        %vm4681 = vcmp.lt.s32.totalorder %v4661, 2
        %vm4682 = vcmp.lt.s32.totalorder %v4661, 3
        %vm4683 = vcmp.lt.s32.totalorder %v4661, 4
        %v4684 = vsel %vm4680, %v4664, %v4667
        %v4685 = vsel %vm4683, %v4673, 2102212464
        %v4686 = vsel %vm4682, %v4670, %v4685
        %v4687 = vsel %vm4681, %v4684, %v4686
        %v4688 = vsel %vm4680, %v4667, %v4670
        %v4689 = vsel %vm4683, %v4676, 920167782
        %v4690 = vsel %vm4682, %v4673, %v4689
        %v4691 = vsel %vm4681, %v4688, %v4690
        %v4692 = vsel %vm4680, %v4670, %v4673
        %v4693 = vsel %vm4683, %v4679, 1326507024
        %v4694 = vsel %vm4682, %v4676, %v4693
        %v4695 = vsel %vm4681, %v4692, %v4694
        %v4696 = vshll.u32 %v4656, 8
        %v4697 = vmul.u32.u64.compose %v4696, %v4695
        %v4698 = vextract.low.u32 %v4697
        %v4699 = vextract.high.u32 %v4697
        %v4700 = vmul.u32.u64.compose %v4696, %v4691
        %v4701 = vextract.low.u32 %v4700
        %v4702 = vextract.high.u32 %v4700
        %v4703 = vmul.u32 %v4696, %v4687
        %v4704 = vadd.s32 %v4699, %v4701
        %vm4705 = vc.u32 %v4699, %v4701
        %v4706 = vadd.s32 %v4702, 1
        %v4707 = vsel %vm4705, %v4706, %v4702
        %v4708 = vadd.s32 %v4703, %v4707
        %v4709 = vadd.s32 %v4708, 536870912
        %v4710 = vshrl.u32 %v4709, 30
        %v4711 = vshll.u32 %v4710, 30
        %v4712 = vsub.s32 %v4708, %v4711
        %vm4713 = vcmp.lt.s32.totalorder %v4712, 0
        %v4714 = vsub.s32 0, %v4712
        %v4715 = vsel %vm4713, %v4714, %v4712
        %v4716 = vclz %v4715
        %v4717 = vsub.s32 %v4716, 2
        %vm4718 = vcmp.gt.s32.totalorder 0, %v4717
        %v4719 = vsel %vm4718, 0, %v4717
        %v4720 = vsub.s32 32, %v4719
        %v4721 = vshll.u32 %v4712, %v4719
        %v4722 = vshrl.u32 %v4704, %v4720
        %v4723 = vor.u32 %v4721, %v4722
        %v4724 = vsub.s32 4294967266, %v4719
        %v4725 = vadd.s32 %v4724, 127
        %v4726 = vshll.u32 %v4725, 23
        %v4727 = vor.u32 4788187, %v4726
        %v4728 = vand.u32 2147483647, %v4727
        %v4730 = vcvt.s32.f32 %v4723
        %v4731 = vmul.f32 %v4730, %v4728
        %v4732 = vxor.u32 %v4731, 2147483648
        %v4733 = vsel %vm4650, %v4732, %v4731
        %v4734 = vsub.s32 4, %v4710
        %v4735 = vsel %vm4650, %v4734, %v4710
        %v4736 = vsel %vm4649, %v4644, %v4733
        %v4737 = vsel %vm4649, 0, %v4735
        %v4738 = vcosq.f32.pop %v4736
        %v4739 = vsinq.f32.pop %v4736
        %vm4740 = vweird.f32 %v4644
        %v4741 = vadd.s32 %v4737, 3
        %v4742 = vand.u32 %v4741, 3
        %vm4743 = vcmp.lt.s32.totalorder %v4742, 2
        %vm4744 = vcmp.eq.s32.totalorder %v4742, 0
        %v4745 = vxor.u32 %v4739, 2147483648
        %v4746 = vsel %vm4744, %v4738, %v4745
        %vm4747 = vcmp.eq.s32.totalorder %v4742, 2
        %v4748 = vxor.u32 %v4738, 2147483648
        %v4749 = vsel %vm4747, %v4748, %v4739
        %v4750 = vsel %vm4743, %v4746, %v4749
        %v4751 = vsel %vm4740, nan, %v4750
        %v4752 = vand.u32 2147483647, %v4645
        %vm4753 = vcmp.le.f32.partialorder %v4752, 0.7853982
        %vm4754 = vcmp.lt.s32.totalorder %v4645, 0
        %v4755 = vand.u32 %v4645, 2139095040
        %v4756 = vshrl.u32 %v4755, 23
        %v4757 = vsub.s32 %v4756, 127
        %v4758 = vand.u32 2147483647, %v4645
        %v4759 = vand.u32 %v4758, 8388607
        %v4760 = vor.u32 %v4759, 8388608
        %v4761 = vsub.s32 0, %v4760
        %v4762 = vadd.s32 %v4757, 1
        %vm4763 = vcmp.gt.s32.totalorder %v4762, 0
        %v4764 = vsel %vm4763, %v4762, 0
        %v4765 = vshrl.u32 %v4764, 5
        %v4766 = vand.u32 %v4764, 31
        %v4767 = vsub.s32 32, %v4766
        %v4768 = vshrl.u32 683565275, %v4767
        %v4769 = vshll.u32 683565275, %v4766
        %v4770 = vshrl.u32 2475754826, %v4767
        %v4771 = vor.u32 %v4769, %v4770
        %v4772 = vshll.u32 2475754826, %v4766
        %v4773 = vshrl.u32 2131351028, %v4767
        %v4774 = vor.u32 %v4772, %v4773
        %v4775 = vshll.u32 2131351028, %v4766
        %v4776 = vshrl.u32 2102212464, %v4767
        %v4777 = vor.u32 %v4775, %v4776
        %v4778 = vshll.u32 2102212464, %v4766
        %v4779 = vshrl.u32 920167782, %v4767
        %v4780 = vor.u32 %v4778, %v4779
        %v4781 = vshll.u32 920167782, %v4766
        %v4782 = vshrl.u32 1326507024, %v4767
        %v4783 = vor.u32 %v4781, %v4782
        %vm4784 = vcmp.lt.s32.totalorder %v4765, 1
        %vm4785 = vcmp.lt.s32.totalorder %v4765, 2
        %vm4786 = vcmp.lt.s32.totalorder %v4765, 3
        %vm4787 = vcmp.lt.s32.totalorder %v4765, 4
        %v4788 = vsel %vm4784, %v4768, %v4771
        %v4789 = vsel %vm4787, %v4777, 2102212464
        %v4790 = vsel %vm4786, %v4774, %v4789
        %v4791 = vsel %vm4785, %v4788, %v4790
        %v4792 = vsel %vm4784, %v4771, %v4774
        %v4793 = vsel %vm4787, %v4780, 920167782
        %v4794 = vsel %vm4786, %v4777, %v4793
        %v4795 = vsel %vm4785, %v4792, %v4794
        %v4796 = vsel %vm4784, %v4774, %v4777
        %v4797 = vsel %vm4787, %v4783, 1326507024
        %v4798 = vsel %vm4786, %v4780, %v4797
        %v4799 = vsel %vm4785, %v4796, %v4798
        %v4800 = vshll.u32 %v4760, 8
        %v4801 = vmul.u32.u64.compose %v4800, %v4799
        %v4802 = vextract.low.u32 %v4801
        %v4803 = vextract.high.u32 %v4801
        %v4804 = vmul.u32.u64.compose %v4800, %v4795
        %v4805 = vextract.low.u32 %v4804
        %v4806 = vextract.high.u32 %v4804
        %v4807 = vmul.u32 %v4800, %v4791
        %v4808 = vadd.s32 %v4803, %v4805
        %vm4809 = vc.u32 %v4803, %v4805
        %v4810 = vadd.s32 %v4806, 1
        %v4811 = vsel %vm4809, %v4810, %v4806
        %v4812 = vadd.s32 %v4807, %v4811
        %v4813 = vadd.s32 %v4812, 536870912
        %v4814 = vshrl.u32 %v4813, 30
        %v4815 = vshll.u32 %v4814, 30
        %v4816 = vsub.s32 %v4812, %v4815
        %vm4817 = vcmp.lt.s32.totalorder %v4816, 0
        %v4818 = vsub.s32 0, %v4816
        %v4819 = vsel %vm4817, %v4818, %v4816
        %v4820 = vclz %v4819
        %v4821 = vsub.s32 %v4820, 2
        %vm4822 = vcmp.gt.s32.totalorder 0, %v4821
        %v4823 = vsel %vm4822, 0, %v4821
        %v4824 = vsub.s32 32, %v4823
        %v4825 = vshll.u32 %v4816, %v4823
        %v4826 = vshrl.u32 %v4808, %v4824
        %v4827 = vor.u32 %v4825, %v4826
        %v4828 = vsub.s32 4294967266, %v4823
        %v4829 = vadd.s32 %v4828, 127
        %v4830 = vshll.u32 %v4829, 23
        %v4831 = vor.u32 4788187, %v4830
        %v4832 = vand.u32 2147483647, %v4831
        %v4834 = vcvt.s32.f32 %v4827
        %v4835 = vmul.f32 %v4834, %v4832
        %v4836 = vxor.u32 %v4835, 2147483648
        %v4837 = vsel %vm4754, %v4836, %v4835
        %v4838 = vsub.s32 4, %v4814
        %v4839 = vsel %vm4754, %v4838, %v4814
        %v4840 = vsel %vm4753, %v4645, %v4837
        %v4841 = vsel %vm4753, 0, %v4839
        %v4842 = vcosq.f32.pop %v4840
        %v4843 = vsinq.f32.pop %v4840
        %vm4844 = vweird.f32 %v4645
        %v4845 = vadd.s32 %v4841, 3
        %v4846 = vand.u32 %v4845, 3
        %vm4847 = vcmp.lt.s32.totalorder %v4846, 2
        %vm4848 = vcmp.eq.s32.totalorder %v4846, 0
        %v4849 = vxor.u32 %v4843, 2147483648
        %v4850 = vsel %vm4848, %v4842, %v4849
        %vm4851 = vcmp.eq.s32.totalorder %v4846, 2
        %v4852 = vxor.u32 %v4842, 2147483648
        %v4853 = vsel %vm4851, %v4852, %v4843
        %v4854 = vsel %vm4847, %v4850, %v4853
        %v4855 = vsel %vm4844, nan, %v4854
        %v4856 = vrcp.pop %v4644
        %v4857 = vrcp.pop %v4645
        %v4858 = vmul.f32 %v4644, %v4856
        %v4859 = vmul.f32 %v4645, %v4857
        %v4860 = vsub.f32 2.0, %v4858
        %v4861 = vsub.f32 2.0, %v4859
        %v4862 = vmul.f32 %v4856, %v4860
        %v4863 = vmul.f32 %v4857, %v4861
        %vm4864 = vcmp.lt.f32.partialorder %v4646, 1e-06
        %vm4865 = vcmp.lt.f32.partialorder %v4647, 1e-06
        %v4866 = vmul.f32 %v4646, 0.16666667
        %v4867 = vmul.f32 %v4647, 0.16666667
        %v4868 = vsub.f32 1.0, %v4866
        %v4869 = vsub.f32 1.0, %v4867
        %v4870 = vmul.f32 %v4751, %v4862
        %v4871 = vmul.f32 %v4855, %v4863
        %v4872 = vsel %vm4864, %v4868, %v4870
        %v4873 = vsel %vm4865, %v4869, %v4871
        %v4874 = vmul.f32 %v4630, %v4872
        %v4875 = vmul.f32 %v4631, %v4873
        %4876 = vset.pattern.permute.xlu0 18
        %4877 = vperm.xlu0 %4876, %v288
        %v4878 = vpop.permute.xlu0 %4877
        %4880 = vset.pattern.permute.xlu0 18
        %4881 = vperm.xlu0 %4880, %v289
        %v4882 = vpop.permute.xlu0 %4881
        %v4884 = vlaneseq
        %v4885 = vshrl.u32 %v4884, 7
        %v4886 = vsub.s32 2, %v4885
        %v4887 = vrot.slane %v296, %v4886
        %v4888 = vsub.f32 %v4878, %v4887
        %v4889 = vsub.f32 %v4882, %v4887
        %v4890 = vmul.f32 %v4888, %v4888
        %v4891 = vmul.f32 %v4889, %v4889
        %v4892 = vand.u32 2147483647, %v4888
        %vm4893 = vcmp.le.f32.partialorder %v4892, 0.7853982
        %vm4894 = vcmp.lt.s32.totalorder %v4888, 0
        %v4895 = vand.u32 %v4888, 2139095040
        %v4896 = vshrl.u32 %v4895, 23
        %v4897 = vsub.s32 %v4896, 127
        %v4898 = vand.u32 2147483647, %v4888
        %v4899 = vand.u32 %v4898, 8388607
        %v4900 = vor.u32 %v4899, 8388608
        %v4901 = vsub.s32 0, %v4900
        %v4902 = vadd.s32 %v4897, 1
        %vm4903 = vcmp.gt.s32.totalorder %v4902, 0
        %v4904 = vsel %vm4903, %v4902, 0
        %v4905 = vshrl.u32 %v4904, 5
        %v4906 = vand.u32 %v4904, 31
        %v4907 = vsub.s32 32, %v4906
        %v4908 = vshrl.u32 683565275, %v4907
        %v4909 = vshll.u32 683565275, %v4906
        %v4910 = vshrl.u32 2475754826, %v4907
        %v4911 = vor.u32 %v4909, %v4910
        %v4912 = vshll.u32 2475754826, %v4906
        %v4913 = vshrl.u32 2131351028, %v4907
        %v4914 = vor.u32 %v4912, %v4913
        %v4915 = vshll.u32 2131351028, %v4906
        %v4916 = vshrl.u32 2102212464, %v4907
        %v4917 = vor.u32 %v4915, %v4916
        %v4918 = vshll.u32 2102212464, %v4906
        %v4919 = vshrl.u32 920167782, %v4907
        %v4920 = vor.u32 %v4918, %v4919
        %v4921 = vshll.u32 920167782, %v4906
        %v4922 = vshrl.u32 1326507024, %v4907
        %v4923 = vor.u32 %v4921, %v4922
        %vm4924 = vcmp.lt.s32.totalorder %v4905, 1
        %vm4925 = vcmp.lt.s32.totalorder %v4905, 2
        %vm4926 = vcmp.lt.s32.totalorder %v4905, 3
        %vm4927 = vcmp.lt.s32.totalorder %v4905, 4
        %v4928 = vsel %vm4924, %v4908, %v4911
        %v4929 = vsel %vm4927, %v4917, 2102212464
        %v4930 = vsel %vm4926, %v4914, %v4929
        %v4931 = vsel %vm4925, %v4928, %v4930
        %v4932 = vsel %vm4924, %v4911, %v4914
        %v4933 = vsel %vm4927, %v4920, 920167782
        %v4934 = vsel %vm4926, %v4917, %v4933
        %v4935 = vsel %vm4925, %v4932, %v4934
        %v4936 = vsel %vm4924, %v4914, %v4917
        %v4937 = vsel %vm4927, %v4923, 1326507024
        %v4938 = vsel %vm4926, %v4920, %v4937
        %v4939 = vsel %vm4925, %v4936, %v4938
        %v4940 = vshll.u32 %v4900, 8
        %v4941 = vmul.u32.u64.compose %v4940, %v4939
        %v4942 = vextract.low.u32 %v4941
        %v4943 = vextract.high.u32 %v4941
        %v4944 = vmul.u32.u64.compose %v4940, %v4935
        %v4945 = vextract.low.u32 %v4944
        %v4946 = vextract.high.u32 %v4944
        %v4947 = vmul.u32 %v4940, %v4931
        %v4948 = vadd.s32 %v4943, %v4945
        %vm4949 = vc.u32 %v4943, %v4945
        %v4950 = vadd.s32 %v4946, 1
        %v4951 = vsel %vm4949, %v4950, %v4946
        %v4952 = vadd.s32 %v4947, %v4951
        %v4953 = vadd.s32 %v4952, 536870912
        %v4954 = vshrl.u32 %v4953, 30
        %v4955 = vshll.u32 %v4954, 30
        %v4956 = vsub.s32 %v4952, %v4955
        %vm4957 = vcmp.lt.s32.totalorder %v4956, 0
        %v4958 = vsub.s32 0, %v4956
        %v4959 = vsel %vm4957, %v4958, %v4956
        %v4960 = vclz %v4959
        %v4961 = vsub.s32 %v4960, 2
        %vm4962 = vcmp.gt.s32.totalorder 0, %v4961
        %v4963 = vsel %vm4962, 0, %v4961
        %v4964 = vsub.s32 32, %v4963
        %v4965 = vshll.u32 %v4956, %v4963
        %v4966 = vshrl.u32 %v4948, %v4964
        %v4967 = vor.u32 %v4965, %v4966
        %v4968 = vsub.s32 4294967266, %v4963
        %v4969 = vadd.s32 %v4968, 127
        %v4970 = vshll.u32 %v4969, 23
        %v4971 = vor.u32 4788187, %v4970
        %v4972 = vand.u32 2147483647, %v4971
        %v4974 = vcvt.s32.f32 %v4967
        %v4975 = vmul.f32 %v4974, %v4972
        %v4976 = vxor.u32 %v4975, 2147483648
        %v4977 = vsel %vm4894, %v4976, %v4975
        %v4978 = vsub.s32 4, %v4954
        %v4979 = vsel %vm4894, %v4978, %v4954
        %v4980 = vsel %vm4893, %v4888, %v4977
        %v4981 = vsel %vm4893, 0, %v4979
        %v4982 = vcosq.f32.pop %v4980
        %v4983 = vsinq.f32.pop %v4980
        %vm4984 = vweird.f32 %v4888
        %v4985 = vadd.s32 %v4981, 3
        %v4986 = vand.u32 %v4985, 3
        %vm4987 = vcmp.lt.s32.totalorder %v4986, 2
        %vm4988 = vcmp.eq.s32.totalorder %v4986, 0
        %v4989 = vxor.u32 %v4983, 2147483648
        %v4990 = vsel %vm4988, %v4982, %v4989
        %vm4991 = vcmp.eq.s32.totalorder %v4986, 2
        %v4992 = vxor.u32 %v4982, 2147483648
        %v4993 = vsel %vm4991, %v4992, %v4983
        %v4994 = vsel %vm4987, %v4990, %v4993
        %v4995 = vsel %vm4984, nan, %v4994
        %v4996 = vand.u32 2147483647, %v4889
        %vm4997 = vcmp.le.f32.partialorder %v4996, 0.7853982
        %vm4998 = vcmp.lt.s32.totalorder %v4889, 0
        %v4999 = vand.u32 %v4889, 2139095040
        %v5000 = vshrl.u32 %v4999, 23
        %v5001 = vsub.s32 %v5000, 127
        %v5002 = vand.u32 2147483647, %v4889
        %v5003 = vand.u32 %v5002, 8388607
        %v5004 = vor.u32 %v5003, 8388608
        %v5005 = vsub.s32 0, %v5004
        %v5006 = vadd.s32 %v5001, 1
        %vm5007 = vcmp.gt.s32.totalorder %v5006, 0
        %v5008 = vsel %vm5007, %v5006, 0
        %v5009 = vshrl.u32 %v5008, 5
        %v5010 = vand.u32 %v5008, 31
        %v5011 = vsub.s32 32, %v5010
        %v5012 = vshrl.u32 683565275, %v5011
        %v5013 = vshll.u32 683565275, %v5010
        %v5014 = vshrl.u32 2475754826, %v5011
        %v5015 = vor.u32 %v5013, %v5014
        %v5016 = vshll.u32 2475754826, %v5010
        %v5017 = vshrl.u32 2131351028, %v5011
        %v5018 = vor.u32 %v5016, %v5017
        %v5019 = vshll.u32 2131351028, %v5010
        %v5020 = vshrl.u32 2102212464, %v5011
        %v5021 = vor.u32 %v5019, %v5020
        %v5022 = vshll.u32 2102212464, %v5010
        %v5023 = vshrl.u32 920167782, %v5011
        %v5024 = vor.u32 %v5022, %v5023
        %v5025 = vshll.u32 920167782, %v5010
        %v5026 = vshrl.u32 1326507024, %v5011
        %v5027 = vor.u32 %v5025, %v5026
        %vm5028 = vcmp.lt.s32.totalorder %v5009, 1
        %vm5029 = vcmp.lt.s32.totalorder %v5009, 2
        %vm5030 = vcmp.lt.s32.totalorder %v5009, 3
        %vm5031 = vcmp.lt.s32.totalorder %v5009, 4
        %v5032 = vsel %vm5028, %v5012, %v5015
        %v5033 = vsel %vm5031, %v5021, 2102212464
        %v5034 = vsel %vm5030, %v5018, %v5033
        %v5035 = vsel %vm5029, %v5032, %v5034
        %v5036 = vsel %vm5028, %v5015, %v5018
        %v5037 = vsel %vm5031, %v5024, 920167782
        %v5038 = vsel %vm5030, %v5021, %v5037
        %v5039 = vsel %vm5029, %v5036, %v5038
        %v5040 = vsel %vm5028, %v5018, %v5021
        %v5041 = vsel %vm5031, %v5027, 1326507024
        %v5042 = vsel %vm5030, %v5024, %v5041
        %v5043 = vsel %vm5029, %v5040, %v5042
        %v5044 = vshll.u32 %v5004, 8
        %v5045 = vmul.u32.u64.compose %v5044, %v5043
        %v5046 = vextract.low.u32 %v5045
        %v5047 = vextract.high.u32 %v5045
        %v5048 = vmul.u32.u64.compose %v5044, %v5039
        %v5049 = vextract.low.u32 %v5048
        %v5050 = vextract.high.u32 %v5048
        %v5051 = vmul.u32 %v5044, %v5035
        %v5052 = vadd.s32 %v5047, %v5049
        %vm5053 = vc.u32 %v5047, %v5049
        %v5054 = vadd.s32 %v5050, 1
        %v5055 = vsel %vm5053, %v5054, %v5050
        %v5056 = vadd.s32 %v5051, %v5055
        %v5057 = vadd.s32 %v5056, 536870912
        %v5058 = vshrl.u32 %v5057, 30
        %v5059 = vshll.u32 %v5058, 30
        %v5060 = vsub.s32 %v5056, %v5059
        %vm5061 = vcmp.lt.s32.totalorder %v5060, 0
        %v5062 = vsub.s32 0, %v5060
        %v5063 = vsel %vm5061, %v5062, %v5060
        %v5064 = vclz %v5063
        %v5065 = vsub.s32 %v5064, 2
        %vm5066 = vcmp.gt.s32.totalorder 0, %v5065
        %v5067 = vsel %vm5066, 0, %v5065
        %v5068 = vsub.s32 32, %v5067
        %v5069 = vshll.u32 %v5060, %v5067
        %v5070 = vshrl.u32 %v5052, %v5068
        %v5071 = vor.u32 %v5069, %v5070
        %v5072 = vsub.s32 4294967266, %v5067
        %v5073 = vadd.s32 %v5072, 127
        %v5074 = vshll.u32 %v5073, 23
        %v5075 = vor.u32 4788187, %v5074
        %v5076 = vand.u32 2147483647, %v5075
        %v5078 = vcvt.s32.f32 %v5071
        %v5079 = vmul.f32 %v5078, %v5076
        %v5080 = vxor.u32 %v5079, 2147483648
        %v5081 = vsel %vm4998, %v5080, %v5079
        %v5082 = vsub.s32 4, %v5058
        %v5083 = vsel %vm4998, %v5082, %v5058
        %v5084 = vsel %vm4997, %v4889, %v5081
        %v5085 = vsel %vm4997, 0, %v5083
        %v5086 = vcosq.f32.pop %v5084
        %v5087 = vsinq.f32.pop %v5084
        %vm5088 = vweird.f32 %v4889
        %v5089 = vadd.s32 %v5085, 3
        %v5090 = vand.u32 %v5089, 3
        %vm5091 = vcmp.lt.s32.totalorder %v5090, 2
        %vm5092 = vcmp.eq.s32.totalorder %v5090, 0
        %v5093 = vxor.u32 %v5087, 2147483648
        %v5094 = vsel %vm5092, %v5086, %v5093
        %vm5095 = vcmp.eq.s32.totalorder %v5090, 2
        %v5096 = vxor.u32 %v5086, 2147483648
        %v5097 = vsel %vm5095, %v5096, %v5087
        %v5098 = vsel %vm5091, %v5094, %v5097
        %v5099 = vsel %vm5088, nan, %v5098
        %v5100 = vrcp.pop %v4888
        %v5101 = vrcp.pop %v4889
        %v5102 = vmul.f32 %v4888, %v5100
        %v5103 = vmul.f32 %v4889, %v5101
        %v5104 = vsub.f32 2.0, %v5102
        %v5105 = vsub.f32 2.0, %v5103
        %v5106 = vmul.f32 %v5100, %v5104
        %v5107 = vmul.f32 %v5101, %v5105
        %vm5108 = vcmp.lt.f32.partialorder %v4890, 1e-06
        %vm5109 = vcmp.lt.f32.partialorder %v4891, 1e-06
        %v5110 = vmul.f32 %v4890, 0.16666667
        %v5111 = vmul.f32 %v4891, 0.16666667
        %v5112 = vsub.f32 1.0, %v5110
        %v5113 = vsub.f32 1.0, %v5111
        %v5114 = vmul.f32 %v4995, %v5106
        %v5115 = vmul.f32 %v5099, %v5107
        %v5116 = vsel %vm5108, %v5112, %v5114
        %v5117 = vsel %vm5109, %v5113, %v5115
        %v5118 = vmul.f32 %v4874, %v5116
        %v5119 = vmul.f32 %v4875, %v5117
        %5120 = vset.pattern.permute.xlu0 19
        %5121 = vperm.xlu0 %5120, %v288
        %v5122 = vpop.permute.xlu0 %5121
        %5124 = vset.pattern.permute.xlu0 19
        %5125 = vperm.xlu0 %5124, %v289
        %v5126 = vpop.permute.xlu0 %5125
        %v5128 = vlaneseq
        %v5129 = vshrl.u32 %v5128, 7
        %v5130 = vsub.s32 3, %v5129
        %v5131 = vrot.slane %v296, %v5130
        %v5132 = vsub.f32 %v5122, %v5131
        %v5133 = vsub.f32 %v5126, %v5131
        %v5134 = vmul.f32 %v5132, %v5132
        %v5135 = vmul.f32 %v5133, %v5133
        %v5136 = vand.u32 2147483647, %v5132
        %vm5137 = vcmp.le.f32.partialorder %v5136, 0.7853982
        %vm5138 = vcmp.lt.s32.totalorder %v5132, 0
        %v5139 = vand.u32 %v5132, 2139095040
        %v5140 = vshrl.u32 %v5139, 23
        %v5141 = vsub.s32 %v5140, 127
        %v5142 = vand.u32 2147483647, %v5132
        %v5143 = vand.u32 %v5142, 8388607
        %v5144 = vor.u32 %v5143, 8388608
        %v5145 = vsub.s32 0, %v5144
        %v5146 = vadd.s32 %v5141, 1
        %vm5147 = vcmp.gt.s32.totalorder %v5146, 0
        %v5148 = vsel %vm5147, %v5146, 0
        %v5149 = vshrl.u32 %v5148, 5
        %v5150 = vand.u32 %v5148, 31
        %v5151 = vsub.s32 32, %v5150
        %v5152 = vshrl.u32 683565275, %v5151
        %v5153 = vshll.u32 683565275, %v5150
        %v5154 = vshrl.u32 2475754826, %v5151
        %v5155 = vor.u32 %v5153, %v5154
        %v5156 = vshll.u32 2475754826, %v5150
        %v5157 = vshrl.u32 2131351028, %v5151
        %v5158 = vor.u32 %v5156, %v5157
        %v5159 = vshll.u32 2131351028, %v5150
        %v5160 = vshrl.u32 2102212464, %v5151
        %v5161 = vor.u32 %v5159, %v5160
        %v5162 = vshll.u32 2102212464, %v5150
        %v5163 = vshrl.u32 920167782, %v5151
        %v5164 = vor.u32 %v5162, %v5163
        %v5165 = vshll.u32 920167782, %v5150
        %v5166 = vshrl.u32 1326507024, %v5151
        %v5167 = vor.u32 %v5165, %v5166
        %vm5168 = vcmp.lt.s32.totalorder %v5149, 1
        %vm5169 = vcmp.lt.s32.totalorder %v5149, 2
        %vm5170 = vcmp.lt.s32.totalorder %v5149, 3
        %vm5171 = vcmp.lt.s32.totalorder %v5149, 4
        %v5172 = vsel %vm5168, %v5152, %v5155
        %v5173 = vsel %vm5171, %v5161, 2102212464
        %v5174 = vsel %vm5170, %v5158, %v5173
        %v5175 = vsel %vm5169, %v5172, %v5174
        %v5176 = vsel %vm5168, %v5155, %v5158
        %v5177 = vsel %vm5171, %v5164, 920167782
        %v5178 = vsel %vm5170, %v5161, %v5177
        %v5179 = vsel %vm5169, %v5176, %v5178
        %v5180 = vsel %vm5168, %v5158, %v5161
        %v5181 = vsel %vm5171, %v5167, 1326507024
        %v5182 = vsel %vm5170, %v5164, %v5181
        %v5183 = vsel %vm5169, %v5180, %v5182
        %v5184 = vshll.u32 %v5144, 8
        %v5185 = vmul.u32.u64.compose %v5184, %v5183
        %v5186 = vextract.low.u32 %v5185
        %v5187 = vextract.high.u32 %v5185
        %v5188 = vmul.u32.u64.compose %v5184, %v5179
        %v5189 = vextract.low.u32 %v5188
        %v5190 = vextract.high.u32 %v5188
        %v5191 = vmul.u32 %v5184, %v5175
        %v5192 = vadd.s32 %v5187, %v5189
        %vm5193 = vc.u32 %v5187, %v5189
        %v5194 = vadd.s32 %v5190, 1
        %v5195 = vsel %vm5193, %v5194, %v5190
        %v5196 = vadd.s32 %v5191, %v5195
        %v5197 = vadd.s32 %v5196, 536870912
        %v5198 = vshrl.u32 %v5197, 30
        %v5199 = vshll.u32 %v5198, 30
        %v5200 = vsub.s32 %v5196, %v5199
        %vm5201 = vcmp.lt.s32.totalorder %v5200, 0
        %v5202 = vsub.s32 0, %v5200
        %v5203 = vsel %vm5201, %v5202, %v5200
        %v5204 = vclz %v5203
        %v5205 = vsub.s32 %v5204, 2
        %vm5206 = vcmp.gt.s32.totalorder 0, %v5205
        %v5207 = vsel %vm5206, 0, %v5205
        %v5208 = vsub.s32 32, %v5207
        %v5209 = vshll.u32 %v5200, %v5207
        %v5210 = vshrl.u32 %v5192, %v5208
        %v5211 = vor.u32 %v5209, %v5210
        %v5212 = vsub.s32 4294967266, %v5207
        %v5213 = vadd.s32 %v5212, 127
        %v5214 = vshll.u32 %v5213, 23
        %v5215 = vor.u32 4788187, %v5214
        %v5216 = vand.u32 2147483647, %v5215
        %v5218 = vcvt.s32.f32 %v5211
        %v5219 = vmul.f32 %v5218, %v5216
        %v5220 = vxor.u32 %v5219, 2147483648
        %v5221 = vsel %vm5138, %v5220, %v5219
        %v5222 = vsub.s32 4, %v5198
        %v5223 = vsel %vm5138, %v5222, %v5198
        %v5224 = vsel %vm5137, %v5132, %v5221
        %v5225 = vsel %vm5137, 0, %v5223
        %v5226 = vcosq.f32.pop %v5224
        %v5227 = vsinq.f32.pop %v5224
        %vm5228 = vweird.f32 %v5132
        %v5229 = vadd.s32 %v5225, 3
        %v5230 = vand.u32 %v5229, 3
        %vm5231 = vcmp.lt.s32.totalorder %v5230, 2
        %vm5232 = vcmp.eq.s32.totalorder %v5230, 0
        %v5233 = vxor.u32 %v5227, 2147483648
        %v5234 = vsel %vm5232, %v5226, %v5233
        %vm5235 = vcmp.eq.s32.totalorder %v5230, 2
        %v5236 = vxor.u32 %v5226, 2147483648
        %v5237 = vsel %vm5235, %v5236, %v5227
        %v5238 = vsel %vm5231, %v5234, %v5237
        %v5239 = vsel %vm5228, nan, %v5238
        %v5240 = vand.u32 2147483647, %v5133
        %vm5241 = vcmp.le.f32.partialorder %v5240, 0.7853982
        %vm5242 = vcmp.lt.s32.totalorder %v5133, 0
        %v5243 = vand.u32 %v5133, 2139095040
        %v5244 = vshrl.u32 %v5243, 23
        %v5245 = vsub.s32 %v5244, 127
        %v5246 = vand.u32 2147483647, %v5133
        %v5247 = vand.u32 %v5246, 8388607
        %v5248 = vor.u32 %v5247, 8388608
        %v5249 = vsub.s32 0, %v5248
        %v5250 = vadd.s32 %v5245, 1
        %vm5251 = vcmp.gt.s32.totalorder %v5250, 0
        %v5252 = vsel %vm5251, %v5250, 0
        %v5253 = vshrl.u32 %v5252, 5
        %v5254 = vand.u32 %v5252, 31
        %v5255 = vsub.s32 32, %v5254
        %v5256 = vshrl.u32 683565275, %v5255
        %v5257 = vshll.u32 683565275, %v5254
        %v5258 = vshrl.u32 2475754826, %v5255
        %v5259 = vor.u32 %v5257, %v5258
        %v5260 = vshll.u32 2475754826, %v5254
        %v5261 = vshrl.u32 2131351028, %v5255
        %v5262 = vor.u32 %v5260, %v5261
        %v5263 = vshll.u32 2131351028, %v5254
        %v5264 = vshrl.u32 2102212464, %v5255
        %v5265 = vor.u32 %v5263, %v5264
        %v5266 = vshll.u32 2102212464, %v5254
        %v5267 = vshrl.u32 920167782, %v5255
        %v5268 = vor.u32 %v5266, %v5267
        %v5269 = vshll.u32 920167782, %v5254
        %v5270 = vshrl.u32 1326507024, %v5255
        %v5271 = vor.u32 %v5269, %v5270
        %vm5272 = vcmp.lt.s32.totalorder %v5253, 1
        %vm5273 = vcmp.lt.s32.totalorder %v5253, 2
        %vm5274 = vcmp.lt.s32.totalorder %v5253, 3
        %vm5275 = vcmp.lt.s32.totalorder %v5253, 4
        %v5276 = vsel %vm5272, %v5256, %v5259
        %v5277 = vsel %vm5275, %v5265, 2102212464
        %v5278 = vsel %vm5274, %v5262, %v5277
        %v5279 = vsel %vm5273, %v5276, %v5278
        %v5280 = vsel %vm5272, %v5259, %v5262
        %v5281 = vsel %vm5275, %v5268, 920167782
        %v5282 = vsel %vm5274, %v5265, %v5281
        %v5283 = vsel %vm5273, %v5280, %v5282
        %v5284 = vsel %vm5272, %v5262, %v5265
        %v5285 = vsel %vm5275, %v5271, 1326507024
        %v5286 = vsel %vm5274, %v5268, %v5285
        %v5287 = vsel %vm5273, %v5284, %v5286
        %v5288 = vshll.u32 %v5248, 8
        %v5289 = vmul.u32.u64.compose %v5288, %v5287
        %v5290 = vextract.low.u32 %v5289
        %v5291 = vextract.high.u32 %v5289
        %v5292 = vmul.u32.u64.compose %v5288, %v5283
        %v5293 = vextract.low.u32 %v5292
        %v5294 = vextract.high.u32 %v5292
        %v5295 = vmul.u32 %v5288, %v5279
        %v5296 = vadd.s32 %v5291, %v5293
        %vm5297 = vc.u32 %v5291, %v5293
        %v5298 = vadd.s32 %v5294, 1
        %v5299 = vsel %vm5297, %v5298, %v5294
        %v5300 = vadd.s32 %v5295, %v5299
        %v5301 = vadd.s32 %v5300, 536870912
        %v5302 = vshrl.u32 %v5301, 30
        %v5303 = vshll.u32 %v5302, 30
        %v5304 = vsub.s32 %v5300, %v5303
        %vm5305 = vcmp.lt.s32.totalorder %v5304, 0
        %v5306 = vsub.s32 0, %v5304
        %v5307 = vsel %vm5305, %v5306, %v5304
        %v5308 = vclz %v5307
        %v5309 = vsub.s32 %v5308, 2
        %vm5310 = vcmp.gt.s32.totalorder 0, %v5309
        %v5311 = vsel %vm5310, 0, %v5309
        %v5312 = vsub.s32 32, %v5311
        %v5313 = vshll.u32 %v5304, %v5311
        %v5314 = vshrl.u32 %v5296, %v5312
        %v5315 = vor.u32 %v5313, %v5314
        %v5316 = vsub.s32 4294967266, %v5311
        %v5317 = vadd.s32 %v5316, 127
        %v5318 = vshll.u32 %v5317, 23
        %v5319 = vor.u32 4788187, %v5318
        %v5320 = vand.u32 2147483647, %v5319
        %v5322 = vcvt.s32.f32 %v5315
        %v5323 = vmul.f32 %v5322, %v5320
        %v5324 = vxor.u32 %v5323, 2147483648
        %v5325 = vsel %vm5242, %v5324, %v5323
        %v5326 = vsub.s32 4, %v5302
        %v5327 = vsel %vm5242, %v5326, %v5302
        %v5328 = vsel %vm5241, %v5133, %v5325
        %v5329 = vsel %vm5241, 0, %v5327
        %v5330 = vcosq.f32.pop %v5328
        %v5331 = vsinq.f32.pop %v5328
        %vm5332 = vweird.f32 %v5133
        %v5333 = vadd.s32 %v5329, 3
        %v5334 = vand.u32 %v5333, 3
        %vm5335 = vcmp.lt.s32.totalorder %v5334, 2
        %vm5336 = vcmp.eq.s32.totalorder %v5334, 0
        %v5337 = vxor.u32 %v5331, 2147483648
        %v5338 = vsel %vm5336, %v5330, %v5337
        %vm5339 = vcmp.eq.s32.totalorder %v5334, 2
        %v5340 = vxor.u32 %v5330, 2147483648
        %v5341 = vsel %vm5339, %v5340, %v5331
        %v5342 = vsel %vm5335, %v5338, %v5341
        %v5343 = vsel %vm5332, nan, %v5342
        %v5344 = vrcp.pop %v5132
        %v5345 = vrcp.pop %v5133
        %v5346 = vmul.f32 %v5132, %v5344
        %v5347 = vmul.f32 %v5133, %v5345
        %v5348 = vsub.f32 2.0, %v5346
        %v5349 = vsub.f32 2.0, %v5347
        %v5350 = vmul.f32 %v5344, %v5348
        %v5351 = vmul.f32 %v5345, %v5349
        %vm5352 = vcmp.lt.f32.partialorder %v5134, 1e-06
        %vm5353 = vcmp.lt.f32.partialorder %v5135, 1e-06
        %v5354 = vmul.f32 %v5134, 0.16666667
        %v5355 = vmul.f32 %v5135, 0.16666667
        %v5356 = vsub.f32 1.0, %v5354
        %v5357 = vsub.f32 1.0, %v5355
        %v5358 = vmul.f32 %v5239, %v5350
        %v5359 = vmul.f32 %v5343, %v5351
        %v5360 = vsel %vm5352, %v5356, %v5358
        %v5361 = vsel %vm5353, %v5357, %v5359
        %v5362 = vmul.f32 %v5118, %v5360
        %v5363 = vmul.f32 %v5119, %v5361
        %5364 = vset.pattern.permute.xlu0 20
        %5365 = vperm.xlu0 %5364, %v288
        %v5366 = vpop.permute.xlu0 %5365
        %5368 = vset.pattern.permute.xlu0 20
        %5369 = vperm.xlu0 %5368, %v289
        %v5370 = vpop.permute.xlu0 %5369
        %v5372 = vlaneseq
        %v5373 = vshrl.u32 %v5372, 7
        %v5374 = vsub.s32 4, %v5373
        %v5375 = vrot.slane %v296, %v5374
        %v5376 = vsub.f32 %v5366, %v5375
        %v5377 = vsub.f32 %v5370, %v5375
        %v5378 = vmul.f32 %v5376, %v5376
        %v5379 = vmul.f32 %v5377, %v5377
        %v5380 = vand.u32 2147483647, %v5376
        %vm5381 = vcmp.le.f32.partialorder %v5380, 0.7853982
        %vm5382 = vcmp.lt.s32.totalorder %v5376, 0
        %v5383 = vand.u32 %v5376, 2139095040
        %v5384 = vshrl.u32 %v5383, 23
        %v5385 = vsub.s32 %v5384, 127
        %v5386 = vand.u32 2147483647, %v5376
        %v5387 = vand.u32 %v5386, 8388607
        %v5388 = vor.u32 %v5387, 8388608
        %v5389 = vsub.s32 0, %v5388
        %v5390 = vadd.s32 %v5385, 1
        %vm5391 = vcmp.gt.s32.totalorder %v5390, 0
        %v5392 = vsel %vm5391, %v5390, 0
        %v5393 = vshrl.u32 %v5392, 5
        %v5394 = vand.u32 %v5392, 31
        %v5395 = vsub.s32 32, %v5394
        %v5396 = vshrl.u32 683565275, %v5395
        %v5397 = vshll.u32 683565275, %v5394
        %v5398 = vshrl.u32 2475754826, %v5395
        %v5399 = vor.u32 %v5397, %v5398
        %v5400 = vshll.u32 2475754826, %v5394
        %v5401 = vshrl.u32 2131351028, %v5395
        %v5402 = vor.u32 %v5400, %v5401
        %v5403 = vshll.u32 2131351028, %v5394
        %v5404 = vshrl.u32 2102212464, %v5395
        %v5405 = vor.u32 %v5403, %v5404
        %v5406 = vshll.u32 2102212464, %v5394
        %v5407 = vshrl.u32 920167782, %v5395
        %v5408 = vor.u32 %v5406, %v5407
        %v5409 = vshll.u32 920167782, %v5394
        %v5410 = vshrl.u32 1326507024, %v5395
        %v5411 = vor.u32 %v5409, %v5410
        %vm5412 = vcmp.lt.s32.totalorder %v5393, 1
        %vm5413 = vcmp.lt.s32.totalorder %v5393, 2
        %vm5414 = vcmp.lt.s32.totalorder %v5393, 3
        %vm5415 = vcmp.lt.s32.totalorder %v5393, 4
        %v5416 = vsel %vm5412, %v5396, %v5399
        %v5417 = vsel %vm5415, %v5405, 2102212464
        %v5418 = vsel %vm5414, %v5402, %v5417
        %v5419 = vsel %vm5413, %v5416, %v5418
        %v5420 = vsel %vm5412, %v5399, %v5402
        %v5421 = vsel %vm5415, %v5408, 920167782
        %v5422 = vsel %vm5414, %v5405, %v5421
        %v5423 = vsel %vm5413, %v5420, %v5422
        %v5424 = vsel %vm5412, %v5402, %v5405
        %v5425 = vsel %vm5415, %v5411, 1326507024
        %v5426 = vsel %vm5414, %v5408, %v5425
        %v5427 = vsel %vm5413, %v5424, %v5426
        %v5428 = vshll.u32 %v5388, 8
        %v5429 = vmul.u32.u64.compose %v5428, %v5427
        %v5430 = vextract.low.u32 %v5429
        %v5431 = vextract.high.u32 %v5429
        %v5432 = vmul.u32.u64.compose %v5428, %v5423
        %v5433 = vextract.low.u32 %v5432
        %v5434 = vextract.high.u32 %v5432
        %v5435 = vmul.u32 %v5428, %v5419
        %v5436 = vadd.s32 %v5431, %v5433
        %vm5437 = vc.u32 %v5431, %v5433
        %v5438 = vadd.s32 %v5434, 1
        %v5439 = vsel %vm5437, %v5438, %v5434
        %v5440 = vadd.s32 %v5435, %v5439
        %v5441 = vadd.s32 %v5440, 536870912
        %v5442 = vshrl.u32 %v5441, 30
        %v5443 = vshll.u32 %v5442, 30
        %v5444 = vsub.s32 %v5440, %v5443
        %vm5445 = vcmp.lt.s32.totalorder %v5444, 0
        %v5446 = vsub.s32 0, %v5444
        %v5447 = vsel %vm5445, %v5446, %v5444
        %v5448 = vclz %v5447
        %v5449 = vsub.s32 %v5448, 2
        %vm5450 = vcmp.gt.s32.totalorder 0, %v5449
        %v5451 = vsel %vm5450, 0, %v5449
        %v5452 = vsub.s32 32, %v5451
        %v5453 = vshll.u32 %v5444, %v5451
        %v5454 = vshrl.u32 %v5436, %v5452
        %v5455 = vor.u32 %v5453, %v5454
        %v5456 = vsub.s32 4294967266, %v5451
        %v5457 = vadd.s32 %v5456, 127
        %v5458 = vshll.u32 %v5457, 23
        %v5459 = vor.u32 4788187, %v5458
        %v5460 = vand.u32 2147483647, %v5459
        %v5462 = vcvt.s32.f32 %v5455
        %v5463 = vmul.f32 %v5462, %v5460
        %v5464 = vxor.u32 %v5463, 2147483648
        %v5465 = vsel %vm5382, %v5464, %v5463
        %v5466 = vsub.s32 4, %v5442
        %v5467 = vsel %vm5382, %v5466, %v5442
        %v5468 = vsel %vm5381, %v5376, %v5465
        %v5469 = vsel %vm5381, 0, %v5467
        %v5470 = vcosq.f32.pop %v5468
        %v5471 = vsinq.f32.pop %v5468
        %vm5472 = vweird.f32 %v5376
        %v5473 = vadd.s32 %v5469, 3
        %v5474 = vand.u32 %v5473, 3
        %vm5475 = vcmp.lt.s32.totalorder %v5474, 2
        %vm5476 = vcmp.eq.s32.totalorder %v5474, 0
        %v5477 = vxor.u32 %v5471, 2147483648
        %v5478 = vsel %vm5476, %v5470, %v5477
        %vm5479 = vcmp.eq.s32.totalorder %v5474, 2
        %v5480 = vxor.u32 %v5470, 2147483648
        %v5481 = vsel %vm5479, %v5480, %v5471
        %v5482 = vsel %vm5475, %v5478, %v5481
        %v5483 = vsel %vm5472, nan, %v5482
        %v5484 = vand.u32 2147483647, %v5377
        %vm5485 = vcmp.le.f32.partialorder %v5484, 0.7853982
        %vm5486 = vcmp.lt.s32.totalorder %v5377, 0
        %v5487 = vand.u32 %v5377, 2139095040
        %v5488 = vshrl.u32 %v5487, 23
        %v5489 = vsub.s32 %v5488, 127
        %v5490 = vand.u32 2147483647, %v5377
        %v5491 = vand.u32 %v5490, 8388607
        %v5492 = vor.u32 %v5491, 8388608
        %v5493 = vsub.s32 0, %v5492
        %v5494 = vadd.s32 %v5489, 1
        %vm5495 = vcmp.gt.s32.totalorder %v5494, 0
        %v5496 = vsel %vm5495, %v5494, 0
        %v5497 = vshrl.u32 %v5496, 5
        %v5498 = vand.u32 %v5496, 31
        %v5499 = vsub.s32 32, %v5498
        %v5500 = vshrl.u32 683565275, %v5499
        %v5501 = vshll.u32 683565275, %v5498
        %v5502 = vshrl.u32 2475754826, %v5499
        %v5503 = vor.u32 %v5501, %v5502
        %v5504 = vshll.u32 2475754826, %v5498
        %v5505 = vshrl.u32 2131351028, %v5499
        %v5506 = vor.u32 %v5504, %v5505
        %v5507 = vshll.u32 2131351028, %v5498
        %v5508 = vshrl.u32 2102212464, %v5499
        %v5509 = vor.u32 %v5507, %v5508
        %v5510 = vshll.u32 2102212464, %v5498
        %v5511 = vshrl.u32 920167782, %v5499
        %v5512 = vor.u32 %v5510, %v5511
        %v5513 = vshll.u32 920167782, %v5498
        %v5514 = vshrl.u32 1326507024, %v5499
        %v5515 = vor.u32 %v5513, %v5514
        %vm5516 = vcmp.lt.s32.totalorder %v5497, 1
        %vm5517 = vcmp.lt.s32.totalorder %v5497, 2
        %vm5518 = vcmp.lt.s32.totalorder %v5497, 3
        %vm5519 = vcmp.lt.s32.totalorder %v5497, 4
        %v5520 = vsel %vm5516, %v5500, %v5503
        %v5521 = vsel %vm5519, %v5509, 2102212464
        %v5522 = vsel %vm5518, %v5506, %v5521
        %v5523 = vsel %vm5517, %v5520, %v5522
        %v5524 = vsel %vm5516, %v5503, %v5506
        %v5525 = vsel %vm5519, %v5512, 920167782
        %v5526 = vsel %vm5518, %v5509, %v5525
        %v5527 = vsel %vm5517, %v5524, %v5526
        %v5528 = vsel %vm5516, %v5506, %v5509
        %v5529 = vsel %vm5519, %v5515, 1326507024
        %v5530 = vsel %vm5518, %v5512, %v5529
        %v5531 = vsel %vm5517, %v5528, %v5530
        %v5532 = vshll.u32 %v5492, 8
        %v5533 = vmul.u32.u64.compose %v5532, %v5531
        %v5534 = vextract.low.u32 %v5533
        %v5535 = vextract.high.u32 %v5533
        %v5536 = vmul.u32.u64.compose %v5532, %v5527
        %v5537 = vextract.low.u32 %v5536
        %v5538 = vextract.high.u32 %v5536
        %v5539 = vmul.u32 %v5532, %v5523
        %v5540 = vadd.s32 %v5535, %v5537
        %vm5541 = vc.u32 %v5535, %v5537
        %v5542 = vadd.s32 %v5538, 1
        %v5543 = vsel %vm5541, %v5542, %v5538
        %v5544 = vadd.s32 %v5539, %v5543
        %v5545 = vadd.s32 %v5544, 536870912
        %v5546 = vshrl.u32 %v5545, 30
        %v5547 = vshll.u32 %v5546, 30
        %v5548 = vsub.s32 %v5544, %v5547
        %vm5549 = vcmp.lt.s32.totalorder %v5548, 0
        %v5550 = vsub.s32 0, %v5548
        %v5551 = vsel %vm5549, %v5550, %v5548
        %v5552 = vclz %v5551
        %v5553 = vsub.s32 %v5552, 2
        %vm5554 = vcmp.gt.s32.totalorder 0, %v5553
        %v5555 = vsel %vm5554, 0, %v5553
        %v5556 = vsub.s32 32, %v5555
        %v5557 = vshll.u32 %v5548, %v5555
        %v5558 = vshrl.u32 %v5540, %v5556
        %v5559 = vor.u32 %v5557, %v5558
        %v5560 = vsub.s32 4294967266, %v5555
        %v5561 = vadd.s32 %v5560, 127
        %v5562 = vshll.u32 %v5561, 23
        %v5563 = vor.u32 4788187, %v5562
        %v5564 = vand.u32 2147483647, %v5563
        %v5566 = vcvt.s32.f32 %v5559
        %v5567 = vmul.f32 %v5566, %v5564
        %v5568 = vxor.u32 %v5567, 2147483648
        %v5569 = vsel %vm5486, %v5568, %v5567
        %v5570 = vsub.s32 4, %v5546
        %v5571 = vsel %vm5486, %v5570, %v5546
        %v5572 = vsel %vm5485, %v5377, %v5569
        %v5573 = vsel %vm5485, 0, %v5571
        %v5574 = vcosq.f32.pop %v5572
        %v5575 = vsinq.f32.pop %v5572
        %vm5576 = vweird.f32 %v5377
        %v5577 = vadd.s32 %v5573, 3
        %v5578 = vand.u32 %v5577, 3
        %vm5579 = vcmp.lt.s32.totalorder %v5578, 2
        %vm5580 = vcmp.eq.s32.totalorder %v5578, 0
        %v5581 = vxor.u32 %v5575, 2147483648
        %v5582 = vsel %vm5580, %v5574, %v5581
        %vm5583 = vcmp.eq.s32.totalorder %v5578, 2
        %v5584 = vxor.u32 %v5574, 2147483648
        %v5585 = vsel %vm5583, %v5584, %v5575
        %v5586 = vsel %vm5579, %v5582, %v5585
        %v5587 = vsel %vm5576, nan, %v5586
        %v5588 = vrcp.pop %v5376
        %v5589 = vrcp.pop %v5377
        %v5590 = vmul.f32 %v5376, %v5588
        %v5591 = vmul.f32 %v5377, %v5589
        %v5592 = vsub.f32 2.0, %v5590
        %v5593 = vsub.f32 2.0, %v5591
        %v5594 = vmul.f32 %v5588, %v5592
        %v5595 = vmul.f32 %v5589, %v5593
        %vm5596 = vcmp.lt.f32.partialorder %v5378, 1e-06
        %vm5597 = vcmp.lt.f32.partialorder %v5379, 1e-06
        %v5598 = vmul.f32 %v5378, 0.16666667
        %v5599 = vmul.f32 %v5379, 0.16666667
        %v5600 = vsub.f32 1.0, %v5598
        %v5601 = vsub.f32 1.0, %v5599
        %v5602 = vmul.f32 %v5483, %v5594
        %v5603 = vmul.f32 %v5587, %v5595
        %v5604 = vsel %vm5596, %v5600, %v5602
        %v5605 = vsel %vm5597, %v5601, %v5603
        %v5606 = vmul.f32 %v5362, %v5604
        %v5607 = vmul.f32 %v5363, %v5605
        %5608 = vset.pattern.permute.xlu0 21
        %5609 = vperm.xlu0 %5608, %v288
        %v5610 = vpop.permute.xlu0 %5609
        %5612 = vset.pattern.permute.xlu0 21
        %5613 = vperm.xlu0 %5612, %v289
        %v5614 = vpop.permute.xlu0 %5613
        %v5616 = vlaneseq
        %v5617 = vshrl.u32 %v5616, 7
        %v5618 = vsub.s32 5, %v5617
        %v5619 = vrot.slane %v296, %v5618
        %v5620 = vsub.f32 %v5610, %v5619
        %v5621 = vsub.f32 %v5614, %v5619
        %v5622 = vmul.f32 %v5620, %v5620
        %v5623 = vmul.f32 %v5621, %v5621
        %v5624 = vand.u32 2147483647, %v5620
        %vm5625 = vcmp.le.f32.partialorder %v5624, 0.7853982
        %vm5626 = vcmp.lt.s32.totalorder %v5620, 0
        %v5627 = vand.u32 %v5620, 2139095040
        %v5628 = vshrl.u32 %v5627, 23
        %v5629 = vsub.s32 %v5628, 127
        %v5630 = vand.u32 2147483647, %v5620
        %v5631 = vand.u32 %v5630, 8388607
        %v5632 = vor.u32 %v5631, 8388608
        %v5633 = vsub.s32 0, %v5632
        %v5634 = vadd.s32 %v5629, 1
        %vm5635 = vcmp.gt.s32.totalorder %v5634, 0
        %v5636 = vsel %vm5635, %v5634, 0
        %v5637 = vshrl.u32 %v5636, 5
        %v5638 = vand.u32 %v5636, 31
        %v5639 = vsub.s32 32, %v5638
        %v5640 = vshrl.u32 683565275, %v5639
        %v5641 = vshll.u32 683565275, %v5638
        %v5642 = vshrl.u32 2475754826, %v5639
        %v5643 = vor.u32 %v5641, %v5642
        %v5644 = vshll.u32 2475754826, %v5638
        %v5645 = vshrl.u32 2131351028, %v5639
        %v5646 = vor.u32 %v5644, %v5645
        %v5647 = vshll.u32 2131351028, %v5638
        %v5648 = vshrl.u32 2102212464, %v5639
        %v5649 = vor.u32 %v5647, %v5648
        %v5650 = vshll.u32 2102212464, %v5638
        %v5651 = vshrl.u32 920167782, %v5639
        %v5652 = vor.u32 %v5650, %v5651
        %v5653 = vshll.u32 920167782, %v5638
        %v5654 = vshrl.u32 1326507024, %v5639
        %v5655 = vor.u32 %v5653, %v5654
        %vm5656 = vcmp.lt.s32.totalorder %v5637, 1
        %vm5657 = vcmp.lt.s32.totalorder %v5637, 2
        %vm5658 = vcmp.lt.s32.totalorder %v5637, 3
        %vm5659 = vcmp.lt.s32.totalorder %v5637, 4
        %v5660 = vsel %vm5656, %v5640, %v5643
        %v5661 = vsel %vm5659, %v5649, 2102212464
        %v5662 = vsel %vm5658, %v5646, %v5661
        %v5663 = vsel %vm5657, %v5660, %v5662
        %v5664 = vsel %vm5656, %v5643, %v5646
        %v5665 = vsel %vm5659, %v5652, 920167782
        %v5666 = vsel %vm5658, %v5649, %v5665
        %v5667 = vsel %vm5657, %v5664, %v5666
        %v5668 = vsel %vm5656, %v5646, %v5649
        %v5669 = vsel %vm5659, %v5655, 1326507024
        %v5670 = vsel %vm5658, %v5652, %v5669
        %v5671 = vsel %vm5657, %v5668, %v5670
        %v5672 = vshll.u32 %v5632, 8
        %v5673 = vmul.u32.u64.compose %v5672, %v5671
        %v5674 = vextract.low.u32 %v5673
        %v5675 = vextract.high.u32 %v5673
        %v5676 = vmul.u32.u64.compose %v5672, %v5667
        %v5677 = vextract.low.u32 %v5676
        %v5678 = vextract.high.u32 %v5676
        %v5679 = vmul.u32 %v5672, %v5663
        %v5680 = vadd.s32 %v5675, %v5677
        %vm5681 = vc.u32 %v5675, %v5677
        %v5682 = vadd.s32 %v5678, 1
        %v5683 = vsel %vm5681, %v5682, %v5678
        %v5684 = vadd.s32 %v5679, %v5683
        %v5685 = vadd.s32 %v5684, 536870912
        %v5686 = vshrl.u32 %v5685, 30
        %v5687 = vshll.u32 %v5686, 30
        %v5688 = vsub.s32 %v5684, %v5687
        %vm5689 = vcmp.lt.s32.totalorder %v5688, 0
        %v5690 = vsub.s32 0, %v5688
        %v5691 = vsel %vm5689, %v5690, %v5688
        %v5692 = vclz %v5691
        %v5693 = vsub.s32 %v5692, 2
        %vm5694 = vcmp.gt.s32.totalorder 0, %v5693
        %v5695 = vsel %vm5694, 0, %v5693
        %v5696 = vsub.s32 32, %v5695
        %v5697 = vshll.u32 %v5688, %v5695
        %v5698 = vshrl.u32 %v5680, %v5696
        %v5699 = vor.u32 %v5697, %v5698
        %v5700 = vsub.s32 4294967266, %v5695
        %v5701 = vadd.s32 %v5700, 127
        %v5702 = vshll.u32 %v5701, 23
        %v5703 = vor.u32 4788187, %v5702
        %v5704 = vand.u32 2147483647, %v5703
        %v5706 = vcvt.s32.f32 %v5699
        %v5707 = vmul.f32 %v5706, %v5704
        %v5708 = vxor.u32 %v5707, 2147483648
        %v5709 = vsel %vm5626, %v5708, %v5707
        %v5710 = vsub.s32 4, %v5686
        %v5711 = vsel %vm5626, %v5710, %v5686
        %v5712 = vsel %vm5625, %v5620, %v5709
        %v5713 = vsel %vm5625, 0, %v5711
        %v5714 = vcosq.f32.pop %v5712
        %v5715 = vsinq.f32.pop %v5712
        %vm5716 = vweird.f32 %v5620
        %v5717 = vadd.s32 %v5713, 3
        %v5718 = vand.u32 %v5717, 3
        %vm5719 = vcmp.lt.s32.totalorder %v5718, 2
        %vm5720 = vcmp.eq.s32.totalorder %v5718, 0
        %v5721 = vxor.u32 %v5715, 2147483648
        %v5722 = vsel %vm5720, %v5714, %v5721
        %vm5723 = vcmp.eq.s32.totalorder %v5718, 2
        %v5724 = vxor.u32 %v5714, 2147483648
        %v5725 = vsel %vm5723, %v5724, %v5715
        %v5726 = vsel %vm5719, %v5722, %v5725
        %v5727 = vsel %vm5716, nan, %v5726
        %v5728 = vand.u32 2147483647, %v5621
        %vm5729 = vcmp.le.f32.partialorder %v5728, 0.7853982
        %vm5730 = vcmp.lt.s32.totalorder %v5621, 0
        %v5731 = vand.u32 %v5621, 2139095040
        %v5732 = vshrl.u32 %v5731, 23
        %v5733 = vsub.s32 %v5732, 127
        %v5734 = vand.u32 2147483647, %v5621
        %v5735 = vand.u32 %v5734, 8388607
        %v5736 = vor.u32 %v5735, 8388608
        %v5737 = vsub.s32 0, %v5736
        %v5738 = vadd.s32 %v5733, 1
        %vm5739 = vcmp.gt.s32.totalorder %v5738, 0
        %v5740 = vsel %vm5739, %v5738, 0
        %v5741 = vshrl.u32 %v5740, 5
        %v5742 = vand.u32 %v5740, 31
        %v5743 = vsub.s32 32, %v5742
        %v5744 = vshrl.u32 683565275, %v5743
        %v5745 = vshll.u32 683565275, %v5742
        %v5746 = vshrl.u32 2475754826, %v5743
        %v5747 = vor.u32 %v5745, %v5746
        %v5748 = vshll.u32 2475754826, %v5742
        %v5749 = vshrl.u32 2131351028, %v5743
        %v5750 = vor.u32 %v5748, %v5749
        %v5751 = vshll.u32 2131351028, %v5742
        %v5752 = vshrl.u32 2102212464, %v5743
        %v5753 = vor.u32 %v5751, %v5752
        %v5754 = vshll.u32 2102212464, %v5742
        %v5755 = vshrl.u32 920167782, %v5743
        %v5756 = vor.u32 %v5754, %v5755
        %v5757 = vshll.u32 920167782, %v5742
        %v5758 = vshrl.u32 1326507024, %v5743
        %v5759 = vor.u32 %v5757, %v5758
        %vm5760 = vcmp.lt.s32.totalorder %v5741, 1
        %vm5761 = vcmp.lt.s32.totalorder %v5741, 2
        %vm5762 = vcmp.lt.s32.totalorder %v5741, 3
        %vm5763 = vcmp.lt.s32.totalorder %v5741, 4
        %v5764 = vsel %vm5760, %v5744, %v5747
        %v5765 = vsel %vm5763, %v5753, 2102212464
        %v5766 = vsel %vm5762, %v5750, %v5765
        %v5767 = vsel %vm5761, %v5764, %v5766
        %v5768 = vsel %vm5760, %v5747, %v5750
        %v5769 = vsel %vm5763, %v5756, 920167782
        %v5770 = vsel %vm5762, %v5753, %v5769
        %v5771 = vsel %vm5761, %v5768, %v5770
        %v5772 = vsel %vm5760, %v5750, %v5753
        %v5773 = vsel %vm5763, %v5759, 1326507024
        %v5774 = vsel %vm5762, %v5756, %v5773
        %v5775 = vsel %vm5761, %v5772, %v5774
        %v5776 = vshll.u32 %v5736, 8
        %v5777 = vmul.u32.u64.compose %v5776, %v5775
        %v5778 = vextract.low.u32 %v5777
        %v5779 = vextract.high.u32 %v5777
        %v5780 = vmul.u32.u64.compose %v5776, %v5771
        %v5781 = vextract.low.u32 %v5780
        %v5782 = vextract.high.u32 %v5780
        %v5783 = vmul.u32 %v5776, %v5767
        %v5784 = vadd.s32 %v5779, %v5781
        %vm5785 = vc.u32 %v5779, %v5781
        %v5786 = vadd.s32 %v5782, 1
        %v5787 = vsel %vm5785, %v5786, %v5782
        %v5788 = vadd.s32 %v5783, %v5787
        %v5789 = vadd.s32 %v5788, 536870912
        %v5790 = vshrl.u32 %v5789, 30
        %v5791 = vshll.u32 %v5790, 30
        %v5792 = vsub.s32 %v5788, %v5791
        %vm5793 = vcmp.lt.s32.totalorder %v5792, 0
        %v5794 = vsub.s32 0, %v5792
        %v5795 = vsel %vm5793, %v5794, %v5792
        %v5796 = vclz %v5795
        %v5797 = vsub.s32 %v5796, 2
        %vm5798 = vcmp.gt.s32.totalorder 0, %v5797
        %v5799 = vsel %vm5798, 0, %v5797
        %v5800 = vsub.s32 32, %v5799
        %v5801 = vshll.u32 %v5792, %v5799
        %v5802 = vshrl.u32 %v5784, %v5800
        %v5803 = vor.u32 %v5801, %v5802
        %v5804 = vsub.s32 4294967266, %v5799
        %v5805 = vadd.s32 %v5804, 127
        %v5806 = vshll.u32 %v5805, 23
        %v5807 = vor.u32 4788187, %v5806
        %v5808 = vand.u32 2147483647, %v5807
        %v5810 = vcvt.s32.f32 %v5803
        %v5811 = vmul.f32 %v5810, %v5808
        %v5812 = vxor.u32 %v5811, 2147483648
        %v5813 = vsel %vm5730, %v5812, %v5811
        %v5814 = vsub.s32 4, %v5790
        %v5815 = vsel %vm5730, %v5814, %v5790
        %v5816 = vsel %vm5729, %v5621, %v5813
        %v5817 = vsel %vm5729, 0, %v5815
        %v5818 = vcosq.f32.pop %v5816
        %v5819 = vsinq.f32.pop %v5816
        %vm5820 = vweird.f32 %v5621
        %v5821 = vadd.s32 %v5817, 3
        %v5822 = vand.u32 %v5821, 3
        %vm5823 = vcmp.lt.s32.totalorder %v5822, 2
        %vm5824 = vcmp.eq.s32.totalorder %v5822, 0
        %v5825 = vxor.u32 %v5819, 2147483648
        %v5826 = vsel %vm5824, %v5818, %v5825
        %vm5827 = vcmp.eq.s32.totalorder %v5822, 2
        %v5828 = vxor.u32 %v5818, 2147483648
        %v5829 = vsel %vm5827, %v5828, %v5819
        %v5830 = vsel %vm5823, %v5826, %v5829
        %v5831 = vsel %vm5820, nan, %v5830
        %v5832 = vrcp.pop %v5620
        %v5833 = vrcp.pop %v5621
        %v5834 = vmul.f32 %v5620, %v5832
        %v5835 = vmul.f32 %v5621, %v5833
        %v5836 = vsub.f32 2.0, %v5834
        %v5837 = vsub.f32 2.0, %v5835
        %v5838 = vmul.f32 %v5832, %v5836
        %v5839 = vmul.f32 %v5833, %v5837
        %vm5840 = vcmp.lt.f32.partialorder %v5622, 1e-06
        %vm5841 = vcmp.lt.f32.partialorder %v5623, 1e-06
        %v5842 = vmul.f32 %v5622, 0.16666667
        %v5843 = vmul.f32 %v5623, 0.16666667
        %v5844 = vsub.f32 1.0, %v5842
        %v5845 = vsub.f32 1.0, %v5843
        %v5846 = vmul.f32 %v5727, %v5838
        %v5847 = vmul.f32 %v5831, %v5839
        %v5848 = vsel %vm5840, %v5844, %v5846
        %v5849 = vsel %vm5841, %v5845, %v5847
        %v5850 = vmul.f32 %v5606, %v5848
        %v5851 = vmul.f32 %v5607, %v5849
        %5852 = vset.pattern.permute.xlu0 22
        %5853 = vperm.xlu0 %5852, %v288
        %v5854 = vpop.permute.xlu0 %5853
        %5856 = vset.pattern.permute.xlu0 22
        %5857 = vperm.xlu0 %5856, %v289
        %v5858 = vpop.permute.xlu0 %5857
        %v5860 = vlaneseq
        %v5861 = vshrl.u32 %v5860, 7
        %v5862 = vsub.s32 6, %v5861
        %v5863 = vrot.slane %v296, %v5862
        %v5864 = vsub.f32 %v5854, %v5863
        %v5865 = vsub.f32 %v5858, %v5863
        %v5866 = vmul.f32 %v5864, %v5864
        %v5867 = vmul.f32 %v5865, %v5865
        %v5868 = vand.u32 2147483647, %v5864
        %vm5869 = vcmp.le.f32.partialorder %v5868, 0.7853982
        %vm5870 = vcmp.lt.s32.totalorder %v5864, 0
        %v5871 = vand.u32 %v5864, 2139095040
        %v5872 = vshrl.u32 %v5871, 23
        %v5873 = vsub.s32 %v5872, 127
        %v5874 = vand.u32 2147483647, %v5864
        %v5875 = vand.u32 %v5874, 8388607
        %v5876 = vor.u32 %v5875, 8388608
        %v5877 = vsub.s32 0, %v5876
        %v5878 = vadd.s32 %v5873, 1
        %vm5879 = vcmp.gt.s32.totalorder %v5878, 0
        %v5880 = vsel %vm5879, %v5878, 0
        %v5881 = vshrl.u32 %v5880, 5
        %v5882 = vand.u32 %v5880, 31
        %v5883 = vsub.s32 32, %v5882
        %v5884 = vshrl.u32 683565275, %v5883
        %v5885 = vshll.u32 683565275, %v5882
        %v5886 = vshrl.u32 2475754826, %v5883
        %v5887 = vor.u32 %v5885, %v5886
        %v5888 = vshll.u32 2475754826, %v5882
        %v5889 = vshrl.u32 2131351028, %v5883
        %v5890 = vor.u32 %v5888, %v5889
        %v5891 = vshll.u32 2131351028, %v5882
        %v5892 = vshrl.u32 2102212464, %v5883
        %v5893 = vor.u32 %v5891, %v5892
        %v5894 = vshll.u32 2102212464, %v5882
        %v5895 = vshrl.u32 920167782, %v5883
        %v5896 = vor.u32 %v5894, %v5895
        %v5897 = vshll.u32 920167782, %v5882
        %v5898 = vshrl.u32 1326507024, %v5883
        %v5899 = vor.u32 %v5897, %v5898
        %vm5900 = vcmp.lt.s32.totalorder %v5881, 1
        %vm5901 = vcmp.lt.s32.totalorder %v5881, 2
        %vm5902 = vcmp.lt.s32.totalorder %v5881, 3
        %vm5903 = vcmp.lt.s32.totalorder %v5881, 4
        %v5904 = vsel %vm5900, %v5884, %v5887
        %v5905 = vsel %vm5903, %v5893, 2102212464
        %v5906 = vsel %vm5902, %v5890, %v5905
        %v5907 = vsel %vm5901, %v5904, %v5906
        %v5908 = vsel %vm5900, %v5887, %v5890
        %v5909 = vsel %vm5903, %v5896, 920167782
        %v5910 = vsel %vm5902, %v5893, %v5909
        %v5911 = vsel %vm5901, %v5908, %v5910
        %v5912 = vsel %vm5900, %v5890, %v5893
        %v5913 = vsel %vm5903, %v5899, 1326507024
        %v5914 = vsel %vm5902, %v5896, %v5913
        %v5915 = vsel %vm5901, %v5912, %v5914
        %v5916 = vshll.u32 %v5876, 8
        %v5917 = vmul.u32.u64.compose %v5916, %v5915
        %v5918 = vextract.low.u32 %v5917
        %v5919 = vextract.high.u32 %v5917
        %v5920 = vmul.u32.u64.compose %v5916, %v5911
        %v5921 = vextract.low.u32 %v5920
        %v5922 = vextract.high.u32 %v5920
        %v5923 = vmul.u32 %v5916, %v5907
        %v5924 = vadd.s32 %v5919, %v5921
        %vm5925 = vc.u32 %v5919, %v5921
        %v5926 = vadd.s32 %v5922, 1
        %v5927 = vsel %vm5925, %v5926, %v5922
        %v5928 = vadd.s32 %v5923, %v5927
        %v5929 = vadd.s32 %v5928, 536870912
        %v5930 = vshrl.u32 %v5929, 30
        %v5931 = vshll.u32 %v5930, 30
        %v5932 = vsub.s32 %v5928, %v5931
        %vm5933 = vcmp.lt.s32.totalorder %v5932, 0
        %v5934 = vsub.s32 0, %v5932
        %v5935 = vsel %vm5933, %v5934, %v5932
        %v5936 = vclz %v5935
        %v5937 = vsub.s32 %v5936, 2
        %vm5938 = vcmp.gt.s32.totalorder 0, %v5937
        %v5939 = vsel %vm5938, 0, %v5937
        %v5940 = vsub.s32 32, %v5939
        %v5941 = vshll.u32 %v5932, %v5939
        %v5942 = vshrl.u32 %v5924, %v5940
        %v5943 = vor.u32 %v5941, %v5942
        %v5944 = vsub.s32 4294967266, %v5939
        %v5945 = vadd.s32 %v5944, 127
        %v5946 = vshll.u32 %v5945, 23
        %v5947 = vor.u32 4788187, %v5946
        %v5948 = vand.u32 2147483647, %v5947
        %v5950 = vcvt.s32.f32 %v5943
        %v5951 = vmul.f32 %v5950, %v5948
        %v5952 = vxor.u32 %v5951, 2147483648
        %v5953 = vsel %vm5870, %v5952, %v5951
        %v5954 = vsub.s32 4, %v5930
        %v5955 = vsel %vm5870, %v5954, %v5930
        %v5956 = vsel %vm5869, %v5864, %v5953
        %v5957 = vsel %vm5869, 0, %v5955
        %v5958 = vcosq.f32.pop %v5956
        %v5959 = vsinq.f32.pop %v5956
        %vm5960 = vweird.f32 %v5864
        %v5961 = vadd.s32 %v5957, 3
        %v5962 = vand.u32 %v5961, 3
        %vm5963 = vcmp.lt.s32.totalorder %v5962, 2
        %vm5964 = vcmp.eq.s32.totalorder %v5962, 0
        %v5965 = vxor.u32 %v5959, 2147483648
        %v5966 = vsel %vm5964, %v5958, %v5965
        %vm5967 = vcmp.eq.s32.totalorder %v5962, 2
        %v5968 = vxor.u32 %v5958, 2147483648
        %v5969 = vsel %vm5967, %v5968, %v5959
        %v5970 = vsel %vm5963, %v5966, %v5969
        %v5971 = vsel %vm5960, nan, %v5970
        %v5972 = vand.u32 2147483647, %v5865
        %vm5973 = vcmp.le.f32.partialorder %v5972, 0.7853982
        %vm5974 = vcmp.lt.s32.totalorder %v5865, 0
        %v5975 = vand.u32 %v5865, 2139095040
        %v5976 = vshrl.u32 %v5975, 23
        %v5977 = vsub.s32 %v5976, 127
        %v5978 = vand.u32 2147483647, %v5865
        %v5979 = vand.u32 %v5978, 8388607
        %v5980 = vor.u32 %v5979, 8388608
        %v5981 = vsub.s32 0, %v5980
        %v5982 = vadd.s32 %v5977, 1
        %vm5983 = vcmp.gt.s32.totalorder %v5982, 0
        %v5984 = vsel %vm5983, %v5982, 0
        %v5985 = vshrl.u32 %v5984, 5
        %v5986 = vand.u32 %v5984, 31
        %v5987 = vsub.s32 32, %v5986
        %v5988 = vshrl.u32 683565275, %v5987
        %v5989 = vshll.u32 683565275, %v5986
        %v5990 = vshrl.u32 2475754826, %v5987
        %v5991 = vor.u32 %v5989, %v5990
        %v5992 = vshll.u32 2475754826, %v5986
        %v5993 = vshrl.u32 2131351028, %v5987
        %v5994 = vor.u32 %v5992, %v5993
        %v5995 = vshll.u32 2131351028, %v5986
        %v5996 = vshrl.u32 2102212464, %v5987
        %v5997 = vor.u32 %v5995, %v5996
        %v5998 = vshll.u32 2102212464, %v5986
        %v5999 = vshrl.u32 920167782, %v5987
        %v6000 = vor.u32 %v5998, %v5999
        %v6001 = vshll.u32 920167782, %v5986
        %v6002 = vshrl.u32 1326507024, %v5987
        %v6003 = vor.u32 %v6001, %v6002
        %vm6004 = vcmp.lt.s32.totalorder %v5985, 1
        %vm6005 = vcmp.lt.s32.totalorder %v5985, 2
        %vm6006 = vcmp.lt.s32.totalorder %v5985, 3
        %vm6007 = vcmp.lt.s32.totalorder %v5985, 4
        %v6008 = vsel %vm6004, %v5988, %v5991
        %v6009 = vsel %vm6007, %v5997, 2102212464
        %v6010 = vsel %vm6006, %v5994, %v6009
        %v6011 = vsel %vm6005, %v6008, %v6010
        %v6012 = vsel %vm6004, %v5991, %v5994
        %v6013 = vsel %vm6007, %v6000, 920167782
        %v6014 = vsel %vm6006, %v5997, %v6013
        %v6015 = vsel %vm6005, %v6012, %v6014
        %v6016 = vsel %vm6004, %v5994, %v5997
        %v6017 = vsel %vm6007, %v6003, 1326507024
        %v6018 = vsel %vm6006, %v6000, %v6017
        %v6019 = vsel %vm6005, %v6016, %v6018
        %v6020 = vshll.u32 %v5980, 8
        %v6021 = vmul.u32.u64.compose %v6020, %v6019
        %v6022 = vextract.low.u32 %v6021
        %v6023 = vextract.high.u32 %v6021
        %v6024 = vmul.u32.u64.compose %v6020, %v6015
        %v6025 = vextract.low.u32 %v6024
        %v6026 = vextract.high.u32 %v6024
        %v6027 = vmul.u32 %v6020, %v6011
        %v6028 = vadd.s32 %v6023, %v6025
        %vm6029 = vc.u32 %v6023, %v6025
        %v6030 = vadd.s32 %v6026, 1
        %v6031 = vsel %vm6029, %v6030, %v6026
        %v6032 = vadd.s32 %v6027, %v6031
        %v6033 = vadd.s32 %v6032, 536870912
        %v6034 = vshrl.u32 %v6033, 30
        %v6035 = vshll.u32 %v6034, 30
        %v6036 = vsub.s32 %v6032, %v6035
        %vm6037 = vcmp.lt.s32.totalorder %v6036, 0
        %v6038 = vsub.s32 0, %v6036
        %v6039 = vsel %vm6037, %v6038, %v6036
        %v6040 = vclz %v6039
        %v6041 = vsub.s32 %v6040, 2
        %vm6042 = vcmp.gt.s32.totalorder 0, %v6041
        %v6043 = vsel %vm6042, 0, %v6041
        %v6044 = vsub.s32 32, %v6043
        %v6045 = vshll.u32 %v6036, %v6043
        %v6046 = vshrl.u32 %v6028, %v6044
        %v6047 = vor.u32 %v6045, %v6046
        %v6048 = vsub.s32 4294967266, %v6043
        %v6049 = vadd.s32 %v6048, 127
        %v6050 = vshll.u32 %v6049, 23
        %v6051 = vor.u32 4788187, %v6050
        %v6052 = vand.u32 2147483647, %v6051
        %v6054 = vcvt.s32.f32 %v6047
        %v6055 = vmul.f32 %v6054, %v6052
        %v6056 = vxor.u32 %v6055, 2147483648
        %v6057 = vsel %vm5974, %v6056, %v6055
        %v6058 = vsub.s32 4, %v6034
        %v6059 = vsel %vm5974, %v6058, %v6034
        %v6060 = vsel %vm5973, %v5865, %v6057
        %v6061 = vsel %vm5973, 0, %v6059
        %v6062 = vcosq.f32.pop %v6060
        %v6063 = vsinq.f32.pop %v6060
        %vm6064 = vweird.f32 %v5865
        %v6065 = vadd.s32 %v6061, 3
        %v6066 = vand.u32 %v6065, 3
        %vm6067 = vcmp.lt.s32.totalorder %v6066, 2
        %vm6068 = vcmp.eq.s32.totalorder %v6066, 0
        %v6069 = vxor.u32 %v6063, 2147483648
        %v6070 = vsel %vm6068, %v6062, %v6069
        %vm6071 = vcmp.eq.s32.totalorder %v6066, 2
        %v6072 = vxor.u32 %v6062, 2147483648
        %v6073 = vsel %vm6071, %v6072, %v6063
        %v6074 = vsel %vm6067, %v6070, %v6073
        %v6075 = vsel %vm6064, nan, %v6074
        %v6076 = vrcp.pop %v5864
        %v6077 = vrcp.pop %v5865
        %v6078 = vmul.f32 %v5864, %v6076
        %v6079 = vmul.f32 %v5865, %v6077
        %v6080 = vsub.f32 2.0, %v6078
        %v6081 = vsub.f32 2.0, %v6079
        %v6082 = vmul.f32 %v6076, %v6080
        %v6083 = vmul.f32 %v6077, %v6081
        %vm6084 = vcmp.lt.f32.partialorder %v5866, 1e-06
        %vm6085 = vcmp.lt.f32.partialorder %v5867, 1e-06
        %v6086 = vmul.f32 %v5866, 0.16666667
        %v6087 = vmul.f32 %v5867, 0.16666667
        %v6088 = vsub.f32 1.0, %v6086
        %v6089 = vsub.f32 1.0, %v6087
        %v6090 = vmul.f32 %v5971, %v6082
        %v6091 = vmul.f32 %v6075, %v6083
        %v6092 = vsel %vm6084, %v6088, %v6090
        %v6093 = vsel %vm6085, %v6089, %v6091
        %v6094 = vmul.f32 %v5850, %v6092
        %v6095 = vmul.f32 %v5851, %v6093
        %6096 = vset.pattern.permute.xlu0 23
        %6097 = vperm.xlu0 %6096, %v288
        %v6098 = vpop.permute.xlu0 %6097
        %6100 = vset.pattern.permute.xlu0 23
        %6101 = vperm.xlu0 %6100, %v289
        %v6102 = vpop.permute.xlu0 %6101
        %v6104 = vlaneseq
        %v6105 = vshrl.u32 %v6104, 7
        %v6106 = vsub.s32 7, %v6105
        %v6107 = vrot.slane %v296, %v6106
        %v6108 = vsub.f32 %v6098, %v6107
        %v6109 = vsub.f32 %v6102, %v6107
        %v6110 = vmul.f32 %v6108, %v6108
        %v6111 = vmul.f32 %v6109, %v6109
        %v6112 = vand.u32 2147483647, %v6108
        %vm6113 = vcmp.le.f32.partialorder %v6112, 0.7853982
        %vm6114 = vcmp.lt.s32.totalorder %v6108, 0
        %v6115 = vand.u32 %v6108, 2139095040
        %v6116 = vshrl.u32 %v6115, 23
        %v6117 = vsub.s32 %v6116, 127
        %v6118 = vand.u32 2147483647, %v6108
        %v6119 = vand.u32 %v6118, 8388607
        %v6120 = vor.u32 %v6119, 8388608
        %v6121 = vsub.s32 0, %v6120
        %v6122 = vadd.s32 %v6117, 1
        %vm6123 = vcmp.gt.s32.totalorder %v6122, 0
        %v6124 = vsel %vm6123, %v6122, 0
        %v6125 = vshrl.u32 %v6124, 5
        %v6126 = vand.u32 %v6124, 31
        %v6127 = vsub.s32 32, %v6126
        %v6128 = vshrl.u32 683565275, %v6127
        %v6129 = vshll.u32 683565275, %v6126
        %v6130 = vshrl.u32 2475754826, %v6127
        %v6131 = vor.u32 %v6129, %v6130
        %v6132 = vshll.u32 2475754826, %v6126
        %v6133 = vshrl.u32 2131351028, %v6127
        %v6134 = vor.u32 %v6132, %v6133
        %v6135 = vshll.u32 2131351028, %v6126
        %v6136 = vshrl.u32 2102212464, %v6127
        %v6137 = vor.u32 %v6135, %v6136
        %v6138 = vshll.u32 2102212464, %v6126
        %v6139 = vshrl.u32 920167782, %v6127
        %v6140 = vor.u32 %v6138, %v6139
        %v6141 = vshll.u32 920167782, %v6126
        %v6142 = vshrl.u32 1326507024, %v6127
        %v6143 = vor.u32 %v6141, %v6142
        %vm6144 = vcmp.lt.s32.totalorder %v6125, 1
        %vm6145 = vcmp.lt.s32.totalorder %v6125, 2
        %vm6146 = vcmp.lt.s32.totalorder %v6125, 3
        %vm6147 = vcmp.lt.s32.totalorder %v6125, 4
        %v6148 = vsel %vm6144, %v6128, %v6131
        %v6149 = vsel %vm6147, %v6137, 2102212464
        %v6150 = vsel %vm6146, %v6134, %v6149
        %v6151 = vsel %vm6145, %v6148, %v6150
        %v6152 = vsel %vm6144, %v6131, %v6134
        %v6153 = vsel %vm6147, %v6140, 920167782
        %v6154 = vsel %vm6146, %v6137, %v6153
        %v6155 = vsel %vm6145, %v6152, %v6154
        %v6156 = vsel %vm6144, %v6134, %v6137
        %v6157 = vsel %vm6147, %v6143, 1326507024
        %v6158 = vsel %vm6146, %v6140, %v6157
        %v6159 = vsel %vm6145, %v6156, %v6158
        %v6160 = vshll.u32 %v6120, 8
        %v6161 = vmul.u32.u64.compose %v6160, %v6159
        %v6162 = vextract.low.u32 %v6161
        %v6163 = vextract.high.u32 %v6161
        %v6164 = vmul.u32.u64.compose %v6160, %v6155
        %v6165 = vextract.low.u32 %v6164
        %v6166 = vextract.high.u32 %v6164
        %v6167 = vmul.u32 %v6160, %v6151
        %v6168 = vadd.s32 %v6163, %v6165
        %vm6169 = vc.u32 %v6163, %v6165
        %v6170 = vadd.s32 %v6166, 1
        %v6171 = vsel %vm6169, %v6170, %v6166
        %v6172 = vadd.s32 %v6167, %v6171
        %v6173 = vadd.s32 %v6172, 536870912
        %v6174 = vshrl.u32 %v6173, 30
        %v6175 = vshll.u32 %v6174, 30
        %v6176 = vsub.s32 %v6172, %v6175
        %vm6177 = vcmp.lt.s32.totalorder %v6176, 0
        %v6178 = vsub.s32 0, %v6176
        %v6179 = vsel %vm6177, %v6178, %v6176
        %v6180 = vclz %v6179
        %v6181 = vsub.s32 %v6180, 2
        %vm6182 = vcmp.gt.s32.totalorder 0, %v6181
        %v6183 = vsel %vm6182, 0, %v6181
        %v6184 = vsub.s32 32, %v6183
        %v6185 = vshll.u32 %v6176, %v6183
        %v6186 = vshrl.u32 %v6168, %v6184
        %v6187 = vor.u32 %v6185, %v6186
        %v6188 = vsub.s32 4294967266, %v6183
        %v6189 = vadd.s32 %v6188, 127
        %v6190 = vshll.u32 %v6189, 23
        %v6191 = vor.u32 4788187, %v6190
        %v6192 = vand.u32 2147483647, %v6191
        %v6194 = vcvt.s32.f32 %v6187
        %v6195 = vmul.f32 %v6194, %v6192
        %v6196 = vxor.u32 %v6195, 2147483648
        %v6197 = vsel %vm6114, %v6196, %v6195
        %v6198 = vsub.s32 4, %v6174
        %v6199 = vsel %vm6114, %v6198, %v6174
        %v6200 = vsel %vm6113, %v6108, %v6197
        %v6201 = vsel %vm6113, 0, %v6199
        %v6202 = vcosq.f32.pop %v6200
        %v6203 = vsinq.f32.pop %v6200
        %vm6204 = vweird.f32 %v6108
        %v6205 = vadd.s32 %v6201, 3
        %v6206 = vand.u32 %v6205, 3
        %vm6207 = vcmp.lt.s32.totalorder %v6206, 2
        %vm6208 = vcmp.eq.s32.totalorder %v6206, 0
        %v6209 = vxor.u32 %v6203, 2147483648
        %v6210 = vsel %vm6208, %v6202, %v6209
        %vm6211 = vcmp.eq.s32.totalorder %v6206, 2
        %v6212 = vxor.u32 %v6202, 2147483648
        %v6213 = vsel %vm6211, %v6212, %v6203
        %v6214 = vsel %vm6207, %v6210, %v6213
        %v6215 = vsel %vm6204, nan, %v6214
        %v6216 = vand.u32 2147483647, %v6109
        %vm6217 = vcmp.le.f32.partialorder %v6216, 0.7853982
        %vm6218 = vcmp.lt.s32.totalorder %v6109, 0
        %v6219 = vand.u32 %v6109, 2139095040
        %v6220 = vshrl.u32 %v6219, 23
        %v6221 = vsub.s32 %v6220, 127
        %v6222 = vand.u32 2147483647, %v6109
        %v6223 = vand.u32 %v6222, 8388607
        %v6224 = vor.u32 %v6223, 8388608
        %v6225 = vsub.s32 0, %v6224
        %v6226 = vadd.s32 %v6221, 1
        %vm6227 = vcmp.gt.s32.totalorder %v6226, 0
        %v6228 = vsel %vm6227, %v6226, 0
        %v6229 = vshrl.u32 %v6228, 5
        %v6230 = vand.u32 %v6228, 31
        %v6231 = vsub.s32 32, %v6230
        %v6232 = vshrl.u32 683565275, %v6231
        %v6233 = vshll.u32 683565275, %v6230
        %v6234 = vshrl.u32 2475754826, %v6231
        %v6235 = vor.u32 %v6233, %v6234
        %v6236 = vshll.u32 2475754826, %v6230
        %v6237 = vshrl.u32 2131351028, %v6231
        %v6238 = vor.u32 %v6236, %v6237
        %v6239 = vshll.u32 2131351028, %v6230
        %v6240 = vshrl.u32 2102212464, %v6231
        %v6241 = vor.u32 %v6239, %v6240
        %v6242 = vshll.u32 2102212464, %v6230
        %v6243 = vshrl.u32 920167782, %v6231
        %v6244 = vor.u32 %v6242, %v6243
        %v6245 = vshll.u32 920167782, %v6230
        %v6246 = vshrl.u32 1326507024, %v6231
        %v6247 = vor.u32 %v6245, %v6246
        %vm6248 = vcmp.lt.s32.totalorder %v6229, 1
        %vm6249 = vcmp.lt.s32.totalorder %v6229, 2
        %vm6250 = vcmp.lt.s32.totalorder %v6229, 3
        %vm6251 = vcmp.lt.s32.totalorder %v6229, 4
        %v6252 = vsel %vm6248, %v6232, %v6235
        %v6253 = vsel %vm6251, %v6241, 2102212464
        %v6254 = vsel %vm6250, %v6238, %v6253
        %v6255 = vsel %vm6249, %v6252, %v6254
        %v6256 = vsel %vm6248, %v6235, %v6238
        %v6257 = vsel %vm6251, %v6244, 920167782
        %v6258 = vsel %vm6250, %v6241, %v6257
        %v6259 = vsel %vm6249, %v6256, %v6258
        %v6260 = vsel %vm6248, %v6238, %v6241
        %v6261 = vsel %vm6251, %v6247, 1326507024
        %v6262 = vsel %vm6250, %v6244, %v6261
        %v6263 = vsel %vm6249, %v6260, %v6262
        %v6264 = vshll.u32 %v6224, 8
        %v6265 = vmul.u32.u64.compose %v6264, %v6263
        %v6266 = vextract.low.u32 %v6265
        %v6267 = vextract.high.u32 %v6265
        %v6268 = vmul.u32.u64.compose %v6264, %v6259
        %v6269 = vextract.low.u32 %v6268
        %v6270 = vextract.high.u32 %v6268
        %v6271 = vmul.u32 %v6264, %v6255
        %v6272 = vadd.s32 %v6267, %v6269
        %vm6273 = vc.u32 %v6267, %v6269
        %v6274 = vadd.s32 %v6270, 1
        %v6275 = vsel %vm6273, %v6274, %v6270
        %v6276 = vadd.s32 %v6271, %v6275
        %v6277 = vadd.s32 %v6276, 536870912
        %v6278 = vshrl.u32 %v6277, 30
        %v6279 = vshll.u32 %v6278, 30
        %v6280 = vsub.s32 %v6276, %v6279
        %vm6281 = vcmp.lt.s32.totalorder %v6280, 0
        %v6282 = vsub.s32 0, %v6280
        %v6283 = vsel %vm6281, %v6282, %v6280
        %v6284 = vclz %v6283
        %v6285 = vsub.s32 %v6284, 2
        %vm6286 = vcmp.gt.s32.totalorder 0, %v6285
        %v6287 = vsel %vm6286, 0, %v6285
        %v6288 = vsub.s32 32, %v6287
        %v6289 = vshll.u32 %v6280, %v6287
        %v6290 = vshrl.u32 %v6272, %v6288
        %v6291 = vor.u32 %v6289, %v6290
        %v6292 = vsub.s32 4294967266, %v6287
        %v6293 = vadd.s32 %v6292, 127
        %v6294 = vshll.u32 %v6293, 23
        %v6295 = vor.u32 4788187, %v6294
        %v6296 = vand.u32 2147483647, %v6295
        %v6298 = vcvt.s32.f32 %v6291
        %v6299 = vmul.f32 %v6298, %v6296
        %v6300 = vxor.u32 %v6299, 2147483648
        %v6301 = vsel %vm6218, %v6300, %v6299
        %v6302 = vsub.s32 4, %v6278
        %v6303 = vsel %vm6218, %v6302, %v6278
        %v6304 = vsel %vm6217, %v6109, %v6301
        %v6305 = vsel %vm6217, 0, %v6303
        %v6306 = vcosq.f32.pop %v6304
        %v6307 = vsinq.f32.pop %v6304
        %vm6308 = vweird.f32 %v6109
        %v6309 = vadd.s32 %v6305, 3
        %v6310 = vand.u32 %v6309, 3
        %vm6311 = vcmp.lt.s32.totalorder %v6310, 2
        %vm6312 = vcmp.eq.s32.totalorder %v6310, 0
        %v6313 = vxor.u32 %v6307, 2147483648
        %v6314 = vsel %vm6312, %v6306, %v6313
        %vm6315 = vcmp.eq.s32.totalorder %v6310, 2
        %v6316 = vxor.u32 %v6306, 2147483648
        %v6317 = vsel %vm6315, %v6316, %v6307
        %v6318 = vsel %vm6311, %v6314, %v6317
        %v6319 = vsel %vm6308, nan, %v6318
        %v6320 = vrcp.pop %v6108
        %v6321 = vrcp.pop %v6109
        %v6322 = vmul.f32 %v6108, %v6320
        %v6323 = vmul.f32 %v6109, %v6321
        %v6324 = vsub.f32 2.0, %v6322
        %v6325 = vsub.f32 2.0, %v6323
        %v6326 = vmul.f32 %v6320, %v6324
        %v6327 = vmul.f32 %v6321, %v6325
        %vm6328 = vcmp.lt.f32.partialorder %v6110, 1e-06
        %vm6329 = vcmp.lt.f32.partialorder %v6111, 1e-06
        %v6330 = vmul.f32 %v6110, 0.16666667
        %v6331 = vmul.f32 %v6111, 0.16666667
        %v6332 = vsub.f32 1.0, %v6330
        %v6333 = vsub.f32 1.0, %v6331
        %v6334 = vmul.f32 %v6215, %v6326
        %v6335 = vmul.f32 %v6319, %v6327
        %v6336 = vsel %vm6328, %v6332, %v6334
        %v6337 = vsel %vm6329, %v6333, %v6335
        %v6338 = vmul.f32 %v6094, %v6336
        %v6339 = vmul.f32 %v6095, %v6337
        %v6340 = vmul.f32 %v6338, %v6338
        %v6341 = vmul.f32 %v6339, %v6339
        %v6342 = vmul.f32 %v6340, %v6340
        %v6343 = vmul.f32 %v6341, %v6341
        %v6344 = vsel %vm319, %v6342, 0.0
        %v6345 = vsel %vm319, %v6343, 0.0
        %v6346 = vpack.c.bf16 %v6345, %v6344
        %6347 = vrot.lane.b32.xlu0 %v2311, 110
        %v6348 = vpop.permute.xlu0 %6347
        %6349 = vrot.lane.b32.xlu0 %v2312, 110
        %v6350 = vpop.permute.xlu0 %6349
        %6351 = vrot.lane.b32.xlu0 %v2313, 110
        %v6352 = vpop.permute.xlu0 %6351
        %6353 = vrot.lane.b32.xlu0 %v2314, 110
        %v6354 = vpop.permute.xlu0 %6353
        %6355 = vrot.lane.b32.xlu0 %v2315, 110
        %v6356 = vpop.permute.xlu0 %6355
        %6357 = vrot.lane.b32.xlu0 %v2316, 110
        %v6358 = vpop.permute.xlu0 %6357
        %6359 = vrot.lane.b32.xlu0 %v2317, 110
        %v6360 = vpop.permute.xlu0 %6359
        %6361 = vrot.lane.b32.xlu0 %v2318, 110
        %v6362 = vpop.permute.xlu0 %6361
        %6371 = vmatprep.subr.bf16.mxu0 0
        %6372 = vmatpush1.bf16.msra.mxu0 %v6348
        %6373 = vmatprep.subr.bf16.mxu0 0
        %6374 = vmatpush1.bf16.msra.mxu0 %v6350
        %6375 = vmatprep.subr.bf16.mxu0 0
        %6376 = vmatpush1.bf16.msra.mxu0 %v6352
        %6377 = vmatprep.subr.bf16.mxu0 0
        %6378 = vmatpush1.bf16.msra.mxu0 %v6354
        %6379 = vmatprep.subr.bf16.mxu0 0
        %6380 = vmatpush1.bf16.msra.mxu0 %v6356
        %6381 = vmatprep.subr.bf16.mxu0 0
        %6382 = vmatpush1.bf16.msra.mxu0 %v6358
        %6383 = vmatprep.subr.bf16.mxu0 0
        %6384 = vmatpush1.bf16.msra.mxu0 %v6360
        %6385 = vmatprep.subr.bf16.mxu0 0
        %6386 = vmatpush1.bf16.msra.mxu0 %v6362
        %6387 = vmatprep.subr.bf16.mxu0 0
        %6388 = vmatpush1.bf16.msra.mxu0 0
        %6389 = vmatprep.subr.bf16.mxu0 0
        %6390 = vmatpush1.bf16.msra.mxu0 0
        %6391 = vmatprep.subr.bf16.mxu0 0
        %6392 = vmatpush1.bf16.msra.mxu0 0
        %6393 = vmatprep.subr.bf16.mxu0 0
        %6394 = vmatpush1.bf16.msra.mxu0 0
        %6395 = vmatprep.subr.bf16.mxu0 0
        %6396 = vmatpush1.bf16.msra.mxu0 0
        %6397 = vmatprep.subr.bf16.mxu0 0
        %6398 = vmatpush1.bf16.msra.mxu0 0
        %6399 = vmatprep.subr.bf16.mxu0 0
        %6400 = vmatpush1.bf16.msra.mxu0 0
        %6401 = vmatprep.subr.bf16.mxu0 0
        %6402 = vmatpush1.bf16.msra.mxu0 0
        %6403 = vmatprep.mubr.bf16.mxu0 0
        %6404 = vmatmul.mubr.bf16.gmra.mrb[0].mxu0 %v6346
        %v6405 = vpop.f32.mrb[0].mxu0
        %v6406 = vadd.f32 0.0, %v6405
        %v6407 = vpop.f32.mrb[0].mxu0
        %v6408 = vpop.f32.mrb[0].mxu0
        %v6409 = vadd.f32 0.0, %v6408
        %v6410 = vpop.f32.mrb[0].mxu0
        %6411 = vdwg.mxu0
        %6412 = vset.pattern.permute.xlu0 24
        %6413 = vperm.xlu0 %6412, %v288
        %v6414 = vpop.permute.xlu0 %6413
        %6416 = vset.pattern.permute.xlu0 24
        %6417 = vperm.xlu0 %6416, %v289
        %v6418 = vpop.permute.xlu0 %6417
        %v6420 = vlaneseq
        %v6421 = vshrl.u32 %v6420, 7
        %v6422 = vsub.s32 0, %v6421
        %v6423 = vrot.slane %v297, %v6422
        %v6424 = vsub.f32 %v6414, %v6423
        %v6425 = vsub.f32 %v6418, %v6423
        %v6426 = vmul.f32 %v6424, %v6424
        %v6427 = vmul.f32 %v6425, %v6425
        %v6428 = vand.u32 2147483647, %v6424
        %vm6429 = vcmp.le.f32.partialorder %v6428, 0.7853982
        %vm6430 = vcmp.lt.s32.totalorder %v6424, 0
        %v6431 = vand.u32 %v6424, 2139095040
        %v6432 = vshrl.u32 %v6431, 23
        %v6433 = vsub.s32 %v6432, 127
        %v6434 = vand.u32 2147483647, %v6424
        %v6435 = vand.u32 %v6434, 8388607
        %v6436 = vor.u32 %v6435, 8388608
        %v6437 = vsub.s32 0, %v6436
        %v6438 = vadd.s32 %v6433, 1
        %vm6439 = vcmp.gt.s32.totalorder %v6438, 0
        %v6440 = vsel %vm6439, %v6438, 0
        %v6441 = vshrl.u32 %v6440, 5
        %v6442 = vand.u32 %v6440, 31
        %v6443 = vsub.s32 32, %v6442
        %v6444 = vshrl.u32 683565275, %v6443
        %v6445 = vshll.u32 683565275, %v6442
        %v6446 = vshrl.u32 2475754826, %v6443
        %v6447 = vor.u32 %v6445, %v6446
        %v6448 = vshll.u32 2475754826, %v6442
        %v6449 = vshrl.u32 2131351028, %v6443
        %v6450 = vor.u32 %v6448, %v6449
        %v6451 = vshll.u32 2131351028, %v6442
        %v6452 = vshrl.u32 2102212464, %v6443
        %v6453 = vor.u32 %v6451, %v6452
        %v6454 = vshll.u32 2102212464, %v6442
        %v6455 = vshrl.u32 920167782, %v6443
        %v6456 = vor.u32 %v6454, %v6455
        %v6457 = vshll.u32 920167782, %v6442
        %v6458 = vshrl.u32 1326507024, %v6443
        %v6459 = vor.u32 %v6457, %v6458
        %vm6460 = vcmp.lt.s32.totalorder %v6441, 1
        %vm6461 = vcmp.lt.s32.totalorder %v6441, 2
        %vm6462 = vcmp.lt.s32.totalorder %v6441, 3
        %vm6463 = vcmp.lt.s32.totalorder %v6441, 4
        %v6464 = vsel %vm6460, %v6444, %v6447
        %v6465 = vsel %vm6463, %v6453, 2102212464
        %v6466 = vsel %vm6462, %v6450, %v6465
        %v6467 = vsel %vm6461, %v6464, %v6466
        %v6468 = vsel %vm6460, %v6447, %v6450
        %v6469 = vsel %vm6463, %v6456, 920167782
        %v6470 = vsel %vm6462, %v6453, %v6469
        %v6471 = vsel %vm6461, %v6468, %v6470
        %v6472 = vsel %vm6460, %v6450, %v6453
        %v6473 = vsel %vm6463, %v6459, 1326507024
        %v6474 = vsel %vm6462, %v6456, %v6473
        %v6475 = vsel %vm6461, %v6472, %v6474
        %v6476 = vshll.u32 %v6436, 8
        %v6477 = vmul.u32.u64.compose %v6476, %v6475
        %v6478 = vextract.low.u32 %v6477
        %v6479 = vextract.high.u32 %v6477
        %v6480 = vmul.u32.u64.compose %v6476, %v6471
        %v6481 = vextract.low.u32 %v6480
        %v6482 = vextract.high.u32 %v6480
        %v6483 = vmul.u32 %v6476, %v6467
        %v6484 = vadd.s32 %v6479, %v6481
        %vm6485 = vc.u32 %v6479, %v6481
        %v6486 = vadd.s32 %v6482, 1
        %v6487 = vsel %vm6485, %v6486, %v6482
        %v6488 = vadd.s32 %v6483, %v6487
        %v6489 = vadd.s32 %v6488, 536870912
        %v6490 = vshrl.u32 %v6489, 30
        %v6491 = vshll.u32 %v6490, 30
        %v6492 = vsub.s32 %v6488, %v6491
        %vm6493 = vcmp.lt.s32.totalorder %v6492, 0
        %v6494 = vsub.s32 0, %v6492
        %v6495 = vsel %vm6493, %v6494, %v6492
        %v6496 = vclz %v6495
        %v6497 = vsub.s32 %v6496, 2
        %vm6498 = vcmp.gt.s32.totalorder 0, %v6497
        %v6499 = vsel %vm6498, 0, %v6497
        %v6500 = vsub.s32 32, %v6499
        %v6501 = vshll.u32 %v6492, %v6499
        %v6502 = vshrl.u32 %v6484, %v6500
        %v6503 = vor.u32 %v6501, %v6502
        %v6504 = vsub.s32 4294967266, %v6499
        %v6505 = vadd.s32 %v6504, 127
        %v6506 = vshll.u32 %v6505, 23
        %v6507 = vor.u32 4788187, %v6506
        %v6508 = vand.u32 2147483647, %v6507
        %v6510 = vcvt.s32.f32 %v6503
        %v6511 = vmul.f32 %v6510, %v6508
        %v6512 = vxor.u32 %v6511, 2147483648
        %v6513 = vsel %vm6430, %v6512, %v6511
        %v6514 = vsub.s32 4, %v6490
        %v6515 = vsel %vm6430, %v6514, %v6490
        %v6516 = vsel %vm6429, %v6424, %v6513
        %v6517 = vsel %vm6429, 0, %v6515
        %v6518 = vcosq.f32.pop %v6516
        %v6519 = vsinq.f32.pop %v6516
        %vm6520 = vweird.f32 %v6424
        %v6521 = vadd.s32 %v6517, 3
        %v6522 = vand.u32 %v6521, 3
        %vm6523 = vcmp.lt.s32.totalorder %v6522, 2
        %vm6524 = vcmp.eq.s32.totalorder %v6522, 0
        %v6525 = vxor.u32 %v6519, 2147483648
        %v6526 = vsel %vm6524, %v6518, %v6525
        %vm6527 = vcmp.eq.s32.totalorder %v6522, 2
        %v6528 = vxor.u32 %v6518, 2147483648
        %v6529 = vsel %vm6527, %v6528, %v6519
        %v6530 = vsel %vm6523, %v6526, %v6529
        %v6531 = vsel %vm6520, nan, %v6530
        %v6532 = vand.u32 2147483647, %v6425
        %vm6533 = vcmp.le.f32.partialorder %v6532, 0.7853982
        %vm6534 = vcmp.lt.s32.totalorder %v6425, 0
        %v6535 = vand.u32 %v6425, 2139095040
        %v6536 = vshrl.u32 %v6535, 23
        %v6537 = vsub.s32 %v6536, 127
        %v6538 = vand.u32 2147483647, %v6425
        %v6539 = vand.u32 %v6538, 8388607
        %v6540 = vor.u32 %v6539, 8388608
        %v6541 = vsub.s32 0, %v6540
        %v6542 = vadd.s32 %v6537, 1
        %vm6543 = vcmp.gt.s32.totalorder %v6542, 0
        %v6544 = vsel %vm6543, %v6542, 0
        %v6545 = vshrl.u32 %v6544, 5
        %v6546 = vand.u32 %v6544, 31
        %v6547 = vsub.s32 32, %v6546
        %v6548 = vshrl.u32 683565275, %v6547
        %v6549 = vshll.u32 683565275, %v6546
        %v6550 = vshrl.u32 2475754826, %v6547
        %v6551 = vor.u32 %v6549, %v6550
        %v6552 = vshll.u32 2475754826, %v6546
        %v6553 = vshrl.u32 2131351028, %v6547
        %v6554 = vor.u32 %v6552, %v6553
        %v6555 = vshll.u32 2131351028, %v6546
        %v6556 = vshrl.u32 2102212464, %v6547
        %v6557 = vor.u32 %v6555, %v6556
        %v6558 = vshll.u32 2102212464, %v6546
        %v6559 = vshrl.u32 920167782, %v6547
        %v6560 = vor.u32 %v6558, %v6559
        %v6561 = vshll.u32 920167782, %v6546
        %v6562 = vshrl.u32 1326507024, %v6547
        %v6563 = vor.u32 %v6561, %v6562
        %vm6564 = vcmp.lt.s32.totalorder %v6545, 1
        %vm6565 = vcmp.lt.s32.totalorder %v6545, 2
        %vm6566 = vcmp.lt.s32.totalorder %v6545, 3
        %vm6567 = vcmp.lt.s32.totalorder %v6545, 4
        %v6568 = vsel %vm6564, %v6548, %v6551
        %v6569 = vsel %vm6567, %v6557, 2102212464
        %v6570 = vsel %vm6566, %v6554, %v6569
        %v6571 = vsel %vm6565, %v6568, %v6570
        %v6572 = vsel %vm6564, %v6551, %v6554
        %v6573 = vsel %vm6567, %v6560, 920167782
        %v6574 = vsel %vm6566, %v6557, %v6573
        %v6575 = vsel %vm6565, %v6572, %v6574
        %v6576 = vsel %vm6564, %v6554, %v6557
        %v6577 = vsel %vm6567, %v6563, 1326507024
        %v6578 = vsel %vm6566, %v6560, %v6577
        %v6579 = vsel %vm6565, %v6576, %v6578
        %v6580 = vshll.u32 %v6540, 8
        %v6581 = vmul.u32.u64.compose %v6580, %v6579
        %v6582 = vextract.low.u32 %v6581
        %v6583 = vextract.high.u32 %v6581
        %v6584 = vmul.u32.u64.compose %v6580, %v6575
        %v6585 = vextract.low.u32 %v6584
        %v6586 = vextract.high.u32 %v6584
        %v6587 = vmul.u32 %v6580, %v6571
        %v6588 = vadd.s32 %v6583, %v6585
        %vm6589 = vc.u32 %v6583, %v6585
        %v6590 = vadd.s32 %v6586, 1
        %v6591 = vsel %vm6589, %v6590, %v6586
        %v6592 = vadd.s32 %v6587, %v6591
        %v6593 = vadd.s32 %v6592, 536870912
        %v6594 = vshrl.u32 %v6593, 30
        %v6595 = vshll.u32 %v6594, 30
        %v6596 = vsub.s32 %v6592, %v6595
        %vm6597 = vcmp.lt.s32.totalorder %v6596, 0
        %v6598 = vsub.s32 0, %v6596
        %v6599 = vsel %vm6597, %v6598, %v6596
        %v6600 = vclz %v6599
        %v6601 = vsub.s32 %v6600, 2
        %vm6602 = vcmp.gt.s32.totalorder 0, %v6601
        %v6603 = vsel %vm6602, 0, %v6601
        %v6604 = vsub.s32 32, %v6603
        %v6605 = vshll.u32 %v6596, %v6603
        %v6606 = vshrl.u32 %v6588, %v6604
        %v6607 = vor.u32 %v6605, %v6606
        %v6608 = vsub.s32 4294967266, %v6603
        %v6609 = vadd.s32 %v6608, 127
        %v6610 = vshll.u32 %v6609, 23
        %v6611 = vor.u32 4788187, %v6610
        %v6612 = vand.u32 2147483647, %v6611
        %v6614 = vcvt.s32.f32 %v6607
        %v6615 = vmul.f32 %v6614, %v6612
        %v6616 = vxor.u32 %v6615, 2147483648
        %v6617 = vsel %vm6534, %v6616, %v6615
        %v6618 = vsub.s32 4, %v6594
        %v6619 = vsel %vm6534, %v6618, %v6594
        %v6620 = vsel %vm6533, %v6425, %v6617
        %v6621 = vsel %vm6533, 0, %v6619
        %v6622 = vcosq.f32.pop %v6620
        %v6623 = vsinq.f32.pop %v6620
        %vm6624 = vweird.f32 %v6425
        %v6625 = vadd.s32 %v6621, 3
        %v6626 = vand.u32 %v6625, 3
        %vm6627 = vcmp.lt.s32.totalorder %v6626, 2
        %vm6628 = vcmp.eq.s32.totalorder %v6626, 0
        %v6629 = vxor.u32 %v6623, 2147483648
        %v6630 = vsel %vm6628, %v6622, %v6629
        %vm6631 = vcmp.eq.s32.totalorder %v6626, 2
        %v6632 = vxor.u32 %v6622, 2147483648
        %v6633 = vsel %vm6631, %v6632, %v6623
        %v6634 = vsel %vm6627, %v6630, %v6633
        %v6635 = vsel %vm6624, nan, %v6634
        %v6636 = vrcp.pop %v6424
        %v6637 = vrcp.pop %v6425
        %v6638 = vmul.f32 %v6424, %v6636
        %v6639 = vmul.f32 %v6425, %v6637
        %v6640 = vsub.f32 2.0, %v6638
        %v6641 = vsub.f32 2.0, %v6639
        %v6642 = vmul.f32 %v6636, %v6640
        %v6643 = vmul.f32 %v6637, %v6641
        %vm6644 = vcmp.lt.f32.partialorder %v6426, 1e-06
        %vm6645 = vcmp.lt.f32.partialorder %v6427, 1e-06
        %v6646 = vmul.f32 %v6426, 0.16666667
        %v6647 = vmul.f32 %v6427, 0.16666667
        %v6648 = vsub.f32 1.0, %v6646
        %v6649 = vsub.f32 1.0, %v6647
        %v6650 = vmul.f32 %v6531, %v6642
        %v6651 = vmul.f32 %v6635, %v6643
        %v6652 = vsel %vm6644, %v6648, %v6650
        %v6653 = vsel %vm6645, %v6649, %v6651
        %6654 = vset.pattern.permute.xlu0 25
        %6655 = vperm.xlu0 %6654, %v288
        %v6656 = vpop.permute.xlu0 %6655
        %6658 = vset.pattern.permute.xlu0 25
        %6659 = vperm.xlu0 %6658, %v289
        %v6660 = vpop.permute.xlu0 %6659
        %v6662 = vlaneseq
        %v6663 = vshrl.u32 %v6662, 7
        %v6664 = vsub.s32 1, %v6663
        %v6665 = vrot.slane %v297, %v6664
        %v6666 = vsub.f32 %v6656, %v6665
        %v6667 = vsub.f32 %v6660, %v6665
        %v6668 = vmul.f32 %v6666, %v6666
        %v6669 = vmul.f32 %v6667, %v6667
        %v6670 = vand.u32 2147483647, %v6666
        %vm6671 = vcmp.le.f32.partialorder %v6670, 0.7853982
        %vm6672 = vcmp.lt.s32.totalorder %v6666, 0
        %v6673 = vand.u32 %v6666, 2139095040
        %v6674 = vshrl.u32 %v6673, 23
        %v6675 = vsub.s32 %v6674, 127
        %v6676 = vand.u32 2147483647, %v6666
        %v6677 = vand.u32 %v6676, 8388607
        %v6678 = vor.u32 %v6677, 8388608
        %v6679 = vsub.s32 0, %v6678
        %v6680 = vadd.s32 %v6675, 1
        %vm6681 = vcmp.gt.s32.totalorder %v6680, 0
        %v6682 = vsel %vm6681, %v6680, 0
        %v6683 = vshrl.u32 %v6682, 5
        %v6684 = vand.u32 %v6682, 31
        %v6685 = vsub.s32 32, %v6684
        %v6686 = vshrl.u32 683565275, %v6685
        %v6687 = vshll.u32 683565275, %v6684
        %v6688 = vshrl.u32 2475754826, %v6685
        %v6689 = vor.u32 %v6687, %v6688
        %v6690 = vshll.u32 2475754826, %v6684
        %v6691 = vshrl.u32 2131351028, %v6685
        %v6692 = vor.u32 %v6690, %v6691
        %v6693 = vshll.u32 2131351028, %v6684
        %v6694 = vshrl.u32 2102212464, %v6685
        %v6695 = vor.u32 %v6693, %v6694
        %v6696 = vshll.u32 2102212464, %v6684
        %v6697 = vshrl.u32 920167782, %v6685
        %v6698 = vor.u32 %v6696, %v6697
        %v6699 = vshll.u32 920167782, %v6684
        %v6700 = vshrl.u32 1326507024, %v6685
        %v6701 = vor.u32 %v6699, %v6700
        %vm6702 = vcmp.lt.s32.totalorder %v6683, 1
        %vm6703 = vcmp.lt.s32.totalorder %v6683, 2
        %vm6704 = vcmp.lt.s32.totalorder %v6683, 3
        %vm6705 = vcmp.lt.s32.totalorder %v6683, 4
        %v6706 = vsel %vm6702, %v6686, %v6689
        %v6707 = vsel %vm6705, %v6695, 2102212464
        %v6708 = vsel %vm6704, %v6692, %v6707
        %v6709 = vsel %vm6703, %v6706, %v6708
        %v6710 = vsel %vm6702, %v6689, %v6692
        %v6711 = vsel %vm6705, %v6698, 920167782
        %v6712 = vsel %vm6704, %v6695, %v6711
        %v6713 = vsel %vm6703, %v6710, %v6712
        %v6714 = vsel %vm6702, %v6692, %v6695
        %v6715 = vsel %vm6705, %v6701, 1326507024
        %v6716 = vsel %vm6704, %v6698, %v6715
        %v6717 = vsel %vm6703, %v6714, %v6716
        %v6718 = vshll.u32 %v6678, 8
        %v6719 = vmul.u32.u64.compose %v6718, %v6717
        %v6720 = vextract.low.u32 %v6719
        %v6721 = vextract.high.u32 %v6719
        %v6722 = vmul.u32.u64.compose %v6718, %v6713
        %v6723 = vextract.low.u32 %v6722
        %v6724 = vextract.high.u32 %v6722
        %v6725 = vmul.u32 %v6718, %v6709
        %v6726 = vadd.s32 %v6721, %v6723
        %vm6727 = vc.u32 %v6721, %v6723
        %v6728 = vadd.s32 %v6724, 1
        %v6729 = vsel %vm6727, %v6728, %v6724
        %v6730 = vadd.s32 %v6725, %v6729
        %v6731 = vadd.s32 %v6730, 536870912
        %v6732 = vshrl.u32 %v6731, 30
        %v6733 = vshll.u32 %v6732, 30
        %v6734 = vsub.s32 %v6730, %v6733
        %vm6735 = vcmp.lt.s32.totalorder %v6734, 0
        %v6736 = vsub.s32 0, %v6734
        %v6737 = vsel %vm6735, %v6736, %v6734
        %v6738 = vclz %v6737
        %v6739 = vsub.s32 %v6738, 2
        %vm6740 = vcmp.gt.s32.totalorder 0, %v6739
        %v6741 = vsel %vm6740, 0, %v6739
        %v6742 = vsub.s32 32, %v6741
        %v6743 = vshll.u32 %v6734, %v6741
        %v6744 = vshrl.u32 %v6726, %v6742
        %v6745 = vor.u32 %v6743, %v6744
        %v6746 = vsub.s32 4294967266, %v6741
        %v6747 = vadd.s32 %v6746, 127
        %v6748 = vshll.u32 %v6747, 23
        %v6749 = vor.u32 4788187, %v6748
        %v6750 = vand.u32 2147483647, %v6749
        %v6752 = vcvt.s32.f32 %v6745
        %v6753 = vmul.f32 %v6752, %v6750
        %v6754 = vxor.u32 %v6753, 2147483648
        %v6755 = vsel %vm6672, %v6754, %v6753
        %v6756 = vsub.s32 4, %v6732
        %v6757 = vsel %vm6672, %v6756, %v6732
        %v6758 = vsel %vm6671, %v6666, %v6755
        %v6759 = vsel %vm6671, 0, %v6757
        %v6760 = vcosq.f32.pop %v6758
        %v6761 = vsinq.f32.pop %v6758
        %vm6762 = vweird.f32 %v6666
        %v6763 = vadd.s32 %v6759, 3
        %v6764 = vand.u32 %v6763, 3
        %vm6765 = vcmp.lt.s32.totalorder %v6764, 2
        %vm6766 = vcmp.eq.s32.totalorder %v6764, 0
        %v6767 = vxor.u32 %v6761, 2147483648
        %v6768 = vsel %vm6766, %v6760, %v6767
        %vm6769 = vcmp.eq.s32.totalorder %v6764, 2
        %v6770 = vxor.u32 %v6760, 2147483648
        %v6771 = vsel %vm6769, %v6770, %v6761
        %v6772 = vsel %vm6765, %v6768, %v6771
        %v6773 = vsel %vm6762, nan, %v6772
        %v6774 = vand.u32 2147483647, %v6667
        %vm6775 = vcmp.le.f32.partialorder %v6774, 0.7853982
        %vm6776 = vcmp.lt.s32.totalorder %v6667, 0
        %v6777 = vand.u32 %v6667, 2139095040
        %v6778 = vshrl.u32 %v6777, 23
        %v6779 = vsub.s32 %v6778, 127
        %v6780 = vand.u32 2147483647, %v6667
        %v6781 = vand.u32 %v6780, 8388607
        %v6782 = vor.u32 %v6781, 8388608
        %v6783 = vsub.s32 0, %v6782
        %v6784 = vadd.s32 %v6779, 1
        %vm6785 = vcmp.gt.s32.totalorder %v6784, 0
        %v6786 = vsel %vm6785, %v6784, 0
        %v6787 = vshrl.u32 %v6786, 5
        %v6788 = vand.u32 %v6786, 31
        %v6789 = vsub.s32 32, %v6788
        %v6790 = vshrl.u32 683565275, %v6789
        %v6791 = vshll.u32 683565275, %v6788
        %v6792 = vshrl.u32 2475754826, %v6789
        %v6793 = vor.u32 %v6791, %v6792
        %v6794 = vshll.u32 2475754826, %v6788
        %v6795 = vshrl.u32 2131351028, %v6789
        %v6796 = vor.u32 %v6794, %v6795
        %v6797 = vshll.u32 2131351028, %v6788
        %v6798 = vshrl.u32 2102212464, %v6789
        %v6799 = vor.u32 %v6797, %v6798
        %v6800 = vshll.u32 2102212464, %v6788
        %v6801 = vshrl.u32 920167782, %v6789
        %v6802 = vor.u32 %v6800, %v6801
        %v6803 = vshll.u32 920167782, %v6788
        %v6804 = vshrl.u32 1326507024, %v6789
        %v6805 = vor.u32 %v6803, %v6804
        %vm6806 = vcmp.lt.s32.totalorder %v6787, 1
        %vm6807 = vcmp.lt.s32.totalorder %v6787, 2
        %vm6808 = vcmp.lt.s32.totalorder %v6787, 3
        %vm6809 = vcmp.lt.s32.totalorder %v6787, 4
        %v6810 = vsel %vm6806, %v6790, %v6793
        %v6811 = vsel %vm6809, %v6799, 2102212464
        %v6812 = vsel %vm6808, %v6796, %v6811
        %v6813 = vsel %vm6807, %v6810, %v6812
        %v6814 = vsel %vm6806, %v6793, %v6796
        %v6815 = vsel %vm6809, %v6802, 920167782
        %v6816 = vsel %vm6808, %v6799, %v6815
        %v6817 = vsel %vm6807, %v6814, %v6816
        %v6818 = vsel %vm6806, %v6796, %v6799
        %v6819 = vsel %vm6809, %v6805, 1326507024
        %v6820 = vsel %vm6808, %v6802, %v6819
        %v6821 = vsel %vm6807, %v6818, %v6820
        %v6822 = vshll.u32 %v6782, 8
        %v6823 = vmul.u32.u64.compose %v6822, %v6821
        %v6824 = vextract.low.u32 %v6823
        %v6825 = vextract.high.u32 %v6823
        %v6826 = vmul.u32.u64.compose %v6822, %v6817
        %v6827 = vextract.low.u32 %v6826
        %v6828 = vextract.high.u32 %v6826
        %v6829 = vmul.u32 %v6822, %v6813
        %v6830 = vadd.s32 %v6825, %v6827
        %vm6831 = vc.u32 %v6825, %v6827
        %v6832 = vadd.s32 %v6828, 1
        %v6833 = vsel %vm6831, %v6832, %v6828
        %v6834 = vadd.s32 %v6829, %v6833
        %v6835 = vadd.s32 %v6834, 536870912
        %v6836 = vshrl.u32 %v6835, 30
        %v6837 = vshll.u32 %v6836, 30
        %v6838 = vsub.s32 %v6834, %v6837
        %vm6839 = vcmp.lt.s32.totalorder %v6838, 0
        %v6840 = vsub.s32 0, %v6838
        %v6841 = vsel %vm6839, %v6840, %v6838
        %v6842 = vclz %v6841
        %v6843 = vsub.s32 %v6842, 2
        %vm6844 = vcmp.gt.s32.totalorder 0, %v6843
        %v6845 = vsel %vm6844, 0, %v6843
        %v6846 = vsub.s32 32, %v6845
        %v6847 = vshll.u32 %v6838, %v6845
        %v6848 = vshrl.u32 %v6830, %v6846
        %v6849 = vor.u32 %v6847, %v6848
        %v6850 = vsub.s32 4294967266, %v6845
        %v6851 = vadd.s32 %v6850, 127
        %v6852 = vshll.u32 %v6851, 23
        %v6853 = vor.u32 4788187, %v6852
        %v6854 = vand.u32 2147483647, %v6853
        %v6856 = vcvt.s32.f32 %v6849
        %v6857 = vmul.f32 %v6856, %v6854
        %v6858 = vxor.u32 %v6857, 2147483648
        %v6859 = vsel %vm6776, %v6858, %v6857
        %v6860 = vsub.s32 4, %v6836
        %v6861 = vsel %vm6776, %v6860, %v6836
        %v6862 = vsel %vm6775, %v6667, %v6859
        %v6863 = vsel %vm6775, 0, %v6861
        %v6864 = vcosq.f32.pop %v6862
        %v6865 = vsinq.f32.pop %v6862
        %vm6866 = vweird.f32 %v6667
        %v6867 = vadd.s32 %v6863, 3
        %v6868 = vand.u32 %v6867, 3
        %vm6869 = vcmp.lt.s32.totalorder %v6868, 2
        %vm6870 = vcmp.eq.s32.totalorder %v6868, 0
        %v6871 = vxor.u32 %v6865, 2147483648
        %v6872 = vsel %vm6870, %v6864, %v6871
        %vm6873 = vcmp.eq.s32.totalorder %v6868, 2
        %v6874 = vxor.u32 %v6864, 2147483648
        %v6875 = vsel %vm6873, %v6874, %v6865
        %v6876 = vsel %vm6869, %v6872, %v6875
        %v6877 = vsel %vm6866, nan, %v6876
        %v6878 = vrcp.pop %v6666
        %v6879 = vrcp.pop %v6667
        %v6880 = vmul.f32 %v6666, %v6878
        %v6881 = vmul.f32 %v6667, %v6879
        %v6882 = vsub.f32 2.0, %v6880
        %v6883 = vsub.f32 2.0, %v6881
        %v6884 = vmul.f32 %v6878, %v6882
        %v6885 = vmul.f32 %v6879, %v6883
        %vm6886 = vcmp.lt.f32.partialorder %v6668, 1e-06
        %vm6887 = vcmp.lt.f32.partialorder %v6669, 1e-06
        %v6888 = vmul.f32 %v6668, 0.16666667
        %v6889 = vmul.f32 %v6669, 0.16666667
        %v6890 = vsub.f32 1.0, %v6888
        %v6891 = vsub.f32 1.0, %v6889
        %v6892 = vmul.f32 %v6773, %v6884
        %v6893 = vmul.f32 %v6877, %v6885
        %v6894 = vsel %vm6886, %v6890, %v6892
        %v6895 = vsel %vm6887, %v6891, %v6893
        %v6896 = vmul.f32 %v6652, %v6894
        %v6897 = vmul.f32 %v6653, %v6895
        %6898 = vset.pattern.permute.xlu0 26
        %6899 = vperm.xlu0 %6898, %v288
        %v6900 = vpop.permute.xlu0 %6899
        %6902 = vset.pattern.permute.xlu0 26
        %6903 = vperm.xlu0 %6902, %v289
        %v6904 = vpop.permute.xlu0 %6903
        %v6906 = vlaneseq
        %v6907 = vshrl.u32 %v6906, 7
        %v6908 = vsub.s32 2, %v6907
        %v6909 = vrot.slane %v297, %v6908
        %v6910 = vsub.f32 %v6900, %v6909
        %v6911 = vsub.f32 %v6904, %v6909
        %v6912 = vmul.f32 %v6910, %v6910
        %v6913 = vmul.f32 %v6911, %v6911
        %v6914 = vand.u32 2147483647, %v6910
        %vm6915 = vcmp.le.f32.partialorder %v6914, 0.7853982
        %vm6916 = vcmp.lt.s32.totalorder %v6910, 0
        %v6917 = vand.u32 %v6910, 2139095040
        %v6918 = vshrl.u32 %v6917, 23
        %v6919 = vsub.s32 %v6918, 127
        %v6920 = vand.u32 2147483647, %v6910
        %v6921 = vand.u32 %v6920, 8388607
        %v6922 = vor.u32 %v6921, 8388608
        %v6923 = vsub.s32 0, %v6922
        %v6924 = vadd.s32 %v6919, 1
        %vm6925 = vcmp.gt.s32.totalorder %v6924, 0
        %v6926 = vsel %vm6925, %v6924, 0
        %v6927 = vshrl.u32 %v6926, 5
        %v6928 = vand.u32 %v6926, 31
        %v6929 = vsub.s32 32, %v6928
        %v6930 = vshrl.u32 683565275, %v6929
        %v6931 = vshll.u32 683565275, %v6928
        %v6932 = vshrl.u32 2475754826, %v6929
        %v6933 = vor.u32 %v6931, %v6932
        %v6934 = vshll.u32 2475754826, %v6928
        %v6935 = vshrl.u32 2131351028, %v6929
        %v6936 = vor.u32 %v6934, %v6935
        %v6937 = vshll.u32 2131351028, %v6928
        %v6938 = vshrl.u32 2102212464, %v6929
        %v6939 = vor.u32 %v6937, %v6938
        %v6940 = vshll.u32 2102212464, %v6928
        %v6941 = vshrl.u32 920167782, %v6929
        %v6942 = vor.u32 %v6940, %v6941
        %v6943 = vshll.u32 920167782, %v6928
        %v6944 = vshrl.u32 1326507024, %v6929
        %v6945 = vor.u32 %v6943, %v6944
        %vm6946 = vcmp.lt.s32.totalorder %v6927, 1
        %vm6947 = vcmp.lt.s32.totalorder %v6927, 2
        %vm6948 = vcmp.lt.s32.totalorder %v6927, 3
        %vm6949 = vcmp.lt.s32.totalorder %v6927, 4
        %v6950 = vsel %vm6946, %v6930, %v6933
        %v6951 = vsel %vm6949, %v6939, 2102212464
        %v6952 = vsel %vm6948, %v6936, %v6951
        %v6953 = vsel %vm6947, %v6950, %v6952
        %v6954 = vsel %vm6946, %v6933, %v6936
        %v6955 = vsel %vm6949, %v6942, 920167782
        %v6956 = vsel %vm6948, %v6939, %v6955
        %v6957 = vsel %vm6947, %v6954, %v6956
        %v6958 = vsel %vm6946, %v6936, %v6939
        %v6959 = vsel %vm6949, %v6945, 1326507024
        %v6960 = vsel %vm6948, %v6942, %v6959
        %v6961 = vsel %vm6947, %v6958, %v6960
        %v6962 = vshll.u32 %v6922, 8
        %v6963 = vmul.u32.u64.compose %v6962, %v6961
        %v6964 = vextract.low.u32 %v6963
        %v6965 = vextract.high.u32 %v6963
        %v6966 = vmul.u32.u64.compose %v6962, %v6957
        %v6967 = vextract.low.u32 %v6966
        %v6968 = vextract.high.u32 %v6966
        %v6969 = vmul.u32 %v6962, %v6953
        %v6970 = vadd.s32 %v6965, %v6967
        %vm6971 = vc.u32 %v6965, %v6967
        %v6972 = vadd.s32 %v6968, 1
        %v6973 = vsel %vm6971, %v6972, %v6968
        %v6974 = vadd.s32 %v6969, %v6973
        %v6975 = vadd.s32 %v6974, 536870912
        %v6976 = vshrl.u32 %v6975, 30
        %v6977 = vshll.u32 %v6976, 30
        %v6978 = vsub.s32 %v6974, %v6977
        %vm6979 = vcmp.lt.s32.totalorder %v6978, 0
        %v6980 = vsub.s32 0, %v6978
        %v6981 = vsel %vm6979, %v6980, %v6978
        %v6982 = vclz %v6981
        %v6983 = vsub.s32 %v6982, 2
        %vm6984 = vcmp.gt.s32.totalorder 0, %v6983
        %v6985 = vsel %vm6984, 0, %v6983
        %v6986 = vsub.s32 32, %v6985
        %v6987 = vshll.u32 %v6978, %v6985
        %v6988 = vshrl.u32 %v6970, %v6986
        %v6989 = vor.u32 %v6987, %v6988
        %v6990 = vsub.s32 4294967266, %v6985
        %v6991 = vadd.s32 %v6990, 127
        %v6992 = vshll.u32 %v6991, 23
        %v6993 = vor.u32 4788187, %v6992
        %v6994 = vand.u32 2147483647, %v6993
        %v6996 = vcvt.s32.f32 %v6989
        %v6997 = vmul.f32 %v6996, %v6994
        %v6998 = vxor.u32 %v6997, 2147483648
        %v6999 = vsel %vm6916, %v6998, %v6997
        %v7000 = vsub.s32 4, %v6976
        %v7001 = vsel %vm6916, %v7000, %v6976
        %v7002 = vsel %vm6915, %v6910, %v6999
        %v7003 = vsel %vm6915, 0, %v7001
        %v7004 = vcosq.f32.pop %v7002
        %v7005 = vsinq.f32.pop %v7002
        %vm7006 = vweird.f32 %v6910
        %v7007 = vadd.s32 %v7003, 3
        %v7008 = vand.u32 %v7007, 3
        %vm7009 = vcmp.lt.s32.totalorder %v7008, 2
        %vm7010 = vcmp.eq.s32.totalorder %v7008, 0
        %v7011 = vxor.u32 %v7005, 2147483648
        %v7012 = vsel %vm7010, %v7004, %v7011
        %vm7013 = vcmp.eq.s32.totalorder %v7008, 2
        %v7014 = vxor.u32 %v7004, 2147483648
        %v7015 = vsel %vm7013, %v7014, %v7005
        %v7016 = vsel %vm7009, %v7012, %v7015
        %v7017 = vsel %vm7006, nan, %v7016
        %v7018 = vand.u32 2147483647, %v6911
        %vm7019 = vcmp.le.f32.partialorder %v7018, 0.7853982
        %vm7020 = vcmp.lt.s32.totalorder %v6911, 0
        %v7021 = vand.u32 %v6911, 2139095040
        %v7022 = vshrl.u32 %v7021, 23
        %v7023 = vsub.s32 %v7022, 127
        %v7024 = vand.u32 2147483647, %v6911
        %v7025 = vand.u32 %v7024, 8388607
        %v7026 = vor.u32 %v7025, 8388608
        %v7027 = vsub.s32 0, %v7026
        %v7028 = vadd.s32 %v7023, 1
        %vm7029 = vcmp.gt.s32.totalorder %v7028, 0
        %v7030 = vsel %vm7029, %v7028, 0
        %v7031 = vshrl.u32 %v7030, 5
        %v7032 = vand.u32 %v7030, 31
        %v7033 = vsub.s32 32, %v7032
        %v7034 = vshrl.u32 683565275, %v7033
        %v7035 = vshll.u32 683565275, %v7032
        %v7036 = vshrl.u32 2475754826, %v7033
        %v7037 = vor.u32 %v7035, %v7036
        %v7038 = vshll.u32 2475754826, %v7032
        %v7039 = vshrl.u32 2131351028, %v7033
        %v7040 = vor.u32 %v7038, %v7039
        %v7041 = vshll.u32 2131351028, %v7032
        %v7042 = vshrl.u32 2102212464, %v7033
        %v7043 = vor.u32 %v7041, %v7042
        %v7044 = vshll.u32 2102212464, %v7032
        %v7045 = vshrl.u32 920167782, %v7033
        %v7046 = vor.u32 %v7044, %v7045
        %v7047 = vshll.u32 920167782, %v7032
        %v7048 = vshrl.u32 1326507024, %v7033
        %v7049 = vor.u32 %v7047, %v7048
        %vm7050 = vcmp.lt.s32.totalorder %v7031, 1
        %vm7051 = vcmp.lt.s32.totalorder %v7031, 2
        %vm7052 = vcmp.lt.s32.totalorder %v7031, 3
        %vm7053 = vcmp.lt.s32.totalorder %v7031, 4
        %v7054 = vsel %vm7050, %v7034, %v7037
        %v7055 = vsel %vm7053, %v7043, 2102212464
        %v7056 = vsel %vm7052, %v7040, %v7055
        %v7057 = vsel %vm7051, %v7054, %v7056
        %v7058 = vsel %vm7050, %v7037, %v7040
        %v7059 = vsel %vm7053, %v7046, 920167782
        %v7060 = vsel %vm7052, %v7043, %v7059
        %v7061 = vsel %vm7051, %v7058, %v7060
        %v7062 = vsel %vm7050, %v7040, %v7043
        %v7063 = vsel %vm7053, %v7049, 1326507024
        %v7064 = vsel %vm7052, %v7046, %v7063
        %v7065 = vsel %vm7051, %v7062, %v7064
        %v7066 = vshll.u32 %v7026, 8
        %v7067 = vmul.u32.u64.compose %v7066, %v7065
        %v7068 = vextract.low.u32 %v7067
        %v7069 = vextract.high.u32 %v7067
        %v7070 = vmul.u32.u64.compose %v7066, %v7061
        %v7071 = vextract.low.u32 %v7070
        %v7072 = vextract.high.u32 %v7070
        %v7073 = vmul.u32 %v7066, %v7057
        %v7074 = vadd.s32 %v7069, %v7071
        %vm7075 = vc.u32 %v7069, %v7071
        %v7076 = vadd.s32 %v7072, 1
        %v7077 = vsel %vm7075, %v7076, %v7072
        %v7078 = vadd.s32 %v7073, %v7077
        %v7079 = vadd.s32 %v7078, 536870912
        %v7080 = vshrl.u32 %v7079, 30
        %v7081 = vshll.u32 %v7080, 30
        %v7082 = vsub.s32 %v7078, %v7081
        %vm7083 = vcmp.lt.s32.totalorder %v7082, 0
        %v7084 = vsub.s32 0, %v7082
        %v7085 = vsel %vm7083, %v7084, %v7082
        %v7086 = vclz %v7085
        %v7087 = vsub.s32 %v7086, 2
        %vm7088 = vcmp.gt.s32.totalorder 0, %v7087
        %v7089 = vsel %vm7088, 0, %v7087
        %v7090 = vsub.s32 32, %v7089
        %v7091 = vshll.u32 %v7082, %v7089
        %v7092 = vshrl.u32 %v7074, %v7090
        %v7093 = vor.u32 %v7091, %v7092
        %v7094 = vsub.s32 4294967266, %v7089
        %v7095 = vadd.s32 %v7094, 127
        %v7096 = vshll.u32 %v7095, 23
        %v7097 = vor.u32 4788187, %v7096
        %v7098 = vand.u32 2147483647, %v7097
        %v7100 = vcvt.s32.f32 %v7093
        %v7101 = vmul.f32 %v7100, %v7098
        %v7102 = vxor.u32 %v7101, 2147483648
        %v7103 = vsel %vm7020, %v7102, %v7101
        %v7104 = vsub.s32 4, %v7080
        %v7105 = vsel %vm7020, %v7104, %v7080
        %v7106 = vsel %vm7019, %v6911, %v7103
        %v7107 = vsel %vm7019, 0, %v7105
        %v7108 = vcosq.f32.pop %v7106
        %v7109 = vsinq.f32.pop %v7106
        %vm7110 = vweird.f32 %v6911
        %v7111 = vadd.s32 %v7107, 3
        %v7112 = vand.u32 %v7111, 3
        %vm7113 = vcmp.lt.s32.totalorder %v7112, 2
        %vm7114 = vcmp.eq.s32.totalorder %v7112, 0
        %v7115 = vxor.u32 %v7109, 2147483648
        %v7116 = vsel %vm7114, %v7108, %v7115
        %vm7117 = vcmp.eq.s32.totalorder %v7112, 2
        %v7118 = vxor.u32 %v7108, 2147483648
        %v7119 = vsel %vm7117, %v7118, %v7109
        %v7120 = vsel %vm7113, %v7116, %v7119
        %v7121 = vsel %vm7110, nan, %v7120
        %v7122 = vrcp.pop %v6910
        %v7123 = vrcp.pop %v6911
        %v7124 = vmul.f32 %v6910, %v7122
        %v7125 = vmul.f32 %v6911, %v7123
        %v7126 = vsub.f32 2.0, %v7124
        %v7127 = vsub.f32 2.0, %v7125
        %v7128 = vmul.f32 %v7122, %v7126
        %v7129 = vmul.f32 %v7123, %v7127
        %vm7130 = vcmp.lt.f32.partialorder %v6912, 1e-06
        %vm7131 = vcmp.lt.f32.partialorder %v6913, 1e-06
        %v7132 = vmul.f32 %v6912, 0.16666667
        %v7133 = vmul.f32 %v6913, 0.16666667
        %v7134 = vsub.f32 1.0, %v7132
        %v7135 = vsub.f32 1.0, %v7133
        %v7136 = vmul.f32 %v7017, %v7128
        %v7137 = vmul.f32 %v7121, %v7129
        %v7138 = vsel %vm7130, %v7134, %v7136
        %v7139 = vsel %vm7131, %v7135, %v7137
        %v7140 = vmul.f32 %v6896, %v7138
        %v7141 = vmul.f32 %v6897, %v7139
        %7142 = vset.pattern.permute.xlu0 27
        %7143 = vperm.xlu0 %7142, %v288
        %v7144 = vpop.permute.xlu0 %7143
        %7146 = vset.pattern.permute.xlu0 27
        %7147 = vperm.xlu0 %7146, %v289
        %v7148 = vpop.permute.xlu0 %7147
        %v7150 = vlaneseq
        %v7151 = vshrl.u32 %v7150, 7
        %v7152 = vsub.s32 3, %v7151
        %v7153 = vrot.slane %v297, %v7152
        %v7154 = vsub.f32 %v7144, %v7153
        %v7155 = vsub.f32 %v7148, %v7153
        %v7156 = vmul.f32 %v7154, %v7154
        %v7157 = vmul.f32 %v7155, %v7155
        %v7158 = vand.u32 2147483647, %v7154
        %vm7159 = vcmp.le.f32.partialorder %v7158, 0.7853982
        %vm7160 = vcmp.lt.s32.totalorder %v7154, 0
        %v7161 = vand.u32 %v7154, 2139095040
        %v7162 = vshrl.u32 %v7161, 23
        %v7163 = vsub.s32 %v7162, 127
        %v7164 = vand.u32 2147483647, %v7154
        %v7165 = vand.u32 %v7164, 8388607
        %v7166 = vor.u32 %v7165, 8388608
        %v7167 = vsub.s32 0, %v7166
        %v7168 = vadd.s32 %v7163, 1
        %vm7169 = vcmp.gt.s32.totalorder %v7168, 0
        %v7170 = vsel %vm7169, %v7168, 0
        %v7171 = vshrl.u32 %v7170, 5
        %v7172 = vand.u32 %v7170, 31
        %v7173 = vsub.s32 32, %v7172
        %v7174 = vshrl.u32 683565275, %v7173
        %v7175 = vshll.u32 683565275, %v7172
        %v7176 = vshrl.u32 2475754826, %v7173
        %v7177 = vor.u32 %v7175, %v7176
        %v7178 = vshll.u32 2475754826, %v7172
        %v7179 = vshrl.u32 2131351028, %v7173
        %v7180 = vor.u32 %v7178, %v7179
        %v7181 = vshll.u32 2131351028, %v7172
        %v7182 = vshrl.u32 2102212464, %v7173
        %v7183 = vor.u32 %v7181, %v7182
        %v7184 = vshll.u32 2102212464, %v7172
        %v7185 = vshrl.u32 920167782, %v7173
        %v7186 = vor.u32 %v7184, %v7185
        %v7187 = vshll.u32 920167782, %v7172
        %v7188 = vshrl.u32 1326507024, %v7173
        %v7189 = vor.u32 %v7187, %v7188
        %vm7190 = vcmp.lt.s32.totalorder %v7171, 1
        %vm7191 = vcmp.lt.s32.totalorder %v7171, 2
        %vm7192 = vcmp.lt.s32.totalorder %v7171, 3
        %vm7193 = vcmp.lt.s32.totalorder %v7171, 4
        %v7194 = vsel %vm7190, %v7174, %v7177
        %v7195 = vsel %vm7193, %v7183, 2102212464
        %v7196 = vsel %vm7192, %v7180, %v7195
        %v7197 = vsel %vm7191, %v7194, %v7196
        %v7198 = vsel %vm7190, %v7177, %v7180
        %v7199 = vsel %vm7193, %v7186, 920167782
        %v7200 = vsel %vm7192, %v7183, %v7199
        %v7201 = vsel %vm7191, %v7198, %v7200
        %v7202 = vsel %vm7190, %v7180, %v7183
        %v7203 = vsel %vm7193, %v7189, 1326507024
        %v7204 = vsel %vm7192, %v7186, %v7203
        %v7205 = vsel %vm7191, %v7202, %v7204
        %v7206 = vshll.u32 %v7166, 8
        %v7207 = vmul.u32.u64.compose %v7206, %v7205
        %v7208 = vextract.low.u32 %v7207
        %v7209 = vextract.high.u32 %v7207
        %v7210 = vmul.u32.u64.compose %v7206, %v7201
        %v7211 = vextract.low.u32 %v7210
        %v7212 = vextract.high.u32 %v7210
        %v7213 = vmul.u32 %v7206, %v7197
        %v7214 = vadd.s32 %v7209, %v7211
        %vm7215 = vc.u32 %v7209, %v7211
        %v7216 = vadd.s32 %v7212, 1
        %v7217 = vsel %vm7215, %v7216, %v7212
        %v7218 = vadd.s32 %v7213, %v7217
        %v7219 = vadd.s32 %v7218, 536870912
        %v7220 = vshrl.u32 %v7219, 30
        %v7221 = vshll.u32 %v7220, 30
        %v7222 = vsub.s32 %v7218, %v7221
        %vm7223 = vcmp.lt.s32.totalorder %v7222, 0
        %v7224 = vsub.s32 0, %v7222
        %v7225 = vsel %vm7223, %v7224, %v7222
        %v7226 = vclz %v7225
        %v7227 = vsub.s32 %v7226, 2
        %vm7228 = vcmp.gt.s32.totalorder 0, %v7227
        %v7229 = vsel %vm7228, 0, %v7227
        %v7230 = vsub.s32 32, %v7229
        %v7231 = vshll.u32 %v7222, %v7229
        %v7232 = vshrl.u32 %v7214, %v7230
        %v7233 = vor.u32 %v7231, %v7232
        %v7234 = vsub.s32 4294967266, %v7229
        %v7235 = vadd.s32 %v7234, 127
        %v7236 = vshll.u32 %v7235, 23
        %v7237 = vor.u32 4788187, %v7236
        %v7238 = vand.u32 2147483647, %v7237
        %v7240 = vcvt.s32.f32 %v7233
        %v7241 = vmul.f32 %v7240, %v7238
        %v7242 = vxor.u32 %v7241, 2147483648
        %v7243 = vsel %vm7160, %v7242, %v7241
        %v7244 = vsub.s32 4, %v7220
        %v7245 = vsel %vm7160, %v7244, %v7220
        %v7246 = vsel %vm7159, %v7154, %v7243
        %v7247 = vsel %vm7159, 0, %v7245
        %v7248 = vcosq.f32.pop %v7246
        %v7249 = vsinq.f32.pop %v7246
        %vm7250 = vweird.f32 %v7154
        %v7251 = vadd.s32 %v7247, 3
        %v7252 = vand.u32 %v7251, 3
        %vm7253 = vcmp.lt.s32.totalorder %v7252, 2
        %vm7254 = vcmp.eq.s32.totalorder %v7252, 0
        %v7255 = vxor.u32 %v7249, 2147483648
        %v7256 = vsel %vm7254, %v7248, %v7255
        %vm7257 = vcmp.eq.s32.totalorder %v7252, 2
        %v7258 = vxor.u32 %v7248, 2147483648
        %v7259 = vsel %vm7257, %v7258, %v7249
        %v7260 = vsel %vm7253, %v7256, %v7259
        %v7261 = vsel %vm7250, nan, %v7260
        %v7262 = vand.u32 2147483647, %v7155
        %vm7263 = vcmp.le.f32.partialorder %v7262, 0.7853982
        %vm7264 = vcmp.lt.s32.totalorder %v7155, 0
        %v7265 = vand.u32 %v7155, 2139095040
        %v7266 = vshrl.u32 %v7265, 23
        %v7267 = vsub.s32 %v7266, 127
        %v7268 = vand.u32 2147483647, %v7155
        %v7269 = vand.u32 %v7268, 8388607
        %v7270 = vor.u32 %v7269, 8388608
        %v7271 = vsub.s32 0, %v7270
        %v7272 = vadd.s32 %v7267, 1
        %vm7273 = vcmp.gt.s32.totalorder %v7272, 0
        %v7274 = vsel %vm7273, %v7272, 0
        %v7275 = vshrl.u32 %v7274, 5
        %v7276 = vand.u32 %v7274, 31
        %v7277 = vsub.s32 32, %v7276
        %v7278 = vshrl.u32 683565275, %v7277
        %v7279 = vshll.u32 683565275, %v7276
        %v7280 = vshrl.u32 2475754826, %v7277
        %v7281 = vor.u32 %v7279, %v7280
        %v7282 = vshll.u32 2475754826, %v7276
        %v7283 = vshrl.u32 2131351028, %v7277
        %v7284 = vor.u32 %v7282, %v7283
        %v7285 = vshll.u32 2131351028, %v7276
        %v7286 = vshrl.u32 2102212464, %v7277
        %v7287 = vor.u32 %v7285, %v7286
        %v7288 = vshll.u32 2102212464, %v7276
        %v7289 = vshrl.u32 920167782, %v7277
        %v7290 = vor.u32 %v7288, %v7289
        %v7291 = vshll.u32 920167782, %v7276
        %v7292 = vshrl.u32 1326507024, %v7277
        %v7293 = vor.u32 %v7291, %v7292
        %vm7294 = vcmp.lt.s32.totalorder %v7275, 1
        %vm7295 = vcmp.lt.s32.totalorder %v7275, 2
        %vm7296 = vcmp.lt.s32.totalorder %v7275, 3
        %vm7297 = vcmp.lt.s32.totalorder %v7275, 4
        %v7298 = vsel %vm7294, %v7278, %v7281
        %v7299 = vsel %vm7297, %v7287, 2102212464
        %v7300 = vsel %vm7296, %v7284, %v7299
        %v7301 = vsel %vm7295, %v7298, %v7300
        %v7302 = vsel %vm7294, %v7281, %v7284
        %v7303 = vsel %vm7297, %v7290, 920167782
        %v7304 = vsel %vm7296, %v7287, %v7303
        %v7305 = vsel %vm7295, %v7302, %v7304
        %v7306 = vsel %vm7294, %v7284, %v7287
        %v7307 = vsel %vm7297, %v7293, 1326507024
        %v7308 = vsel %vm7296, %v7290, %v7307
        %v7309 = vsel %vm7295, %v7306, %v7308
        %v7310 = vshll.u32 %v7270, 8
        %v7311 = vmul.u32.u64.compose %v7310, %v7309
        %v7312 = vextract.low.u32 %v7311
        %v7313 = vextract.high.u32 %v7311
        %v7314 = vmul.u32.u64.compose %v7310, %v7305
        %v7315 = vextract.low.u32 %v7314
        %v7316 = vextract.high.u32 %v7314
        %v7317 = vmul.u32 %v7310, %v7301
        %v7318 = vadd.s32 %v7313, %v7315
        %vm7319 = vc.u32 %v7313, %v7315
        %v7320 = vadd.s32 %v7316, 1
        %v7321 = vsel %vm7319, %v7320, %v7316
        %v7322 = vadd.s32 %v7317, %v7321
        %v7323 = vadd.s32 %v7322, 536870912
        %v7324 = vshrl.u32 %v7323, 30
        %v7325 = vshll.u32 %v7324, 30
        %v7326 = vsub.s32 %v7322, %v7325
        %vm7327 = vcmp.lt.s32.totalorder %v7326, 0
        %v7328 = vsub.s32 0, %v7326
        %v7329 = vsel %vm7327, %v7328, %v7326
        %v7330 = vclz %v7329
        %v7331 = vsub.s32 %v7330, 2
        %vm7332 = vcmp.gt.s32.totalorder 0, %v7331
        %v7333 = vsel %vm7332, 0, %v7331
        %v7334 = vsub.s32 32, %v7333
        %v7335 = vshll.u32 %v7326, %v7333
        %v7336 = vshrl.u32 %v7318, %v7334
        %v7337 = vor.u32 %v7335, %v7336
        %v7338 = vsub.s32 4294967266, %v7333
        %v7339 = vadd.s32 %v7338, 127
        %v7340 = vshll.u32 %v7339, 23
        %v7341 = vor.u32 4788187, %v7340
        %v7342 = vand.u32 2147483647, %v7341
        %v7344 = vcvt.s32.f32 %v7337
        %v7345 = vmul.f32 %v7344, %v7342
        %v7346 = vxor.u32 %v7345, 2147483648
        %v7347 = vsel %vm7264, %v7346, %v7345
        %v7348 = vsub.s32 4, %v7324
        %v7349 = vsel %vm7264, %v7348, %v7324
        %v7350 = vsel %vm7263, %v7155, %v7347
        %v7351 = vsel %vm7263, 0, %v7349
        %v7352 = vcosq.f32.pop %v7350
        %v7353 = vsinq.f32.pop %v7350
        %vm7354 = vweird.f32 %v7155
        %v7355 = vadd.s32 %v7351, 3
        %v7356 = vand.u32 %v7355, 3
        %vm7357 = vcmp.lt.s32.totalorder %v7356, 2
        %vm7358 = vcmp.eq.s32.totalorder %v7356, 0
        %v7359 = vxor.u32 %v7353, 2147483648
        %v7360 = vsel %vm7358, %v7352, %v7359
        %vm7361 = vcmp.eq.s32.totalorder %v7356, 2
        %v7362 = vxor.u32 %v7352, 2147483648
        %v7363 = vsel %vm7361, %v7362, %v7353
        %v7364 = vsel %vm7357, %v7360, %v7363
        %v7365 = vsel %vm7354, nan, %v7364
        %v7366 = vrcp.pop %v7154
        %v7367 = vrcp.pop %v7155
        %v7368 = vmul.f32 %v7154, %v7366
        %v7369 = vmul.f32 %v7155, %v7367
        %v7370 = vsub.f32 2.0, %v7368
        %v7371 = vsub.f32 2.0, %v7369
        %v7372 = vmul.f32 %v7366, %v7370
        %v7373 = vmul.f32 %v7367, %v7371
        %vm7374 = vcmp.lt.f32.partialorder %v7156, 1e-06
        %vm7375 = vcmp.lt.f32.partialorder %v7157, 1e-06
        %v7376 = vmul.f32 %v7156, 0.16666667
        %v7377 = vmul.f32 %v7157, 0.16666667
        %v7378 = vsub.f32 1.0, %v7376
        %v7379 = vsub.f32 1.0, %v7377
        %v7380 = vmul.f32 %v7261, %v7372
        %v7381 = vmul.f32 %v7365, %v7373
        %v7382 = vsel %vm7374, %v7378, %v7380
        %v7383 = vsel %vm7375, %v7379, %v7381
        %v7384 = vmul.f32 %v7140, %v7382
        %v7385 = vmul.f32 %v7141, %v7383
        %7386 = vset.pattern.permute.xlu0 28
        %7387 = vperm.xlu0 %7386, %v288
        %v7388 = vpop.permute.xlu0 %7387
        %7390 = vset.pattern.permute.xlu0 28
        %7391 = vperm.xlu0 %7390, %v289
        %v7392 = vpop.permute.xlu0 %7391
        %v7394 = vlaneseq
        %v7395 = vshrl.u32 %v7394, 7
        %v7396 = vsub.s32 4, %v7395
        %v7397 = vrot.slane %v297, %v7396
        %v7398 = vsub.f32 %v7388, %v7397
        %v7399 = vsub.f32 %v7392, %v7397
        %v7400 = vmul.f32 %v7398, %v7398
        %v7401 = vmul.f32 %v7399, %v7399
        %v7402 = vand.u32 2147483647, %v7398
        %vm7403 = vcmp.le.f32.partialorder %v7402, 0.7853982
        %vm7404 = vcmp.lt.s32.totalorder %v7398, 0
        %v7405 = vand.u32 %v7398, 2139095040
        %v7406 = vshrl.u32 %v7405, 23
        %v7407 = vsub.s32 %v7406, 127
        %v7408 = vand.u32 2147483647, %v7398
        %v7409 = vand.u32 %v7408, 8388607
        %v7410 = vor.u32 %v7409, 8388608
        %v7411 = vsub.s32 0, %v7410
        %v7412 = vadd.s32 %v7407, 1
        %vm7413 = vcmp.gt.s32.totalorder %v7412, 0
        %v7414 = vsel %vm7413, %v7412, 0
        %v7415 = vshrl.u32 %v7414, 5
        %v7416 = vand.u32 %v7414, 31
        %v7417 = vsub.s32 32, %v7416
        %v7418 = vshrl.u32 683565275, %v7417
        %v7419 = vshll.u32 683565275, %v7416
        %v7420 = vshrl.u32 2475754826, %v7417
        %v7421 = vor.u32 %v7419, %v7420
        %v7422 = vshll.u32 2475754826, %v7416
        %v7423 = vshrl.u32 2131351028, %v7417
        %v7424 = vor.u32 %v7422, %v7423
        %v7425 = vshll.u32 2131351028, %v7416
        %v7426 = vshrl.u32 2102212464, %v7417
        %v7427 = vor.u32 %v7425, %v7426
        %v7428 = vshll.u32 2102212464, %v7416
        %v7429 = vshrl.u32 920167782, %v7417
        %v7430 = vor.u32 %v7428, %v7429
        %v7431 = vshll.u32 920167782, %v7416
        %v7432 = vshrl.u32 1326507024, %v7417
        %v7433 = vor.u32 %v7431, %v7432
        %vm7434 = vcmp.lt.s32.totalorder %v7415, 1
        %vm7435 = vcmp.lt.s32.totalorder %v7415, 2
        %vm7436 = vcmp.lt.s32.totalorder %v7415, 3
        %vm7437 = vcmp.lt.s32.totalorder %v7415, 4
        %v7438 = vsel %vm7434, %v7418, %v7421
        %v7439 = vsel %vm7437, %v7427, 2102212464
        %v7440 = vsel %vm7436, %v7424, %v7439
        %v7441 = vsel %vm7435, %v7438, %v7440
        %v7442 = vsel %vm7434, %v7421, %v7424
        %v7443 = vsel %vm7437, %v7430, 920167782
        %v7444 = vsel %vm7436, %v7427, %v7443
        %v7445 = vsel %vm7435, %v7442, %v7444
        %v7446 = vsel %vm7434, %v7424, %v7427
        %v7447 = vsel %vm7437, %v7433, 1326507024
        %v7448 = vsel %vm7436, %v7430, %v7447
        %v7449 = vsel %vm7435, %v7446, %v7448
        %v7450 = vshll.u32 %v7410, 8
        %v7451 = vmul.u32.u64.compose %v7450, %v7449
        %v7452 = vextract.low.u32 %v7451
        %v7453 = vextract.high.u32 %v7451
        %v7454 = vmul.u32.u64.compose %v7450, %v7445
        %v7455 = vextract.low.u32 %v7454
        %v7456 = vextract.high.u32 %v7454
        %v7457 = vmul.u32 %v7450, %v7441
        %v7458 = vadd.s32 %v7453, %v7455
        %vm7459 = vc.u32 %v7453, %v7455
        %v7460 = vadd.s32 %v7456, 1
        %v7461 = vsel %vm7459, %v7460, %v7456
        %v7462 = vadd.s32 %v7457, %v7461
        %v7463 = vadd.s32 %v7462, 536870912
        %v7464 = vshrl.u32 %v7463, 30
        %v7465 = vshll.u32 %v7464, 30
        %v7466 = vsub.s32 %v7462, %v7465
        %vm7467 = vcmp.lt.s32.totalorder %v7466, 0
        %v7468 = vsub.s32 0, %v7466
        %v7469 = vsel %vm7467, %v7468, %v7466
        %v7470 = vclz %v7469
        %v7471 = vsub.s32 %v7470, 2
        %vm7472 = vcmp.gt.s32.totalorder 0, %v7471
        %v7473 = vsel %vm7472, 0, %v7471
        %v7474 = vsub.s32 32, %v7473
        %v7475 = vshll.u32 %v7466, %v7473
        %v7476 = vshrl.u32 %v7458, %v7474
        %v7477 = vor.u32 %v7475, %v7476
        %v7478 = vsub.s32 4294967266, %v7473
        %v7479 = vadd.s32 %v7478, 127
        %v7480 = vshll.u32 %v7479, 23
        %v7481 = vor.u32 4788187, %v7480
        %v7482 = vand.u32 2147483647, %v7481
        %v7484 = vcvt.s32.f32 %v7477
        %v7485 = vmul.f32 %v7484, %v7482
        %v7486 = vxor.u32 %v7485, 2147483648
        %v7487 = vsel %vm7404, %v7486, %v7485
        %v7488 = vsub.s32 4, %v7464
        %v7489 = vsel %vm7404, %v7488, %v7464
        %v7490 = vsel %vm7403, %v7398, %v7487
        %v7491 = vsel %vm7403, 0, %v7489
        %v7492 = vcosq.f32.pop %v7490
        %v7493 = vsinq.f32.pop %v7490
        %vm7494 = vweird.f32 %v7398
        %v7495 = vadd.s32 %v7491, 3
        %v7496 = vand.u32 %v7495, 3
        %vm7497 = vcmp.lt.s32.totalorder %v7496, 2
        %vm7498 = vcmp.eq.s32.totalorder %v7496, 0
        %v7499 = vxor.u32 %v7493, 2147483648
        %v7500 = vsel %vm7498, %v7492, %v7499
        %vm7501 = vcmp.eq.s32.totalorder %v7496, 2
        %v7502 = vxor.u32 %v7492, 2147483648
        %v7503 = vsel %vm7501, %v7502, %v7493
        %v7504 = vsel %vm7497, %v7500, %v7503
        %v7505 = vsel %vm7494, nan, %v7504
        %v7506 = vand.u32 2147483647, %v7399
        %vm7507 = vcmp.le.f32.partialorder %v7506, 0.7853982
        %vm7508 = vcmp.lt.s32.totalorder %v7399, 0
        %v7509 = vand.u32 %v7399, 2139095040
        %v7510 = vshrl.u32 %v7509, 23
        %v7511 = vsub.s32 %v7510, 127
        %v7512 = vand.u32 2147483647, %v7399
        %v7513 = vand.u32 %v7512, 8388607
        %v7514 = vor.u32 %v7513, 8388608
        %v7515 = vsub.s32 0, %v7514
        %v7516 = vadd.s32 %v7511, 1
        %vm7517 = vcmp.gt.s32.totalorder %v7516, 0
        %v7518 = vsel %vm7517, %v7516, 0
        %v7519 = vshrl.u32 %v7518, 5
        %v7520 = vand.u32 %v7518, 31
        %v7521 = vsub.s32 32, %v7520
        %v7522 = vshrl.u32 683565275, %v7521
        %v7523 = vshll.u32 683565275, %v7520
        %v7524 = vshrl.u32 2475754826, %v7521
        %v7525 = vor.u32 %v7523, %v7524
        %v7526 = vshll.u32 2475754826, %v7520
        %v7527 = vshrl.u32 2131351028, %v7521
        %v7528 = vor.u32 %v7526, %v7527
        %v7529 = vshll.u32 2131351028, %v7520
        %v7530 = vshrl.u32 2102212464, %v7521
        %v7531 = vor.u32 %v7529, %v7530
        %v7532 = vshll.u32 2102212464, %v7520
        %v7533 = vshrl.u32 920167782, %v7521
        %v7534 = vor.u32 %v7532, %v7533
        %v7535 = vshll.u32 920167782, %v7520
        %v7536 = vshrl.u32 1326507024, %v7521
        %v7537 = vor.u32 %v7535, %v7536
        %vm7538 = vcmp.lt.s32.totalorder %v7519, 1
        %vm7539 = vcmp.lt.s32.totalorder %v7519, 2
        %vm7540 = vcmp.lt.s32.totalorder %v7519, 3
        %vm7541 = vcmp.lt.s32.totalorder %v7519, 4
        %v7542 = vsel %vm7538, %v7522, %v7525
        %v7543 = vsel %vm7541, %v7531, 2102212464
        %v7544 = vsel %vm7540, %v7528, %v7543
        %v7545 = vsel %vm7539, %v7542, %v7544
        %v7546 = vsel %vm7538, %v7525, %v7528
        %v7547 = vsel %vm7541, %v7534, 920167782
        %v7548 = vsel %vm7540, %v7531, %v7547
        %v7549 = vsel %vm7539, %v7546, %v7548
        %v7550 = vsel %vm7538, %v7528, %v7531
        %v7551 = vsel %vm7541, %v7537, 1326507024
        %v7552 = vsel %vm7540, %v7534, %v7551
        %v7553 = vsel %vm7539, %v7550, %v7552
        %v7554 = vshll.u32 %v7514, 8
        %v7555 = vmul.u32.u64.compose %v7554, %v7553
        %v7556 = vextract.low.u32 %v7555
        %v7557 = vextract.high.u32 %v7555
        %v7558 = vmul.u32.u64.compose %v7554, %v7549
        %v7559 = vextract.low.u32 %v7558
        %v7560 = vextract.high.u32 %v7558
        %v7561 = vmul.u32 %v7554, %v7545
        %v7562 = vadd.s32 %v7557, %v7559
        %vm7563 = vc.u32 %v7557, %v7559
        %v7564 = vadd.s32 %v7560, 1
        %v7565 = vsel %vm7563, %v7564, %v7560
        %v7566 = vadd.s32 %v7561, %v7565
        %v7567 = vadd.s32 %v7566, 536870912
        %v7568 = vshrl.u32 %v7567, 30
        %v7569 = vshll.u32 %v7568, 30
        %v7570 = vsub.s32 %v7566, %v7569
        %vm7571 = vcmp.lt.s32.totalorder %v7570, 0
        %v7572 = vsub.s32 0, %v7570
        %v7573 = vsel %vm7571, %v7572, %v7570
        %v7574 = vclz %v7573
        %v7575 = vsub.s32 %v7574, 2
        %vm7576 = vcmp.gt.s32.totalorder 0, %v7575
        %v7577 = vsel %vm7576, 0, %v7575
        %v7578 = vsub.s32 32, %v7577
        %v7579 = vshll.u32 %v7570, %v7577
        %v7580 = vshrl.u32 %v7562, %v7578
        %v7581 = vor.u32 %v7579, %v7580
        %v7582 = vsub.s32 4294967266, %v7577
        %v7583 = vadd.s32 %v7582, 127
        %v7584 = vshll.u32 %v7583, 23
        %v7585 = vor.u32 4788187, %v7584
        %v7586 = vand.u32 2147483647, %v7585
        %v7588 = vcvt.s32.f32 %v7581
        %v7589 = vmul.f32 %v7588, %v7586
        %v7590 = vxor.u32 %v7589, 2147483648
        %v7591 = vsel %vm7508, %v7590, %v7589
        %v7592 = vsub.s32 4, %v7568
        %v7593 = vsel %vm7508, %v7592, %v7568
        %v7594 = vsel %vm7507, %v7399, %v7591
        %v7595 = vsel %vm7507, 0, %v7593
        %v7596 = vcosq.f32.pop %v7594
        %v7597 = vsinq.f32.pop %v7594
        %vm7598 = vweird.f32 %v7399
        %v7599 = vadd.s32 %v7595, 3
        %v7600 = vand.u32 %v7599, 3
        %vm7601 = vcmp.lt.s32.totalorder %v7600, 2
        %vm7602 = vcmp.eq.s32.totalorder %v7600, 0
        %v7603 = vxor.u32 %v7597, 2147483648
        %v7604 = vsel %vm7602, %v7596, %v7603
        %vm7605 = vcmp.eq.s32.totalorder %v7600, 2
        %v7606 = vxor.u32 %v7596, 2147483648
        %v7607 = vsel %vm7605, %v7606, %v7597
        %v7608 = vsel %vm7601, %v7604, %v7607
        %v7609 = vsel %vm7598, nan, %v7608
        %v7610 = vrcp.pop %v7398
        %v7611 = vrcp.pop %v7399
        %v7612 = vmul.f32 %v7398, %v7610
        %v7613 = vmul.f32 %v7399, %v7611
        %v7614 = vsub.f32 2.0, %v7612
        %v7615 = vsub.f32 2.0, %v7613
        %v7616 = vmul.f32 %v7610, %v7614
        %v7617 = vmul.f32 %v7611, %v7615
        %vm7618 = vcmp.lt.f32.partialorder %v7400, 1e-06
        %vm7619 = vcmp.lt.f32.partialorder %v7401, 1e-06
        %v7620 = vmul.f32 %v7400, 0.16666667
        %v7621 = vmul.f32 %v7401, 0.16666667
        %v7622 = vsub.f32 1.0, %v7620
        %v7623 = vsub.f32 1.0, %v7621
        %v7624 = vmul.f32 %v7505, %v7616
        %v7625 = vmul.f32 %v7609, %v7617
        %v7626 = vsel %vm7618, %v7622, %v7624
        %v7627 = vsel %vm7619, %v7623, %v7625
        %v7628 = vmul.f32 %v7384, %v7626
        %v7629 = vmul.f32 %v7385, %v7627
        %7630 = vset.pattern.permute.xlu0 29
        %7631 = vperm.xlu0 %7630, %v288
        %v7632 = vpop.permute.xlu0 %7631
        %7634 = vset.pattern.permute.xlu0 29
        %7635 = vperm.xlu0 %7634, %v289
        %v7636 = vpop.permute.xlu0 %7635
        %v7638 = vlaneseq
        %v7639 = vshrl.u32 %v7638, 7
        %v7640 = vsub.s32 5, %v7639
        %v7641 = vrot.slane %v297, %v7640
        %v7642 = vsub.f32 %v7632, %v7641
        %v7643 = vsub.f32 %v7636, %v7641
        %v7644 = vmul.f32 %v7642, %v7642
        %v7645 = vmul.f32 %v7643, %v7643
        %v7646 = vand.u32 2147483647, %v7642
        %vm7647 = vcmp.le.f32.partialorder %v7646, 0.7853982
        %vm7648 = vcmp.lt.s32.totalorder %v7642, 0
        %v7649 = vand.u32 %v7642, 2139095040
        %v7650 = vshrl.u32 %v7649, 23
        %v7651 = vsub.s32 %v7650, 127
        %v7652 = vand.u32 2147483647, %v7642
        %v7653 = vand.u32 %v7652, 8388607
        %v7654 = vor.u32 %v7653, 8388608
        %v7655 = vsub.s32 0, %v7654
        %v7656 = vadd.s32 %v7651, 1
        %vm7657 = vcmp.gt.s32.totalorder %v7656, 0
        %v7658 = vsel %vm7657, %v7656, 0
        %v7659 = vshrl.u32 %v7658, 5
        %v7660 = vand.u32 %v7658, 31
        %v7661 = vsub.s32 32, %v7660
        %v7662 = vshrl.u32 683565275, %v7661
        %v7663 = vshll.u32 683565275, %v7660
        %v7664 = vshrl.u32 2475754826, %v7661
        %v7665 = vor.u32 %v7663, %v7664
        %v7666 = vshll.u32 2475754826, %v7660
        %v7667 = vshrl.u32 2131351028, %v7661
        %v7668 = vor.u32 %v7666, %v7667
        %v7669 = vshll.u32 2131351028, %v7660
        %v7670 = vshrl.u32 2102212464, %v7661
        %v7671 = vor.u32 %v7669, %v7670
        %v7672 = vshll.u32 2102212464, %v7660
        %v7673 = vshrl.u32 920167782, %v7661
        %v7674 = vor.u32 %v7672, %v7673
        %v7675 = vshll.u32 920167782, %v7660
        %v7676 = vshrl.u32 1326507024, %v7661
        %v7677 = vor.u32 %v7675, %v7676
        %vm7678 = vcmp.lt.s32.totalorder %v7659, 1
        %vm7679 = vcmp.lt.s32.totalorder %v7659, 2
        %vm7680 = vcmp.lt.s32.totalorder %v7659, 3
        %vm7681 = vcmp.lt.s32.totalorder %v7659, 4
        %v7682 = vsel %vm7678, %v7662, %v7665
        %v7683 = vsel %vm7681, %v7671, 2102212464
        %v7684 = vsel %vm7680, %v7668, %v7683
        %v7685 = vsel %vm7679, %v7682, %v7684
        %v7686 = vsel %vm7678, %v7665, %v7668
        %v7687 = vsel %vm7681, %v7674, 920167782
        %v7688 = vsel %vm7680, %v7671, %v7687
        %v7689 = vsel %vm7679, %v7686, %v7688
        %v7690 = vsel %vm7678, %v7668, %v7671
        %v7691 = vsel %vm7681, %v7677, 1326507024
        %v7692 = vsel %vm7680, %v7674, %v7691
        %v7693 = vsel %vm7679, %v7690, %v7692
        %v7694 = vshll.u32 %v7654, 8
        %v7695 = vmul.u32.u64.compose %v7694, %v7693
        %v7696 = vextract.low.u32 %v7695
        %v7697 = vextract.high.u32 %v7695
        %v7698 = vmul.u32.u64.compose %v7694, %v7689
        %v7699 = vextract.low.u32 %v7698
        %v7700 = vextract.high.u32 %v7698
        %v7701 = vmul.u32 %v7694, %v7685
        %v7702 = vadd.s32 %v7697, %v7699
        %vm7703 = vc.u32 %v7697, %v7699
        %v7704 = vadd.s32 %v7700, 1
        %v7705 = vsel %vm7703, %v7704, %v7700
        %v7706 = vadd.s32 %v7701, %v7705
        %v7707 = vadd.s32 %v7706, 536870912
        %v7708 = vshrl.u32 %v7707, 30
        %v7709 = vshll.u32 %v7708, 30
        %v7710 = vsub.s32 %v7706, %v7709
        %vm7711 = vcmp.lt.s32.totalorder %v7710, 0
        %v7712 = vsub.s32 0, %v7710
        %v7713 = vsel %vm7711, %v7712, %v7710
        %v7714 = vclz %v7713
        %v7715 = vsub.s32 %v7714, 2
        %vm7716 = vcmp.gt.s32.totalorder 0, %v7715
        %v7717 = vsel %vm7716, 0, %v7715
        %v7718 = vsub.s32 32, %v7717
        %v7719 = vshll.u32 %v7710, %v7717
        %v7720 = vshrl.u32 %v7702, %v7718
        %v7721 = vor.u32 %v7719, %v7720
        %v7722 = vsub.s32 4294967266, %v7717
        %v7723 = vadd.s32 %v7722, 127
        %v7724 = vshll.u32 %v7723, 23
        %v7725 = vor.u32 4788187, %v7724
        %v7726 = vand.u32 2147483647, %v7725
        %v7728 = vcvt.s32.f32 %v7721
        %v7729 = vmul.f32 %v7728, %v7726
        %v7730 = vxor.u32 %v7729, 2147483648
        %v7731 = vsel %vm7648, %v7730, %v7729
        %v7732 = vsub.s32 4, %v7708
        %v7733 = vsel %vm7648, %v7732, %v7708
        %v7734 = vsel %vm7647, %v7642, %v7731
        %v7735 = vsel %vm7647, 0, %v7733
        %v7736 = vcosq.f32.pop %v7734
        %v7737 = vsinq.f32.pop %v7734
        %vm7738 = vweird.f32 %v7642
        %v7739 = vadd.s32 %v7735, 3
        %v7740 = vand.u32 %v7739, 3
        %vm7741 = vcmp.lt.s32.totalorder %v7740, 2
        %vm7742 = vcmp.eq.s32.totalorder %v7740, 0
        %v7743 = vxor.u32 %v7737, 2147483648
        %v7744 = vsel %vm7742, %v7736, %v7743
        %vm7745 = vcmp.eq.s32.totalorder %v7740, 2
        %v7746 = vxor.u32 %v7736, 2147483648
        %v7747 = vsel %vm7745, %v7746, %v7737
        %v7748 = vsel %vm7741, %v7744, %v7747
        %v7749 = vsel %vm7738, nan, %v7748
        %v7750 = vand.u32 2147483647, %v7643
        %vm7751 = vcmp.le.f32.partialorder %v7750, 0.7853982
        %vm7752 = vcmp.lt.s32.totalorder %v7643, 0
        %v7753 = vand.u32 %v7643, 2139095040
        %v7754 = vshrl.u32 %v7753, 23
        %v7755 = vsub.s32 %v7754, 127
        %v7756 = vand.u32 2147483647, %v7643
        %v7757 = vand.u32 %v7756, 8388607
        %v7758 = vor.u32 %v7757, 8388608
        %v7759 = vsub.s32 0, %v7758
        %v7760 = vadd.s32 %v7755, 1
        %vm7761 = vcmp.gt.s32.totalorder %v7760, 0
        %v7762 = vsel %vm7761, %v7760, 0
        %v7763 = vshrl.u32 %v7762, 5
        %v7764 = vand.u32 %v7762, 31
        %v7765 = vsub.s32 32, %v7764
        %v7766 = vshrl.u32 683565275, %v7765
        %v7767 = vshll.u32 683565275, %v7764
        %v7768 = vshrl.u32 2475754826, %v7765
        %v7769 = vor.u32 %v7767, %v7768
        %v7770 = vshll.u32 2475754826, %v7764
        %v7771 = vshrl.u32 2131351028, %v7765
        %v7772 = vor.u32 %v7770, %v7771
        %v7773 = vshll.u32 2131351028, %v7764
        %v7774 = vshrl.u32 2102212464, %v7765
        %v7775 = vor.u32 %v7773, %v7774
        %v7776 = vshll.u32 2102212464, %v7764
        %v7777 = vshrl.u32 920167782, %v7765
        %v7778 = vor.u32 %v7776, %v7777
        %v7779 = vshll.u32 920167782, %v7764
        %v7780 = vshrl.u32 1326507024, %v7765
        %v7781 = vor.u32 %v7779, %v7780
        %vm7782 = vcmp.lt.s32.totalorder %v7763, 1
        %vm7783 = vcmp.lt.s32.totalorder %v7763, 2
        %vm7784 = vcmp.lt.s32.totalorder %v7763, 3
        %vm7785 = vcmp.lt.s32.totalorder %v7763, 4
        %v7786 = vsel %vm7782, %v7766, %v7769
        %v7787 = vsel %vm7785, %v7775, 2102212464
        %v7788 = vsel %vm7784, %v7772, %v7787
        %v7789 = vsel %vm7783, %v7786, %v7788
        %v7790 = vsel %vm7782, %v7769, %v7772
        %v7791 = vsel %vm7785, %v7778, 920167782
        %v7792 = vsel %vm7784, %v7775, %v7791
        %v7793 = vsel %vm7783, %v7790, %v7792
        %v7794 = vsel %vm7782, %v7772, %v7775
        %v7795 = vsel %vm7785, %v7781, 1326507024
        %v7796 = vsel %vm7784, %v7778, %v7795
        %v7797 = vsel %vm7783, %v7794, %v7796
        %v7798 = vshll.u32 %v7758, 8
        %v7799 = vmul.u32.u64.compose %v7798, %v7797
        %v7800 = vextract.low.u32 %v7799
        %v7801 = vextract.high.u32 %v7799
        %v7802 = vmul.u32.u64.compose %v7798, %v7793
        %v7803 = vextract.low.u32 %v7802
        %v7804 = vextract.high.u32 %v7802
        %v7805 = vmul.u32 %v7798, %v7789
        %v7806 = vadd.s32 %v7801, %v7803
        %vm7807 = vc.u32 %v7801, %v7803
        %v7808 = vadd.s32 %v7804, 1
        %v7809 = vsel %vm7807, %v7808, %v7804
        %v7810 = vadd.s32 %v7805, %v7809
        %v7811 = vadd.s32 %v7810, 536870912
        %v7812 = vshrl.u32 %v7811, 30
        %v7813 = vshll.u32 %v7812, 30
        %v7814 = vsub.s32 %v7810, %v7813
        %vm7815 = vcmp.lt.s32.totalorder %v7814, 0
        %v7816 = vsub.s32 0, %v7814
        %v7817 = vsel %vm7815, %v7816, %v7814
        %v7818 = vclz %v7817
        %v7819 = vsub.s32 %v7818, 2
        %vm7820 = vcmp.gt.s32.totalorder 0, %v7819
        %v7821 = vsel %vm7820, 0, %v7819
        %v7822 = vsub.s32 32, %v7821
        %v7823 = vshll.u32 %v7814, %v7821
        %v7824 = vshrl.u32 %v7806, %v7822
        %v7825 = vor.u32 %v7823, %v7824
        %v7826 = vsub.s32 4294967266, %v7821
        %v7827 = vadd.s32 %v7826, 127
        %v7828 = vshll.u32 %v7827, 23
        %v7829 = vor.u32 4788187, %v7828
        %v7830 = vand.u32 2147483647, %v7829
        %v7832 = vcvt.s32.f32 %v7825
        %v7833 = vmul.f32 %v7832, %v7830
        %v7834 = vxor.u32 %v7833, 2147483648
        %v7835 = vsel %vm7752, %v7834, %v7833
        %v7836 = vsub.s32 4, %v7812
        %v7837 = vsel %vm7752, %v7836, %v7812
        %v7838 = vsel %vm7751, %v7643, %v7835
        %v7839 = vsel %vm7751, 0, %v7837
        %v7840 = vcosq.f32.pop %v7838
        %v7841 = vsinq.f32.pop %v7838
        %vm7842 = vweird.f32 %v7643
        %v7843 = vadd.s32 %v7839, 3
        %v7844 = vand.u32 %v7843, 3
        %vm7845 = vcmp.lt.s32.totalorder %v7844, 2
        %vm7846 = vcmp.eq.s32.totalorder %v7844, 0
        %v7847 = vxor.u32 %v7841, 2147483648
        %v7848 = vsel %vm7846, %v7840, %v7847
        %vm7849 = vcmp.eq.s32.totalorder %v7844, 2
        %v7850 = vxor.u32 %v7840, 2147483648
        %v7851 = vsel %vm7849, %v7850, %v7841
        %v7852 = vsel %vm7845, %v7848, %v7851
        %v7853 = vsel %vm7842, nan, %v7852
        %v7854 = vrcp.pop %v7642
        %v7855 = vrcp.pop %v7643
        %v7856 = vmul.f32 %v7642, %v7854
        %v7857 = vmul.f32 %v7643, %v7855
        %v7858 = vsub.f32 2.0, %v7856
        %v7859 = vsub.f32 2.0, %v7857
        %v7860 = vmul.f32 %v7854, %v7858
        %v7861 = vmul.f32 %v7855, %v7859
        %vm7862 = vcmp.lt.f32.partialorder %v7644, 1e-06
        %vm7863 = vcmp.lt.f32.partialorder %v7645, 1e-06
        %v7864 = vmul.f32 %v7644, 0.16666667
        %v7865 = vmul.f32 %v7645, 0.16666667
        %v7866 = vsub.f32 1.0, %v7864
        %v7867 = vsub.f32 1.0, %v7865
        %v7868 = vmul.f32 %v7749, %v7860
        %v7869 = vmul.f32 %v7853, %v7861
        %v7870 = vsel %vm7862, %v7866, %v7868
        %v7871 = vsel %vm7863, %v7867, %v7869
        %v7872 = vmul.f32 %v7628, %v7870
        %v7873 = vmul.f32 %v7629, %v7871
        %7874 = vset.pattern.permute.xlu0 30
        %7875 = vperm.xlu0 %7874, %v288
        %v7876 = vpop.permute.xlu0 %7875
        %7878 = vset.pattern.permute.xlu0 30
        %7879 = vperm.xlu0 %7878, %v289
        %v7880 = vpop.permute.xlu0 %7879
        %v7882 = vlaneseq
        %v7883 = vshrl.u32 %v7882, 7
        %v7884 = vsub.s32 6, %v7883
        %v7885 = vrot.slane %v297, %v7884
        %v7886 = vsub.f32 %v7876, %v7885
        %v7887 = vsub.f32 %v7880, %v7885
        %v7888 = vmul.f32 %v7886, %v7886
        %v7889 = vmul.f32 %v7887, %v7887
        %v7890 = vand.u32 2147483647, %v7886
        %vm7891 = vcmp.le.f32.partialorder %v7890, 0.7853982
        %vm7892 = vcmp.lt.s32.totalorder %v7886, 0
        %v7893 = vand.u32 %v7886, 2139095040
        %v7894 = vshrl.u32 %v7893, 23
        %v7895 = vsub.s32 %v7894, 127
        %v7896 = vand.u32 2147483647, %v7886
        %v7897 = vand.u32 %v7896, 8388607
        %v7898 = vor.u32 %v7897, 8388608
        %v7899 = vsub.s32 0, %v7898
        %v7900 = vadd.s32 %v7895, 1
        %vm7901 = vcmp.gt.s32.totalorder %v7900, 0
        %v7902 = vsel %vm7901, %v7900, 0
        %v7903 = vshrl.u32 %v7902, 5
        %v7904 = vand.u32 %v7902, 31
        %v7905 = vsub.s32 32, %v7904
        %v7906 = vshrl.u32 683565275, %v7905
        %v7907 = vshll.u32 683565275, %v7904
        %v7908 = vshrl.u32 2475754826, %v7905
        %v7909 = vor.u32 %v7907, %v7908
        %v7910 = vshll.u32 2475754826, %v7904
        %v7911 = vshrl.u32 2131351028, %v7905
        %v7912 = vor.u32 %v7910, %v7911
        %v7913 = vshll.u32 2131351028, %v7904
        %v7914 = vshrl.u32 2102212464, %v7905
        %v7915 = vor.u32 %v7913, %v7914
        %v7916 = vshll.u32 2102212464, %v7904
        %v7917 = vshrl.u32 920167782, %v7905
        %v7918 = vor.u32 %v7916, %v7917
        %v7919 = vshll.u32 920167782, %v7904
        %v7920 = vshrl.u32 1326507024, %v7905
        %v7921 = vor.u32 %v7919, %v7920
        %vm7922 = vcmp.lt.s32.totalorder %v7903, 1
        %vm7923 = vcmp.lt.s32.totalorder %v7903, 2
        %vm7924 = vcmp.lt.s32.totalorder %v7903, 3
        %vm7925 = vcmp.lt.s32.totalorder %v7903, 4
        %v7926 = vsel %vm7922, %v7906, %v7909
        %v7927 = vsel %vm7925, %v7915, 2102212464
        %v7928 = vsel %vm7924, %v7912, %v7927
        %v7929 = vsel %vm7923, %v7926, %v7928
        %v7930 = vsel %vm7922, %v7909, %v7912
        %v7931 = vsel %vm7925, %v7918, 920167782
        %v7932 = vsel %vm7924, %v7915, %v7931
        %v7933 = vsel %vm7923, %v7930, %v7932
        %v7934 = vsel %vm7922, %v7912, %v7915
        %v7935 = vsel %vm7925, %v7921, 1326507024
        %v7936 = vsel %vm7924, %v7918, %v7935
        %v7937 = vsel %vm7923, %v7934, %v7936
        %v7938 = vshll.u32 %v7898, 8
        %v7939 = vmul.u32.u64.compose %v7938, %v7937
        %v7940 = vextract.low.u32 %v7939
        %v7941 = vextract.high.u32 %v7939
        %v7942 = vmul.u32.u64.compose %v7938, %v7933
        %v7943 = vextract.low.u32 %v7942
        %v7944 = vextract.high.u32 %v7942
        %v7945 = vmul.u32 %v7938, %v7929
        %v7946 = vadd.s32 %v7941, %v7943
        %vm7947 = vc.u32 %v7941, %v7943
        %v7948 = vadd.s32 %v7944, 1
        %v7949 = vsel %vm7947, %v7948, %v7944
        %v7950 = vadd.s32 %v7945, %v7949
        %v7951 = vadd.s32 %v7950, 536870912
        %v7952 = vshrl.u32 %v7951, 30
        %v7953 = vshll.u32 %v7952, 30
        %v7954 = vsub.s32 %v7950, %v7953
        %vm7955 = vcmp.lt.s32.totalorder %v7954, 0
        %v7956 = vsub.s32 0, %v7954
        %v7957 = vsel %vm7955, %v7956, %v7954
        %v7958 = vclz %v7957
        %v7959 = vsub.s32 %v7958, 2
        %vm7960 = vcmp.gt.s32.totalorder 0, %v7959
        %v7961 = vsel %vm7960, 0, %v7959
        %v7962 = vsub.s32 32, %v7961
        %v7963 = vshll.u32 %v7954, %v7961
        %v7964 = vshrl.u32 %v7946, %v7962
        %v7965 = vor.u32 %v7963, %v7964
        %v7966 = vsub.s32 4294967266, %v7961
        %v7967 = vadd.s32 %v7966, 127
        %v7968 = vshll.u32 %v7967, 23
        %v7969 = vor.u32 4788187, %v7968
        %v7970 = vand.u32 2147483647, %v7969
        %v7972 = vcvt.s32.f32 %v7965
        %v7973 = vmul.f32 %v7972, %v7970
        %v7974 = vxor.u32 %v7973, 2147483648
        %v7975 = vsel %vm7892, %v7974, %v7973
        %v7976 = vsub.s32 4, %v7952
        %v7977 = vsel %vm7892, %v7976, %v7952
        %v7978 = vsel %vm7891, %v7886, %v7975
        %v7979 = vsel %vm7891, 0, %v7977
        %v7980 = vcosq.f32.pop %v7978
        %v7981 = vsinq.f32.pop %v7978
        %vm7982 = vweird.f32 %v7886
        %v7983 = vadd.s32 %v7979, 3
        %v7984 = vand.u32 %v7983, 3
        %vm7985 = vcmp.lt.s32.totalorder %v7984, 2
        %vm7986 = vcmp.eq.s32.totalorder %v7984, 0
        %v7987 = vxor.u32 %v7981, 2147483648
        %v7988 = vsel %vm7986, %v7980, %v7987
        %vm7989 = vcmp.eq.s32.totalorder %v7984, 2
        %v7990 = vxor.u32 %v7980, 2147483648
        %v7991 = vsel %vm7989, %v7990, %v7981
        %v7992 = vsel %vm7985, %v7988, %v7991
        %v7993 = vsel %vm7982, nan, %v7992
        %v7994 = vand.u32 2147483647, %v7887
        %vm7995 = vcmp.le.f32.partialorder %v7994, 0.7853982
        %vm7996 = vcmp.lt.s32.totalorder %v7887, 0
        %v7997 = vand.u32 %v7887, 2139095040
        %v7998 = vshrl.u32 %v7997, 23
        %v7999 = vsub.s32 %v7998, 127
        %v8000 = vand.u32 2147483647, %v7887
        %v8001 = vand.u32 %v8000, 8388607
        %v8002 = vor.u32 %v8001, 8388608
        %v8003 = vsub.s32 0, %v8002
        %v8004 = vadd.s32 %v7999, 1
        %vm8005 = vcmp.gt.s32.totalorder %v8004, 0
        %v8006 = vsel %vm8005, %v8004, 0
        %v8007 = vshrl.u32 %v8006, 5
        %v8008 = vand.u32 %v8006, 31
        %v8009 = vsub.s32 32, %v8008
        %v8010 = vshrl.u32 683565275, %v8009
        %v8011 = vshll.u32 683565275, %v8008
        %v8012 = vshrl.u32 2475754826, %v8009
        %v8013 = vor.u32 %v8011, %v8012
        %v8014 = vshll.u32 2475754826, %v8008
        %v8015 = vshrl.u32 2131351028, %v8009
        %v8016 = vor.u32 %v8014, %v8015
        %v8017 = vshll.u32 2131351028, %v8008
        %v8018 = vshrl.u32 2102212464, %v8009
        %v8019 = vor.u32 %v8017, %v8018
        %v8020 = vshll.u32 2102212464, %v8008
        %v8021 = vshrl.u32 920167782, %v8009
        %v8022 = vor.u32 %v8020, %v8021
        %v8023 = vshll.u32 920167782, %v8008
        %v8024 = vshrl.u32 1326507024, %v8009
        %v8025 = vor.u32 %v8023, %v8024
        %vm8026 = vcmp.lt.s32.totalorder %v8007, 1
        %vm8027 = vcmp.lt.s32.totalorder %v8007, 2
        %vm8028 = vcmp.lt.s32.totalorder %v8007, 3
        %vm8029 = vcmp.lt.s32.totalorder %v8007, 4
        %v8030 = vsel %vm8026, %v8010, %v8013
        %v8031 = vsel %vm8029, %v8019, 2102212464
        %v8032 = vsel %vm8028, %v8016, %v8031
        %v8033 = vsel %vm8027, %v8030, %v8032
        %v8034 = vsel %vm8026, %v8013, %v8016
        %v8035 = vsel %vm8029, %v8022, 920167782
        %v8036 = vsel %vm8028, %v8019, %v8035
        %v8037 = vsel %vm8027, %v8034, %v8036
        %v8038 = vsel %vm8026, %v8016, %v8019
        %v8039 = vsel %vm8029, %v8025, 1326507024
        %v8040 = vsel %vm8028, %v8022, %v8039
        %v8041 = vsel %vm8027, %v8038, %v8040
        %v8042 = vshll.u32 %v8002, 8
        %v8043 = vmul.u32.u64.compose %v8042, %v8041
        %v8044 = vextract.low.u32 %v8043
        %v8045 = vextract.high.u32 %v8043
        %v8046 = vmul.u32.u64.compose %v8042, %v8037
        %v8047 = vextract.low.u32 %v8046
        %v8048 = vextract.high.u32 %v8046
        %v8049 = vmul.u32 %v8042, %v8033
        %v8050 = vadd.s32 %v8045, %v8047
        %vm8051 = vc.u32 %v8045, %v8047
        %v8052 = vadd.s32 %v8048, 1
        %v8053 = vsel %vm8051, %v8052, %v8048
        %v8054 = vadd.s32 %v8049, %v8053
        %v8055 = vadd.s32 %v8054, 536870912
        %v8056 = vshrl.u32 %v8055, 30
        %v8057 = vshll.u32 %v8056, 30
        %v8058 = vsub.s32 %v8054, %v8057
        %vm8059 = vcmp.lt.s32.totalorder %v8058, 0
        %v8060 = vsub.s32 0, %v8058
        %v8061 = vsel %vm8059, %v8060, %v8058
        %v8062 = vclz %v8061
        %v8063 = vsub.s32 %v8062, 2
        %vm8064 = vcmp.gt.s32.totalorder 0, %v8063
        %v8065 = vsel %vm8064, 0, %v8063
        %v8066 = vsub.s32 32, %v8065
        %v8067 = vshll.u32 %v8058, %v8065
        %v8068 = vshrl.u32 %v8050, %v8066
        %v8069 = vor.u32 %v8067, %v8068
        %v8070 = vsub.s32 4294967266, %v8065
        %v8071 = vadd.s32 %v8070, 127
        %v8072 = vshll.u32 %v8071, 23
        %v8073 = vor.u32 4788187, %v8072
        %v8074 = vand.u32 2147483647, %v8073
        %v8076 = vcvt.s32.f32 %v8069
        %v8077 = vmul.f32 %v8076, %v8074
        %v8078 = vxor.u32 %v8077, 2147483648
        %v8079 = vsel %vm7996, %v8078, %v8077
        %v8080 = vsub.s32 4, %v8056
        %v8081 = vsel %vm7996, %v8080, %v8056
        %v8082 = vsel %vm7995, %v7887, %v8079
        %v8083 = vsel %vm7995, 0, %v8081
        %v8084 = vcosq.f32.pop %v8082
        %v8085 = vsinq.f32.pop %v8082
        %vm8086 = vweird.f32 %v7887
        %v8087 = vadd.s32 %v8083, 3
        %v8088 = vand.u32 %v8087, 3
        %vm8089 = vcmp.lt.s32.totalorder %v8088, 2
        %vm8090 = vcmp.eq.s32.totalorder %v8088, 0
        %v8091 = vxor.u32 %v8085, 2147483648
        %v8092 = vsel %vm8090, %v8084, %v8091
        %vm8093 = vcmp.eq.s32.totalorder %v8088, 2
        %v8094 = vxor.u32 %v8084, 2147483648
        %v8095 = vsel %vm8093, %v8094, %v8085
        %v8096 = vsel %vm8089, %v8092, %v8095
        %v8097 = vsel %vm8086, nan, %v8096
        %v8098 = vrcp.pop %v7886
        %v8099 = vrcp.pop %v7887
        %v8100 = vmul.f32 %v7886, %v8098
        %v8101 = vmul.f32 %v7887, %v8099
        %v8102 = vsub.f32 2.0, %v8100
        %v8103 = vsub.f32 2.0, %v8101
        %v8104 = vmul.f32 %v8098, %v8102
        %v8105 = vmul.f32 %v8099, %v8103
        %vm8106 = vcmp.lt.f32.partialorder %v7888, 1e-06
        %vm8107 = vcmp.lt.f32.partialorder %v7889, 1e-06
        %v8108 = vmul.f32 %v7888, 0.16666667
        %v8109 = vmul.f32 %v7889, 0.16666667
        %v8110 = vsub.f32 1.0, %v8108
        %v8111 = vsub.f32 1.0, %v8109
        %v8112 = vmul.f32 %v7993, %v8104
        %v8113 = vmul.f32 %v8097, %v8105
        %v8114 = vsel %vm8106, %v8110, %v8112
        %v8115 = vsel %vm8107, %v8111, %v8113
        %v8116 = vmul.f32 %v7872, %v8114
        %v8117 = vmul.f32 %v7873, %v8115
        %8118 = vset.pattern.permute.xlu0 31
        %8119 = vperm.xlu0 %8118, %v288
        %v8120 = vpop.permute.xlu0 %8119
        %8122 = vset.pattern.permute.xlu0 31
        %8123 = vperm.xlu0 %8122, %v289
        %v8124 = vpop.permute.xlu0 %8123
        %v8126 = vlaneseq
        %v8127 = vshrl.u32 %v8126, 7
        %v8128 = vsub.s32 7, %v8127
        %v8129 = vrot.slane %v297, %v8128
        %v8130 = vsub.f32 %v8120, %v8129
        %v8131 = vsub.f32 %v8124, %v8129
        %v8132 = vmul.f32 %v8130, %v8130
        %v8133 = vmul.f32 %v8131, %v8131
        %v8134 = vand.u32 2147483647, %v8130
        %vm8135 = vcmp.le.f32.partialorder %v8134, 0.7853982
        %vm8136 = vcmp.lt.s32.totalorder %v8130, 0
        %v8137 = vand.u32 %v8130, 2139095040
        %v8138 = vshrl.u32 %v8137, 23
        %v8139 = vsub.s32 %v8138, 127
        %v8140 = vand.u32 2147483647, %v8130
        %v8141 = vand.u32 %v8140, 8388607
        %v8142 = vor.u32 %v8141, 8388608
        %v8143 = vsub.s32 0, %v8142
        %v8144 = vadd.s32 %v8139, 1
        %vm8145 = vcmp.gt.s32.totalorder %v8144, 0
        %v8146 = vsel %vm8145, %v8144, 0
        %v8147 = vshrl.u32 %v8146, 5
        %v8148 = vand.u32 %v8146, 31
        %v8149 = vsub.s32 32, %v8148
        %v8150 = vshrl.u32 683565275, %v8149
        %v8151 = vshll.u32 683565275, %v8148
        %v8152 = vshrl.u32 2475754826, %v8149
        %v8153 = vor.u32 %v8151, %v8152
        %v8154 = vshll.u32 2475754826, %v8148
        %v8155 = vshrl.u32 2131351028, %v8149
        %v8156 = vor.u32 %v8154, %v8155
        %v8157 = vshll.u32 2131351028, %v8148
        %v8158 = vshrl.u32 2102212464, %v8149
        %v8159 = vor.u32 %v8157, %v8158
        %v8160 = vshll.u32 2102212464, %v8148
        %v8161 = vshrl.u32 920167782, %v8149
        %v8162 = vor.u32 %v8160, %v8161
        %v8163 = vshll.u32 920167782, %v8148
        %v8164 = vshrl.u32 1326507024, %v8149
        %v8165 = vor.u32 %v8163, %v8164
        %vm8166 = vcmp.lt.s32.totalorder %v8147, 1
        %vm8167 = vcmp.lt.s32.totalorder %v8147, 2
        %vm8168 = vcmp.lt.s32.totalorder %v8147, 3
        %vm8169 = vcmp.lt.s32.totalorder %v8147, 4
        %v8170 = vsel %vm8166, %v8150, %v8153
        %v8171 = vsel %vm8169, %v8159, 2102212464
        %v8172 = vsel %vm8168, %v8156, %v8171
        %v8173 = vsel %vm8167, %v8170, %v8172
        %v8174 = vsel %vm8166, %v8153, %v8156
        %v8175 = vsel %vm8169, %v8162, 920167782
        %v8176 = vsel %vm8168, %v8159, %v8175
        %v8177 = vsel %vm8167, %v8174, %v8176
        %v8178 = vsel %vm8166, %v8156, %v8159
        %v8179 = vsel %vm8169, %v8165, 1326507024
        %v8180 = vsel %vm8168, %v8162, %v8179
        %v8181 = vsel %vm8167, %v8178, %v8180
        %v8182 = vshll.u32 %v8142, 8
        %v8183 = vmul.u32.u64.compose %v8182, %v8181
        %v8184 = vextract.low.u32 %v8183
        %v8185 = vextract.high.u32 %v8183
        %v8186 = vmul.u32.u64.compose %v8182, %v8177
        %v8187 = vextract.low.u32 %v8186
        %v8188 = vextract.high.u32 %v8186
        %v8189 = vmul.u32 %v8182, %v8173
        %v8190 = vadd.s32 %v8185, %v8187
        %vm8191 = vc.u32 %v8185, %v8187
        %v8192 = vadd.s32 %v8188, 1
        %v8193 = vsel %vm8191, %v8192, %v8188
        %v8194 = vadd.s32 %v8189, %v8193
        %v8195 = vadd.s32 %v8194, 536870912
        %v8196 = vshrl.u32 %v8195, 30
        %v8197 = vshll.u32 %v8196, 30
        %v8198 = vsub.s32 %v8194, %v8197
        %vm8199 = vcmp.lt.s32.totalorder %v8198, 0
        %v8200 = vsub.s32 0, %v8198
        %v8201 = vsel %vm8199, %v8200, %v8198
        %v8202 = vclz %v8201
        %v8203 = vsub.s32 %v8202, 2
        %vm8204 = vcmp.gt.s32.totalorder 0, %v8203
        %v8205 = vsel %vm8204, 0, %v8203
        %v8206 = vsub.s32 32, %v8205
        %v8207 = vshll.u32 %v8198, %v8205
        %v8208 = vshrl.u32 %v8190, %v8206
        %v8209 = vor.u32 %v8207, %v8208
        %v8210 = vsub.s32 4294967266, %v8205
        %v8211 = vadd.s32 %v8210, 127
        %v8212 = vshll.u32 %v8211, 23
        %v8213 = vor.u32 4788187, %v8212
        %v8214 = vand.u32 2147483647, %v8213
        %v8216 = vcvt.s32.f32 %v8209
        %v8217 = vmul.f32 %v8216, %v8214
        %v8218 = vxor.u32 %v8217, 2147483648
        %v8219 = vsel %vm8136, %v8218, %v8217
        %v8220 = vsub.s32 4, %v8196
        %v8221 = vsel %vm8136, %v8220, %v8196
        %v8222 = vsel %vm8135, %v8130, %v8219
        %v8223 = vsel %vm8135, 0, %v8221
        %v8224 = vcosq.f32.pop %v8222
        %v8225 = vsinq.f32.pop %v8222
        %vm8226 = vweird.f32 %v8130
        %v8227 = vadd.s32 %v8223, 3
        %v8228 = vand.u32 %v8227, 3
        %vm8229 = vcmp.lt.s32.totalorder %v8228, 2
        %vm8230 = vcmp.eq.s32.totalorder %v8228, 0
        %v8231 = vxor.u32 %v8225, 2147483648
        %v8232 = vsel %vm8230, %v8224, %v8231
        %vm8233 = vcmp.eq.s32.totalorder %v8228, 2
        %v8234 = vxor.u32 %v8224, 2147483648
        %v8235 = vsel %vm8233, %v8234, %v8225
        %v8236 = vsel %vm8229, %v8232, %v8235
        %v8237 = vsel %vm8226, nan, %v8236
        %v8238 = vand.u32 2147483647, %v8131
        %vm8239 = vcmp.le.f32.partialorder %v8238, 0.7853982
        %vm8240 = vcmp.lt.s32.totalorder %v8131, 0
        %v8241 = vand.u32 %v8131, 2139095040
        %v8242 = vshrl.u32 %v8241, 23
        %v8243 = vsub.s32 %v8242, 127
        %v8244 = vand.u32 2147483647, %v8131
        %v8245 = vand.u32 %v8244, 8388607
        %v8246 = vor.u32 %v8245, 8388608
        %v8247 = vsub.s32 0, %v8246
        %v8248 = vadd.s32 %v8243, 1
        %vm8249 = vcmp.gt.s32.totalorder %v8248, 0
        %v8250 = vsel %vm8249, %v8248, 0
        %v8251 = vshrl.u32 %v8250, 5
        %v8252 = vand.u32 %v8250, 31
        %v8253 = vsub.s32 32, %v8252
        %v8254 = vshrl.u32 683565275, %v8253
        %v8255 = vshll.u32 683565275, %v8252
        %v8256 = vshrl.u32 2475754826, %v8253
        %v8257 = vor.u32 %v8255, %v8256
        %v8258 = vshll.u32 2475754826, %v8252
        %v8259 = vshrl.u32 2131351028, %v8253
        %v8260 = vor.u32 %v8258, %v8259
        %v8261 = vshll.u32 2131351028, %v8252
        %v8262 = vshrl.u32 2102212464, %v8253
        %v8263 = vor.u32 %v8261, %v8262
        %v8264 = vshll.u32 2102212464, %v8252
        %v8265 = vshrl.u32 920167782, %v8253
        %v8266 = vor.u32 %v8264, %v8265
        %v8267 = vshll.u32 920167782, %v8252
        %v8268 = vshrl.u32 1326507024, %v8253
        %v8269 = vor.u32 %v8267, %v8268
        %vm8270 = vcmp.lt.s32.totalorder %v8251, 1
        %vm8271 = vcmp.lt.s32.totalorder %v8251, 2
        %vm8272 = vcmp.lt.s32.totalorder %v8251, 3
        %vm8273 = vcmp.lt.s32.totalorder %v8251, 4
        %v8274 = vsel %vm8270, %v8254, %v8257
        %v8275 = vsel %vm8273, %v8263, 2102212464
        %v8276 = vsel %vm8272, %v8260, %v8275
        %v8277 = vsel %vm8271, %v8274, %v8276
        %v8278 = vsel %vm8270, %v8257, %v8260
        %v8279 = vsel %vm8273, %v8266, 920167782
        %v8280 = vsel %vm8272, %v8263, %v8279
        %v8281 = vsel %vm8271, %v8278, %v8280
        %v8282 = vsel %vm8270, %v8260, %v8263
        %v8283 = vsel %vm8273, %v8269, 1326507024
        %v8284 = vsel %vm8272, %v8266, %v8283
        %v8285 = vsel %vm8271, %v8282, %v8284
        %v8286 = vshll.u32 %v8246, 8
        %v8287 = vmul.u32.u64.compose %v8286, %v8285
        %v8288 = vextract.low.u32 %v8287
        %v8289 = vextract.high.u32 %v8287
        %v8290 = vmul.u32.u64.compose %v8286, %v8281
        %v8291 = vextract.low.u32 %v8290
        %v8292 = vextract.high.u32 %v8290
        %v8293 = vmul.u32 %v8286, %v8277
        %v8294 = vadd.s32 %v8289, %v8291
        %vm8295 = vc.u32 %v8289, %v8291
        %v8296 = vadd.s32 %v8292, 1
        %v8297 = vsel %vm8295, %v8296, %v8292
        %v8298 = vadd.s32 %v8293, %v8297
        %v8299 = vadd.s32 %v8298, 536870912
        %v8300 = vshrl.u32 %v8299, 30
        %v8301 = vshll.u32 %v8300, 30
        %v8302 = vsub.s32 %v8298, %v8301
        %vm8303 = vcmp.lt.s32.totalorder %v8302, 0
        %v8304 = vsub.s32 0, %v8302
        %v8305 = vsel %vm8303, %v8304, %v8302
        %v8306 = vclz %v8305
        %v8307 = vsub.s32 %v8306, 2
        %vm8308 = vcmp.gt.s32.totalorder 0, %v8307
        %v8309 = vsel %vm8308, 0, %v8307
        %v8310 = vsub.s32 32, %v8309
        %v8311 = vshll.u32 %v8302, %v8309
        %v8312 = vshrl.u32 %v8294, %v8310
        %v8313 = vor.u32 %v8311, %v8312
        %v8314 = vsub.s32 4294967266, %v8309
        %v8315 = vadd.s32 %v8314, 127
        %v8316 = vshll.u32 %v8315, 23
        %v8317 = vor.u32 4788187, %v8316
        %v8318 = vand.u32 2147483647, %v8317
        %v8320 = vcvt.s32.f32 %v8313
        %v8321 = vmul.f32 %v8320, %v8318
        %v8322 = vxor.u32 %v8321, 2147483648
        %v8323 = vsel %vm8240, %v8322, %v8321
        %v8324 = vsub.s32 4, %v8300
        %v8325 = vsel %vm8240, %v8324, %v8300
        %v8326 = vsel %vm8239, %v8131, %v8323
        %v8327 = vsel %vm8239, 0, %v8325
        %v8328 = vcosq.f32.pop %v8326
        %v8329 = vsinq.f32.pop %v8326
        %vm8330 = vweird.f32 %v8131
        %v8331 = vadd.s32 %v8327, 3
        %v8332 = vand.u32 %v8331, 3
        %vm8333 = vcmp.lt.s32.totalorder %v8332, 2
        %vm8334 = vcmp.eq.s32.totalorder %v8332, 0
        %v8335 = vxor.u32 %v8329, 2147483648
        %v8336 = vsel %vm8334, %v8328, %v8335
        %vm8337 = vcmp.eq.s32.totalorder %v8332, 2
        %v8338 = vxor.u32 %v8328, 2147483648
        %v8339 = vsel %vm8337, %v8338, %v8329
        %v8340 = vsel %vm8333, %v8336, %v8339
        %v8341 = vsel %vm8330, nan, %v8340
        %v8342 = vrcp.pop %v8130
        %v8343 = vrcp.pop %v8131
        %v8344 = vmul.f32 %v8130, %v8342
        %v8345 = vmul.f32 %v8131, %v8343
        %v8346 = vsub.f32 2.0, %v8344
        %v8347 = vsub.f32 2.0, %v8345
        %v8348 = vmul.f32 %v8342, %v8346
        %v8349 = vmul.f32 %v8343, %v8347
        %vm8350 = vcmp.lt.f32.partialorder %v8132, 1e-06
        %vm8351 = vcmp.lt.f32.partialorder %v8133, 1e-06
        %v8352 = vmul.f32 %v8132, 0.16666667
        %v8353 = vmul.f32 %v8133, 0.16666667
        %v8354 = vsub.f32 1.0, %v8352
        %v8355 = vsub.f32 1.0, %v8353
        %v8356 = vmul.f32 %v8237, %v8348
        %v8357 = vmul.f32 %v8341, %v8349
        %v8358 = vsel %vm8350, %v8354, %v8356
        %v8359 = vsel %vm8351, %v8355, %v8357
        %v8360 = vmul.f32 %v8116, %v8358
        %v8361 = vmul.f32 %v8117, %v8359
        %v8362 = vmul.f32 %v8360, %v8360
        %v8363 = vmul.f32 %v8361, %v8361
        %v8364 = vmul.f32 %v8362, %v8362
        %v8365 = vmul.f32 %v8363, %v8363
        %v8366 = vsel %vm319, %v8364, 0.0
        %v8367 = vsel %vm319, %v8365, 0.0
        %v8368 = vpack.c.bf16 %v8367, %v8366
        %8369 = vrot.lane.b32.xlu0 %v2311, 101
        %v8370 = vpop.permute.xlu0 %8369
        %8371 = vrot.lane.b32.xlu0 %v2312, 101
        %v8372 = vpop.permute.xlu0 %8371
        %8373 = vrot.lane.b32.xlu0 %v2313, 101
        %v8374 = vpop.permute.xlu0 %8373
        %8375 = vrot.lane.b32.xlu0 %v2314, 101
        %v8376 = vpop.permute.xlu0 %8375
        %8377 = vrot.lane.b32.xlu0 %v2315, 101
        %v8378 = vpop.permute.xlu0 %8377
        %8379 = vrot.lane.b32.xlu0 %v2316, 101
        %v8380 = vpop.permute.xlu0 %8379
        %8381 = vrot.lane.b32.xlu0 %v2317, 101
        %v8382 = vpop.permute.xlu0 %8381
        %8383 = vrot.lane.b32.xlu0 %v2318, 101
        %v8384 = vpop.permute.xlu0 %8383
        %8393 = vmatprep.subr.bf16.mxu0 0
        %8394 = vmatpush1.bf16.msra.mxu0 %v8370
        %8395 = vmatprep.subr.bf16.mxu0 0
        %8396 = vmatpush1.bf16.msra.mxu0 %v8372
        %8397 = vmatprep.subr.bf16.mxu0 0
        %8398 = vmatpush1.bf16.msra.mxu0 %v8374
        %8399 = vmatprep.subr.bf16.mxu0 0
        %8400 = vmatpush1.bf16.msra.mxu0 %v8376
        %8401 = vmatprep.subr.bf16.mxu0 0
        %8402 = vmatpush1.bf16.msra.mxu0 %v8378
        %8403 = vmatprep.subr.bf16.mxu0 0
        %8404 = vmatpush1.bf16.msra.mxu0 %v8380
        %8405 = vmatprep.subr.bf16.mxu0 0
        %8406 = vmatpush1.bf16.msra.mxu0 %v8382
        %8407 = vmatprep.subr.bf16.mxu0 0
        %8408 = vmatpush1.bf16.msra.mxu0 %v8384
        %8409 = vmatprep.subr.bf16.mxu0 0
        %8410 = vmatpush1.bf16.msra.mxu0 0
        %8411 = vmatprep.subr.bf16.mxu0 0
        %8412 = vmatpush1.bf16.msra.mxu0 0
        %8413 = vmatprep.subr.bf16.mxu0 0
        %8414 = vmatpush1.bf16.msra.mxu0 0
        %8415 = vmatprep.subr.bf16.mxu0 0
        %8416 = vmatpush1.bf16.msra.mxu0 0
        %8417 = vmatprep.subr.bf16.mxu0 0
        %8418 = vmatpush1.bf16.msra.mxu0 0
        %8419 = vmatprep.subr.bf16.mxu0 0
        %8420 = vmatpush1.bf16.msra.mxu0 0
        %8421 = vmatprep.subr.bf16.mxu0 0
        %8422 = vmatpush1.bf16.msra.mxu0 0
        %8423 = vmatprep.subr.bf16.mxu0 0
        %8424 = vmatpush1.bf16.msra.mxu0 0
        %8425 = vmatprep.mubr.bf16.mxu0 0
        %8426 = vmatmul.mubr.bf16.gmra.mrb[0].mxu0 %v8368
        %v8427 = vpop.f32.mrb[0].mxu0
        %v8428 = vadd.f32 0.0, %v8427
        %v8429 = vpop.f32.mrb[0].mxu0
        %v8430 = vpop.f32.mrb[0].mxu0
        %v8431 = vadd.f32 0.0, %v8430
        %v8432 = vpop.f32.mrb[0].mxu0
        %8433 = vdwg.mxu0
        %v8434 = vld [vmem:[#allocation2] sm:$0xff]
        %v8435 = vld [vmem:[#allocation2 + $0x8] sm:$0xff]
        %8438 = vrot.lane.b32.xlu0 %v4384, 9
        %v8439 = vpop.permute.xlu0 %8438
        %8440 = vrot.lane.b32.xlu0 %v4387, 9
        %v8441 = vpop.permute.xlu0 %8440
        %8446 = vrot.lane.b32.xlu0 %v6406, 18
        %v8447 = vpop.permute.xlu0 %8446
        %8448 = vrot.lane.b32.xlu0 %v6409, 18
        %v8449 = vpop.permute.xlu0 %8448
        %8454 = vrot.lane.b32.xlu0 %v8428, 27
        %v8455 = vpop.permute.xlu0 %8454
        %8456 = vrot.lane.b32.xlu0 %v8431, 27
        %v8457 = vpop.permute.xlu0 %8456
        %vm8460 = vcmask 72704
        %v8461 = vsel %vm8460, %v2362, %v8439
        %v8462 = vsel %vm8460, %v2365, %v8441
        %vm8463 = vcmask 146432
        %v8464 = vsel %vm8463, %v8461, %v8447
        %v8465 = vsel %vm8463, %v8462, %v8449
        %vm8466 = vcmask 220160
        %v8467 = vsel %vm8466, %v8464, %v8455
        %v8468 = vsel %vm8466, %v8465, %v8457
        %v8469 = vadd.f32 %v8434, %v8467
        %v8470 = vadd.f32 %v8435, %v8468
        %vm8471 = vcmask 293888
        %8472 = vst.msk [vmem:[#allocation2] sm:$0xff] %vm8471, %v8469
        %8473 = vst.msk [vmem:[#allocation2 + $0x8] sm:$0xff] %vm8471, %v8470
        // Predicated region
        $region37: #{tpu_custom_call.1} parent=31 // pred_check
          %p8474 = pneg %p277
        $region38: #{tpu_custom_call.1} parent=31 // pred_check_branch
          %8476 = sbr.rel (%p8474) target = $region40
        $region39: #{tpu_custom_call.1} parent=31 // pred_region
          %v8477 = vld [vmem:[#allocation2] sm:$0xff]
          %v8478 = vld [vmem:[#allocation2 + $0x8] sm:$0xff]
          %v8479 = vadd.f32 %v8477, 1e-06
          %v8480 = vadd.f32 %v8478, 1e-06
          %8482 = vset.pattern.permute.xlu0 8
          %8483 = vperm.xlu0 %8482, %v8479
          %v8484 = vpop.permute.xlu0 %8483
          %8487 = vset.pattern.permute.xlu0 8
          %8488 = vperm.xlu0 %8487, %v8480
          %v8489 = vpop.permute.xlu0 %8488
          %v8491 = vrcp.pop %v8484
          %v8492 = vmul.f32 %v8477, %v8491
          %v8493 = vrcp.pop %v8489
          %v8494 = vmul.f32 %v8478, %v8493
          %8495 = vset.pattern.permute.xlu0 17
          %8496 = vperm.xlu0 %8495, %v8479
          %v8497 = vpop.permute.xlu0 %8496
          %8499 = vset.pattern.permute.xlu0 17
          %8500 = vperm.xlu0 %8499, %v8480
          %v8501 = vpop.permute.xlu0 %8500
          %v8503 = vrcp.pop %v8497
          %v8504 = vmul.f32 %v8477, %v8503
          %v8505 = vrcp.pop %v8501
          %v8506 = vmul.f32 %v8478, %v8505
          %8507 = vset.pattern.permute.xlu0 26
          %8508 = vperm.xlu0 %8507, %v8479
          %v8509 = vpop.permute.xlu0 %8508
          %8511 = vset.pattern.permute.xlu0 26
          %8512 = vperm.xlu0 %8511, %v8480
          %v8513 = vpop.permute.xlu0 %8512
          %v8515 = vrcp.pop %v8509
          %v8516 = vmul.f32 %v8477, %v8515
          %v8517 = vrcp.pop %v8513
          %v8518 = vmul.f32 %v8478, %v8517
          %8519 = vset.pattern.permute.xlu0 35
          %8520 = vperm.xlu0 %8519, %v8479
          %v8521 = vpop.permute.xlu0 %8520
          %8523 = vset.pattern.permute.xlu0 35
          %8524 = vperm.xlu0 %8523, %v8480
          %v8525 = vpop.permute.xlu0 %8524
          %v8527 = vrcp.pop %v8521
          %v8528 = vmul.f32 %v8477, %v8527
          %v8529 = vrcp.pop %v8525
          %v8530 = vmul.f32 %v8478, %v8529
          %8533 = vrot.lane.b32.xlu0 %v8504, 127
          %v8534 = vpop.permute.xlu0 %8533
          %8535 = vrot.lane.b32.xlu0 %v8506, 127
          %v8536 = vpop.permute.xlu0 %8535
          %8541 = vrot.lane.b32.xlu0 %v8516, 126
          %v8542 = vpop.permute.xlu0 %8541
          %8543 = vrot.lane.b32.xlu0 %v8518, 126
          %v8544 = vpop.permute.xlu0 %8543
          %8549 = vrot.lane.b32.xlu0 %v8528, 125
          %v8550 = vpop.permute.xlu0 %8549
          %8551 = vrot.lane.b32.xlu0 %v8530, 125
          %v8552 = vpop.permute.xlu0 %8551
          %vm8555 = vcmask 64512
          %v8556 = vsel %vm8555, %v8492, %v8534
          %v8557 = vsel %vm8555, %v8494, %v8536
          %vm8558 = vcmask 130048
          %v8559 = vsel %vm8558, %v8556, %v8542
          %v8560 = vsel %vm8558, %v8557, %v8544
          %vm8561 = vcmask 195584
          %v8562 = vsel %vm8561, %v8559, %v8550
          %v8563 = vsel %vm8561, %v8560, %v8552
          %vm8564 = vcmask 261120
          %8565 = vst.msk [vmem:[%s246] sm:$0xff] %vm8564, %v8562
          %8566 = vst.msk [vmem:[%s246 + $0x8] sm:$0xff] %vm8564, %v8563
        $region40: #{tpu_custom_call.1} parent=31 // pred_fallthru
          _
        %s8567 = sand.u32 %s132, 1
        %s8568 = scalar_lea.sflag [#allocation6], %s8567
        %s8569 = sand.u32 %s132, 1
        %s8570 = smul.addr %s8569, 16
        %s8571 = scalar_lea.vmem [#allocation5], %s8570
        // Predicated region
        $region41: #{tpu_custom_call.1} parent=31 // pred_check
          %p8572 = pneg %p142
        $region42: #{tpu_custom_call.1} parent=31 // pred_check_branch
          %8574 = sbr.rel (%p8572) target = $region44
        $region43: #{tpu_custom_call.1} parent=31 // pred_region
          %s8575 = smul.u32 2, %s25
          %s8577 = ssub.s32 256, 256
          %8578 = vsyncadd %s8568, %s8577
          %s8579 = smul.addr %s24, 2
          %s8580 = sadd.s32 %s8575, %s8579
          %s8581 = smul.addr %s8580, 128
          %s8582 = scalar_lea.hbm %s4, %s8581
          %s8583 = sshll.u32 %s8571, 4
          %s8584 = int_to_ptr.vmem [resolvable:$true] %s8583
          %8589 = dma.vmem_to_hbm [thread:$0]  %s8584, 256, %s8582, %s8568, 128, 128, 8
        $region44: #{tpu_custom_call.1} parent=31 // pred_fallthru
          _
      $region32: #{tpu_custom_call.1} parent=5 // pred_fallthru
        _
      %p8590 = scmp.le.s32.totalorder 2, %s14
      // Predicated region
      $region45: #{tpu_custom_call.1} parent=5 // pred_check
        %p8591 = pneg %p8590
      $region46: #{tpu_custom_call.1} parent=5 // pred_check_branch
        %8593 = sbr.rel (%p8591) target = $region48
      $region47: #{tpu_custom_call.1} parent=5 // pred_region
        %s8594 = ssub.s32 %s14, 2
        // Predicated region
        $region49: #{tpu_custom_call.1} parent=47 // pred_check
          %p8595 = pneg %p148
        $region50: #{tpu_custom_call.1} parent=47 // pred_check_branch
          %8597 = sbr.rel (%p8595) target = $region52
        $region51: #{tpu_custom_call.1} parent=47 // pred_region
          %s8598 = sand.u32 %s133, 1
          %s8599 = scalar_lea.sflag [#allocation6], %s8598
          %s8600 = sand.u32 %s133, 1
          %s8601 = smul.addr %s8600, 16
          %s8602 = scalar_lea.vmem [#allocation5], %s8601
          %8603 = dma.done %s8599, 256
        $region52: #{tpu_custom_call.1} parent=47 // pred_fallthru
          _
      $region48: #{tpu_custom_call.1} parent=5 // pred_fallthru
        _
    $region6: #{tpu_custom_call.1} parent=1 // loop_footer
      %s18 = sadd.s32 1, %s14
    $region7: #{tpu_custom_call.1} parent=1 // loop_footer_branch
      %13 = sbr.rel target = $region3
    $region8: #{tpu_custom_call.1} parent=1 // loop_exit
      _
    %8604 = vsyncpa [#allocation6], 1
    %s8605 = scalar_lea.sflag [#allocation6], 1
    %8606 = vsyncpa %s8605, 1

</llo_original>
